<compile_context>
chip_gen: v6e
topology: v6e:2x2x1
jax: 0.10.0
libtpu: 0.0.40
codegen_flags: <defaults>
</compile_context>

<pallas_src>
import functools

import jax
import jax.numpy as jnp
from jax import lax
from jax.experimental import pallas as pl
from jax.experimental.pallas import tpu as pltpu


def _round_up(x, m):
    return ((x + m - 1) // m) * m


# ConvTranspose2d(k=4, s=2, p=1) tap table, indexed by output-row parity py.
# For output row 2r+py the contributing rows of the 1-padded input (offset oy)
# and the kernel-row index ky they use are:
#   py=0: (oy=1, ky=1), (oy=0, ky=3)      py=1: (oy=2, ky=0), (oy=1, ky=2)
# The same relation holds per column:  kx = px + 3 - 2*ox  (invalid kx -> 0).
_DECONV_Y_TAPS = (((1, 1), (0, 3)), ((2, 0), (1, 2)))  # ((oy, ky), (oy, ky)) per py


# ----------------------------------------------------------------------------
# Fused per-layer kernel: Conv3x3+ReLU -> ConvTranspose4x4/s2+ReLU
# ----------------------------------------------------------------------------
def _layer_kernel(x_ref, w1_ref, b1_ref, w2_ref, b2_ref, o_ref,
                  pad1_ref, pad2_ref, *, H, W, C, Cp, Cout):
    cdt = pad1_ref.dtype  # compute dtype (bf16 by default)

    def zero_border(ref):
        # Only the 1-px halo (plus lane-pad channels when C < Cp) needs zeros;
        # the (H, W, :C) interior is fully rewritten every grid step.
        ref[0:1, :, :] = jnp.zeros((1, W + 2, Cp), cdt)
        ref[H + 1:H + 2, :, :] = jnp.zeros((1, W + 2, Cp), cdt)
        ref[:, 0:1, :] = jnp.zeros((H + 2, 1, Cp), cdt)
        ref[:, W + 1:W + 2, :] = jnp.zeros((H + 2, 1, Cp), cdt)
        if Cp > C:
            ref[1:H + 1, 1:W + 1, C:] = jnp.zeros((H, W, Cp - C), cdt)

    # -- Zero-pad the input into VMEM scratch (replaces a jnp.pad HBM pass). --
    zero_border(pad1_ref)
    pad1_ref[1:H + 1, 1:W + 1, :C] = x_ref[0].astype(cdt)

    def im2col(src_ref, offsets):
        # Pack |offsets| shifted (H, W, Cp) slabs along K (lane-aligned: Cp%128==0).
        slabs = [src_ref[oy:oy + H, ox:ox + W, :] for (oy, ox) in offsets]
        return jnp.concatenate(slabs, axis=-1).reshape(H * W, len(offsets) * Cp)

    # -- Conv2d(C, C, 3, padding=1) + ReLU: one K-packed MXU matmul. --
    conv_offs = [(dy, dx) for dy in range(3) for dx in range(3)]
    mid = jnp.dot(im2col(pad1_ref, conv_offs), w1_ref[...],
                  preferred_element_type=jnp.float32)
    mid = jnp.maximum(mid + b1_ref[...], 0.0)                       # (H*W, C) f32

    # -- Re-pad the conv output in VMEM (conv->deconv fused, no HBM round trip). --
    zero_border(pad2_ref)
    pad2_ref[1:H + 1, 1:W + 1, :C] = mid.reshape(H, W, C).astype(cdt)

    # -- ConvTranspose2d(C, Cout, 4, stride=2, padding=1) + ReLU. --
    # One K-packed matmul per output-row parity py; both output-column parities
    # px are produced together as 2*Cout lanes, so the store is already
    # interleaved in the (N, H, 2, W, 2*Cout) == NHWC-(N, 2H, 2W, Cout) layout.
    b2 = b2_ref[...]
    for py in range(2):
        offs = [(oy, ox) for (oy, _) in _DECONV_Y_TAPS[py] for ox in range(3)]
        r = jnp.dot(im2col(pad2_ref, offs), w2_ref[py],
                    preferred_element_type=jnp.float32)
        r = jnp.maximum(r + b2, 0.0)                                # (H*W, 2*Cout)
        o_ref[0, :, py, :, :] = r.reshape(H, W, 2 * Cout).astype(o_ref.dtype)


def upsample_layer(x_nhwc, w1p, b1r, w2p, b2r, *, compute_dtype=jnp.bfloat16,
                   vmem_limit_bytes=None):
    """One fused Conv3x3+ReLU -> ConvTranspose4x4/s2+ReLU layer (NHWC in/out)."""
    N, H, W, C = x_nhwc.shape
    Cp = w1p.shape[0] // 9
    Cout = w2p.shape[-1] // 2
    kernel = functools.partial(_layer_kernel, H=H, W=W, C=C, Cp=Cp, Cout=Cout)
    y = pl.pallas_call(
        kernel,
        out_shape=jax.ShapeDtypeStruct((N, H, 2, W, 2 * Cout), x_nhwc.dtype),
        grid=(N,),
        in_specs=[
            pl.BlockSpec((1, H, W, C), lambda n: (n, 0, 0, 0)),
            pl.BlockSpec((9 * Cp, C), lambda n: (0, 0)),
            pl.BlockSpec((1, C), lambda n: (0, 0)),
            pl.BlockSpec((2, 6 * Cp, 2 * Cout), lambda n: (0, 0, 0)),
            pl.BlockSpec((1, 2 * Cout), lambda n: (0, 0)),
        ],
        out_specs=pl.BlockSpec((1, H, 2, W, 2 * Cout), lambda n: (n, 0, 0, 0, 0)),
        scratch_shapes=[
            pltpu.VMEM((H + 2, W + 2, Cp), compute_dtype),   # padded input
            pltpu.VMEM((H + 2, W + 2, Cp), compute_dtype),   # padded conv output
        ],
        compiler_params=pltpu.CompilerParams(
            dimension_semantics=("parallel",),
            vmem_limit_bytes=vmem_limit_bytes,
        ),
    )(x_nhwc, w1p, b1r, w2p, b2r)
    # (N, H, 2, W, 2*Cout) is row-major-identical to NHWC (N, 2H, 2W, Cout):
    # the parity interleave is a pure view (no extra HBM pass).
    return y.reshape(N, 2 * H, 2 * W, Cout)


# ----------------------------------------------------------------------------
# One-time weight repacking (hoisted out of the forward pass)
# ----------------------------------------------------------------------------
def _pack_layer_params(w1, b1, w2, b2, compute_dtype):
    """Repack PyTorch-layout layer params into the kernel's K-packed form."""
    ch = w1.shape[1]                 # Conv2d weight: (Cout=ch, Cin=ch, 3, 3)
    cout = w2.shape[1]               # ConvTranspose2d weight: (Cin=ch, Cout, 4, 4)
    cp = _round_up(ch, 128)          # lane-aligned in-kernel channel width

    # Conv2d: (Cout,Cin,3,3) -> HWIO (3,3,Cin,Cout) -> tap-major (9*Cp, ch).
    w1h = jnp.transpose(w1, (2, 3, 1, 0))
    w1h = jnp.pad(w1h, ((0, 0), (0, 0), (0, cp - ch), (0, 0)))
    w1p = w1h.reshape(9 * cp, ch).astype(compute_dtype)
    b1r = b1.reshape(1, ch).astype(jnp.float32)

    # ConvTranspose2d: (Cin,Cout,4,4) -> HWIO (4,4,Cin,Cout); per output-row
    # parity py build (6*Cp, 2*Cout) whose K blocks follow the kernel's im2col
    # order (y-tap major, x-offset ox=0..2 minor) and whose two Cout-wide column
    # groups are the px=0 / px=1 output-column parities.
    w2h = jnp.transpose(w2, (2, 3, 0, 1))
    w2h = jnp.pad(w2h, ((0, 0), (0, 0), (0, cp - ch), (0, 0)))      # (4,4,Cp,Cout)
    zero = jnp.zeros((cp, cout), w2h.dtype)

    def xtap(ky, ox, px):
        kx = px + 3 - 2 * ox
        return w2h[ky, kx] if 0 <= kx < 4 else zero

    planes = []
    for py in range(2):
        blocks = [jnp.concatenate([xtap(ky, ox, 0), xtap(ky, ox, 1)], axis=-1)
                  for (_, ky) in _DECONV_Y_TAPS[py] for ox in range(3)]
        planes.append(jnp.concatenate(blocks, axis=0))               # (6*Cp, 2*Cout)
    w2p = jnp.stack(planes, axis=0).astype(compute_dtype)            # (2, 6*Cp, 2*Cout)
    b2r = jnp.concatenate([b2, b2]).reshape(1, 2 * cout).astype(jnp.float32)
    return w1p, b1r, w2p, b2r


# ----------------------------------------------------------------------------
# Upsample module (mirrors the PyTorch __init__ / forward)
# ----------------------------------------------------------------------------
class UpsamplePallas:
    def __init__(self, backbone_channels, key, compute_dtype=jnp.bfloat16):
        self.in_channels = backbone_channels
        out_channels = backbone_channels[0][1]
        self.out_channels = [(1, out_channels)] + backbone_channels
        self.compute_dtype = compute_dtype

        self.layers = []          # raw PyTorch-layout params (used by the reference)
        self.packed_layers = []   # kernel-ready packed params (prepared once)
        depth, ch = backbone_channels[0]
        while depth > 1:
            next_ch = max(ch // 2, out_channels)
            key, k1, k2, k3, k4 = jax.random.split(key, 5)
            # Conv2d(ch, ch, 3, padding=1): PyTorch weight layout (Cout, Cin, 3, 3)
            w1 = jax.random.normal(k1, (ch, ch, 3, 3), jnp.float32) * 0.1
            b1 = jax.random.normal(k2, (ch,), jnp.float32) * 0.1
            # ConvTranspose2d(ch, next_ch, 4, stride=2, padding=1): (Cin, Cout, 4, 4)
            w2 = jax.random.normal(k3, (ch, next_ch, 4, 4), jnp.float32) * 0.1
            b2 = jax.random.normal(k4, (next_ch,), jnp.float32) * 0.1
            self.layers.append((w1, b1, w2, b2))
            self.packed_layers.append(
                _pack_layer_params(w1, b1, w2, b2, compute_dtype))
            ch = next_ch
            depth /= 2

        packed = tuple(self.packed_layers)
        cdt = compute_dtype

        def _forward(x0):
            # NCHW -> NHWC once at the model boundary; whole chain under one jit.
            h = jnp.transpose(x0, (0, 2, 3, 1)).astype(cdt)
            for params in packed:
                h = upsample_layer(h, *params, compute_dtype=cdt)
            return jnp.transpose(h, (0, 3, 1, 2)).astype(x0.dtype)

        self._forward = jax.jit(_forward)

    def __call__(self, x):
        # x: list of NCHW arrays (PyTorch convention); returns [output] + x
        return [self._forward(x[0])] + x


# ----------------------------------------------------------------------------
# Pure-JAX f32 reference (for correctness check only)
# ----------------------------------------------------------------------------
def _reference(x_list, layers):
    h = jnp.transpose(x_list[0], (0, 2, 3, 1))
    for (w1, b1, w2, b2) in layers:
        w1_hwio = jnp.transpose(w1, (2, 3, 1, 0))
        h = lax.conv_general_dilated(h, w1_hwio, (1, 1), ((1, 1), (1, 1)),
                                     dimension_numbers=("NHWC", "HWIO", "NHWC"))
        h = jax.nn.relu(h + b1)
        # ConvTranspose(k=4,s=2,p=1) == lhs-dilated conv with flipped kernel, pad 2
        w2_hwio = jnp.transpose(w2, (2, 3, 0, 1))[::-1, ::-1]
        h = lax.conv_general_dilated(h, w2_hwio, (1, 1), ((2, 2), (2, 2)),
                                     lhs_dilation=(2, 2),
                                     dimension_numbers=("NHWC", "HWIO", "NHWC"))
        h = jax.nn.relu(h + b2)
    return jnp.transpose(h, (0, 3, 1, 2))


if __name__ == "__main__":
    key = jax.random.PRNGKey(0)
    # backbone_channels[0] = (depth=4, ch=8) -> two Conv+ConvTranspose layers.
    backbone_channels = [(4, 8), (8, 16)]
    k_params, k0, k1 = jax.random.split(key, 3)
    model = UpsamplePallas(backbone_channels, k_params)

    x0 = jax.random.normal(k0, (2, 8, 8, 8), jnp.float32)    # NCHW
    x1 = jax.random.normal(k1, (2, 16, 4, 4), jnp.float32)   # NCHW (passed through)
    x = [x0, x1]

    out = model(x)
    out = [jax.block_until_ready(o) for o in out]

    assert len(out) == 3
    assert out[0].shape == (2, 8, 32, 32), out[0].shape   # 8x8 upsampled 2x per layer
    assert out[0].dtype == jnp.float32
    assert out[1].shape == x0.shape and out[2].shape == x1.shape

    ref0 = jax.block_until_ready(_reference(x, model.layers))
    err = float(jnp.max(jnp.abs(out[0] - ref0)))
    scale = float(jnp.max(jnp.abs(ref0))) + 1e-6
    # bf16 MXU inputs with f32 accumulation -> slightly looser tolerance than f32.
    assert err <= 2e-2 * scale + 5e-3, f"mismatch: max|diff|={err}, scale={scale}"

    print("KERNEL_OK")
</pallas_src>

<mosaic_0001>
module attributes {stable_mosaic.version = 11 : i64} {
  func.func @_layer_kernel(%arg0: i32, %arg1: memref<1x8x8x8xbf16, #tpu.memory_space<vmem>>, %arg2: memref<1152x8xbf16, #tpu.memory_space<vmem>>, %arg3: memref<1x8xf32, #tpu.memory_space<vmem>>, %arg4: memref<2x768x16xbf16, #tpu.memory_space<vmem>>, %arg5: memref<1x16xf32, #tpu.memory_space<vmem>>, %arg6: memref<1x8x2x8x16xbf16, #tpu.memory_space<vmem>>, %arg7: memref<10x10x128xbf16, #tpu.memory_space<vmem>>, %arg8: memref<10x10x128xbf16, #tpu.memory_space<vmem>>) attributes {dimension_semantics = [#tpu.dimension_semantics<parallel>], iteration_bounds = array<i64: 2>, scalar_prefetch = 0 : i64, scratch_operands = 2 : i64, tpu.core_type = #tpu.core_type<tc>, window_params = [{transform_indices = @transform_0, window_bounds = array<i64: 1, 8, 8, 8>}, {pipeline_mode = #tpu.pipeline_mode<synchronous>, transform_indices = @transform_1, window_bounds = array<i64: 1152, 8>}, {pipeline_mode = #tpu.pipeline_mode<synchronous>, transform_indices = @transform_2, window_bounds = array<i64: 1, 8>}, {pipeline_mode = #tpu.pipeline_mode<synchronous>, transform_indices = @transform_3, window_bounds = array<i64: 2, 768, 16>}, {pipeline_mode = #tpu.pipeline_mode<synchronous>, transform_indices = @transform_4, window_bounds = array<i64: 1, 16>}, {transform_indices = @transform_5, window_bounds = array<i64: 1, 8, 2, 8, 16>}]} {
    %cst = arith.constant 0.000000e+00 : bf16
    %0 = vector.broadcast %cst : bf16 to vector<1x10x128xbf16>
    %c0 = arith.constant 0 : index
    %c0_0 = arith.constant 0 : index
    %c0_1 = arith.constant 0 : index
    %1 = vector.load %arg7[%c0, %c0_0, %c0_1] : memref<10x10x128xbf16, #tpu.memory_space<vmem>>, vector<1x10x128xbf16>
    tpu.vector_store %arg7[%c0, %c0_0, %c0_1], %0 {strides = array<i32>} : memref<10x10x128xbf16, #tpu.memory_space<vmem>>, vector<1x10x128xbf16>,
    %cst_2 = arith.constant 0.000000e+00 : bf16
    %2 = vector.broadcast %cst_2 : bf16 to vector<1x10x128xbf16>
    %c9 = arith.constant 9 : index
    %c0_3 = arith.constant 0 : index
    %c0_4 = arith.constant 0 : index
    %3 = vector.load %arg7[%c9, %c0_3, %c0_4] : memref<10x10x128xbf16, #tpu.memory_space<vmem>>, vector<1x10x128xbf16>
    tpu.vector_store %arg7[%c9, %c0_3, %c0_4], %2 {strides = array<i32>} : memref<10x10x128xbf16, #tpu.memory_space<vmem>>, vector<1x10x128xbf16>,
    %cst_5 = arith.constant 0.000000e+00 : bf16
    %4 = vector.broadcast %cst_5 : bf16 to vector<10x1x128xbf16>
    %c0_6 = arith.constant 0 : index
    %c0_7 = arith.constant 0 : index
    %c0_8 = arith.constant 0 : index
    %5 = vector.load %arg7[%c0_6, %c0_7, %c0_8] : memref<10x10x128xbf16, #tpu.memory_space<vmem>>, vector<10x1x128xbf16>
    tpu.vector_store %arg7[%c0_6, %c0_7, %c0_8], %4 {strides = array<i32>} : memref<10x10x128xbf16, #tpu.memory_space<vmem>>, vector<10x1x128xbf16>,
    %cst_9 = arith.constant 0.000000e+00 : bf16
    %6 = vector.broadcast %cst_9 : bf16 to vector<10x1x128xbf16>
    %c0_10 = arith.constant 0 : index
    %c9_11 = arith.constant 9 : index
    %c0_12 = arith.constant 0 : index
    %7 = vector.load %arg7[%c0_10, %c9_11, %c0_12] : memref<10x10x128xbf16, #tpu.memory_space<vmem>>, vector<10x1x128xbf16>
    tpu.vector_store %arg7[%c0_10, %c9_11, %c0_12], %6 {strides = array<i32>} : memref<10x10x128xbf16, #tpu.memory_space<vmem>>, vector<10x1x128xbf16>,
    %cst_13 = arith.constant 0.000000e+00 : bf16
    %8 = vector.broadcast %cst_13 : bf16 to vector<8x8x120xbf16>
    %c1 = arith.constant 1 : index
    %c1_14 = arith.constant 1 : index
    %c8 = arith.constant 8 : index
    %9 = vector.load %arg7[%c1, %c1_14, %c8] : memref<10x10x128xbf16, #tpu.memory_space<vmem>>, vector<8x8x120xbf16>
    tpu.vector_store %arg7[%c1, %c1_14, %c8], %8 {strides = array<i32>} : memref<10x10x128xbf16, #tpu.memory_space<vmem>>, vector<8x8x120xbf16>,
    %c0_15 = arith.constant 0 : index
    %c0_16 = arith.constant 0 : index
    %c0_17 = arith.constant 0 : index
    %c0_18 = arith.constant 0 : index
    %10 = vector.load %arg1[%c0_15, %c0_16, %c0_17, %c0_18] : memref<1x8x8x8xbf16, #tpu.memory_space<vmem>>, vector<1x8x8x8xbf16>
    %11 = vector.shape_cast %10 : vector<1x8x8x8xbf16> to vector<8x8x8xbf16>
    %c1_19 = arith.constant 1 : index
    %c1_20 = arith.constant 1 : index
    %c0_21 = arith.constant 0 : index
    %12 = vector.load %arg7[%c1_19, %c1_20, %c0_21] : memref<10x10x128xbf16, #tpu.memory_space<vmem>>, vector<8x8x8xbf16>
    tpu.vector_store %arg7[%c1_19, %c1_20, %c0_21], %11 {strides = array<i32>} : memref<10x10x128xbf16, #tpu.memory_space<vmem>>, vector<8x8x8xbf16>,
    %c0_22 = arith.constant 0 : index
    %c0_23 = arith.constant 0 : index
    %c0_24 = arith.constant 0 : index
    %13 = vector.load %arg7[%c0_22, %c0_23, %c0_24] : memref<10x10x128xbf16, #tpu.memory_space<vmem>>, vector<8x8x128xbf16>
    %c0_25 = arith.constant 0 : index
    %c1_26 = arith.constant 1 : index
    %c0_27 = arith.constant 0 : index
    %14 = vector.load %arg7[%c0_25, %c1_26, %c0_27] : memref<10x10x128xbf16, #tpu.memory_space<vmem>>, vector<8x8x128xbf16>
    %c0_28 = arith.constant 0 : index
    %c2 = arith.constant 2 : index
    %c0_29 = arith.constant 0 : index
    %15 = vector.load %arg7[%c0_28, %c2, %c0_29] : memref<10x10x128xbf16, #tpu.memory_space<vmem>>, vector<8x8x128xbf16>
    %c1_30 = arith.constant 1 : index
    %c0_31 = arith.constant 0 : index
    %c0_32 = arith.constant 0 : index
    %16 = vector.load %arg7[%c1_30, %c0_31, %c0_32] : memref<10x10x128xbf16, #tpu.memory_space<vmem>>, vector<8x8x128xbf16>
    %c1_33 = arith.constant 1 : index
    %c1_34 = arith.constant 1 : index
    %c0_35 = arith.constant 0 : index
    %17 = vector.load %arg7[%c1_33, %c1_34, %c0_35] : memref<10x10x128xbf16, #tpu.memory_space<vmem>>, vector<8x8x128xbf16>
    %c1_36 = arith.constant 1 : index
    %c2_37 = arith.constant 2 : index
    %c0_38 = arith.constant 0 : index
    %18 = vector.load %arg7[%c1_36, %c2_37, %c0_38] : memref<10x10x128xbf16, #tpu.memory_space<vmem>>, vector<8x8x128xbf16>
    %c2_39 = arith.constant 2 : index
    %c0_40 = arith.constant 0 : index
    %c0_41 = arith.constant 0 : index
    %19 = vector.load %arg7[%c2_39, %c0_40, %c0_41] : memref<10x10x128xbf16, #tpu.memory_space<vmem>>, vector<8x8x128xbf16>
    %c2_42 = arith.constant 2 : index
    %c1_43 = arith.constant 1 : index
    %c0_44 = arith.constant 0 : index
    %20 = vector.load %arg7[%c2_42, %c1_43, %c0_44] : memref<10x10x128xbf16, #tpu.memory_space<vmem>>, vector<8x8x128xbf16>
    %c2_45 = arith.constant 2 : index
    %c2_46 = arith.constant 2 : index
    %c0_47 = arith.constant 0 : index
    %21 = vector.load %arg7[%c2_45, %c2_46, %c0_47] : memref<10x10x128xbf16, #tpu.memory_space<vmem>>, vector<8x8x128xbf16>
    %22 = tpu.concatenate %13, %14, %15, %16, %17, %18, %19, %20, %21 in 2 : vector<8x8x128xbf16>, vector<8x8x128xbf16>, vector<8x8x128xbf16>, vector<8x8x128xbf16>, vector<8x8x128xbf16>, vector<8x8x128xbf16>, vector<8x8x128xbf16>, vector<8x8x128xbf16>, vector<8x8x128xbf16> -> vector<8x8x1152xbf16>
    %23 = vector.shape_cast %22 : vector<8x8x1152xbf16> to vector<64x1152xbf16>
    %c0_48 = arith.constant 0 : index
    %c0_49 = arith.constant 0 : index
    %24 = vector.load %arg2[%c0_48, %c0_49] : memref<1152x8xbf16, #tpu.memory_space<vmem>>, vector<1152x8xbf16>
    %cst_50 = arith.constant dense<0.000000e+00> : vector<64x8xf32>
    %25 = tpu.matmul %23, %24, %cst_50 {dimension_numbers = #tpu.dot_dimension_numbers<[1], [0], [0], [1], [0, 0, 1, 1], [], []>} : vector<64x1152xbf16>, vector<1152x8xbf16>, vector<64x8xf32> -> vector<64x8xf32>
    %c0_51 = arith.constant 0 : index
    %c0_52 = arith.constant 0 : index
    %26 = vector.load %arg3[%c0_51, %c0_52] : memref<1x8xf32, #tpu.memory_space<vmem>>, vector<1x8xf32>
    %27 = vector.broadcast %26 : vector<1x8xf32> to vector<64x8xf32>
    %28 = arith.addf %25, %27 : vector<64x8xf32>
    %cst_53 = arith.constant 0.000000e+00 : f32
    %29 = vector.broadcast %cst_53 : f32 to vector<64x8xf32>
    %30 = arith.maximumf %28, %29 : vector<64x8xf32>
    %cst_54 = arith.constant 0.000000e+00 : bf16
    %31 = vector.broadcast %cst_54 : bf16 to vector<1x10x128xbf16>
    %c0_55 = arith.constant 0 : index
    %c0_56 = arith.constant 0 : index
    %c0_57 = arith.constant 0 : index
    %32 = vector.load %arg8[%c0_55, %c0_56, %c0_57] : memref<10x10x128xbf16, #tpu.memory_space<vmem>>, vector<1x10x128xbf16>
    tpu.vector_store %arg8[%c0_55, %c0_56, %c0_57], %31 {strides = array<i32>} : memref<10x10x128xbf16, #tpu.memory_space<vmem>>, vector<1x10x128xbf16>,
    %cst_58 = arith.constant 0.000000e+00 : bf16
    %33 = vector.broadcast %cst_58 : bf16 to vector<1x10x128xbf16>
    %c9_59 = arith.constant 9 : index
    %c0_60 = arith.constant 0 : index
    %c0_61 = arith.constant 0 : index
    %34 = vector.load %arg8[%c9_59, %c0_60, %c0_61] : memref<10x10x128xbf16, #tpu.memory_space<vmem>>, vector<1x10x128xbf16>
    tpu.vector_store %arg8[%c9_59, %c0_60, %c0_61], %33 {strides = array<i32>} : memref<10x10x128xbf16, #tpu.memory_space<vmem>>, vector<1x10x128xbf16>,
    %cst_62 = arith.constant 0.000000e+00 : bf16
    %35 = vector.broadcast %cst_62 : bf16 to vector<10x1x128xbf16>
    %c0_63 = arith.constant 0 : index
    %c0_64 = arith.constant 0 : index
    %c0_65 = arith.constant 0 : index
    %36 = vector.load %arg8[%c0_63, %c0_64, %c0_65] : memref<10x10x128xbf16, #tpu.memory_space<vmem>>, vector<10x1x128xbf16>
    tpu.vector_store %arg8[%c0_63, %c0_64, %c0_65], %35 {strides = array<i32>} : memref<10x10x128xbf16, #tpu.memory_space<vmem>>, vector<10x1x128xbf16>,
    %cst_66 = arith.constant 0.000000e+00 : bf16
    %37 = vector.broadcast %cst_66 : bf16 to vector<10x1x128xbf16>
    %c0_67 = arith.constant 0 : index
    %c9_68 = arith.constant 9 : index
    %c0_69 = arith.constant 0 : index
    %38 = vector.load %arg8[%c0_67, %c9_68, %c0_69] : memref<10x10x128xbf16, #tpu.memory_space<vmem>>, vector<10x1x128xbf16>
    tpu.vector_store %arg8[%c0_67, %c9_68, %c0_69], %37 {strides = array<i32>} : memref<10x10x128xbf16, #tpu.memory_space<vmem>>, vector<10x1x128xbf16>,
    %cst_70 = arith.constant 0.000000e+00 : bf16
    %39 = vector.broadcast %cst_70 : bf16 to vector<8x8x120xbf16>
    %c1_71 = arith.constant 1 : index
    %c1_72 = arith.constant 1 : index
    %c8_73 = arith.constant 8 : index
    %40 = vector.load %arg8[%c1_71, %c1_72, %c8_73] : memref<10x10x128xbf16, #tpu.memory_space<vmem>>, vector<8x8x120xbf16>
    tpu.vector_store %arg8[%c1_71, %c1_72, %c8_73], %39 {strides = array<i32>} : memref<10x10x128xbf16, #tpu.memory_space<vmem>>, vector<8x8x120xbf16>,
    %41 = vector.shape_cast %30 : vector<64x8xf32> to vector<8x8x8xf32>
    %42 = arith.truncf %41 : vector<8x8x8xf32> to vector<8x8x8xbf16>
    %c1_74 = arith.constant 1 : index
    %c1_75 = arith.constant 1 : index
    %c0_76 = arith.constant 0 : index
    %43 = vector.load %arg8[%c1_74, %c1_75, %c0_76] : memref<10x10x128xbf16, #tpu.memory_space<vmem>>, vector<8x8x8xbf16>
    tpu.vector_store %arg8[%c1_74, %c1_75, %c0_76], %42 {strides = array<i32>} : memref<10x10x128xbf16, #tpu.memory_space<vmem>>, vector<8x8x8xbf16>,
    %c0_77 = arith.constant 0 : index
    %c0_78 = arith.constant 0 : index
    %44 = vector.load %arg5[%c0_77, %c0_78] : memref<1x16xf32, #tpu.memory_space<vmem>>, vector<1x16xf32>
    %c1_79 = arith.constant 1 : index
    %c0_80 = arith.constant 0 : index
    %c0_81 = arith.constant 0 : index
    %45 = vector.load %arg8[%c1_79, %c0_80, %c0_81] : memref<10x10x128xbf16, #tpu.memory_space<vmem>>, vector<8x8x128xbf16>
    %c1_82 = arith.constant 1 : index
    %c1_83 = arith.constant 1 : index
    %c0_84 = arith.constant 0 : index
    %46 = vector.load %arg8[%c1_82, %c1_83, %c0_84] : memref<10x10x128xbf16, #tpu.memory_space<vmem>>, vector<8x8x128xbf16>
    %c1_85 = arith.constant 1 : index
    %c2_86 = arith.constant 2 : index
    %c0_87 = arith.constant 0 : index
    %47 = vector.load %arg8[%c1_85, %c2_86, %c0_87] : memref<10x10x128xbf16, #tpu.memory_space<vmem>>, vector<8x8x128xbf16>
    %c0_88 = arith.constant 0 : index
    %c0_89 = arith.constant 0 : index
    %c0_90 = arith.constant 0 : index
    %48 = vector.load %arg8[%c0_88, %c0_89, %c0_90] : memref<10x10x128xbf16, #tpu.memory_space<vmem>>, vector<8x8x128xbf16>
    %c0_91 = arith.constant 0 : index
    %c1_92 = arith.constant 1 : index
    %c0_93 = arith.constant 0 : index
    %49 = vector.load %arg8[%c0_91, %c1_92, %c0_93] : memref<10x10x128xbf16, #tpu.memory_space<vmem>>, vector<8x8x128xbf16>
    %c0_94 = arith.constant 0 : index
    %c2_95 = arith.constant 2 : index
    %c0_96 = arith.constant 0 : index
    %50 = vector.load %arg8[%c0_94, %c2_95, %c0_96] : memref<10x10x128xbf16, #tpu.memory_space<vmem>>, vector<8x8x128xbf16>
    %51 = tpu.concatenate %45, %46, %47, %48, %49, %50 in 2 : vector<8x8x128xbf16>, vector<8x8x128xbf16>, vector<8x8x128xbf16>, vector<8x8x128xbf16>, vector<8x8x128xbf16>, vector<8x8x128xbf16> -> vector<8x8x768xbf16>
    %52 = vector.shape_cast %51 : vector<8x8x768xbf16> to vector<64x768xbf16>
    %c0_97 = arith.constant 0 : index
    %c0_98 = arith.constant 0 : index
    %c0_99 = arith.constant 0 : index
    %53 = vector.load %arg4[%c0_97, %c0_98, %c0_99] : memref<2x768x16xbf16, #tpu.memory_space<vmem>>, vector<1x768x16xbf16>
    %54 = vector.shape_cast %53 : vector<1x768x16xbf16> to vector<768x16xbf16>
    %cst_100 = arith.constant dense<0.000000e+00> : vector<64x16xf32>
    %55 = tpu.matmul %52, %54, %cst_100 {dimension_numbers = #tpu.dot_dimension_numbers<[1], [0], [0], [1], [0, 0, 1, 1], [], []>} : vector<64x768xbf16>, vector<768x16xbf16>, vector<64x16xf32> -> vector<64x16xf32>
    %56 = vector.broadcast %44 : vector<1x16xf32> to vector<64x16xf32>
    %57 = arith.addf %55, %56 : vector<64x16xf32>
    %cst_101 = arith.constant 0.000000e+00 : f32
    %58 = vector.broadcast %cst_101 : f32 to vector<64x16xf32>
    %59 = arith.maximumf %57, %58 : vector<64x16xf32>
    %60 = vector.shape_cast %59 : vector<64x16xf32> to vector<8x8x16xf32>
    %61 = arith.truncf %60 : vector<8x8x16xf32> to vector<8x8x16xbf16>
    %c0_102 = arith.constant 0 : index
    %c0_103 = arith.constant 0 : index
    %c0_104 = arith.constant 0 : index
    %c0_105 = arith.constant 0 : index
    %c0_106 = arith.constant 0 : index
    %62 = vector.load %arg6[%c0_102, %c0_103, %c0_104, %c0_105, %c0_106] : memref<1x8x2x8x16xbf16, #tpu.memory_space<vmem>>, vector<1x8x1x8x16xbf16>
    %63 = vector.shape_cast %62 : vector<1x8x1x8x16xbf16> to vector<8x8x16xbf16>
    %64 = vector.shape_cast %61 : vector<8x8x16xbf16> to vector<1x8x1x8x16xbf16>
    tpu.vector_store %arg6[%c0_102, %c0_103, %c0_104, %c0_105, %c0_106], %64 {strides = array<i32>} : memref<1x8x2x8x16xbf16, #tpu.memory_space<vmem>>, vector<1x8x1x8x16xbf16>,
    %c2_107 = arith.constant 2 : index
    %c0_108 = arith.constant 0 : index
    %c0_109 = arith.constant 0 : index
    %65 = vector.load %arg8[%c2_107, %c0_108, %c0_109] : memref<10x10x128xbf16, #tpu.memory_space<vmem>>, vector<8x8x128xbf16>
    %c2_110 = arith.constant 2 : index
    %c1_111 = arith.constant 1 : index
    %c0_112 = arith.constant 0 : index
    %66 = vector.load %arg8[%c2_110, %c1_111, %c0_112] : memref<10x10x128xbf16, #tpu.memory_space<vmem>>, vector<8x8x128xbf16>
    %c2_113 = arith.constant 2 : index
    %c2_114 = arith.constant 2 : index
    %c0_115 = arith.constant 0 : index
    %67 = vector.load %arg8[%c2_113, %c2_114, %c0_115] : memref<10x10x128xbf16, #tpu.memory_space<vmem>>, vector<8x8x128xbf16>
    %c1_116 = arith.constant 1 : index
    %c0_117 = arith.constant 0 : index
    %c0_118 = arith.constant 0 : index
    %68 = vector.load %arg8[%c1_116, %c0_117, %c0_118] : memref<10x10x128xbf16, #tpu.memory_space<vmem>>, vector<8x8x128xbf16>
    %c1_119 = arith.constant 1 : index
    %c1_120 = arith.constant 1 : index
    %c0_121 = arith.constant 0 : index
    %69 = vector.load %arg8[%c1_119, %c1_120, %c0_121] : memref<10x10x128xbf16, #tpu.memory_space<vmem>>, vector<8x8x128xbf16>
    %c1_122 = arith.constant 1 : index
    %c2_123 = arith.constant 2 : index
    %c0_124 = arith.constant 0 : index
    %70 = vector.load %arg8[%c1_122, %c2_123, %c0_124] : memref<10x10x128xbf16, #tpu.memory_space<vmem>>, vector<8x8x128xbf16>
    %71 = tpu.concatenate %65, %66, %67, %68, %69, %70 in 2 : vector<8x8x128xbf16>, vector<8x8x128xbf16>, vector<8x8x128xbf16>, vector<8x8x128xbf16>, vector<8x8x128xbf16>, vector<8x8x128xbf16> -> vector<8x8x768xbf16>
    %72 = vector.shape_cast %71 : vector<8x8x768xbf16> to vector<64x768xbf16>
    %c1_125 = arith.constant 1 : index
    %c0_126 = arith.constant 0 : index
    %c0_127 = arith.constant 0 : index
    %73 = vector.load %arg4[%c1_125, %c0_126, %c0_127] : memref<2x768x16xbf16, #tpu.memory_space<vmem>>, vector<1x768x16xbf16>
    %74 = vector.shape_cast %73 : vector<1x768x16xbf16> to vector<768x16xbf16>
    %cst_128 = arith.constant dense<0.000000e+00> : vector<64x16xf32>
    %75 = tpu.matmul %72, %74, %cst_128 {dimension_numbers = #tpu.dot_dimension_numbers<[1], [0], [0], [1], [0, 0, 1, 1], [], []>} : vector<64x768xbf16>, vector<768x16xbf16>, vector<64x16xf32> -> vector<64x16xf32>
    %76 = vector.broadcast %44 : vector<1x16xf32> to vector<64x16xf32>
    %77 = arith.addf %75, %76 : vector<64x16xf32>
    %cst_129 = arith.constant 0.000000e+00 : f32
    %78 = vector.broadcast %cst_129 : f32 to vector<64x16xf32>
    %79 = arith.maximumf %77, %78 : vector<64x16xf32>
    %80 = vector.shape_cast %79 : vector<64x16xf32> to vector<8x8x16xf32>
    %81 = arith.truncf %80 : vector<8x8x16xf32> to vector<8x8x16xbf16>
    %c0_130 = arith.constant 0 : index
    %c0_131 = arith.constant 0 : index
    %c1_132 = arith.constant 1 : index
    %c0_133 = arith.constant 0 : index
    %c0_134 = arith.constant 0 : index
    %82 = vector.load %arg6[%c0_130, %c0_131, %c1_132, %c0_133, %c0_134] : memref<1x8x2x8x16xbf16, #tpu.memory_space<vmem>>, vector<1x8x1x8x16xbf16>
    %83 = vector.shape_cast %82 : vector<1x8x1x8x16xbf16> to vector<8x8x16xbf16>
    %84 = vector.shape_cast %81 : vector<8x8x16xbf16> to vector<1x8x1x8x16xbf16>
    tpu.vector_store %arg6[%c0_130, %c0_131, %c1_132, %c0_133, %c0_134], %84 {strides = array<i32>} : memref<1x8x2x8x16xbf16, #tpu.memory_space<vmem>>, vector<1x8x1x8x16xbf16>,
    return
  }
  func.func @transform_0(%arg0: i32) -> (i32, i32, i32, i32) {
    %c0_i32 = arith.constant 0 : i32
    %c0_i32_0 = arith.constant 0 : i32
    %c0_i32_1 = arith.constant 0 : i32
    %c0_i32_2 = arith.constant 0 : i32
    return %arg0, %c0_i32, %c0_i32_0, %c0_i32_1 : i32, i32, i32, i32
  }
  func.func @transform_1(%arg0: i32) -> (i32, i32) {
    %c0_i32 = arith.constant 0 : i32
    %c0_i32_0 = arith.constant 0 : i32
    %c0_i32_1 = arith.constant 0 : i32
    return %c0_i32, %c0_i32_0 : i32, i32
  }
  func.func @transform_2(%arg0: i32) -> (i32, i32) {
    %c0_i32 = arith.constant 0 : i32
    %c0_i32_0 = arith.constant 0 : i32
    %c0_i32_1 = arith.constant 0 : i32
    return %c0_i32, %c0_i32_0 : i32, i32
  }
  func.func @transform_3(%arg0: i32) -> (i32, i32, i32) {
    %c0_i32 = arith.constant 0 : i32
    %c0_i32_0 = arith.constant 0 : i32
    %c0_i32_1 = arith.constant 0 : i32
    %c0_i32_2 = arith.constant 0 : i32
    return %c0_i32, %c0_i32_0, %c0_i32_1 : i32, i32, i32
  }
  func.func @transform_4(%arg0: i32) -> (i32, i32) {
    %c0_i32 = arith.constant 0 : i32
    %c0_i32_0 = arith.constant 0 : i32
    %c0_i32_1 = arith.constant 0 : i32
    return %c0_i32, %c0_i32_0 : i32, i32
  }
  func.func @transform_5(%arg0: i32) -> (i32, i32, i32, i32, i32) {
    %c0_i32 = arith.constant 0 : i32
    %c0_i32_0 = arith.constant 0 : i32
    %c0_i32_1 = arith.constant 0 : i32
    %c0_i32_2 = arith.constant 0 : i32
    %c0_i32_3 = arith.constant 0 : i32
    return %arg0, %c0_i32, %c0_i32_0, %c0_i32_1, %c0_i32_2 : i32, i32, i32, i32, i32
  }
}

module attributes {stable_mosaic.version = 11 : i64} {
  func.func @_layer_kernel(%arg0: i32, %arg1: memref<1x16x16x8xbf16, #tpu.memory_space<vmem>>, %arg2: memref<1152x8xbf16, #tpu.memory_space<vmem>>, %arg3: memref<1x8xf32, #tpu.memory_space<vmem>>, %arg4: memref<2x768x16xbf16, #tpu.memory_space<vmem>>, %arg5: memref<1x16xf32, #tpu.memory_space<vmem>>, %arg6: memref<1x16x2x16x16xbf16, #tpu.memory_space<vmem>>, %arg7: memref<18x18x128xbf16, #tpu.memory_space<vmem>>, %arg8: memref<18x18x128xbf16, #tpu.memory_space<vmem>>) attributes {dimension_semantics = [#tpu.dimension_semantics<parallel>], iteration_bounds = array<i64: 2>, scalar_prefetch = 0 : i64, scratch_operands = 2 : i64, tpu.core_type = #tpu.core_type<tc>, window_params = [{transform_indices = @transform_0, window_bounds = array<i64: 1, 16, 16, 8>}, {pipeline_mode = #tpu.pipeline_mode<synchronous>, transform_indices = @transform_1, window_bounds = array<i64: 1152, 8>}, {pipeline_mode = #tpu.pipeline_mode<synchronous>, transform_indices = @transform_2, window_bounds = array<i64: 1, 8>}, {pipeline_mode = #tpu.pipeline_mode<synchronous>, transform_indices = @transform_3, window_bounds = array<i64: 2, 768, 16>}, {pipeline_mode = #tpu.pipeline_mode<synchronous>, transform_indices = @transform_4, window_bounds = array<i64: 1, 16>}, {transform_indices = @transform_5, window_bounds = array<i64: 1, 16, 2, 16, 16>}]} {
    %cst = arith.constant 0.000000e+00 : bf16
    %0 = vector.broadcast %cst : bf16 to vector<1x18x128xbf16>
    %c0 = arith.constant 0 : index
    %c0_0 = arith.constant 0 : index
    %c0_1 = arith.constant 0 : index
    %1 = vector.load %arg7[%c0, %c0_0, %c0_1] : memref<18x18x128xbf16, #tpu.memory_space<vmem>>, vector<1x18x128xbf16>
    tpu.vector_store %arg7[%c0, %c0_0, %c0_1], %0 {strides = array<i32>} : memref<18x18x128xbf16, #tpu.memory_space<vmem>>, vector<1x18x128xbf16>,
    %cst_2 = arith.constant 0.000000e+00 : bf16
    %2 = vector.broadcast %cst_2 : bf16 to vector<1x18x128xbf16>
    %c17 = arith.constant 17 : index
    %c0_3 = arith.constant 0 : index
    %c0_4 = arith.constant 0 : index
    %3 = vector.load %arg7[%c17, %c0_3, %c0_4] : memref<18x18x128xbf16, #tpu.memory_space<vmem>>, vector<1x18x128xbf16>
    tpu.vector_store %arg7[%c17, %c0_3, %c0_4], %2 {strides = array<i32>} : memref<18x18x128xbf16, #tpu.memory_space<vmem>>, vector<1x18x128xbf16>,
    %cst_5 = arith.constant 0.000000e+00 : bf16
    %4 = vector.broadcast %cst_5 : bf16 to vector<18x1x128xbf16>
    %c0_6 = arith.constant 0 : index
    %c0_7 = arith.constant 0 : index
    %c0_8 = arith.constant 0 : index
    %5 = vector.load %arg7[%c0_6, %c0_7, %c0_8] : memref<18x18x128xbf16, #tpu.memory_space<vmem>>, vector<18x1x128xbf16>
    tpu.vector_store %arg7[%c0_6, %c0_7, %c0_8], %4 {strides = array<i32>} : memref<18x18x128xbf16, #tpu.memory_space<vmem>>, vector<18x1x128xbf16>,
    %cst_9 = arith.constant 0.000000e+00 : bf16
    %6 = vector.broadcast %cst_9 : bf16 to vector<18x1x128xbf16>
    %c0_10 = arith.constant 0 : index
    %c17_11 = arith.constant 17 : index
    %c0_12 = arith.constant 0 : index
    %7 = vector.load %arg7[%c0_10, %c17_11, %c0_12] : memref<18x18x128xbf16, #tpu.memory_space<vmem>>, vector<18x1x128xbf16>
    tpu.vector_store %arg7[%c0_10, %c17_11, %c0_12], %6 {strides = array<i32>} : memref<18x18x128xbf16, #tpu.memory_space<vmem>>, vector<18x1x128xbf16>,
    %cst_13 = arith.constant 0.000000e+00 : bf16
    %8 = vector.broadcast %cst_13 : bf16 to vector<16x16x120xbf16>
    %c1 = arith.constant 1 : index
    %c1_14 = arith.constant 1 : index
    %c8 = arith.constant 8 : index
    %9 = vector.load %arg7[%c1, %c1_14, %c8] : memref<18x18x128xbf16, #tpu.memory_space<vmem>>, vector<16x16x120xbf16>
    tpu.vector_store %arg7[%c1, %c1_14, %c8], %8 {strides = array<i32>} : memref<18x18x128xbf16, #tpu.memory_space<vmem>>, vector<16x16x120xbf16>,
    %c0_15 = arith.constant 0 : index
    %c0_16 = arith.constant 0 : index
    %c0_17 = arith.constant 0 : index
    %c0_18 = arith.constant 0 : index
    %10 = vector.load %arg1[%c0_15, %c0_16, %c0_17, %c0_18] : memref<1x16x16x8xbf16, #tpu.memory_space<vmem>>, vector<1x16x16x8xbf16>
    %11 = vector.shape_cast %10 : vector<1x16x16x8xbf16> to vector<16x16x8xbf16>
    %c1_19 = arith.constant 1 : index
    %c1_20 = arith.constant 1 : index
    %c0_21 = arith.constant 0 : index
    %12 = vector.load %arg7[%c1_19, %c1_20, %c0_21] : memref<18x18x128xbf16, #tpu.memory_space<vmem>>, vector<16x16x8xbf16>
    tpu.vector_store %arg7[%c1_19, %c1_20, %c0_21], %11 {strides = array<i32>} : memref<18x18x128xbf16, #tpu.memory_space<vmem>>, vector<16x16x8xbf16>,
    %c0_22 = arith.constant 0 : index
    %c0_23 = arith.constant 0 : index
    %c0_24 = arith.constant 0 : index
    %13 = vector.load %arg7[%c0_22, %c0_23, %c0_24] : memref<18x18x128xbf16, #tpu.memory_space<vmem>>, vector<16x16x128xbf16>
    %c0_25 = arith.constant 0 : index
    %c1_26 = arith.constant 1 : index
    %c0_27 = arith.constant 0 : index
    %14 = vector.load %arg7[%c0_25, %c1_26, %c0_27] : memref<18x18x128xbf16, #tpu.memory_space<vmem>>, vector<16x16x128xbf16>
    %c0_28 = arith.constant 0 : index
    %c2 = arith.constant 2 : index
    %c0_29 = arith.constant 0 : index
    %15 = vector.load %arg7[%c0_28, %c2, %c0_29] : memref<18x18x128xbf16, #tpu.memory_space<vmem>>, vector<16x16x128xbf16>
    %c1_30 = arith.constant 1 : index
    %c0_31 = arith.constant 0 : index
    %c0_32 = arith.constant 0 : index
    %16 = vector.load %arg7[%c1_30, %c0_31, %c0_32] : memref<18x18x128xbf16, #tpu.memory_space<vmem>>, vector<16x16x128xbf16>
    %c1_33 = arith.constant 1 : index
    %c1_34 = arith.constant 1 : index
    %c0_35 = arith.constant 0 : index
    %17 = vector.load %arg7[%c1_33, %c1_34, %c0_35] : memref<18x18x128xbf16, #tpu.memory_space<vmem>>, vector<16x16x128xbf16>
    %c1_36 = arith.constant 1 : index
    %c2_37 = arith.constant 2 : index
    %c0_38 = arith.constant 0 : index
    %18 = vector.load %arg7[%c1_36, %c2_37, %c0_38] : memref<18x18x128xbf16, #tpu.memory_space<vmem>>, vector<16x16x128xbf16>
    %c2_39 = arith.constant 2 : index
    %c0_40 = arith.constant 0 : index
    %c0_41 = arith.constant 0 : index
    %19 = vector.load %arg7[%c2_39, %c0_40, %c0_41] : memref<18x18x128xbf16, #tpu.memory_space<vmem>>, vector<16x16x128xbf16>
    %c2_42 = arith.constant 2 : index
    %c1_43 = arith.constant 1 : index
    %c0_44 = arith.constant 0 : index
    %20 = vector.load %arg7[%c2_42, %c1_43, %c0_44] : memref<18x18x128xbf16, #tpu.memory_space<vmem>>, vector<16x16x128xbf16>
    %c2_45 = arith.constant 2 : index
    %c2_46 = arith.constant 2 : index
    %c0_47 = arith.constant 0 : index
    %21 = vector.load %arg7[%c2_45, %c2_46, %c0_47] : memref<18x18x128xbf16, #tpu.memory_space<vmem>>, vector<16x16x128xbf16>
    %22 = tpu.concatenate %13, %14, %15, %16, %17, %18, %19, %20, %21 in 2 : vector<16x16x128xbf16>, vector<16x16x128xbf16>, vector<16x16x128xbf16>, vector<16x16x128xbf16>, vector<16x16x128xbf16>, vector<16x16x128xbf16>, vector<16x16x128xbf16>, vector<16x16x128xbf16>, vector<16x16x128xbf16> -> vector<16x16x1152xbf16>
    %23 = vector.shape_cast %22 : vector<16x16x1152xbf16> to vector<256x1152xbf16>
    %c0_48 = arith.constant 0 : index
    %c0_49 = arith.constant 0 : index
    %24 = vector.load %arg2[%c0_48, %c0_49] : memref<1152x8xbf16, #tpu.memory_space<vmem>>, vector<1152x8xbf16>
    %cst_50 = arith.constant dense<0.000000e+00> : vector<256x8xf32>
    %25 = tpu.matmul %23, %24, %cst_50 {dimension_numbers = #tpu.dot_dimension_numbers<[1], [0], [0], [1], [0, 0, 1, 1], [], []>} : vector<256x1152xbf16>, vector<1152x8xbf16>, vector<256x8xf32> -> vector<256x8xf32>
    %c0_51 = arith.constant 0 : index
    %c0_52 = arith.constant 0 : index
    %26 = vector.load %arg3[%c0_51, %c0_52] : memref<1x8xf32, #tpu.memory_space<vmem>>, vector<1x8xf32>
    %27 = vector.broadcast %26 : vector<1x8xf32> to vector<256x8xf32>
    %28 = arith.addf %25, %27 : vector<256x8xf32>
    %cst_53 = arith.constant 0.000000e+00 : f32
    %29 = vector.broadcast %cst_53 : f32 to vector<256x8xf32>
    %30 = arith.maximumf %28, %29 : vector<256x8xf32>
    %cst_54 = arith.constant 0.000000e+00 : bf16
    %31 = vector.broadcast %cst_54 : bf16 to vector<1x18x128xbf16>
    %c0_55 = arith.constant 0 : index
    %c0_56 = arith.constant 0 : index
    %c0_57 = arith.constant 0 : index
    %32 = vector.load %arg8[%c0_55, %c0_56, %c0_57] : memref<18x18x128xbf16, #tpu.memory_space<vmem>>, vector<1x18x128xbf16>
    tpu.vector_store %arg8[%c0_55, %c0_56, %c0_57], %31 {strides = array<i32>} : memref<18x18x128xbf16, #tpu.memory_space<vmem>>, vector<1x18x128xbf16>,
    %cst_58 = arith.constant 0.000000e+00 : bf16
    %33 = vector.broadcast %cst_58 : bf16 to vector<1x18x128xbf16>
    %c17_59 = arith.constant 17 : index
    %c0_60 = arith.constant 0 : index
    %c0_61 = arith.constant 0 : index
    %34 = vector.load %arg8[%c17_59, %c0_60, %c0_61] : memref<18x18x128xbf16, #tpu.memory_space<vmem>>, vector<1x18x128xbf16>
    tpu.vector_store %arg8[%c17_59, %c0_60, %c0_61], %33 {strides = array<i32>} : memref<18x18x128xbf16, #tpu.memory_space<vmem>>, vector<1x18x128xbf16>,
    %cst_62 = arith.constant 0.000000e+00 : bf16
    %35 = vector.broadcast %cst_62 : bf16 to vector<18x1x128xbf16>
    %c0_63 = arith.constant 0 : index
    %c0_64 = arith.constant 0 : index
    %c0_65 = arith.constant 0 : index
    %36 = vector.load %arg8[%c0_63, %c0_64, %c0_65] : memref<18x18x128xbf16, #tpu.memory_space<vmem>>, vector<18x1x128xbf16>
    tpu.vector_store %arg8[%c0_63, %c0_64, %c0_65], %35 {strides = array<i32>} : memref<18x18x128xbf16, #tpu.memory_space<vmem>>, vector<18x1x128xbf16>,
    %cst_66 = arith.constant 0.000000e+00 : bf16
    %37 = vector.broadcast %cst_66 : bf16 to vector<18x1x128xbf16>
    %c0_67 = arith.constant 0 : index
    %c17_68 = arith.constant 17 : index
    %c0_69 = arith.constant 0 : index
    %38 = vector.load %arg8[%c0_67, %c17_68, %c0_69] : memref<18x18x128xbf16, #tpu.memory_space<vmem>>, vector<18x1x128xbf16>
    tpu.vector_store %arg8[%c0_67, %c17_68, %c0_69], %37 {strides = array<i32>} : memref<18x18x128xbf16, #tpu.memory_space<vmem>>, vector<18x1x128xbf16>,
    %cst_70 = arith.constant 0.000000e+00 : bf16
    %39 = vector.broadcast %cst_70 : bf16 to vector<16x16x120xbf16>
    %c1_71 = arith.constant 1 : index
    %c1_72 = arith.constant 1 : index
    %c8_73 = arith.constant 8 : index
    %40 = vector.load %arg8[%c1_71, %c1_72, %c8_73] : memref<18x18x128xbf16, #tpu.memory_space<vmem>>, vector<16x16x120xbf16>
    tpu.vector_store %arg8[%c1_71, %c1_72, %c8_73], %39 {strides = array<i32>} : memref<18x18x128xbf16, #tpu.memory_space<vmem>>, vector<16x16x120xbf16>,
    %41 = vector.shape_cast %30 : vector<256x8xf32> to vector<16x16x8xf32>
    %42 = arith.truncf %41 : vector<16x16x8xf32> to vector<16x16x8xbf16>
    %c1_74 = arith.constant 1 : index
    %c1_75 = arith.constant 1 : index
    %c0_76 = arith.constant 0 : index
    %43 = vector.load %arg8[%c1_74, %c1_75, %c0_76] : memref<18x18x128xbf16, #tpu.memory_space<vmem>>, vector<16x16x8xbf16>
    tpu.vector_store %arg8[%c1_74, %c1_75, %c0_76], %42 {strides = array<i32>} : memref<18x18x128xbf16, #tpu.memory_space<vmem>>, vector<16x16x8xbf16>,
    %c0_77 = arith.constant 0 : index
    %c0_78 = arith.constant 0 : index
    %44 = vector.load %arg5[%c0_77, %c0_78] : memref<1x16xf32, #tpu.memory_space<vmem>>, vector<1x16xf32>
    %c1_79 = arith.constant 1 : index
    %c0_80 = arith.constant 0 : index
    %c0_81 = arith.constant 0 : index
    %45 = vector.load %arg8[%c1_79, %c0_80, %c0_81] : memref<18x18x128xbf16, #tpu.memory_space<vmem>>, vector<16x16x128xbf16>
    %c1_82 = arith.constant 1 : index
    %c1_83 = arith.constant 1 : index
    %c0_84 = arith.constant 0 : index
    %46 = vector.load %arg8[%c1_82, %c1_83, %c0_84] : memref<18x18x128xbf16, #tpu.memory_space<vmem>>, vector<16x16x128xbf16>
    %c1_85 = arith.constant 1 : index
    %c2_86 = arith.constant 2 : index
    %c0_87 = arith.constant 0 : index
    %47 = vector.load %arg8[%c1_85, %c2_86, %c0_87] : memref<18x18x128xbf16, #tpu.memory_space<vmem>>, vector<16x16x128xbf16>
    %c0_88 = arith.constant 0 : index
    %c0_89 = arith.constant 0 : index
    %c0_90 = arith.constant 0 : index
    %48 = vector.load %arg8[%c0_88, %c0_89, %c0_90] : memref<18x18x128xbf16, #tpu.memory_space<vmem>>, vector<16x16x128xbf16>
    %c0_91 = arith.constant 0 : index
    %c1_92 = arith.constant 1 : index
    %c0_93 = arith.constant 0 : index
    %49 = vector.load %arg8[%c0_91, %c1_92, %c0_93] : memref<18x18x128xbf16, #tpu.memory_space<vmem>>, vector<16x16x128xbf16>
    %c0_94 = arith.constant 0 : index
    %c2_95 = arith.constant 2 : index
    %c0_96 = arith.constant 0 : index
    %50 = vector.load %arg8[%c0_94, %c2_95, %c0_96] : memref<18x18x128xbf16, #tpu.memory_space<vmem>>, vector<16x16x128xbf16>
    %51 = tpu.concatenate %45, %46, %47, %48, %49, %50 in 2 : vector<16x16x128xbf16>, vector<16x16x128xbf16>, vector<16x16x128xbf16>, vector<16x16x128xbf16>, vector<16x16x128xbf16>, vector<16x16x128xbf16> -> vector<16x16x768xbf16>
    %52 = vector.shape_cast %51 : vector<16x16x768xbf16> to vector<256x768xbf16>
    %c0_97 = arith.constant 0 : index
    %c0_98 = arith.constant 0 : index
    %c0_99 = arith.constant 0 : index
    %53 = vector.load %arg4[%c0_97, %c0_98, %c0_99] : memref<2x768x16xbf16, #tpu.memory_space<vmem>>, vector<1x768x16xbf16>
    %54 = vector.shape_cast %53 : vector<1x768x16xbf16> to vector<768x16xbf16>
    %cst_100 = arith.constant dense<0.000000e+00> : vector<256x16xf32>
    %55 = tpu.matmul %52, %54, %cst_100 {dimension_numbers = #tpu.dot_dimension_numbers<[1], [0], [0], [1], [0, 0, 1, 1], [], []>} : vector<256x768xbf16>, vector<768x16xbf16>, vector<256x16xf32> -> vector<256x16xf32>
    %56 = vector.broadcast %44 : vector<1x16xf32> to vector<256x16xf32>
    %57 = arith.addf %55, %56 : vector<256x16xf32>
    %cst_101 = arith.constant 0.000000e+00 : f32
    %58 = vector.broadcast %cst_101 : f32 to vector<256x16xf32>
    %59 = arith.maximumf %57, %58 : vector<256x16xf32>
    %60 = vector.shape_cast %59 : vector<256x16xf32> to vector<16x16x16xf32>
    %61 = arith.truncf %60 : vector<16x16x16xf32> to vector<16x16x16xbf16>
    %c0_102 = arith.constant 0 : index
    %c0_103 = arith.constant 0 : index
    %c0_104 = arith.constant 0 : index
    %c0_105 = arith.constant 0 : index
    %c0_106 = arith.constant 0 : index
    %62 = vector.load %arg6[%c0_102, %c0_103, %c0_104, %c0_105, %c0_106] : memref<1x16x2x16x16xbf16, #tpu.memory_space<vmem>>, vector<1x16x1x16x16xbf16>
    %63 = vector.shape_cast %62 : vector<1x16x1x16x16xbf16> to vector<16x16x16xbf16>
    %64 = vector.shape_cast %61 : vector<16x16x16xbf16> to vector<1x16x1x16x16xbf16>
    tpu.vector_store %arg6[%c0_102, %c0_103, %c0_104, %c0_105, %c0_106], %64 {strides = array<i32>} : memref<1x16x2x16x16xbf16, #tpu.memory_space<vmem>>, vector<1x16x1x16x16xbf16>,
    %c2_107 = arith.constant 2 : index
    %c0_108 = arith.constant 0 : index
    %c0_109 = arith.constant 0 : index
    %65 = vector.load %arg8[%c2_107, %c0_108, %c0_109] : memref<18x18x128xbf16, #tpu.memory_space<vmem>>, vector<16x16x128xbf16>
    %c2_110 = arith.constant 2 : index
    %c1_111 = arith.constant 1 : index
    %c0_112 = arith.constant 0 : index
    %66 = vector.load %arg8[%c2_110, %c1_111, %c0_112] : memref<18x18x128xbf16, #tpu.memory_space<vmem>>, vector<16x16x128xbf16>
    %c2_113 = arith.constant 2 : index
    %c2_114 = arith.constant 2 : index
    %c0_115 = arith.constant 0 : index
    %67 = vector.load %arg8[%c2_113, %c2_114, %c0_115] : memref<18x18x128xbf16, #tpu.memory_space<vmem>>, vector<16x16x128xbf16>
    %c1_116 = arith.constant 1 : index
    %c0_117 = arith.constant 0 : index
    %c0_118 = arith.constant 0 : index
    %68 = vector.load %arg8[%c1_116, %c0_117, %c0_118] : memref<18x18x128xbf16, #tpu.memory_space<vmem>>, vector<16x16x128xbf16>
    %c1_119 = arith.constant 1 : index
    %c1_120 = arith.constant 1 : index
    %c0_121 = arith.constant 0 : index
    %69 = vector.load %arg8[%c1_119, %c1_120, %c0_121] : memref<18x18x128xbf16, #tpu.memory_space<vmem>>, vector<16x16x128xbf16>
    %c1_122 = arith.constant 1 : index
    %c2_123 = arith.constant 2 : index
    %c0_124 = arith.constant 0 : index
    %70 = vector.load %arg8[%c1_122, %c2_123, %c0_124] : memref<18x18x128xbf16, #tpu.memory_space<vmem>>, vector<16x16x128xbf16>
    %71 = tpu.concatenate %65, %66, %67, %68, %69, %70 in 2 : vector<16x16x128xbf16>, vector<16x16x128xbf16>, vector<16x16x128xbf16>, vector<16x16x128xbf16>, vector<16x16x128xbf16>, vector<16x16x128xbf16> -> vector<16x16x768xbf16>
    %72 = vector.shape_cast %71 : vector<16x16x768xbf16> to vector<256x768xbf16>
    %c1_125 = arith.constant 1 : index
    %c0_126 = arith.constant 0 : index
    %c0_127 = arith.constant 0 : index
    %73 = vector.load %arg4[%c1_125, %c0_126, %c0_127] : memref<2x768x16xbf16, #tpu.memory_space<vmem>>, vector<1x768x16xbf16>
    %74 = vector.shape_cast %73 : vector<1x768x16xbf16> to vector<768x16xbf16>
    %cst_128 = arith.constant dense<0.000000e+00> : vector<256x16xf32>
    %75 = tpu.matmul %72, %74, %cst_128 {dimension_numbers = #tpu.dot_dimension_numbers<[1], [0], [0], [1], [0, 0, 1, 1], [], []>} : vector<256x768xbf16>, vector<768x16xbf16>, vector<256x16xf32> -> vector<256x16xf32>
    %76 = vector.broadcast %44 : vector<1x16xf32> to vector<256x16xf32>
    %77 = arith.addf %75, %76 : vector<256x16xf32>
    %cst_129 = arith.constant 0.000000e+00 : f32
    %78 = vector.broadcast %cst_129 : f32 to vector<256x16xf32>
    %79 = arith.maximumf %77, %78 : vector<256x16xf32>
    %80 = vector.shape_cast %79 : vector<256x16xf32> to vector<16x16x16xf32>
    %81 = arith.truncf %80 : vector<16x16x16xf32> to vector<16x16x16xbf16>
    %c0_130 = arith.constant 0 : index
    %c0_131 = arith.constant 0 : index
    %c1_132 = arith.constant 1 : index
    %c0_133 = arith.constant 0 : index
    %c0_134 = arith.constant 0 : index
    %82 = vector.load %arg6[%c0_130, %c0_131, %c1_132, %c0_133, %c0_134] : memref<1x16x2x16x16xbf16, #tpu.memory_space<vmem>>, vector<1x16x1x16x16xbf16>
    %83 = vector.shape_cast %82 : vector<1x16x1x16x16xbf16> to vector<16x16x16xbf16>
    %84 = vector.shape_cast %81 : vector<16x16x16xbf16> to vector<1x16x1x16x16xbf16>
    tpu.vector_store %arg6[%c0_130, %c0_131, %c1_132, %c0_133, %c0_134], %84 {strides = array<i32>} : memref<1x16x2x16x16xbf16, #tpu.memory_space<vmem>>, vector<1x16x1x16x16xbf16>,
    return
  }
  func.func @transform_0(%arg0: i32) -> (i32, i32, i32, i32) {
    %c0_i32 = arith.constant 0 : i32
    %c0_i32_0 = arith.constant 0 : i32
    %c0_i32_1 = arith.constant 0 : i32
    %c0_i32_2 = arith.constant 0 : i32
    return %arg0, %c0_i32, %c0_i32_0, %c0_i32_1 : i32, i32, i32, i32
  }
  func.func @transform_1(%arg0: i32) -> (i32, i32) {
    %c0_i32 = arith.constant 0 : i32
    %c0_i32_0 = arith.constant 0 : i32
    %c0_i32_1 = arith.constant 0 : i32
    return %c0_i32, %c0_i32_0 : i32, i32
  }
  func.func @transform_2(%arg0: i32) -> (i32, i32) {
    %c0_i32 = arith.constant 0 : i32
    %c0_i32_0 = arith.constant 0 : i32
    %c0_i32_1 = arith.constant 0 : i32
    return %c0_i32, %c0_i32_0 : i32, i32
  }
  func.func @transform_3(%arg0: i32) -> (i32, i32, i32) {
    %c0_i32 = arith.constant 0 : i32
    %c0_i32_0 = arith.constant 0 : i32
    %c0_i32_1 = arith.constant 0 : i32
    %c0_i32_2 = arith.constant 0 : i32
    return %c0_i32, %c0_i32_0, %c0_i32_1 : i32, i32, i32
  }
  func.func @transform_4(%arg0: i32) -> (i32, i32) {
    %c0_i32 = arith.constant 0 : i32
    %c0_i32_0 = arith.constant 0 : i32
    %c0_i32_1 = arith.constant 0 : i32
    return %c0_i32, %c0_i32_0 : i32, i32
  }
  func.func @transform_5(%arg0: i32) -> (i32, i32, i32, i32, i32) {
    %c0_i32 = arith.constant 0 : i32
    %c0_i32_0 = arith.constant 0 : i32
    %c0_i32_1 = arith.constant 0 : i32
    %c0_i32_2 = arith.constant 0 : i32
    %c0_i32_3 = arith.constant 0 : i32
    return %arg0, %c0_i32, %c0_i32_0, %c0_i32_1, %c0_i32_2 : i32, i32, i32, i32, i32
  }
}

</mosaic_0001>

<llo_original>
// kernel: _forward.2
$region0: #{_forward.2}
  #allocation0 [shape = 'u32[]', space=smem, size = 0x4, offset = 0x4, fixed_abs, tag = 'smem constant byte address 0x4 - core index']
  #allocation1 [shape = 'u32[144,128]{1,0:T(1,128)}', space=vmem, size = 0x12000, scoped, tag = 'internal scratch']
  #allocation2 [shape = 'bf16[10,10,128]{2,1,0:T(8,128)(2,1)}', space=vmem, size = 0xa000, scoped, tag = 'scratch operand']
  #allocation3 [shape = 'bf16[10,10,128]{2,1,0:T(8,128)(2,1)}', space=vmem, size = 0xa000, scoped, tag = 'scratch operand']
  %s0 = inlined_call_operand.vmem [shape: bf16[2,8,8,8], index: 0, kind: input, shape index: {}]
  %s1 = inlined_call_operand.hbm [shape: bf16[1152,8], index: 1, kind: input, shape index: {}]
  %s2 = inlined_call_operand.vmem [shape: f32[1,8], index: 2, kind: input, shape index: {}]
  %s3 = inlined_call_operand.hbm [shape: bf16[2,768,16], index: 3, kind: input, shape index: {}]
  %s4 = inlined_call_operand.vmem [shape: f32[1,16], index: 4, kind: input, shape index: {}]
  %s5 = inlined_call_operand.vmem [shape: bf16[2,8,2,8,16], index: 5, kind: output, shape index: {}]
  %s6 = sld [smem:[#allocation0]]
  $region61: #{_forward.2} parent=0
    _
  %s8 = ssub.s32 1, %s6
  %s9 = scalar_select 0, %s8, %s6
  $region1: #{_forward.2} parent=0
    #allocation4 [shape = 'u8[294912]{0}', space=vmem, size = 0x48000, scoped, tag = 'input window, operand 1, single buffered']
    #allocation5 [shape = 's32[2]{0}', space=sflag, size = 0x8, scoped, tag = 'scoped memory for _forward.2']
    #allocation6 [shape = 'u8[393216]{0}', space=vmem, size = 0x60000, scoped, tag = 'input window, operand 3, single buffered']
    #allocation7 [shape = 's32[1]{0}', space=sflag, size = 0x4, scoped, tag = 'scoped memory for _forward.2']
    %10 = vsyncpa [#allocation5], 0
    %11 = vsyncpa [#allocation7], 0
    loop: start=0, step=1, limit=4
    $region2: #{_forward.2} parent=1 // loop_pre_header
      _
    $region3: #{_forward.2} parent=1 // loop_header
      %s13 = sphi 0, %s17
      %p14 = scmp.ge.s32.totalorder %s13, 4
      %s23 = sphi 0, %s25
      %s26 = sphi 0, %s23
      %s27 = sphi 0, %s26
      %s43 = sphi 0, %s27
      %s47 = sphi 0, %s47
      %s49 = sphi 0, %s47
      %s50 = sphi 0, %s49
      %s64 = sphi 0, %s50
      %s68 = sphi 0, %s68
      %s70 = sphi 0, %s68
      %s71 = sphi 0, %s70
      %s85 = sphi 0, %s71
      %s89 = sphi 0, %s89
      %s91 = sphi 0, %s89
      %s92 = sphi 0, %s91
      %s106 = sphi 0, %s92
      %s110 = sphi 0, %s110
      %s112 = sphi 0, %s110
      %s113 = sphi 0, %s112
      %s127 = sphi 0, %s113
      %s133 = sphi 0, %s135
      %s136 = sphi 0, %s133
      %s137 = sphi 0, %s136
      %s153 = sphi 0, %s137
    $region4: #{_forward.2} parent=1 // loop_header_branch
      %16 = sbr.rel (%p14) target = $region8
    $region5: #{_forward.2} parent=1 // loop_body
      %s18 = ssub.s32 %s13, 1
      %s19 = ssub.s32 %s13, 2
      %s20 = sadd.s32 %s13, 1
      %s21 = ssub.s32 %s13, %s20
      %p22 = scmp.eq.s32.totalorder %s21, 0
      %s24 = sadd.s32 %s23, 1
      %s25 = scalar_select %p22, %s23, %s24
      %p28 = pneg %p22
      %p29 = scmp.eq.s32.totalorder %s13, 1
      %p30 = por %p28, %p29
      %p31 = scmp.ne.s32.totalorder %s23, %s26
      %p32 = scmp.eq.s32.totalorder %s13, 0
      %p33 = por %p31, %p32
      %p34 = scmp.ne.s32.totalorder %s23, %s26
      %p35 = scmp.eq.s32.totalorder %s18, 1
      %p36 = por %p34, %p35
      %p37 = scmp.ne.s32.totalorder %s26, %s27
      %p38 = scmp.eq.s32.totalorder %s18, 0
      %p39 = por %p37, %p38
      %p40 = scmp.ne.s32.totalorder %s26, %s27
      %p41 = scmp.eq.s32.totalorder %s19, 1
      %p42 = por %p40, %p41
      %p44 = scmp.ne.s32.totalorder %s27, %s43
      %p45 = scmp.eq.s32.totalorder %s19, 0
      %p46 = por %p44, %p45
      %s48 = sadd.s32 %s47, 1
      %p51 = scmp.eq.s32.totalorder %s13, 1
      %p52 = scmp.ne.s32.totalorder %s47, %s49
      %p53 = scmp.eq.s32.totalorder %s13, 0
      %p54 = por %p52, %p53
      %p55 = scmp.ne.s32.totalorder %s47, %s49
      %p56 = scmp.eq.s32.totalorder %s18, 1
      %p57 = por %p55, %p56
      %p58 = scmp.ne.s32.totalorder %s49, %s50
      %p59 = scmp.eq.s32.totalorder %s18, 0
      %p60 = por %p58, %p59
      %p61 = scmp.ne.s32.totalorder %s49, %s50
      %p62 = scmp.eq.s32.totalorder %s19, 1
      %p63 = por %p61, %p62
      %p65 = scmp.ne.s32.totalorder %s50, %s64
      %p66 = scmp.eq.s32.totalorder %s19, 0
      %p67 = por %p65, %p66
      %s69 = sadd.s32 %s68, 1
      %p72 = scmp.eq.s32.totalorder %s13, 1
      %p73 = scmp.ne.s32.totalorder %s68, %s70
      %p74 = scmp.eq.s32.totalorder %s13, 0
      %p75 = por %p73, %p74
      %p76 = scmp.ne.s32.totalorder %s68, %s70
      %p77 = scmp.eq.s32.totalorder %s18, 1
      %p78 = por %p76, %p77
      %p79 = scmp.ne.s32.totalorder %s70, %s71
      %p80 = scmp.eq.s32.totalorder %s18, 0
      %p81 = por %p79, %p80
      %p82 = scmp.ne.s32.totalorder %s70, %s71
      %p83 = scmp.eq.s32.totalorder %s19, 1
      %p84 = por %p82, %p83
      %p86 = scmp.ne.s32.totalorder %s71, %s85
      %p87 = scmp.eq.s32.totalorder %s19, 0
      %p88 = por %p86, %p87
      %s90 = sadd.s32 %s89, 1
      %p93 = scmp.eq.s32.totalorder %s13, 1
      %p94 = scmp.ne.s32.totalorder %s89, %s91
      %p95 = scmp.eq.s32.totalorder %s13, 0
      %p96 = por %p94, %p95
      %p97 = scmp.ne.s32.totalorder %s89, %s91
      %p98 = scmp.eq.s32.totalorder %s18, 1
      %p99 = por %p97, %p98
      %p100 = scmp.ne.s32.totalorder %s91, %s92
      %p101 = scmp.eq.s32.totalorder %s18, 0
      %p102 = por %p100, %p101
      %p103 = scmp.ne.s32.totalorder %s91, %s92
      %p104 = scmp.eq.s32.totalorder %s19, 1
      %p105 = por %p103, %p104
      %p107 = scmp.ne.s32.totalorder %s92, %s106
      %p108 = scmp.eq.s32.totalorder %s19, 0
      %p109 = por %p107, %p108
      %s111 = sadd.s32 %s110, 1
      %p114 = scmp.eq.s32.totalorder %s13, 1
      %p115 = scmp.ne.s32.totalorder %s110, %s112
      %p116 = scmp.eq.s32.totalorder %s13, 0
      %p117 = por %p115, %p116
      %p118 = scmp.ne.s32.totalorder %s110, %s112
      %p119 = scmp.eq.s32.totalorder %s18, 1
      %p120 = por %p118, %p119
      %p121 = scmp.ne.s32.totalorder %s112, %s113
      %p122 = scmp.eq.s32.totalorder %s18, 0
      %p123 = por %p121, %p122
      %p124 = scmp.ne.s32.totalorder %s112, %s113
      %p125 = scmp.eq.s32.totalorder %s19, 1
      %p126 = por %p124, %p125
      %p128 = scmp.ne.s32.totalorder %s113, %s127
      %p129 = scmp.eq.s32.totalorder %s19, 0
      %p130 = por %p128, %p129
      %s131 = ssub.s32 %s13, %s20
      %p132 = scmp.eq.s32.totalorder %s131, 0
      %s134 = sadd.s32 %s133, 1
      %s135 = scalar_select %p132, %s133, %s134
      %p138 = pneg %p132
      %p139 = scmp.eq.s32.totalorder %s13, 1
      %p140 = por %p138, %p139
      %p141 = scmp.ne.s32.totalorder %s133, %s136
      %p142 = scmp.eq.s32.totalorder %s13, 0
      %p143 = por %p141, %p142
      %p144 = scmp.ne.s32.totalorder %s133, %s136
      %p145 = scmp.eq.s32.totalorder %s18, 1
      %p146 = por %p144, %p145
      %p147 = scmp.ne.s32.totalorder %s136, %s137
      %p148 = scmp.eq.s32.totalorder %s18, 0
      %p149 = por %p147, %p148
      %p150 = scmp.ne.s32.totalorder %s136, %s137
      %p151 = scmp.eq.s32.totalorder %s19, 1
      %p152 = por %p150, %p151
      %p154 = scmp.ne.s32.totalorder %s137, %s153
      %p155 = scmp.eq.s32.totalorder %s19, 0
      %p156 = por %p154, %p155
      %p157 = scmp.le.s32.totalorder 1, %s13
      %p158 = scmp.lt.s32.totalorder %s13, 3
      %p159 = pnand %p157, %p158
      %p160 = pneg %p159
      // Predicated region
      $region9: #{_forward.2} parent=5 // pred_check
        _
      $region10: #{_forward.2} parent=5 // pred_check_branch
        %162 = sbr.rel (%p159) target = $region12
      $region11: #{_forward.2} parent=5 // pred_region
        %s163 = ssub.s32 %s13, 1
        // Predicated region
        $region13: #{_forward.2} parent=11 // pred_check
          %p164 = pneg %p60
        $region14: #{_forward.2} parent=11 // pred_check_branch
          %166 = sbr.rel (%p164) target = $region16
        $region15: #{_forward.2} parent=11 // pred_region
          %s168 = ssub.s32 9216, 9216
          %169 = vsyncadd [#allocation5], %s168
          %s170 = sshll.u32 [#allocation4], 4
          %s171 = int_to_ptr.vmem [resolvable:$true] %s170
          %176 = dma.hbm_to_vmem [thread:$0]  %s1, 9216, %s171, [#allocation5], 64, 64, 4
        $region16: #{_forward.2} parent=11 // pred_fallthru
          _
        // Predicated region
        $region17: #{_forward.2} parent=11 // pred_check
          %p177 = pneg %p81
        $region18: #{_forward.2} parent=11 // pred_check_branch
          %179 = sbr.rel (%p177) target = $region20
        $region19: #{_forward.2} parent=11 // pred_region
          _
        $region20: #{_forward.2} parent=11 // pred_fallthru
          _
        // Predicated region
        $region21: #{_forward.2} parent=11 // pred_check
          %p180 = pneg %p102
        $region22: #{_forward.2} parent=11 // pred_check_branch
          %182 = sbr.rel (%p180) target = $region24
        $region23: #{_forward.2} parent=11 // pred_region
          %s184 = ssub.s32 12288, 12288
          %185 = vsyncadd [#allocation7], %s184
          %s186 = sshll.u32 [#allocation6], 4
          %s187 = int_to_ptr.vmem [resolvable:$true] %s186
          %192 = dma.hbm_to_vmem [thread:$0]  %s3, 12288, %s187, [#allocation7], 64, 64, 4
        $region24: #{_forward.2} parent=11 // pred_fallthru
          _
        // Predicated region
        $region25: #{_forward.2} parent=11 // pred_check
          %p193 = pneg %p123
        $region26: #{_forward.2} parent=11 // pred_check_branch
          %195 = sbr.rel (%p193) target = $region28
        $region27: #{_forward.2} parent=11 // pred_region
          _
        $region28: #{_forward.2} parent=11 // pred_fallthru
          _
      $region12: #{_forward.2} parent=5 // pred_fallthru
        _
      %p196 = scmp.lt.s32.totalorder %s13, 2
      // Predicated region
      $region29: #{_forward.2} parent=5 // pred_check
        %p197 = pneg %p196
      $region30: #{_forward.2} parent=5 // pred_check_branch
        %199 = sbr.rel (%p197) target = $region32
      $region31: #{_forward.2} parent=5 // pred_region
        // Predicated region
        $region33: #{_forward.2} parent=31 // pred_check
          %p200 = pneg %p33
        $region34: #{_forward.2} parent=31 // pred_check_branch
          %202 = sbr.rel (%p200) target = $region36
        $region35: #{_forward.2} parent=31 // pred_region
          %p203 = scmp.lt.s32.totalorder %s13, 1
          %s204 = scalar_select %p203, %s13, 1
          %s205 = smul.addr %s204, 8
          %s206 = smul.addr %s205, 4
          %s207 = scalar_lea.vmem %s0, %s206
        $region36: #{_forward.2} parent=31 // pred_fallthru
          _
      $region32: #{_forward.2} parent=5 // pred_fallthru
        _
      %p208 = scmp.le.s32.totalorder 1, %s13
      %p209 = scmp.lt.s32.totalorder %s13, 3
      %p210 = pnand %p208, %p209
      %p211 = pneg %p210
      // Predicated region
      $region37: #{_forward.2} parent=5 // pred_check
        _
      $region38: #{_forward.2} parent=5 // pred_check_branch
        %213 = sbr.rel (%p210) target = $region40
      $region39: #{_forward.2} parent=5 // pred_region
        %s214 = ssub.s32 %s13, 1
        // Predicated region
        $region41: #{_forward.2} parent=39 // pred_check
          %p215 = pneg %p60
        $region42: #{_forward.2} parent=39 // pred_check_branch
          %217 = sbr.rel (%p215) target = $region44
        $region43: #{_forward.2} parent=39 // pred_region
          %218 = dma.done [#allocation5], 9216
        $region44: #{_forward.2} parent=39 // pred_fallthru
          _
        // Predicated region
        $region45: #{_forward.2} parent=39 // pred_check
          %p219 = pneg %p102
        $region46: #{_forward.2} parent=39 // pred_check_branch
          %221 = sbr.rel (%p219) target = $region48
        $region47: #{_forward.2} parent=39 // pred_region
          %222 = dma.done [#allocation7], 12288
        $region48: #{_forward.2} parent=39 // pred_fallthru
          _
        %p223 = scmp.lt.s32.totalorder %s18, 1
        %s224 = scalar_select %p223, %s18, 1
        %s225 = smul.addr %s224, 8
        %s226 = smul.addr %s225, 4
        %s227 = scalar_lea.vmem %s0, %s226
        %p228 = pneg %p39
        %p229 = pneg %p36
        %p230 = pneg %p60
        %p231 = pneg %p57
        %p232 = pneg %p81
        %p233 = pneg %p78
        %p234 = pneg %p102
        %p235 = pneg %p99
        %p236 = pneg %p123
        %p237 = pneg %p120
        %p238 = pneg %p149
        %p239 = pneg %p146
        %p240 = scmp.lt.s32.totalorder %s18, 1
        %s241 = scalar_select %p240, %s18, 1
        %s242 = smul.addr %s241, 16
        %s243 = smul.addr %s242, 4
        %s244 = scalar_lea.vmem %s5, %s243
        %p245 = scmp.lt.s32.totalorder %s18, 1
        %s246 = scalar_select %p245, %s18, 1
        %s247 = smul.addr %s246, 8
        %s248 = smul.addr %s247, 4
        %s249 = scalar_lea.vmem %s0, %s248
        %p250 = scmp.lt.s32.totalorder %s18, 1
        %s251 = scalar_select %p250, %s18, 1
        %s252 = smul.addr %s251, 16
        %s253 = smul.addr %s252, 4
        %s254 = scalar_lea.vmem %s5, %s253
        %256 = vst [vmem:[#allocation2] sm:$0xf] 0
        %257 = vst [vmem:[#allocation2 + $0x4] sm:$0x1] 0
        %s258 = scalar_lea.vmem [#allocation2], 72
        %259 = vst [vmem:[%s258] sm:$0xf] 0
        %260 = vst [vmem:[%s258 + $0x4] sm:$0x1] 0
        %vm261 = vcmask 1040384
        %vm262 = vsmask.f32 256
        %vm263 = vmand %vm261, %vm262
        %v264 = vld [vmem:[#allocation2] sm:$0x1]
        %v265 = vsel %vm263, 0, %v264
        %266 = vst [vmem:[#allocation2] sm:$0x1] %v265
        %v267 = vld [vmem:[#allocation2 + $0x8] sm:$0x1]
        %v268 = vsel %vm263, 0, %v267
        %269 = vst [vmem:[#allocation2 + $0x8] sm:$0x1] %v268
        %v270 = vld [vmem:[#allocation2 + $0x10] sm:$0x1]
        %v271 = vsel %vm263, 0, %v270
        %272 = vst [vmem:[#allocation2 + $0x10] sm:$0x1] %v271
        %v273 = vld [vmem:[#allocation2 + $0x18] sm:$0x1]
        %v274 = vsel %vm263, 0, %v273
        %275 = vst [vmem:[#allocation2 + $0x18] sm:$0x1] %v274
        %v276 = vld [vmem:[#allocation2 + $0x20] sm:$0x1]
        %v277 = vsel %vm263, 0, %v276
        %278 = vst [vmem:[#allocation2 + $0x20] sm:$0x1] %v277
        %v279 = vld [vmem:[#allocation2 + $0x28] sm:$0x1]
        %v280 = vsel %vm263, 0, %v279
        %281 = vst [vmem:[#allocation2 + $0x28] sm:$0x1] %v280
        %v282 = vld [vmem:[#allocation2 + $0x30] sm:$0x1]
        %v283 = vsel %vm263, 0, %v282
        %284 = vst [vmem:[#allocation2 + $0x30] sm:$0x1] %v283
        %v285 = vld [vmem:[#allocation2 + $0x38] sm:$0x1]
        %v286 = vsel %vm263, 0, %v285
        %287 = vst [vmem:[#allocation2 + $0x38] sm:$0x1] %v286
        %v288 = vld [vmem:[#allocation2 + $0x40] sm:$0x1]
        %v289 = vsel %vm263, 0, %v288
        %290 = vst [vmem:[#allocation2 + $0x40] sm:$0x1] %v289
        %v291 = vld [vmem:[#allocation2 + $0x48] sm:$0x1]
        %v292 = vsel %vm263, 0, %v291
        %293 = vst [vmem:[#allocation2 + $0x48] sm:$0x1] %v292
        %vm294 = vsmask.f32 7938
        %vm295 = vmand %vm261, %vm294
        %v296 = vld [vmem:[#allocation2 + $0x4] sm:$0x1]
        %v297 = vsel %vm295, 0, %v296
        %298 = vst [vmem:[#allocation2 + $0x4] sm:$0x1] %v297
        %v299 = vld [vmem:[#allocation2 + $0xc] sm:$0x1]
        %v300 = vsel %vm295, 0, %v299
        %301 = vst [vmem:[#allocation2 + $0xc] sm:$0x1] %v300
        %v302 = vld [vmem:[#allocation2 + $0x14] sm:$0x1]
        %v303 = vsel %vm295, 0, %v302
        %304 = vst [vmem:[#allocation2 + $0x14] sm:$0x1] %v303
        %v305 = vld [vmem:[#allocation2 + $0x1c] sm:$0x1]
        %v306 = vsel %vm295, 0, %v305
        %307 = vst [vmem:[#allocation2 + $0x1c] sm:$0x1] %v306
        %v308 = vld [vmem:[#allocation2 + $0x24] sm:$0x1]
        %v309 = vsel %vm295, 0, %v308
        %310 = vst [vmem:[#allocation2 + $0x24] sm:$0x1] %v309
        %v311 = vld [vmem:[#allocation2 + $0x2c] sm:$0x1]
        %v312 = vsel %vm295, 0, %v311
        %313 = vst [vmem:[#allocation2 + $0x2c] sm:$0x1] %v312
        %v314 = vld [vmem:[#allocation2 + $0x34] sm:$0x1]
        %v315 = vsel %vm295, 0, %v314
        %316 = vst [vmem:[#allocation2 + $0x34] sm:$0x1] %v315
        %v317 = vld [vmem:[#allocation2 + $0x3c] sm:$0x1]
        %v318 = vsel %vm295, 0, %v317
        %319 = vst [vmem:[#allocation2 + $0x3c] sm:$0x1] %v318
        %v320 = vld [vmem:[#allocation2 + $0x44] sm:$0x1]
        %v321 = vsel %vm295, 0, %v320
        %322 = vst [vmem:[#allocation2 + $0x44] sm:$0x1] %v321
        %v323 = vld [vmem:[#allocation2 + $0x4c] sm:$0x1]
        %v324 = vsel %vm295, 0, %v323
        %325 = vst [vmem:[#allocation2 + $0x4c] sm:$0x1] %v324
        %s326 = scalar_lea.vmem [#allocation2], 8
        %vm327 = vcmask 1043520
        %vm328 = vmand %vm327, %vm294
        %v329 = vld [vmem:[%s326] sm:$0xf]
        %v330 = vsel %vm328, 0, %v329
        %331 = vst [vmem:[%s326] sm:$0xf] %v330
        %vm332 = vcmask 1040448
        %vm333 = vmand %vm332, %vm262
        %v334 = vld [vmem:[%s326 + $0x4] sm:$0x1]
        %v335 = vsel %vm333, 0, %v334
        %336 = vst [vmem:[%s326 + $0x4] sm:$0x1] %v335
        %v337 = vld [vmem:[%s326 + $0x8] sm:$0xf]
        %v338 = vsel %vm328, 0, %v337
        %339 = vst [vmem:[%s326 + $0x8] sm:$0xf] %v338
        %v340 = vld [vmem:[%s326 + $0xc] sm:$0x1]
        %v341 = vsel %vm333, 0, %v340
        %342 = vst [vmem:[%s326 + $0xc] sm:$0x1] %v341
        %v343 = vld [vmem:[%s326 + $0x10] sm:$0xf]
        %v344 = vsel %vm328, 0, %v343
        %345 = vst [vmem:[%s326 + $0x10] sm:$0xf] %v344
        %v346 = vld [vmem:[%s326 + $0x14] sm:$0x1]
        %v347 = vsel %vm333, 0, %v346
        %348 = vst [vmem:[%s326 + $0x14] sm:$0x1] %v347
        %v349 = vld [vmem:[%s326 + $0x18] sm:$0xf]
        %v350 = vsel %vm328, 0, %v349
        %351 = vst [vmem:[%s326 + $0x18] sm:$0xf] %v350
        %v352 = vld [vmem:[%s326 + $0x1c] sm:$0x1]
        %v353 = vsel %vm333, 0, %v352
        %354 = vst [vmem:[%s326 + $0x1c] sm:$0x1] %v353
        %v355 = vld [vmem:[%s326 + $0x20] sm:$0xf]
        %v356 = vsel %vm328, 0, %v355
        %357 = vst [vmem:[%s326 + $0x20] sm:$0xf] %v356
        %v358 = vld [vmem:[%s326 + $0x24] sm:$0x1]
        %v359 = vsel %vm333, 0, %v358
        %360 = vst [vmem:[%s326 + $0x24] sm:$0x1] %v359
        %v361 = vld [vmem:[%s326 + $0x28] sm:$0xf]
        %v362 = vsel %vm328, 0, %v361
        %363 = vst [vmem:[%s326 + $0x28] sm:$0xf] %v362
        %v364 = vld [vmem:[%s326 + $0x2c] sm:$0x1]
        %v365 = vsel %vm333, 0, %v364
        %366 = vst [vmem:[%s326 + $0x2c] sm:$0x1] %v365
        %v367 = vld [vmem:[%s326 + $0x30] sm:$0xf]
        %v368 = vsel %vm328, 0, %v367
        %369 = vst [vmem:[%s326 + $0x30] sm:$0xf] %v368
        %v370 = vld [vmem:[%s326 + $0x34] sm:$0x1]
        %v371 = vsel %vm333, 0, %v370
        %372 = vst [vmem:[%s326 + $0x34] sm:$0x1] %v371
        %v373 = vld [vmem:[%s326 + $0x38] sm:$0xf]
        %v374 = vsel %vm328, 0, %v373
        %375 = vst [vmem:[%s326 + $0x38] sm:$0xf] %v374
        %v376 = vld [vmem:[%s326 + $0x3c] sm:$0x1]
        %v377 = vsel %vm333, 0, %v376
        %378 = vst [vmem:[%s326 + $0x3c] sm:$0x1] %v377
        %v379 = vld [vmem:[%s249] sm:$0xf]
        %v380 = vld [vmem:[%s249 + $0x4] sm:$0xf]
        %v381 = vld [vmem:[%s249 + $0x8] sm:$0xf]
        %v382 = vld [vmem:[%s249 + $0xc] sm:$0xf]
        %v383 = vld [vmem:[%s249 + $0x10] sm:$0xf]
        %v384 = vld [vmem:[%s249 + $0x14] sm:$0xf]
        %v385 = vld [vmem:[%s249 + $0x18] sm:$0xf]
        %v386 = vld [vmem:[%s249 + $0x1c] sm:$0xf]
        %v388 = vshrl.u32 %v379, 16
        %v390 = vrot.slane %v388, 7
        %v391 = vshll.u32 %v379, 16
        %v393 = vor.u32 %v390, %v391
        %v394 = vrot.slane %v390, 4
        %v396 = vshrl.u32 %v380, 16
        %v398 = vrot.slane %v396, 7
        %v399 = vshll.u32 %v380, 16
        %v401 = vor.u32 %v398, %v399
        %v402 = vrot.slane %v398, 4
        %v404 = vshrl.u32 %v381, 16
        %v406 = vrot.slane %v404, 7
        %v407 = vshll.u32 %v381, 16
        %v409 = vor.u32 %v406, %v407
        %v410 = vrot.slane %v406, 4
        %v412 = vshrl.u32 %v382, 16
        %v414 = vrot.slane %v412, 7
        %v415 = vshll.u32 %v382, 16
        %v417 = vor.u32 %v414, %v415
        %v418 = vrot.slane %v414, 4
        %v420 = vshrl.u32 %v383, 16
        %v422 = vrot.slane %v420, 7
        %v423 = vshll.u32 %v383, 16
        %v425 = vor.u32 %v422, %v423
        %v426 = vrot.slane %v422, 4
        %v428 = vshrl.u32 %v384, 16
        %v430 = vrot.slane %v428, 7
        %v431 = vshll.u32 %v384, 16
        %v433 = vor.u32 %v430, %v431
        %v434 = vrot.slane %v430, 4
        %v436 = vshrl.u32 %v385, 16
        %v438 = vrot.slane %v436, 7
        %v439 = vshll.u32 %v385, 16
        %v441 = vor.u32 %v438, %v439
        %v442 = vrot.slane %v438, 4
        %v444 = vshrl.u32 %v386, 16
        %v446 = vrot.slane %v444, 7
        %v447 = vshll.u32 %v386, 16
        %v449 = vor.u32 %v446, %v447
        %v450 = vrot.slane %v446, 4
        %vm467 = vcmask 60416
        %vm468 = vmand %vm467, %vm294
        %v469 = vld [vmem:[%s326] sm:$0xf]
        %v470 = vsel %vm468, %v393, %v469
        %471 = vst [vmem:[%s326] sm:$0xf] %v470
        %vm472 = vcmask 57344
        %vm473 = vmand %vm472, %vm262
        %v474 = vld [vmem:[%s326 + $0x4] sm:$0x1]
        %v475 = vsel %vm473, %v394, %v474
        %476 = vst [vmem:[%s326 + $0x4] sm:$0x1] %v475
        %v477 = vld [vmem:[%s326 + $0x8] sm:$0xf]
        %v478 = vsel %vm468, %v401, %v477
        %479 = vst [vmem:[%s326 + $0x8] sm:$0xf] %v478
        %v480 = vld [vmem:[%s326 + $0xc] sm:$0x1]
        %v481 = vsel %vm473, %v402, %v480
        %482 = vst [vmem:[%s326 + $0xc] sm:$0x1] %v481
        %v483 = vld [vmem:[%s326 + $0x10] sm:$0xf]
        %v484 = vsel %vm468, %v409, %v483
        %485 = vst [vmem:[%s326 + $0x10] sm:$0xf] %v484
        %v486 = vld [vmem:[%s326 + $0x14] sm:$0x1]
        %v487 = vsel %vm473, %v410, %v486
        %488 = vst [vmem:[%s326 + $0x14] sm:$0x1] %v487
        %v489 = vld [vmem:[%s326 + $0x18] sm:$0xf]
        %v490 = vsel %vm468, %v417, %v489
        %491 = vst [vmem:[%s326 + $0x18] sm:$0xf] %v490
        %v492 = vld [vmem:[%s326 + $0x1c] sm:$0x1]
        %v493 = vsel %vm473, %v418, %v492
        %494 = vst [vmem:[%s326 + $0x1c] sm:$0x1] %v493
        %v495 = vld [vmem:[%s326 + $0x20] sm:$0xf]
        %v496 = vsel %vm468, %v425, %v495
        %497 = vst [vmem:[%s326 + $0x20] sm:$0xf] %v496
        %v498 = vld [vmem:[%s326 + $0x24] sm:$0x1]
        %v499 = vsel %vm473, %v426, %v498
        %500 = vst [vmem:[%s326 + $0x24] sm:$0x1] %v499
        %v501 = vld [vmem:[%s326 + $0x28] sm:$0xf]
        %v502 = vsel %vm468, %v433, %v501
        %503 = vst [vmem:[%s326 + $0x28] sm:$0xf] %v502
        %v504 = vld [vmem:[%s326 + $0x2c] sm:$0x1]
        %v505 = vsel %vm473, %v434, %v504
        %506 = vst [vmem:[%s326 + $0x2c] sm:$0x1] %v505
        %v507 = vld [vmem:[%s326 + $0x30] sm:$0xf]
        %v508 = vsel %vm468, %v441, %v507
        %509 = vst [vmem:[%s326 + $0x30] sm:$0xf] %v508
        %v510 = vld [vmem:[%s326 + $0x34] sm:$0x1]
        %v511 = vsel %vm473, %v442, %v510
        %512 = vst [vmem:[%s326 + $0x34] sm:$0x1] %v511
        %v513 = vld [vmem:[%s326 + $0x38] sm:$0xf]
        %v514 = vsel %vm468, %v449, %v513
        %515 = vst [vmem:[%s326 + $0x38] sm:$0xf] %v514
        %v516 = vld [vmem:[%s326 + $0x3c] sm:$0x1]
        %v517 = vsel %vm473, %v450, %v516
        %518 = vst [vmem:[%s326 + $0x3c] sm:$0x1] %v517
        %v519 = vld [vmem:[#allocation2] sm:$0xf]
        %v520 = vld [vmem:[#allocation2 + $0x8] sm:$0xf]
        %v521 = vld [vmem:[#allocation2 + $0x10] sm:$0xf]
        %v522 = vld [vmem:[#allocation2 + $0x18] sm:$0xf]
        %v523 = vld [vmem:[#allocation2 + $0x20] sm:$0xf]
        %v524 = vld [vmem:[#allocation2 + $0x28] sm:$0xf]
        %v525 = vld [vmem:[#allocation2 + $0x30] sm:$0xf]
        %v526 = vld [vmem:[#allocation2 + $0x38] sm:$0xf]
        %v527 = vld [vmem:[#allocation2 + $0x4] sm:$0x1]
        %v528 = vld [vmem:[#allocation2 + $0xc] sm:$0x1]
        %v529 = vld [vmem:[#allocation2 + $0x14] sm:$0x1]
        %v530 = vld [vmem:[#allocation2 + $0x1c] sm:$0x1]
        %v531 = vld [vmem:[#allocation2 + $0x24] sm:$0x1]
        %v532 = vld [vmem:[#allocation2 + $0x2c] sm:$0x1]
        %v533 = vld [vmem:[#allocation2 + $0x34] sm:$0x1]
        %v534 = vld [vmem:[#allocation2 + $0x3c] sm:$0x1]
        %v535 = vld [vmem:[#allocation2] sm:$0xe]
        %v536 = vld [vmem:[#allocation2 + $0x8] sm:$0xe]
        %v537 = vld [vmem:[#allocation2 + $0x10] sm:$0xe]
        %v538 = vld [vmem:[#allocation2 + $0x18] sm:$0xe]
        %v539 = vld [vmem:[#allocation2 + $0x20] sm:$0xe]
        %v540 = vld [vmem:[#allocation2 + $0x28] sm:$0xe]
        %v541 = vld [vmem:[#allocation2 + $0x30] sm:$0xe]
        %v542 = vld [vmem:[#allocation2 + $0x38] sm:$0xe]
        %v543 = vld [vmem:[%s326] sm:$0xf]
        %v544 = vld [vmem:[%s326 + $0x8] sm:$0xf]
        %v545 = vld [vmem:[%s326 + $0x10] sm:$0xf]
        %v546 = vld [vmem:[%s326 + $0x18] sm:$0xf]
        %v547 = vld [vmem:[%s326 + $0x20] sm:$0xf]
        %v548 = vld [vmem:[%s326 + $0x28] sm:$0xf]
        %v549 = vld [vmem:[%s326 + $0x30] sm:$0xf]
        %v550 = vld [vmem:[%s326 + $0x38] sm:$0xf]
        %v551 = vld [vmem:[%s326 + $0x4] sm:$0x1]
        %v552 = vld [vmem:[%s326 + $0xc] sm:$0x1]
        %v553 = vld [vmem:[%s326 + $0x14] sm:$0x1]
        %v554 = vld [vmem:[%s326 + $0x1c] sm:$0x1]
        %v555 = vld [vmem:[%s326 + $0x24] sm:$0x1]
        %v556 = vld [vmem:[%s326 + $0x2c] sm:$0x1]
        %v557 = vld [vmem:[%s326 + $0x34] sm:$0x1]
        %v558 = vld [vmem:[%s326 + $0x3c] sm:$0x1]
        %v559 = vld [vmem:[%s326] sm:$0xe]
        %v560 = vld [vmem:[%s326 + $0x8] sm:$0xe]
        %v561 = vld [vmem:[%s326 + $0x10] sm:$0xe]
        %v562 = vld [vmem:[%s326 + $0x18] sm:$0xe]
        %v563 = vld [vmem:[%s326 + $0x20] sm:$0xe]
        %v564 = vld [vmem:[%s326 + $0x28] sm:$0xe]
        %v565 = vld [vmem:[%s326 + $0x30] sm:$0xe]
        %v566 = vld [vmem:[%s326 + $0x38] sm:$0xe]
        %s567 = scalar_lea.vmem [#allocation2], 16
        %v568 = vld [vmem:[%s567] sm:$0xf]
        %v569 = vld [vmem:[%s567 + $0x8] sm:$0xf]
        %v570 = vld [vmem:[%s567 + $0x10] sm:$0xf]
        %v571 = vld [vmem:[%s567 + $0x18] sm:$0xf]
        %v572 = vld [vmem:[%s567 + $0x20] sm:$0xf]
        %v573 = vld [vmem:[%s567 + $0x28] sm:$0xf]
        %v574 = vld [vmem:[%s567 + $0x30] sm:$0xf]
        %v575 = vld [vmem:[%s567 + $0x38] sm:$0xf]
        %v576 = vld [vmem:[%s567 + $0x4] sm:$0x1]
        %v577 = vld [vmem:[%s567 + $0xc] sm:$0x1]
        %v578 = vld [vmem:[%s567 + $0x14] sm:$0x1]
        %v579 = vld [vmem:[%s567 + $0x1c] sm:$0x1]
        %v580 = vld [vmem:[%s567 + $0x24] sm:$0x1]
        %v581 = vld [vmem:[%s567 + $0x2c] sm:$0x1]
        %v582 = vld [vmem:[%s567 + $0x34] sm:$0x1]
        %v583 = vld [vmem:[%s567 + $0x3c] sm:$0x1]
        %v584 = vld [vmem:[%s567] sm:$0xe]
        %v585 = vld [vmem:[%s567 + $0x8] sm:$0xe]
        %v586 = vld [vmem:[%s567 + $0x10] sm:$0xe]
        %v587 = vld [vmem:[%s567 + $0x18] sm:$0xe]
        %v588 = vld [vmem:[%s567 + $0x20] sm:$0xe]
        %v589 = vld [vmem:[%s567 + $0x28] sm:$0xe]
        %v590 = vld [vmem:[%s567 + $0x30] sm:$0xe]
        %v591 = vld [vmem:[%s567 + $0x38] sm:$0xe]
        %v608 = vunpack.c.l.b16 %v519
        %v609 = vunpack.c.l.b16 %v527
        %v610 = vunpack.c.l.b16 %v520
        %v611 = vunpack.c.l.b16 %v528
        %v612 = vunpack.c.l.b16 %v521
        %v613 = vunpack.c.l.b16 %v529
        %v614 = vunpack.c.l.b16 %v522
        %v615 = vunpack.c.l.b16 %v530
        %v616 = vunpack.c.l.b16 %v523
        %v617 = vunpack.c.l.b16 %v531
        %v618 = vunpack.c.l.b16 %v524
        %v619 = vunpack.c.l.b16 %v532
        %v620 = vunpack.c.l.b16 %v525
        %v621 = vunpack.c.l.b16 %v533
        %v622 = vunpack.c.l.b16 %v526
        %v623 = vunpack.c.l.b16 %v534
        %v624 = vpack.c.b16 %v609, %v608
        %v625 = vpack.c.b16 %v611, %v610
        %v626 = vpack.c.b16 %v613, %v612
        %v627 = vpack.c.b16 %v615, %v614
        %v628 = vpack.c.b16 %v617, %v616
        %v629 = vpack.c.b16 %v619, %v618
        %v630 = vpack.c.b16 %v621, %v620
        %v631 = vpack.c.b16 %v623, %v622
        %v633 = vshrl.u32 %v624, 16
        %v635 = vshll.u32 %v624, 16
        %v637 = vrot.slane %v635, 1
        %v638 = vor.u32 %v633, %v637
        %v640 = vshrl.u32 %v625, 16
        %v642 = vshll.u32 %v625, 16
        %v644 = vrot.slane %v642, 1
        %v645 = vor.u32 %v640, %v644
        %v647 = vshrl.u32 %v626, 16
        %v649 = vshll.u32 %v626, 16
        %v651 = vrot.slane %v649, 1
        %v652 = vor.u32 %v647, %v651
        %v654 = vshrl.u32 %v627, 16
        %v656 = vshll.u32 %v627, 16
        %v658 = vrot.slane %v656, 1
        %v659 = vor.u32 %v654, %v658
        %v661 = vshrl.u32 %v628, 16
        %v663 = vshll.u32 %v628, 16
        %v665 = vrot.slane %v663, 1
        %v666 = vor.u32 %v661, %v665
        %v668 = vshrl.u32 %v629, 16
        %v670 = vshll.u32 %v629, 16
        %v672 = vrot.slane %v670, 1
        %v673 = vor.u32 %v668, %v672
        %v675 = vshrl.u32 %v630, 16
        %v677 = vshll.u32 %v630, 16
        %v679 = vrot.slane %v677, 1
        %v680 = vor.u32 %v675, %v679
        %v682 = vshrl.u32 %v631, 16
        %v684 = vshll.u32 %v631, 16
        %v686 = vrot.slane %v684, 1
        %v687 = vor.u32 %v682, %v686
        %v696 = vunpack.c.l.b16 %v535
        %v697 = vunpack.c.l.b16 %v536
        %v698 = vunpack.c.l.b16 %v537
        %v699 = vunpack.c.l.b16 %v538
        %v700 = vunpack.c.l.b16 %v539
        %v701 = vunpack.c.l.b16 %v540
        %v702 = vunpack.c.l.b16 %v541
        %v703 = vunpack.c.l.b16 %v542
        %v704 = vpack.c.b16 %v609, %v696
        %v705 = vpack.c.b16 %v611, %v697
        %v706 = vpack.c.b16 %v613, %v698
        %v707 = vpack.c.b16 %v615, %v699
        %v708 = vpack.c.b16 %v617, %v700
        %v709 = vpack.c.b16 %v619, %v701
        %v710 = vpack.c.b16 %v621, %v702
        %v711 = vpack.c.b16 %v623, %v703
        %v712 = vrot.slane %v704, 1
        %v713 = vrot.slane %v705, 1
        %v714 = vrot.slane %v706, 1
        %v715 = vrot.slane %v707, 1
        %v716 = vrot.slane %v708, 1
        %v717 = vrot.slane %v709, 1
        %v718 = vrot.slane %v710, 1
        %v719 = vrot.slane %v711, 1
        %v736 = vunpack.c.l.b16 %v543
        %v737 = vunpack.c.l.b16 %v551
        %v738 = vunpack.c.l.b16 %v544
        %v739 = vunpack.c.l.b16 %v552
        %v740 = vunpack.c.l.b16 %v545
        %v741 = vunpack.c.l.b16 %v553
        %v742 = vunpack.c.l.b16 %v546
        %v743 = vunpack.c.l.b16 %v554
        %v744 = vunpack.c.l.b16 %v547
        %v745 = vunpack.c.l.b16 %v555
        %v746 = vunpack.c.l.b16 %v548
        %v747 = vunpack.c.l.b16 %v556
        %v748 = vunpack.c.l.b16 %v549
        %v749 = vunpack.c.l.b16 %v557
        %v750 = vunpack.c.l.b16 %v550
        %v751 = vunpack.c.l.b16 %v558
        %v752 = vpack.c.b16 %v737, %v736
        %v753 = vpack.c.b16 %v739, %v738
        %v754 = vpack.c.b16 %v741, %v740
        %v755 = vpack.c.b16 %v743, %v742
        %v756 = vpack.c.b16 %v745, %v744
        %v757 = vpack.c.b16 %v747, %v746
        %v758 = vpack.c.b16 %v749, %v748
        %v759 = vpack.c.b16 %v751, %v750
        %v761 = vshrl.u32 %v752, 16
        %v763 = vshll.u32 %v752, 16
        %v765 = vrot.slane %v763, 1
        %v766 = vor.u32 %v761, %v765
        %v768 = vshrl.u32 %v753, 16
        %v770 = vshll.u32 %v753, 16
        %v772 = vrot.slane %v770, 1
        %v773 = vor.u32 %v768, %v772
        %v775 = vshrl.u32 %v754, 16
        %v777 = vshll.u32 %v754, 16
        %v779 = vrot.slane %v777, 1
        %v780 = vor.u32 %v775, %v779
        %v782 = vshrl.u32 %v755, 16
        %v784 = vshll.u32 %v755, 16
        %v786 = vrot.slane %v784, 1
        %v787 = vor.u32 %v782, %v786
        %v789 = vshrl.u32 %v756, 16
        %v791 = vshll.u32 %v756, 16
        %v793 = vrot.slane %v791, 1
        %v794 = vor.u32 %v789, %v793
        %v796 = vshrl.u32 %v757, 16
        %v798 = vshll.u32 %v757, 16
        %v800 = vrot.slane %v798, 1
        %v801 = vor.u32 %v796, %v800
        %v803 = vshrl.u32 %v758, 16
        %v805 = vshll.u32 %v758, 16
        %v807 = vrot.slane %v805, 1
        %v808 = vor.u32 %v803, %v807
        %v810 = vshrl.u32 %v759, 16
        %v812 = vshll.u32 %v759, 16
        %v814 = vrot.slane %v812, 1
        %v815 = vor.u32 %v810, %v814
        %v824 = vunpack.c.l.b16 %v559
        %v825 = vunpack.c.l.b16 %v560
        %v826 = vunpack.c.l.b16 %v561
        %v827 = vunpack.c.l.b16 %v562
        %v828 = vunpack.c.l.b16 %v563
        %v829 = vunpack.c.l.b16 %v564
        %v830 = vunpack.c.l.b16 %v565
        %v831 = vunpack.c.l.b16 %v566
        %v832 = vpack.c.b16 %v737, %v824
        %v833 = vpack.c.b16 %v739, %v825
        %v834 = vpack.c.b16 %v741, %v826
        %v835 = vpack.c.b16 %v743, %v827
        %v836 = vpack.c.b16 %v745, %v828
        %v837 = vpack.c.b16 %v747, %v829
        %v838 = vpack.c.b16 %v749, %v830
        %v839 = vpack.c.b16 %v751, %v831
        %v840 = vrot.slane %v832, 1
        %v841 = vrot.slane %v833, 1
        %v842 = vrot.slane %v834, 1
        %v843 = vrot.slane %v835, 1
        %v844 = vrot.slane %v836, 1
        %v845 = vrot.slane %v837, 1
        %v846 = vrot.slane %v838, 1
        %v847 = vrot.slane %v839, 1
        %v864 = vunpack.c.l.b16 %v568
        %v865 = vunpack.c.l.b16 %v576
        %v866 = vunpack.c.l.b16 %v569
        %v867 = vunpack.c.l.b16 %v577
        %v868 = vunpack.c.l.b16 %v570
        %v869 = vunpack.c.l.b16 %v578
        %v870 = vunpack.c.l.b16 %v571
        %v871 = vunpack.c.l.b16 %v579
        %v872 = vunpack.c.l.b16 %v572
        %v873 = vunpack.c.l.b16 %v580
        %v874 = vunpack.c.l.b16 %v573
        %v875 = vunpack.c.l.b16 %v581
        %v876 = vunpack.c.l.b16 %v574
        %v877 = vunpack.c.l.b16 %v582
        %v878 = vunpack.c.l.b16 %v575
        %v879 = vunpack.c.l.b16 %v583
        %v880 = vpack.c.b16 %v865, %v864
        %v881 = vpack.c.b16 %v867, %v866
        %v882 = vpack.c.b16 %v869, %v868
        %v883 = vpack.c.b16 %v871, %v870
        %v884 = vpack.c.b16 %v873, %v872
        %v885 = vpack.c.b16 %v875, %v874
        %v886 = vpack.c.b16 %v877, %v876
        %v887 = vpack.c.b16 %v879, %v878
        %v889 = vshrl.u32 %v880, 16
        %v891 = vshll.u32 %v880, 16
        %v893 = vrot.slane %v891, 1
        %v894 = vor.u32 %v889, %v893
        %v896 = vshrl.u32 %v881, 16
        %v898 = vshll.u32 %v881, 16
        %v900 = vrot.slane %v898, 1
        %v901 = vor.u32 %v896, %v900
        %v903 = vshrl.u32 %v882, 16
        %v905 = vshll.u32 %v882, 16
        %v907 = vrot.slane %v905, 1
        %v908 = vor.u32 %v903, %v907
        %v910 = vshrl.u32 %v883, 16
        %v912 = vshll.u32 %v883, 16
        %v914 = vrot.slane %v912, 1
        %v915 = vor.u32 %v910, %v914
        %v917 = vshrl.u32 %v884, 16
        %v919 = vshll.u32 %v884, 16
        %v921 = vrot.slane %v919, 1
        %v922 = vor.u32 %v917, %v921
        %v924 = vshrl.u32 %v885, 16
        %v926 = vshll.u32 %v885, 16
        %v928 = vrot.slane %v926, 1
        %v929 = vor.u32 %v924, %v928
        %v931 = vshrl.u32 %v886, 16
        %v933 = vshll.u32 %v886, 16
        %v935 = vrot.slane %v933, 1
        %v936 = vor.u32 %v931, %v935
        %v938 = vshrl.u32 %v887, 16
        %v940 = vshll.u32 %v887, 16
        %v942 = vrot.slane %v940, 1
        %v943 = vor.u32 %v938, %v942
        %v952 = vunpack.c.l.b16 %v584
        %v953 = vunpack.c.l.b16 %v585
        %v954 = vunpack.c.l.b16 %v586
        %v955 = vunpack.c.l.b16 %v587
        %v956 = vunpack.c.l.b16 %v588
        %v957 = vunpack.c.l.b16 %v589
        %v958 = vunpack.c.l.b16 %v590
        %v959 = vunpack.c.l.b16 %v591
        %v960 = vpack.c.b16 %v865, %v952
        %v961 = vpack.c.b16 %v867, %v953
        %v962 = vpack.c.b16 %v869, %v954
        %v963 = vpack.c.b16 %v871, %v955
        %v964 = vpack.c.b16 %v873, %v956
        %v965 = vpack.c.b16 %v875, %v957
        %v966 = vpack.c.b16 %v877, %v958
        %v967 = vpack.c.b16 %v879, %v959
        %v968 = vrot.slane %v960, 1
        %v969 = vrot.slane %v961, 1
        %v970 = vrot.slane %v962, 1
        %v971 = vrot.slane %v963, 1
        %v972 = vrot.slane %v964, 1
        %v973 = vrot.slane %v965, 1
        %v974 = vrot.slane %v966, 1
        %v975 = vrot.slane %v967, 1
        %v976 = vunpack.c.l.b16 %v638
        %v977 = vunpack.c.l.b16 %v712
        %v978 = vunpack.c.l.b16 %v766
        %v979 = vunpack.c.l.b16 %v840
        %v980 = vunpack.c.l.b16 %v894
        %v981 = vunpack.c.l.b16 %v968
        %v982 = vunpack.c.l.b16 %v645
        %v983 = vunpack.c.l.b16 %v713
        %v984 = vunpack.c.l.b16 %v773
        %v985 = vunpack.c.l.b16 %v841
        %v986 = vunpack.c.l.b16 %v901
        %v987 = vunpack.c.l.b16 %v969
        %v988 = vunpack.c.l.b16 %v652
        %v989 = vunpack.c.l.b16 %v714
        %v990 = vunpack.c.l.b16 %v780
        %v991 = vunpack.c.l.b16 %v842
        %v992 = vunpack.c.l.b16 %v908
        %v993 = vunpack.c.l.b16 %v970
        %v994 = vunpack.c.l.b16 %v659
        %v995 = vunpack.c.l.b16 %v715
        %v996 = vunpack.c.l.b16 %v787
        %v997 = vunpack.c.l.b16 %v843
        %v998 = vunpack.c.l.b16 %v915
        %v999 = vunpack.c.l.b16 %v971
        %v1000 = vunpack.c.l.b16 %v666
        %v1001 = vunpack.c.l.b16 %v716
        %v1002 = vunpack.c.l.b16 %v794
        %v1003 = vunpack.c.l.b16 %v844
        %v1004 = vunpack.c.l.b16 %v922
        %v1005 = vunpack.c.l.b16 %v972
        %v1006 = vunpack.c.l.b16 %v673
        %v1007 = vunpack.c.l.b16 %v717
        %v1008 = vunpack.c.l.b16 %v801
        %v1009 = vunpack.c.l.b16 %v845
        %v1010 = vunpack.c.l.b16 %v929
        %v1011 = vunpack.c.l.b16 %v973
        %v1012 = vunpack.c.l.b16 %v680
        %v1013 = vunpack.c.l.b16 %v718
        %v1014 = vunpack.c.l.b16 %v808
        %v1015 = vunpack.c.l.b16 %v846
        %v1016 = vunpack.c.l.b16 %v936
        %v1017 = vunpack.c.l.b16 %v974
        %v1018 = vunpack.c.l.b16 %v687
        %v1019 = vunpack.c.l.b16 %v719
        %v1020 = vunpack.c.l.b16 %v815
        %v1021 = vunpack.c.l.b16 %v847
        %v1022 = vunpack.c.l.b16 %v943
        %v1023 = vunpack.c.l.b16 %v975
        %v1024 = vld [vmem:[#allocation4] sm:$0xf]
        %v1025 = vld [vmem:[#allocation4 + $0x4] sm:$0xf]
        %v1026 = vld [vmem:[#allocation4 + $0x8] sm:$0xf]
        %v1027 = vld [vmem:[#allocation4 + $0xc] sm:$0xf]
        %v1028 = vld [vmem:[#allocation4 + $0x10] sm:$0xf]
        %v1029 = vld [vmem:[#allocation4 + $0x14] sm:$0xf]
        %v1030 = vld [vmem:[#allocation4 + $0x18] sm:$0xf]
        %v1031 = vld [vmem:[#allocation4 + $0x1c] sm:$0xf]
        %v1032 = vld [vmem:[#allocation4 + $0x20] sm:$0xf]
        %v1033 = vld [vmem:[#allocation4 + $0x24] sm:$0xf]
        %v1034 = vld [vmem:[#allocation4 + $0x28] sm:$0xf]
        %v1035 = vld [vmem:[#allocation4 + $0x2c] sm:$0xf]
        %v1036 = vld [vmem:[#allocation4 + $0x30] sm:$0xf]
        %v1037 = vld [vmem:[#allocation4 + $0x34] sm:$0xf]
        %v1038 = vld [vmem:[#allocation4 + $0x38] sm:$0xf]
        %v1039 = vld [vmem:[#allocation4 + $0x3c] sm:$0xf]
        %v1040 = vld [vmem:[#allocation4 + $0x40] sm:$0xf]
        %v1041 = vld [vmem:[#allocation4 + $0x44] sm:$0xf]
        %v1042 = vld [vmem:[#allocation4 + $0x48] sm:$0xf]
        %v1043 = vld [vmem:[#allocation4 + $0x4c] sm:$0xf]
        %v1044 = vld [vmem:[#allocation4 + $0x50] sm:$0xf]
        %v1045 = vld [vmem:[#allocation4 + $0x54] sm:$0xf]
        %v1046 = vld [vmem:[#allocation4 + $0x58] sm:$0xf]
        %v1047 = vld [vmem:[#allocation4 + $0x5c] sm:$0xf]
        %v1048 = vld [vmem:[#allocation4 + $0x60] sm:$0xf]
        %v1049 = vld [vmem:[#allocation4 + $0x64] sm:$0xf]
        %v1050 = vld [vmem:[#allocation4 + $0x68] sm:$0xf]
        %v1051 = vld [vmem:[#allocation4 + $0x6c] sm:$0xf]
        %v1052 = vld [vmem:[#allocation4 + $0x70] sm:$0xf]
        %v1053 = vld [vmem:[#allocation4 + $0x74] sm:$0xf]
        %v1054 = vld [vmem:[#allocation4 + $0x78] sm:$0xf]
        %v1055 = vld [vmem:[#allocation4 + $0x7c] sm:$0xf]
        %v1056 = vld [vmem:[#allocation4 + $0x80] sm:$0xf]
        %v1057 = vld [vmem:[#allocation4 + $0x84] sm:$0xf]
        %v1058 = vld [vmem:[#allocation4 + $0x88] sm:$0xf]
        %v1059 = vld [vmem:[#allocation4 + $0x8c] sm:$0xf]
        %v1060 = vld [vmem:[#allocation4 + $0x90] sm:$0xf]
        %v1061 = vld [vmem:[#allocation4 + $0x94] sm:$0xf]
        %v1062 = vld [vmem:[#allocation4 + $0x98] sm:$0xf]
        %v1063 = vld [vmem:[#allocation4 + $0x9c] sm:$0xf]
        %v1064 = vld [vmem:[#allocation4 + $0xa0] sm:$0xf]
        %v1065 = vld [vmem:[#allocation4 + $0xa4] sm:$0xf]
        %v1066 = vld [vmem:[#allocation4 + $0xa8] sm:$0xf]
        %v1067 = vld [vmem:[#allocation4 + $0xac] sm:$0xf]
        %v1068 = vld [vmem:[#allocation4 + $0xb0] sm:$0xf]
        %v1069 = vld [vmem:[#allocation4 + $0xb4] sm:$0xf]
        %v1070 = vld [vmem:[#allocation4 + $0xb8] sm:$0xf]
        %v1071 = vld [vmem:[#allocation4 + $0xbc] sm:$0xf]
        %v1072 = vld [vmem:[#allocation4 + $0xc0] sm:$0xf]
        %v1073 = vld [vmem:[#allocation4 + $0xc4] sm:$0xf]
        %v1074 = vld [vmem:[#allocation4 + $0xc8] sm:$0xf]
        %v1075 = vld [vmem:[#allocation4 + $0xcc] sm:$0xf]
        %v1076 = vld [vmem:[#allocation4 + $0xd0] sm:$0xf]
        %v1077 = vld [vmem:[#allocation4 + $0xd4] sm:$0xf]
        %v1078 = vld [vmem:[#allocation4 + $0xd8] sm:$0xf]
        %v1079 = vld [vmem:[#allocation4 + $0xdc] sm:$0xf]
        %v1080 = vld [vmem:[#allocation4 + $0xe0] sm:$0xf]
        %v1081 = vld [vmem:[#allocation4 + $0xe4] sm:$0xf]
        %v1082 = vld [vmem:[#allocation4 + $0xe8] sm:$0xf]
        %v1083 = vld [vmem:[#allocation4 + $0xec] sm:$0xf]
        %v1084 = vld [vmem:[#allocation4 + $0xf0] sm:$0xf]
        %v1085 = vld [vmem:[#allocation4 + $0xf4] sm:$0xf]
        %v1086 = vld [vmem:[#allocation4 + $0xf8] sm:$0xf]
        %v1087 = vld [vmem:[#allocation4 + $0xfc] sm:$0xf]
        %v1088 = vld [vmem:[#allocation4 + $0x100] sm:$0xf]
        %v1089 = vld [vmem:[#allocation4 + $0x104] sm:$0xf]
        %v1090 = vld [vmem:[#allocation4 + $0x108] sm:$0xf]
        %v1091 = vld [vmem:[#allocation4 + $0x10c] sm:$0xf]
        %v1092 = vld [vmem:[#allocation4 + $0x110] sm:$0xf]
        %v1093 = vld [vmem:[#allocation4 + $0x114] sm:$0xf]
        %v1094 = vld [vmem:[#allocation4 + $0x118] sm:$0xf]
        %v1095 = vld [vmem:[#allocation4 + $0x11c] sm:$0xf]
        %v1096 = vld [vmem:[#allocation4 + $0x120] sm:$0xf]
        %v1097 = vld [vmem:[#allocation4 + $0x124] sm:$0xf]
        %v1098 = vld [vmem:[#allocation4 + $0x128] sm:$0xf]
        %v1099 = vld [vmem:[#allocation4 + $0x12c] sm:$0xf]
        %v1100 = vld [vmem:[#allocation4 + $0x130] sm:$0xf]
        %v1101 = vld [vmem:[#allocation4 + $0x134] sm:$0xf]
        %v1102 = vld [vmem:[#allocation4 + $0x138] sm:$0xf]
        %v1103 = vld [vmem:[#allocation4 + $0x13c] sm:$0xf]
        %v1104 = vld [vmem:[#allocation4 + $0x140] sm:$0xf]
        %v1105 = vld [vmem:[#allocation4 + $0x144] sm:$0xf]
        %v1106 = vld [vmem:[#allocation4 + $0x148] sm:$0xf]
        %v1107 = vld [vmem:[#allocation4 + $0x14c] sm:$0xf]
        %v1108 = vld [vmem:[#allocation4 + $0x150] sm:$0xf]
        %v1109 = vld [vmem:[#allocation4 + $0x154] sm:$0xf]
        %v1110 = vld [vmem:[#allocation4 + $0x158] sm:$0xf]
        %v1111 = vld [vmem:[#allocation4 + $0x15c] sm:$0xf]
        %v1112 = vld [vmem:[#allocation4 + $0x160] sm:$0xf]
        %v1113 = vld [vmem:[#allocation4 + $0x164] sm:$0xf]
        %v1114 = vld [vmem:[#allocation4 + $0x168] sm:$0xf]
        %v1115 = vld [vmem:[#allocation4 + $0x16c] sm:$0xf]
        %v1116 = vld [vmem:[#allocation4 + $0x170] sm:$0xf]
        %v1117 = vld [vmem:[#allocation4 + $0x174] sm:$0xf]
        %v1118 = vld [vmem:[#allocation4 + $0x178] sm:$0xf]
        %v1119 = vld [vmem:[#allocation4 + $0x17c] sm:$0xf]
        %v1120 = vld [vmem:[#allocation4 + $0x180] sm:$0xf]
        %v1121 = vld [vmem:[#allocation4 + $0x184] sm:$0xf]
        %v1122 = vld [vmem:[#allocation4 + $0x188] sm:$0xf]
        %v1123 = vld [vmem:[#allocation4 + $0x18c] sm:$0xf]
        %v1124 = vld [vmem:[#allocation4 + $0x190] sm:$0xf]
        %v1125 = vld [vmem:[#allocation4 + $0x194] sm:$0xf]
        %v1126 = vld [vmem:[#allocation4 + $0x198] sm:$0xf]
        %v1127 = vld [vmem:[#allocation4 + $0x19c] sm:$0xf]
        %v1128 = vld [vmem:[#allocation4 + $0x1a0] sm:$0xf]
        %v1129 = vld [vmem:[#allocation4 + $0x1a4] sm:$0xf]
        %v1130 = vld [vmem:[#allocation4 + $0x1a8] sm:$0xf]
        %v1131 = vld [vmem:[#allocation4 + $0x1ac] sm:$0xf]
        %v1132 = vld [vmem:[#allocation4 + $0x1b0] sm:$0xf]
        %v1133 = vld [vmem:[#allocation4 + $0x1b4] sm:$0xf]
        %v1134 = vld [vmem:[#allocation4 + $0x1b8] sm:$0xf]
        %v1135 = vld [vmem:[#allocation4 + $0x1bc] sm:$0xf]
        %v1136 = vld [vmem:[#allocation4 + $0x1c0] sm:$0xf]
        %v1137 = vld [vmem:[#allocation4 + $0x1c4] sm:$0xf]
        %v1138 = vld [vmem:[#allocation4 + $0x1c8] sm:$0xf]
        %v1139 = vld [vmem:[#allocation4 + $0x1cc] sm:$0xf]
        %v1140 = vld [vmem:[#allocation4 + $0x1d0] sm:$0xf]
        %v1141 = vld [vmem:[#allocation4 + $0x1d4] sm:$0xf]
        %v1142 = vld [vmem:[#allocation4 + $0x1d8] sm:$0xf]
        %v1143 = vld [vmem:[#allocation4 + $0x1dc] sm:$0xf]
        %v1144 = vld [vmem:[#allocation4 + $0x1e0] sm:$0xf]
        %v1145 = vld [vmem:[#allocation4 + $0x1e4] sm:$0xf]
        %v1146 = vld [vmem:[#allocation4 + $0x1e8] sm:$0xf]
        %v1147 = vld [vmem:[#allocation4 + $0x1ec] sm:$0xf]
        %v1148 = vld [vmem:[#allocation4 + $0x1f0] sm:$0xf]
        %v1149 = vld [vmem:[#allocation4 + $0x1f4] sm:$0xf]
        %v1150 = vld [vmem:[#allocation4 + $0x1f8] sm:$0xf]
        %v1151 = vld [vmem:[#allocation4 + $0x1fc] sm:$0xf]
        %v1152 = vld [vmem:[#allocation4 + $0x200] sm:$0xf]
        %v1153 = vld [vmem:[#allocation4 + $0x204] sm:$0xf]
        %v1154 = vld [vmem:[#allocation4 + $0x208] sm:$0xf]
        %v1155 = vld [vmem:[#allocation4 + $0x20c] sm:$0xf]
        %v1156 = vld [vmem:[#allocation4 + $0x210] sm:$0xf]
        %v1157 = vld [vmem:[#allocation4 + $0x214] sm:$0xf]
        %v1158 = vld [vmem:[#allocation4 + $0x218] sm:$0xf]
        %v1159 = vld [vmem:[#allocation4 + $0x21c] sm:$0xf]
        %v1160 = vld [vmem:[#allocation4 + $0x220] sm:$0xf]
        %v1161 = vld [vmem:[#allocation4 + $0x224] sm:$0xf]
        %v1162 = vld [vmem:[#allocation4 + $0x228] sm:$0xf]
        %v1163 = vld [vmem:[#allocation4 + $0x22c] sm:$0xf]
        %v1164 = vld [vmem:[#allocation4 + $0x230] sm:$0xf]
        %v1165 = vld [vmem:[#allocation4 + $0x234] sm:$0xf]
        %v1166 = vld [vmem:[#allocation4 + $0x238] sm:$0xf]
        %v1167 = vld [vmem:[#allocation4 + $0x23c] sm:$0xf]
        %v1168 = vld [vmem:[%s2] sm:$0x1]
        %v1170 = vlaneseq
        %v1171 = vshrl.u32 %v1170, 7
        %v1172 = vsub.s32 0, %v1171
        %v1173 = vrot.slane %v1168, %v1172
        %v1175 = vpack.c.b16 %v610, %v608
        %v1176 = vpack.c.b16 %v982, %v976
        %v1177 = vpack.c.b16 %v983, %v977
        %v1178 = vpack.c.b16 %v738, %v736
        %v1179 = vpack.c.b16 %v984, %v978
        %v1180 = vpack.c.b16 %v985, %v979
        %v1181 = vpack.c.b16 %v866, %v864
        %v1182 = vpack.c.b16 %v986, %v980
        %v1183 = vpack.c.b16 %v987, %v981
        %v1184 = vpack.c.b16 %v614, %v612
        %v1185 = vpack.c.b16 %v994, %v988
        %v1186 = vpack.c.b16 %v995, %v989
        %v1187 = vpack.c.b16 %v742, %v740
        %v1188 = vpack.c.b16 %v996, %v990
        %v1189 = vpack.c.b16 %v997, %v991
        %v1190 = vpack.c.b16 %v870, %v868
        %v1191 = vpack.c.b16 %v998, %v992
        %v1192 = vpack.c.b16 %v999, %v993
        %v1193 = vpack.c.b16 %v618, %v616
        %v1194 = vpack.c.b16 %v1006, %v1000
        %v1195 = vpack.c.b16 %v1007, %v1001
        %v1196 = vpack.c.b16 %v746, %v744
        %v1197 = vpack.c.b16 %v1008, %v1002
        %v1198 = vpack.c.b16 %v1009, %v1003
        %v1199 = vpack.c.b16 %v874, %v872
        %v1200 = vpack.c.b16 %v1010, %v1004
        %v1201 = vpack.c.b16 %v1011, %v1005
        %v1202 = vpack.c.b16 %v622, %v620
        %v1203 = vpack.c.b16 %v1018, %v1012
        %v1204 = vpack.c.b16 %v1019, %v1013
        %v1205 = vpack.c.b16 %v750, %v748
        %v1206 = vpack.c.b16 %v1020, %v1014
        %v1207 = vpack.c.b16 %v1021, %v1015
        %v1208 = vpack.c.b16 %v878, %v876
        %v1209 = vpack.c.b16 %v1022, %v1016
        %v1210 = vpack.c.b16 %v1023, %v1017
        %v1391 = vunpack.c.l.b16 %v1024
        %v1392 = vunpack.c.l.b16 %v1025
        %v1393 = vunpack.c.l.b16 %v1026
        %v1394 = vunpack.c.l.b16 %v1027
        %v1395 = vunpack.c.l.b16 %v1028
        %v1396 = vunpack.c.l.b16 %v1029
        %v1397 = vunpack.c.l.b16 %v1030
        %v1398 = vunpack.c.l.b16 %v1031
        %v1399 = vunpack.c.l.b16 %v1032
        %v1400 = vunpack.c.l.b16 %v1033
        %v1401 = vunpack.c.l.b16 %v1034
        %v1402 = vunpack.c.l.b16 %v1035
        %v1403 = vunpack.c.l.b16 %v1036
        %v1404 = vunpack.c.l.b16 %v1037
        %v1405 = vunpack.c.l.b16 %v1038
        %v1406 = vunpack.c.l.b16 %v1039
        %v1407 = vunpack.c.l.b16 %v1040
        %v1408 = vunpack.c.l.b16 %v1041
        %v1409 = vunpack.c.l.b16 %v1042
        %v1410 = vunpack.c.l.b16 %v1043
        %v1411 = vunpack.c.l.b16 %v1044
        %v1412 = vunpack.c.l.b16 %v1045
        %v1413 = vunpack.c.l.b16 %v1046
        %v1414 = vunpack.c.l.b16 %v1047
        %v1415 = vunpack.c.l.b16 %v1048
        %v1416 = vunpack.c.l.b16 %v1049
        %v1417 = vunpack.c.l.b16 %v1050
        %v1418 = vunpack.c.l.b16 %v1051
        %v1419 = vunpack.c.l.b16 %v1052
        %v1420 = vunpack.c.l.b16 %v1053
        %v1421 = vunpack.c.l.b16 %v1054
        %v1422 = vunpack.c.l.b16 %v1055
        %v1423 = vunpack.c.l.b16 %v1056
        %v1424 = vunpack.c.l.b16 %v1057
        %v1425 = vunpack.c.l.b16 %v1058
        %v1426 = vunpack.c.l.b16 %v1059
        %v1427 = vunpack.c.l.b16 %v1060
        %v1428 = vunpack.c.l.b16 %v1061
        %v1429 = vunpack.c.l.b16 %v1062
        %v1430 = vunpack.c.l.b16 %v1063
        %v1431 = vunpack.c.l.b16 %v1064
        %v1432 = vunpack.c.l.b16 %v1065
        %v1433 = vunpack.c.l.b16 %v1066
        %v1434 = vunpack.c.l.b16 %v1067
        %v1435 = vunpack.c.l.b16 %v1068
        %v1436 = vunpack.c.l.b16 %v1069
        %v1437 = vunpack.c.l.b16 %v1070
        %v1438 = vunpack.c.l.b16 %v1071
        %v1439 = vunpack.c.l.b16 %v1072
        %v1440 = vunpack.c.l.b16 %v1073
        %v1441 = vunpack.c.l.b16 %v1074
        %v1442 = vunpack.c.l.b16 %v1075
        %v1443 = vunpack.c.l.b16 %v1076
        %v1444 = vunpack.c.l.b16 %v1077
        %v1445 = vunpack.c.l.b16 %v1078
        %v1446 = vunpack.c.l.b16 %v1079
        %v1447 = vunpack.c.l.b16 %v1080
        %v1448 = vunpack.c.l.b16 %v1081
        %v1449 = vunpack.c.l.b16 %v1082
        %v1450 = vunpack.c.l.b16 %v1083
        %v1451 = vunpack.c.l.b16 %v1084
        %v1452 = vunpack.c.l.b16 %v1085
        %v1453 = vunpack.c.l.b16 %v1086
        %v1454 = vunpack.c.l.b16 %v1087
        %v1455 = vunpack.c.l.b16 %v1088
        %v1456 = vunpack.c.l.b16 %v1089
        %v1457 = vunpack.c.l.b16 %v1090
        %v1458 = vunpack.c.l.b16 %v1091
        %v1459 = vunpack.c.l.b16 %v1092
        %v1460 = vunpack.c.l.b16 %v1093
        %v1461 = vunpack.c.l.b16 %v1094
        %v1462 = vunpack.c.l.b16 %v1095
        %v1463 = vunpack.c.l.b16 %v1096
        %v1464 = vunpack.c.l.b16 %v1097
        %v1465 = vunpack.c.l.b16 %v1098
        %v1466 = vunpack.c.l.b16 %v1099
        %v1467 = vunpack.c.l.b16 %v1100
        %v1468 = vunpack.c.l.b16 %v1101
        %v1469 = vunpack.c.l.b16 %v1102
        %v1470 = vunpack.c.l.b16 %v1103
        %v1471 = vunpack.c.l.b16 %v1104
        %v1472 = vunpack.c.l.b16 %v1105
        %v1473 = vunpack.c.l.b16 %v1106
        %v1474 = vunpack.c.l.b16 %v1107
        %v1475 = vunpack.c.l.b16 %v1108
        %v1476 = vunpack.c.l.b16 %v1109
        %v1477 = vunpack.c.l.b16 %v1110
        %v1478 = vunpack.c.l.b16 %v1111
        %v1479 = vunpack.c.l.b16 %v1112
        %v1480 = vunpack.c.l.b16 %v1113
        %v1481 = vunpack.c.l.b16 %v1114
        %v1482 = vunpack.c.l.b16 %v1115
        %v1483 = vunpack.c.l.b16 %v1116
        %v1484 = vunpack.c.l.b16 %v1117
        %v1485 = vunpack.c.l.b16 %v1118
        %v1486 = vunpack.c.l.b16 %v1119
        %v1487 = vunpack.c.l.b16 %v1120
        %v1488 = vunpack.c.l.b16 %v1121
        %v1489 = vunpack.c.l.b16 %v1122
        %v1490 = vunpack.c.l.b16 %v1123
        %v1491 = vunpack.c.l.b16 %v1124
        %v1492 = vunpack.c.l.b16 %v1125
        %v1493 = vunpack.c.l.b16 %v1126
        %v1494 = vunpack.c.l.b16 %v1127
        %v1495 = vunpack.c.l.b16 %v1128
        %v1496 = vunpack.c.l.b16 %v1129
        %v1497 = vunpack.c.l.b16 %v1130
        %v1498 = vunpack.c.l.b16 %v1131
        %v1499 = vunpack.c.l.b16 %v1132
        %v1500 = vunpack.c.l.b16 %v1133
        %v1501 = vunpack.c.l.b16 %v1134
        %v1502 = vunpack.c.l.b16 %v1135
        %v1503 = vunpack.c.l.b16 %v1136
        %v1504 = vunpack.c.l.b16 %v1137
        %v1505 = vunpack.c.l.b16 %v1138
        %v1506 = vunpack.c.l.b16 %v1139
        %v1507 = vunpack.c.l.b16 %v1140
        %v1508 = vunpack.c.l.b16 %v1141
        %v1509 = vunpack.c.l.b16 %v1142
        %v1510 = vunpack.c.l.b16 %v1143
        %v1511 = vunpack.c.l.b16 %v1144
        %v1512 = vunpack.c.l.b16 %v1145
        %v1513 = vunpack.c.l.b16 %v1146
        %v1514 = vunpack.c.l.b16 %v1147
        %v1515 = vunpack.c.l.b16 %v1148
        %v1516 = vunpack.c.l.b16 %v1149
        %v1517 = vunpack.c.l.b16 %v1150
        %v1518 = vunpack.c.l.b16 %v1151
        %v1519 = vunpack.c.l.b16 %v1152
        %v1520 = vunpack.c.l.b16 %v1153
        %v1521 = vunpack.c.l.b16 %v1154
        %v1522 = vunpack.c.l.b16 %v1155
        %v1523 = vunpack.c.l.b16 %v1156
        %v1524 = vunpack.c.l.b16 %v1157
        %v1525 = vunpack.c.l.b16 %v1158
        %v1526 = vunpack.c.l.b16 %v1159
        %v1527 = vunpack.c.l.b16 %v1160
        %v1528 = vunpack.c.l.b16 %v1161
        %v1529 = vunpack.c.l.b16 %v1162
        %v1530 = vunpack.c.l.b16 %v1163
        %v1531 = vunpack.c.l.b16 %v1164
        %v1532 = vunpack.c.l.b16 %v1165
        %v1533 = vunpack.c.l.b16 %v1166
        %v1534 = vunpack.c.l.b16 %v1167
        %v1535 = vpack.c.b16 %v1392, %v1391
        %v1536 = vpack.c.b16 %v1394, %v1393
        %v1537 = vpack.c.b16 %v1396, %v1395
        %v1538 = vpack.c.b16 %v1398, %v1397
        %v1539 = vpack.c.b16 %v1400, %v1399
        %v1540 = vpack.c.b16 %v1402, %v1401
        %v1541 = vpack.c.b16 %v1404, %v1403
        %v1542 = vpack.c.b16 %v1406, %v1405
        %v1543 = vpack.c.b16 %v1408, %v1407
        %v1544 = vpack.c.b16 %v1410, %v1409
        %v1545 = vpack.c.b16 %v1412, %v1411
        %v1546 = vpack.c.b16 %v1414, %v1413
        %v1547 = vpack.c.b16 %v1416, %v1415
        %v1548 = vpack.c.b16 %v1418, %v1417
        %v1549 = vpack.c.b16 %v1420, %v1419
        %v1550 = vpack.c.b16 %v1422, %v1421
        %v1551 = vpack.c.b16 %v1424, %v1423
        %v1552 = vpack.c.b16 %v1426, %v1425
        %v1553 = vpack.c.b16 %v1428, %v1427
        %v1554 = vpack.c.b16 %v1430, %v1429
        %v1555 = vpack.c.b16 %v1432, %v1431
        %v1556 = vpack.c.b16 %v1434, %v1433
        %v1557 = vpack.c.b16 %v1436, %v1435
        %v1558 = vpack.c.b16 %v1438, %v1437
        %v1559 = vpack.c.b16 %v1440, %v1439
        %v1560 = vpack.c.b16 %v1442, %v1441
        %v1561 = vpack.c.b16 %v1444, %v1443
        %v1562 = vpack.c.b16 %v1446, %v1445
        %v1563 = vpack.c.b16 %v1448, %v1447
        %v1564 = vpack.c.b16 %v1450, %v1449
        %v1565 = vpack.c.b16 %v1452, %v1451
        %v1566 = vpack.c.b16 %v1454, %v1453
        %v1567 = vpack.c.b16 %v1456, %v1455
        %v1568 = vpack.c.b16 %v1458, %v1457
        %v1569 = vpack.c.b16 %v1460, %v1459
        %v1570 = vpack.c.b16 %v1462, %v1461
        %v1571 = vpack.c.b16 %v1464, %v1463
        %v1572 = vpack.c.b16 %v1466, %v1465
        %v1573 = vpack.c.b16 %v1468, %v1467
        %v1574 = vpack.c.b16 %v1470, %v1469
        %v1575 = vpack.c.b16 %v1472, %v1471
        %v1576 = vpack.c.b16 %v1474, %v1473
        %v1577 = vpack.c.b16 %v1476, %v1475
        %v1578 = vpack.c.b16 %v1478, %v1477
        %v1579 = vpack.c.b16 %v1480, %v1479
        %v1580 = vpack.c.b16 %v1482, %v1481
        %v1581 = vpack.c.b16 %v1484, %v1483
        %v1582 = vpack.c.b16 %v1486, %v1485
        %v1583 = vpack.c.b16 %v1488, %v1487
        %v1584 = vpack.c.b16 %v1490, %v1489
        %v1585 = vpack.c.b16 %v1492, %v1491
        %v1586 = vpack.c.b16 %v1494, %v1493
        %v1587 = vpack.c.b16 %v1496, %v1495
        %v1588 = vpack.c.b16 %v1498, %v1497
        %v1589 = vpack.c.b16 %v1500, %v1499
        %v1590 = vpack.c.b16 %v1502, %v1501
        %v1591 = vpack.c.b16 %v1504, %v1503
        %v1592 = vpack.c.b16 %v1506, %v1505
        %v1593 = vpack.c.b16 %v1508, %v1507
        %v1594 = vpack.c.b16 %v1510, %v1509
        %v1595 = vpack.c.b16 %v1512, %v1511
        %v1596 = vpack.c.b16 %v1514, %v1513
        %v1597 = vpack.c.b16 %v1516, %v1515
        %v1598 = vpack.c.b16 %v1518, %v1517
        %v1599 = vpack.c.b16 %v1520, %v1519
        %v1600 = vpack.c.b16 %v1522, %v1521
        %v1601 = vpack.c.b16 %v1524, %v1523
        %v1602 = vpack.c.b16 %v1526, %v1525
        %v1603 = vpack.c.b16 %v1528, %v1527
        %v1604 = vpack.c.b16 %v1530, %v1529
        %v1605 = vpack.c.b16 %v1532, %v1531
        %v1606 = vpack.c.b16 %v1534, %v1533
        %1679 = vmatprep.subr.bf16.mxu0 0
        %1680 = vmatpush1.bf16.msra.mxu0 %v1542
        %1681 = vmatprep.subr.bf16.mxu0 0
        %1682 = vmatpush1.bf16.msra.mxu0 %v1541
        %1683 = vmatprep.subr.bf16.mxu0 0
        %1684 = vmatpush1.bf16.msra.mxu0 %v1540
        %1685 = vmatprep.subr.bf16.mxu0 0
        %1686 = vmatpush1.bf16.msra.mxu0 %v1539
        %1687 = vmatprep.subr.bf16.mxu0 0
        %1688 = vmatpush1.bf16.msra.mxu0 %v1538
        %1689 = vmatprep.subr.bf16.mxu0 0
        %1690 = vmatpush1.bf16.msra.mxu0 %v1537
        %1691 = vmatprep.subr.bf16.mxu0 0
        %1692 = vmatpush1.bf16.msra.mxu0 %v1536
        %1693 = vmatprep.subr.bf16.mxu0 0
        %1694 = vmatpush1.bf16.msra.mxu0 %v1535
        %1695 = vmatprep.subr.bf16.mxu0 0
        %1696 = vmatpush2.bf16.msra.mxu0 %v1550
        %1697 = vmatprep.subr.bf16.mxu0 0
        %1698 = vmatpush2.bf16.msra.mxu0 %v1549
        %1699 = vmatprep.subr.bf16.mxu0 0
        %1700 = vmatpush2.bf16.msra.mxu0 %v1548
        %1701 = vmatprep.subr.bf16.mxu0 0
        %1702 = vmatpush2.bf16.msra.mxu0 %v1547
        %1703 = vmatprep.subr.bf16.mxu0 0
        %1704 = vmatpush2.bf16.msra.mxu0 %v1546
        %1705 = vmatprep.subr.bf16.mxu0 0
        %1706 = vmatpush2.bf16.msra.mxu0 %v1545
        %1707 = vmatprep.subr.bf16.mxu0 0
        %1708 = vmatpush2.bf16.msra.mxu0 %v1544
        %1709 = vmatprep.subr.bf16.mxu0 0
        %1710 = vmatpush2.bf16.msra.mxu0 %v1543
        %1711 = vmatprep.mubr.bf16.mxu0 %v1176
        %1712 = vmatmul.mubr.bf16.gmra.mxu0 %v1175
        %v1713 = vpop.f32.mrf.mxu0
        %v1714 = vadd.f32 %v1173, %v1713
        %v1715 = vpop.f32.mrf.mxu0
        %v1716 = vpop.f32.mrf.mxu0
        %v1717 = vadd.f32 %v1173, %v1716
        %v1718 = vpop.f32.mrf.mxu0
        %1719 = vmatprep.mubr.bf16.mxu0 %v1185
        %1720 = vmatmul.mubr.bf16.gmra.mxu0 %v1184
        %v1721 = vpop.f32.mrf.mxu0
        %v1722 = vadd.f32 %v1173, %v1721
        %v1723 = vpop.f32.mrf.mxu0
        %v1724 = vpop.f32.mrf.mxu0
        %v1725 = vadd.f32 %v1173, %v1724
        %v1726 = vpop.f32.mrf.mxu0
        %1727 = vmatprep.mubr.bf16.mxu0 %v1194
        %1728 = vmatmul.mubr.bf16.gmra.mxu0 %v1193
        %v1729 = vpop.f32.mrf.mxu0
        %v1730 = vadd.f32 %v1173, %v1729
        %v1731 = vpop.f32.mrf.mxu0
        %v1732 = vpop.f32.mrf.mxu0
        %v1733 = vadd.f32 %v1173, %v1732
        %v1734 = vpop.f32.mrf.mxu0
        %1735 = vmatprep.mubr.bf16.mxu0 %v1203
        %1736 = vmatmul.mubr.bf16.gmra.mxu0 %v1202
        %v1737 = vpop.f32.mrf.mxu0
        %v1738 = vadd.f32 %v1173, %v1737
        %v1739 = vpop.f32.mrf.mxu0
        %v1740 = vpop.f32.mrf.mxu0
        %v1741 = vadd.f32 %v1173, %v1740
        %v1742 = vpop.f32.mrf.mxu0
        %1743 = vdwg.mxu0
        %1744 = vmatprep.subr.bf16.mxu0 0
        %1745 = vmatpush1.bf16.msra.mxu0 %v1558
        %1746 = vmatprep.subr.bf16.mxu0 0
        %1747 = vmatpush1.bf16.msra.mxu0 %v1557
        %1748 = vmatprep.subr.bf16.mxu0 0
        %1749 = vmatpush1.bf16.msra.mxu0 %v1556
        %1750 = vmatprep.subr.bf16.mxu0 0
        %1751 = vmatpush1.bf16.msra.mxu0 %v1555
        %1752 = vmatprep.subr.bf16.mxu0 0
        %1753 = vmatpush1.bf16.msra.mxu0 %v1554
        %1754 = vmatprep.subr.bf16.mxu0 0
        %1755 = vmatpush1.bf16.msra.mxu0 %v1553
        %1756 = vmatprep.subr.bf16.mxu0 0
        %1757 = vmatpush1.bf16.msra.mxu0 %v1552
        %1758 = vmatprep.subr.bf16.mxu0 0
        %1759 = vmatpush1.bf16.msra.mxu0 %v1551
        %1760 = vmatprep.subr.bf16.mxu0 0
        %1761 = vmatpush2.bf16.msra.mxu0 %v1566
        %1762 = vmatprep.subr.bf16.mxu0 0
        %1763 = vmatpush2.bf16.msra.mxu0 %v1565
        %1764 = vmatprep.subr.bf16.mxu0 0
        %1765 = vmatpush2.bf16.msra.mxu0 %v1564
        %1766 = vmatprep.subr.bf16.mxu0 0
        %1767 = vmatpush2.bf16.msra.mxu0 %v1563
        %1768 = vmatprep.subr.bf16.mxu0 0
        %1769 = vmatpush2.bf16.msra.mxu0 %v1562
        %1770 = vmatprep.subr.bf16.mxu0 0
        %1771 = vmatpush2.bf16.msra.mxu0 %v1561
        %1772 = vmatprep.subr.bf16.mxu0 0
        %1773 = vmatpush2.bf16.msra.mxu0 %v1560
        %1774 = vmatprep.subr.bf16.mxu0 0
        %1775 = vmatpush2.bf16.msra.mxu0 %v1559
        %1776 = vmatprep.mubr.bf16.mxu0 %v1178
        %1777 = vmatmul.mubr.bf16.gmra.mxu0 %v1177
        %v1778 = vpop.f32.mrf.mxu0
        %v1779 = vadd.f32 %v1714, %v1778
        %v1780 = vpop.f32.mrf.mxu0
        %v1781 = vpop.f32.mrf.mxu0
        %v1782 = vadd.f32 %v1717, %v1781
        %v1783 = vpop.f32.mrf.mxu0
        %1784 = vmatprep.mubr.bf16.mxu0 %v1187
        %1785 = vmatmul.mubr.bf16.gmra.mxu0 %v1186
        %v1786 = vpop.f32.mrf.mxu0
        %v1787 = vadd.f32 %v1722, %v1786
        %v1788 = vpop.f32.mrf.mxu0
        %v1789 = vpop.f32.mrf.mxu0
        %v1790 = vadd.f32 %v1725, %v1789
        %v1791 = vpop.f32.mrf.mxu0
        %1792 = vmatprep.mubr.bf16.mxu0 %v1196
        %1793 = vmatmul.mubr.bf16.gmra.mxu0 %v1195
        %v1794 = vpop.f32.mrf.mxu0
        %v1795 = vadd.f32 %v1730, %v1794
        %v1796 = vpop.f32.mrf.mxu0
        %v1797 = vpop.f32.mrf.mxu0
        %v1798 = vadd.f32 %v1733, %v1797
        %v1799 = vpop.f32.mrf.mxu0
        %1800 = vmatprep.mubr.bf16.mxu0 %v1205
        %1801 = vmatmul.mubr.bf16.gmra.mxu0 %v1204
        %v1802 = vpop.f32.mrf.mxu0
        %v1803 = vadd.f32 %v1738, %v1802
        %v1804 = vpop.f32.mrf.mxu0
        %v1805 = vpop.f32.mrf.mxu0
        %v1806 = vadd.f32 %v1741, %v1805
        %v1807 = vpop.f32.mrf.mxu0
        %1808 = vdwg.mxu0
        %1809 = vmatprep.subr.bf16.mxu0 0
        %1810 = vmatpush1.bf16.msra.mxu0 %v1574
        %1811 = vmatprep.subr.bf16.mxu0 0
        %1812 = vmatpush1.bf16.msra.mxu0 %v1573
        %1813 = vmatprep.subr.bf16.mxu0 0
        %1814 = vmatpush1.bf16.msra.mxu0 %v1572
        %1815 = vmatprep.subr.bf16.mxu0 0
        %1816 = vmatpush1.bf16.msra.mxu0 %v1571
        %1817 = vmatprep.subr.bf16.mxu0 0
        %1818 = vmatpush1.bf16.msra.mxu0 %v1570
        %1819 = vmatprep.subr.bf16.mxu0 0
        %1820 = vmatpush1.bf16.msra.mxu0 %v1569
        %1821 = vmatprep.subr.bf16.mxu0 0
        %1822 = vmatpush1.bf16.msra.mxu0 %v1568
        %1823 = vmatprep.subr.bf16.mxu0 0
        %1824 = vmatpush1.bf16.msra.mxu0 %v1567
        %1825 = vmatprep.subr.bf16.mxu0 0
        %1826 = vmatpush2.bf16.msra.mxu0 %v1582
        %1827 = vmatprep.subr.bf16.mxu0 0
        %1828 = vmatpush2.bf16.msra.mxu0 %v1581
        %1829 = vmatprep.subr.bf16.mxu0 0
        %1830 = vmatpush2.bf16.msra.mxu0 %v1580
        %1831 = vmatprep.subr.bf16.mxu0 0
        %1832 = vmatpush2.bf16.msra.mxu0 %v1579
        %1833 = vmatprep.subr.bf16.mxu0 0
        %1834 = vmatpush2.bf16.msra.mxu0 %v1578
        %1835 = vmatprep.subr.bf16.mxu0 0
        %1836 = vmatpush2.bf16.msra.mxu0 %v1577
        %1837 = vmatprep.subr.bf16.mxu0 0
        %1838 = vmatpush2.bf16.msra.mxu0 %v1576
        %1839 = vmatprep.subr.bf16.mxu0 0
        %1840 = vmatpush2.bf16.msra.mxu0 %v1575
        %1841 = vmatprep.mubr.bf16.mxu0 %v1180
        %1842 = vmatmul.mubr.bf16.gmra.mxu0 %v1179
        %v1843 = vpop.f32.mrf.mxu0
        %v1844 = vadd.f32 %v1779, %v1843
        %v1845 = vpop.f32.mrf.mxu0
        %v1846 = vpop.f32.mrf.mxu0
        %v1847 = vadd.f32 %v1782, %v1846
        %v1848 = vpop.f32.mrf.mxu0
        %1849 = vmatprep.mubr.bf16.mxu0 %v1189
        %1850 = vmatmul.mubr.bf16.gmra.mxu0 %v1188
        %v1851 = vpop.f32.mrf.mxu0
        %v1852 = vadd.f32 %v1787, %v1851
        %v1853 = vpop.f32.mrf.mxu0
        %v1854 = vpop.f32.mrf.mxu0
        %v1855 = vadd.f32 %v1790, %v1854
        %v1856 = vpop.f32.mrf.mxu0
        %1857 = vmatprep.mubr.bf16.mxu0 %v1198
        %1858 = vmatmul.mubr.bf16.gmra.mxu0 %v1197
        %v1859 = vpop.f32.mrf.mxu0
        %v1860 = vadd.f32 %v1795, %v1859
        %v1861 = vpop.f32.mrf.mxu0
        %v1862 = vpop.f32.mrf.mxu0
        %v1863 = vadd.f32 %v1798, %v1862
        %v1864 = vpop.f32.mrf.mxu0
        %1865 = vmatprep.mubr.bf16.mxu0 %v1207
        %1866 = vmatmul.mubr.bf16.gmra.mxu0 %v1206
        %v1867 = vpop.f32.mrf.mxu0
        %v1868 = vadd.f32 %v1803, %v1867
        %v1869 = vpop.f32.mrf.mxu0
        %v1870 = vpop.f32.mrf.mxu0
        %v1871 = vadd.f32 %v1806, %v1870
        %v1872 = vpop.f32.mrf.mxu0
        %1873 = vdwg.mxu0
        %1874 = vmatprep.subr.bf16.mxu0 0
        %1875 = vmatpush1.bf16.msra.mxu0 %v1590
        %1876 = vmatprep.subr.bf16.mxu0 0
        %1877 = vmatpush1.bf16.msra.mxu0 %v1589
        %1878 = vmatprep.subr.bf16.mxu0 0
        %1879 = vmatpush1.bf16.msra.mxu0 %v1588
        %1880 = vmatprep.subr.bf16.mxu0 0
        %1881 = vmatpush1.bf16.msra.mxu0 %v1587
        %1882 = vmatprep.subr.bf16.mxu0 0
        %1883 = vmatpush1.bf16.msra.mxu0 %v1586
        %1884 = vmatprep.subr.bf16.mxu0 0
        %1885 = vmatpush1.bf16.msra.mxu0 %v1585
        %1886 = vmatprep.subr.bf16.mxu0 0
        %1887 = vmatpush1.bf16.msra.mxu0 %v1584
        %1888 = vmatprep.subr.bf16.mxu0 0
        %1889 = vmatpush1.bf16.msra.mxu0 %v1583
        %1890 = vmatprep.subr.bf16.mxu0 0
        %1891 = vmatpush2.bf16.msra.mxu0 %v1598
        %1892 = vmatprep.subr.bf16.mxu0 0
        %1893 = vmatpush2.bf16.msra.mxu0 %v1597
        %1894 = vmatprep.subr.bf16.mxu0 0
        %1895 = vmatpush2.bf16.msra.mxu0 %v1596
        %1896 = vmatprep.subr.bf16.mxu0 0
        %1897 = vmatpush2.bf16.msra.mxu0 %v1595
        %1898 = vmatprep.subr.bf16.mxu0 0
        %1899 = vmatpush2.bf16.msra.mxu0 %v1594
        %1900 = vmatprep.subr.bf16.mxu0 0
        %1901 = vmatpush2.bf16.msra.mxu0 %v1593
        %1902 = vmatprep.subr.bf16.mxu0 0
        %1903 = vmatpush2.bf16.msra.mxu0 %v1592
        %1904 = vmatprep.subr.bf16.mxu0 0
        %1905 = vmatpush2.bf16.msra.mxu0 %v1591
        %1906 = vmatprep.mubr.bf16.mxu0 %v1182
        %1907 = vmatmul.mubr.bf16.gmra.mxu0 %v1181
        %v1908 = vpop.f32.mrf.mxu0
        %v1909 = vadd.f32 %v1844, %v1908
        %v1910 = vpop.f32.mrf.mxu0
        %v1911 = vpop.f32.mrf.mxu0
        %v1912 = vadd.f32 %v1847, %v1911
        %v1913 = vpop.f32.mrf.mxu0
        %1914 = vmatprep.mubr.bf16.mxu0 %v1191
        %1915 = vmatmul.mubr.bf16.gmra.mxu0 %v1190
        %v1916 = vpop.f32.mrf.mxu0
        %v1917 = vadd.f32 %v1852, %v1916
        %v1918 = vpop.f32.mrf.mxu0
        %v1919 = vpop.f32.mrf.mxu0
        %v1920 = vadd.f32 %v1855, %v1919
        %v1921 = vpop.f32.mrf.mxu0
        %1922 = vmatprep.mubr.bf16.mxu0 %v1200
        %1923 = vmatmul.mubr.bf16.gmra.mxu0 %v1199
        %v1924 = vpop.f32.mrf.mxu0
        %v1925 = vadd.f32 %v1860, %v1924
        %v1926 = vpop.f32.mrf.mxu0
        %v1927 = vpop.f32.mrf.mxu0
        %v1928 = vadd.f32 %v1863, %v1927
        %v1929 = vpop.f32.mrf.mxu0
        %1930 = vmatprep.mubr.bf16.mxu0 %v1209
        %1931 = vmatmul.mubr.bf16.gmra.mxu0 %v1208
        %v1932 = vpop.f32.mrf.mxu0
        %v1933 = vadd.f32 %v1868, %v1932
        %v1934 = vpop.f32.mrf.mxu0
        %v1935 = vpop.f32.mrf.mxu0
        %v1936 = vadd.f32 %v1871, %v1935
        %v1937 = vpop.f32.mrf.mxu0
        %1938 = vdwg.mxu0
        %1939 = vmatprep.subr.bf16.mxu0 0
        %1940 = vmatpush1.bf16.msra.mxu0 %v1606
        %1941 = vmatprep.subr.bf16.mxu0 0
        %1942 = vmatpush1.bf16.msra.mxu0 %v1605
        %1943 = vmatprep.subr.bf16.mxu0 0
        %1944 = vmatpush1.bf16.msra.mxu0 %v1604
        %1945 = vmatprep.subr.bf16.mxu0 0
        %1946 = vmatpush1.bf16.msra.mxu0 %v1603
        %1947 = vmatprep.subr.bf16.mxu0 0
        %1948 = vmatpush1.bf16.msra.mxu0 %v1602
        %1949 = vmatprep.subr.bf16.mxu0 0
        %1950 = vmatpush1.bf16.msra.mxu0 %v1601
        %1951 = vmatprep.subr.bf16.mxu0 0
        %1952 = vmatpush1.bf16.msra.mxu0 %v1600
        %1953 = vmatprep.subr.bf16.mxu0 0
        %1954 = vmatpush1.bf16.msra.mxu0 %v1599
        %1955 = vmatprep.subr.bf16.mxu0 0
        %1956 = vmatpush2.bf16.msra.mxu0 0
        %1957 = vmatprep.subr.bf16.mxu0 0
        %1958 = vmatpush2.bf16.msra.mxu0 0
        %1959 = vmatprep.subr.bf16.mxu0 0
        %1960 = vmatpush2.bf16.msra.mxu0 0
        %1961 = vmatprep.subr.bf16.mxu0 0
        %1962 = vmatpush2.bf16.msra.mxu0 0
        %1963 = vmatprep.subr.bf16.mxu0 0
        %1964 = vmatpush2.bf16.msra.mxu0 0
        %1965 = vmatprep.subr.bf16.mxu0 0
        %1966 = vmatpush2.bf16.msra.mxu0 0
        %1967 = vmatprep.subr.bf16.mxu0 0
        %1968 = vmatpush2.bf16.msra.mxu0 0
        %1969 = vmatprep.subr.bf16.mxu0 0
        %1970 = vmatpush2.bf16.msra.mxu0 0
        %1971 = vmatprep.mubr.bf16.mxu0 0
        %1972 = vmatmul.mubr.bf16.gmra.mxu0 %v1183
        %v1973 = vpop.f32.mrf.mxu0
        %v1974 = vadd.f32 %v1909, %v1973
        %v1975 = vpop.f32.mrf.mxu0
        %v1976 = vpop.f32.mrf.mxu0
        %v1977 = vadd.f32 %v1912, %v1976
        %v1978 = vpop.f32.mrf.mxu0
        %1979 = vmatprep.mubr.bf16.mxu0 0
        %1980 = vmatmul.mubr.bf16.gmra.mxu0 %v1192
        %v1981 = vpop.f32.mrf.mxu0
        %v1982 = vadd.f32 %v1917, %v1981
        %v1983 = vpop.f32.mrf.mxu0
        %v1984 = vpop.f32.mrf.mxu0
        %v1985 = vadd.f32 %v1920, %v1984
        %v1986 = vpop.f32.mrf.mxu0
        %1987 = vmatprep.mubr.bf16.mxu0 0
        %1988 = vmatmul.mubr.bf16.gmra.mxu0 %v1201
        %v1989 = vpop.f32.mrf.mxu0
        %v1990 = vadd.f32 %v1925, %v1989
        %v1991 = vpop.f32.mrf.mxu0
        %v1992 = vpop.f32.mrf.mxu0
        %v1993 = vadd.f32 %v1928, %v1992
        %v1994 = vpop.f32.mrf.mxu0
        %1995 = vmatprep.mubr.bf16.mxu0 0
        %1996 = vmatmul.mubr.bf16.gmra.mxu0 %v1210
        %v1997 = vpop.f32.mrf.mxu0
        %v1998 = vadd.f32 %v1933, %v1997
        %v1999 = vpop.f32.mrf.mxu0
        %v2000 = vpop.f32.mrf.mxu0
        %v2001 = vadd.f32 %v1936, %v2000
        %v2002 = vpop.f32.mrf.mxu0
        %2003 = vdwg.mxu0
        %v2004 = vmax.f32 %v1974, 0.0
        %v2005 = vmax.f32 %v1977, 0.0
        %v2006 = vmax.f32 %v1982, 0.0
        %v2007 = vmax.f32 %v1985, 0.0
        %v2008 = vmax.f32 %v1990, 0.0
        %v2009 = vmax.f32 %v1993, 0.0
        %v2010 = vmax.f32 %v1998, 0.0
        %v2011 = vmax.f32 %v2001, 0.0
        %2012 = vst [vmem:[#allocation3] sm:$0xf] 0
        %2013 = vst [vmem:[#allocation3 + $0x4] sm:$0x1] 0
        %s2014 = scalar_lea.vmem [#allocation3], 72
        %2015 = vst [vmem:[%s2014] sm:$0xf] 0
        %2016 = vst [vmem:[%s2014 + $0x4] sm:$0x1] 0
        %v2017 = vld [vmem:[#allocation3] sm:$0x1]
        %v2018 = vsel %vm263, 0, %v2017
        %2019 = vst [vmem:[#allocation3] sm:$0x1] %v2018
        %v2020 = vld [vmem:[#allocation3 + $0x8] sm:$0x1]
        %v2021 = vsel %vm263, 0, %v2020
        %2022 = vst [vmem:[#allocation3 + $0x8] sm:$0x1] %v2021
        %v2023 = vld [vmem:[#allocation3 + $0x10] sm:$0x1]
        %v2024 = vsel %vm263, 0, %v2023
        %2025 = vst [vmem:[#allocation3 + $0x10] sm:$0x1] %v2024
        %v2026 = vld [vmem:[#allocation3 + $0x18] sm:$0x1]
        %v2027 = vsel %vm263, 0, %v2026
        %2028 = vst [vmem:[#allocation3 + $0x18] sm:$0x1] %v2027
        %v2029 = vld [vmem:[#allocation3 + $0x20] sm:$0x1]
        %v2030 = vsel %vm263, 0, %v2029
        %2031 = vst [vmem:[#allocation3 + $0x20] sm:$0x1] %v2030
        %v2032 = vld [vmem:[#allocation3 + $0x28] sm:$0x1]
        %v2033 = vsel %vm263, 0, %v2032
        %2034 = vst [vmem:[#allocation3 + $0x28] sm:$0x1] %v2033
        %v2035 = vld [vmem:[#allocation3 + $0x30] sm:$0x1]
        %v2036 = vsel %vm263, 0, %v2035
        %2037 = vst [vmem:[#allocation3 + $0x30] sm:$0x1] %v2036
        %v2038 = vld [vmem:[#allocation3 + $0x38] sm:$0x1]
        %v2039 = vsel %vm263, 0, %v2038
        %2040 = vst [vmem:[#allocation3 + $0x38] sm:$0x1] %v2039
        %v2041 = vld [vmem:[#allocation3 + $0x40] sm:$0x1]
        %v2042 = vsel %vm263, 0, %v2041
        %2043 = vst [vmem:[#allocation3 + $0x40] sm:$0x1] %v2042
        %v2044 = vld [vmem:[#allocation3 + $0x48] sm:$0x1]
        %v2045 = vsel %vm263, 0, %v2044
        %2046 = vst [vmem:[#allocation3 + $0x48] sm:$0x1] %v2045
        %v2047 = vld [vmem:[#allocation3 + $0x4] sm:$0x1]
        %v2048 = vsel %vm295, 0, %v2047
        %2049 = vst [vmem:[#allocation3 + $0x4] sm:$0x1] %v2048
        %v2050 = vld [vmem:[#allocation3 + $0xc] sm:$0x1]
        %v2051 = vsel %vm295, 0, %v2050
        %2052 = vst [vmem:[#allocation3 + $0xc] sm:$0x1] %v2051
        %v2053 = vld [vmem:[#allocation3 + $0x14] sm:$0x1]
        %v2054 = vsel %vm295, 0, %v2053
        %2055 = vst [vmem:[#allocation3 + $0x14] sm:$0x1] %v2054
        %v2056 = vld [vmem:[#allocation3 + $0x1c] sm:$0x1]
        %v2057 = vsel %vm295, 0, %v2056
        %2058 = vst [vmem:[#allocation3 + $0x1c] sm:$0x1] %v2057
        %v2059 = vld [vmem:[#allocation3 + $0x24] sm:$0x1]
        %v2060 = vsel %vm295, 0, %v2059
        %2061 = vst [vmem:[#allocation3 + $0x24] sm:$0x1] %v2060
        %v2062 = vld [vmem:[#allocation3 + $0x2c] sm:$0x1]
        %v2063 = vsel %vm295, 0, %v2062
        %2064 = vst [vmem:[#allocation3 + $0x2c] sm:$0x1] %v2063
        %v2065 = vld [vmem:[#allocation3 + $0x34] sm:$0x1]
        %v2066 = vsel %vm295, 0, %v2065
        %2067 = vst [vmem:[#allocation3 + $0x34] sm:$0x1] %v2066
        %v2068 = vld [vmem:[#allocation3 + $0x3c] sm:$0x1]
        %v2069 = vsel %vm295, 0, %v2068
        %2070 = vst [vmem:[#allocation3 + $0x3c] sm:$0x1] %v2069
        %v2071 = vld [vmem:[#allocation3 + $0x44] sm:$0x1]
        %v2072 = vsel %vm295, 0, %v2071
        %2073 = vst [vmem:[#allocation3 + $0x44] sm:$0x1] %v2072
        %v2074 = vld [vmem:[#allocation3 + $0x4c] sm:$0x1]
        %v2075 = vsel %vm295, 0, %v2074
        %2076 = vst [vmem:[#allocation3 + $0x4c] sm:$0x1] %v2075
        %s2077 = scalar_lea.vmem [#allocation3], 8
        %v2078 = vld [vmem:[%s2077] sm:$0xf]
        %v2079 = vsel %vm328, 0, %v2078
        %2080 = vst [vmem:[%s2077] sm:$0xf] %v2079
        %v2081 = vld [vmem:[%s2077 + $0x4] sm:$0x1]
        %v2082 = vsel %vm333, 0, %v2081
        %2083 = vst [vmem:[%s2077 + $0x4] sm:$0x1] %v2082
        %v2084 = vld [vmem:[%s2077 + $0x8] sm:$0xf]
        %v2085 = vsel %vm328, 0, %v2084
        %2086 = vst [vmem:[%s2077 + $0x8] sm:$0xf] %v2085
        %v2087 = vld [vmem:[%s2077 + $0xc] sm:$0x1]
        %v2088 = vsel %vm333, 0, %v2087
        %2089 = vst [vmem:[%s2077 + $0xc] sm:$0x1] %v2088
        %v2090 = vld [vmem:[%s2077 + $0x10] sm:$0xf]
        %v2091 = vsel %vm328, 0, %v2090
        %2092 = vst [vmem:[%s2077 + $0x10] sm:$0xf] %v2091
        %v2093 = vld [vmem:[%s2077 + $0x14] sm:$0x1]
        %v2094 = vsel %vm333, 0, %v2093
        %2095 = vst [vmem:[%s2077 + $0x14] sm:$0x1] %v2094
        %v2096 = vld [vmem:[%s2077 + $0x18] sm:$0xf]
        %v2097 = vsel %vm328, 0, %v2096
        %2098 = vst [vmem:[%s2077 + $0x18] sm:$0xf] %v2097
        %v2099 = vld [vmem:[%s2077 + $0x1c] sm:$0x1]
        %v2100 = vsel %vm333, 0, %v2099
        %2101 = vst [vmem:[%s2077 + $0x1c] sm:$0x1] %v2100
        %v2102 = vld [vmem:[%s2077 + $0x20] sm:$0xf]
        %v2103 = vsel %vm328, 0, %v2102
        %2104 = vst [vmem:[%s2077 + $0x20] sm:$0xf] %v2103
        %v2105 = vld [vmem:[%s2077 + $0x24] sm:$0x1]
        %v2106 = vsel %vm333, 0, %v2105
        %2107 = vst [vmem:[%s2077 + $0x24] sm:$0x1] %v2106
        %v2108 = vld [vmem:[%s2077 + $0x28] sm:$0xf]
        %v2109 = vsel %vm328, 0, %v2108
        %2110 = vst [vmem:[%s2077 + $0x28] sm:$0xf] %v2109
        %v2111 = vld [vmem:[%s2077 + $0x2c] sm:$0x1]
        %v2112 = vsel %vm333, 0, %v2111
        %2113 = vst [vmem:[%s2077 + $0x2c] sm:$0x1] %v2112
        %v2114 = vld [vmem:[%s2077 + $0x30] sm:$0xf]
        %v2115 = vsel %vm328, 0, %v2114
        %2116 = vst [vmem:[%s2077 + $0x30] sm:$0xf] %v2115
        %v2117 = vld [vmem:[%s2077 + $0x34] sm:$0x1]
        %v2118 = vsel %vm333, 0, %v2117
        %2119 = vst [vmem:[%s2077 + $0x34] sm:$0x1] %v2118
        %v2120 = vld [vmem:[%s2077 + $0x38] sm:$0xf]
        %v2121 = vsel %vm328, 0, %v2120
        %2122 = vst [vmem:[%s2077 + $0x38] sm:$0xf] %v2121
        %v2123 = vld [vmem:[%s2077 + $0x3c] sm:$0x1]
        %v2124 = vsel %vm333, 0, %v2123
        %2125 = vst [vmem:[%s2077 + $0x3c] sm:$0x1] %v2124
        %v2126 = vpack.c.bf16 %v2004, %v2004
        %v2127 = vpack.c.bf16 %v2005, %v2005
        %v2128 = vpack.c.bf16 %v2006, %v2006
        %v2129 = vpack.c.bf16 %v2007, %v2007
        %v2130 = vpack.c.bf16 %v2008, %v2008
        %v2131 = vpack.c.bf16 %v2009, %v2009
        %v2132 = vpack.c.bf16 %v2010, %v2010
        %v2133 = vpack.c.bf16 %v2011, %v2011
        %v2142 = vunpack.c.l.b16 %v2126
        %v2143 = vunpack.c.l.b16 %v2127
        %v2144 = vunpack.c.l.b16 %v2128
        %v2145 = vunpack.c.l.b16 %v2129
        %v2146 = vunpack.c.l.b16 %v2130
        %v2147 = vunpack.c.l.b16 %v2131
        %v2148 = vunpack.c.l.b16 %v2132
        %v2149 = vunpack.c.l.b16 %v2133
        %v2150 = vpack.c.b16 %v2142, %v2142
        %v2151 = vpack.c.b16 %v2143, %v2143
        %v2152 = vpack.c.b16 %v2144, %v2144
        %v2153 = vpack.c.b16 %v2145, %v2145
        %v2154 = vpack.c.b16 %v2146, %v2146
        %v2155 = vpack.c.b16 %v2147, %v2147
        %v2156 = vpack.c.b16 %v2148, %v2148
        %v2157 = vpack.c.b16 %v2149, %v2149
        %v2159 = vshrl.u32 %v2150, 16
        %v2161 = vrot.slane %v2159, 7
        %v2162 = vshll.u32 %v2150, 16
        %v2164 = vor.u32 %v2161, %v2162
        %v2165 = vrot.slane %v2161, 4
        %v2167 = vshrl.u32 %v2151, 16
        %v2169 = vrot.slane %v2167, 7
        %v2170 = vshll.u32 %v2151, 16
        %v2172 = vor.u32 %v2169, %v2170
        %v2173 = vrot.slane %v2169, 4
        %v2175 = vshrl.u32 %v2152, 16
        %v2177 = vrot.slane %v2175, 7
        %v2178 = vshll.u32 %v2152, 16
        %v2180 = vor.u32 %v2177, %v2178
        %v2181 = vrot.slane %v2177, 4
        %v2183 = vshrl.u32 %v2153, 16
        %v2185 = vrot.slane %v2183, 7
        %v2186 = vshll.u32 %v2153, 16
        %v2188 = vor.u32 %v2185, %v2186
        %v2189 = vrot.slane %v2185, 4
        %v2191 = vshrl.u32 %v2154, 16
        %v2193 = vrot.slane %v2191, 7
        %v2194 = vshll.u32 %v2154, 16
        %v2196 = vor.u32 %v2193, %v2194
        %v2197 = vrot.slane %v2193, 4
        %v2199 = vshrl.u32 %v2155, 16
        %v2201 = vrot.slane %v2199, 7
        %v2202 = vshll.u32 %v2155, 16
        %v2204 = vor.u32 %v2201, %v2202
        %v2205 = vrot.slane %v2201, 4
        %v2207 = vshrl.u32 %v2156, 16
        %v2209 = vrot.slane %v2207, 7
        %v2210 = vshll.u32 %v2156, 16
        %v2212 = vor.u32 %v2209, %v2210
        %v2213 = vrot.slane %v2209, 4
        %v2215 = vshrl.u32 %v2157, 16
        %v2217 = vrot.slane %v2215, 7
        %v2218 = vshll.u32 %v2157, 16
        %v2220 = vor.u32 %v2217, %v2218
        %v2221 = vrot.slane %v2217, 4
        %v2238 = vld [vmem:[%s2077] sm:$0xf]
        %v2239 = vsel %vm468, %v2164, %v2238
        %2240 = vst [vmem:[%s2077] sm:$0xf] %v2239
        %v2241 = vld [vmem:[%s2077 + $0x4] sm:$0x1]
        %v2242 = vsel %vm473, %v2165, %v2241
        %2243 = vst [vmem:[%s2077 + $0x4] sm:$0x1] %v2242
        %v2244 = vld [vmem:[%s2077 + $0x8] sm:$0xf]
        %v2245 = vsel %vm468, %v2172, %v2244
        %2246 = vst [vmem:[%s2077 + $0x8] sm:$0xf] %v2245
        %v2247 = vld [vmem:[%s2077 + $0xc] sm:$0x1]
        %v2248 = vsel %vm473, %v2173, %v2247
        %2249 = vst [vmem:[%s2077 + $0xc] sm:$0x1] %v2248
        %v2250 = vld [vmem:[%s2077 + $0x10] sm:$0xf]
        %v2251 = vsel %vm468, %v2180, %v2250
        %2252 = vst [vmem:[%s2077 + $0x10] sm:$0xf] %v2251
        %v2253 = vld [vmem:[%s2077 + $0x14] sm:$0x1]
        %v2254 = vsel %vm473, %v2181, %v2253
        %2255 = vst [vmem:[%s2077 + $0x14] sm:$0x1] %v2254
        %v2256 = vld [vmem:[%s2077 + $0x18] sm:$0xf]
        %v2257 = vsel %vm468, %v2188, %v2256
        %2258 = vst [vmem:[%s2077 + $0x18] sm:$0xf] %v2257
        %v2259 = vld [vmem:[%s2077 + $0x1c] sm:$0x1]
        %v2260 = vsel %vm473, %v2189, %v2259
        %2261 = vst [vmem:[%s2077 + $0x1c] sm:$0x1] %v2260
        %v2262 = vld [vmem:[%s2077 + $0x20] sm:$0xf]
        %v2263 = vsel %vm468, %v2196, %v2262
        %2264 = vst [vmem:[%s2077 + $0x20] sm:$0xf] %v2263
        %v2265 = vld [vmem:[%s2077 + $0x24] sm:$0x1]
        %v2266 = vsel %vm473, %v2197, %v2265
        %2267 = vst [vmem:[%s2077 + $0x24] sm:$0x1] %v2266
        %v2268 = vld [vmem:[%s2077 + $0x28] sm:$0xf]
        %v2269 = vsel %vm468, %v2204, %v2268
        %2270 = vst [vmem:[%s2077 + $0x28] sm:$0xf] %v2269
        %v2271 = vld [vmem:[%s2077 + $0x2c] sm:$0x1]
        %v2272 = vsel %vm473, %v2205, %v2271
        %2273 = vst [vmem:[%s2077 + $0x2c] sm:$0x1] %v2272
        %v2274 = vld [vmem:[%s2077 + $0x30] sm:$0xf]
        %v2275 = vsel %vm468, %v2212, %v2274
        %2276 = vst [vmem:[%s2077 + $0x30] sm:$0xf] %v2275
        %v2277 = vld [vmem:[%s2077 + $0x34] sm:$0x1]
        %v2278 = vsel %vm473, %v2213, %v2277
        %2279 = vst [vmem:[%s2077 + $0x34] sm:$0x1] %v2278
        %v2280 = vld [vmem:[%s2077 + $0x38] sm:$0xf]
        %v2281 = vsel %vm468, %v2220, %v2280
        %2282 = vst [vmem:[%s2077 + $0x38] sm:$0xf] %v2281
        %v2283 = vld [vmem:[%s2077 + $0x3c] sm:$0x1]
        %v2284 = vsel %vm473, %v2221, %v2283
        %2285 = vst [vmem:[%s2077 + $0x3c] sm:$0x1] %v2284
        %v2286 = vld [vmem:[%s4] sm:$0x1]
        %v2287 = vld [vmem:[%s2077] sm:$0xf]
        %v2288 = vld [vmem:[%s2077 + $0x8] sm:$0xf]
        %v2289 = vld [vmem:[%s2077 + $0x10] sm:$0xf]
        %v2290 = vld [vmem:[%s2077 + $0x18] sm:$0xf]
        %v2291 = vld [vmem:[%s2077 + $0x20] sm:$0xf]
        %v2292 = vld [vmem:[%s2077 + $0x28] sm:$0xf]
        %v2293 = vld [vmem:[%s2077 + $0x30] sm:$0xf]
        %v2294 = vld [vmem:[%s2077 + $0x38] sm:$0xf]
        %v2295 = vld [vmem:[%s2077 + $0x4] sm:$0x1]
        %v2296 = vld [vmem:[%s2077 + $0xc] sm:$0x1]
        %v2297 = vld [vmem:[%s2077 + $0x14] sm:$0x1]
        %v2298 = vld [vmem:[%s2077 + $0x1c] sm:$0x1]
        %v2299 = vld [vmem:[%s2077 + $0x24] sm:$0x1]
        %v2300 = vld [vmem:[%s2077 + $0x2c] sm:$0x1]
        %v2301 = vld [vmem:[%s2077 + $0x34] sm:$0x1]
        %v2302 = vld [vmem:[%s2077 + $0x3c] sm:$0x1]
        %v2303 = vld [vmem:[%s2077] sm:$0xe]
        %v2304 = vld [vmem:[%s2077 + $0x8] sm:$0xe]
        %v2305 = vld [vmem:[%s2077 + $0x10] sm:$0xe]
        %v2306 = vld [vmem:[%s2077 + $0x18] sm:$0xe]
        %v2307 = vld [vmem:[%s2077 + $0x20] sm:$0xe]
        %v2308 = vld [vmem:[%s2077 + $0x28] sm:$0xe]
        %v2309 = vld [vmem:[%s2077 + $0x30] sm:$0xe]
        %v2310 = vld [vmem:[%s2077 + $0x38] sm:$0xe]
        %v2311 = vld [vmem:[#allocation3] sm:$0xf]
        %v2312 = vld [vmem:[#allocation3 + $0x8] sm:$0xf]
        %v2313 = vld [vmem:[#allocation3 + $0x10] sm:$0xf]
        %v2314 = vld [vmem:[#allocation3 + $0x18] sm:$0xf]
        %v2315 = vld [vmem:[#allocation3 + $0x20] sm:$0xf]
        %v2316 = vld [vmem:[#allocation3 + $0x28] sm:$0xf]
        %v2317 = vld [vmem:[#allocation3 + $0x30] sm:$0xf]
        %v2318 = vld [vmem:[#allocation3 + $0x38] sm:$0xf]
        %v2319 = vld [vmem:[#allocation3 + $0x4] sm:$0x1]
        %v2320 = vld [vmem:[#allocation3 + $0xc] sm:$0x1]
        %v2321 = vld [vmem:[#allocation3 + $0x14] sm:$0x1]
        %v2322 = vld [vmem:[#allocation3 + $0x1c] sm:$0x1]
        %v2323 = vld [vmem:[#allocation3 + $0x24] sm:$0x1]
        %v2324 = vld [vmem:[#allocation3 + $0x2c] sm:$0x1]
        %v2325 = vld [vmem:[#allocation3 + $0x34] sm:$0x1]
        %v2326 = vld [vmem:[#allocation3 + $0x3c] sm:$0x1]
        %v2327 = vld [vmem:[#allocation3] sm:$0xe]
        %v2328 = vld [vmem:[#allocation3 + $0x8] sm:$0xe]
        %v2329 = vld [vmem:[#allocation3 + $0x10] sm:$0xe]
        %v2330 = vld [vmem:[#allocation3 + $0x18] sm:$0xe]
        %v2331 = vld [vmem:[#allocation3 + $0x20] sm:$0xe]
        %v2332 = vld [vmem:[#allocation3 + $0x28] sm:$0xe]
        %v2333 = vld [vmem:[#allocation3 + $0x30] sm:$0xe]
        %v2334 = vld [vmem:[#allocation3 + $0x38] sm:$0xe]
        %v2351 = vunpack.c.l.b16 %v2287
        %v2352 = vunpack.c.l.b16 %v2295
        %v2353 = vunpack.c.l.b16 %v2288
        %v2354 = vunpack.c.l.b16 %v2296
        %v2355 = vunpack.c.l.b16 %v2289
        %v2356 = vunpack.c.l.b16 %v2297
        %v2357 = vunpack.c.l.b16 %v2290
        %v2358 = vunpack.c.l.b16 %v2298
        %v2359 = vunpack.c.l.b16 %v2291
        %v2360 = vunpack.c.l.b16 %v2299
        %v2361 = vunpack.c.l.b16 %v2292
        %v2362 = vunpack.c.l.b16 %v2300
        %v2363 = vunpack.c.l.b16 %v2293
        %v2364 = vunpack.c.l.b16 %v2301
        %v2365 = vunpack.c.l.b16 %v2294
        %v2366 = vunpack.c.l.b16 %v2302
        %v2367 = vpack.c.b16 %v2352, %v2351
        %v2368 = vpack.c.b16 %v2354, %v2353
        %v2369 = vpack.c.b16 %v2356, %v2355
        %v2370 = vpack.c.b16 %v2358, %v2357
        %v2371 = vpack.c.b16 %v2360, %v2359
        %v2372 = vpack.c.b16 %v2362, %v2361
        %v2373 = vpack.c.b16 %v2364, %v2363
        %v2374 = vpack.c.b16 %v2366, %v2365
        %v2376 = vshrl.u32 %v2367, 16
        %v2378 = vshll.u32 %v2367, 16
        %v2380 = vrot.slane %v2378, 1
        %v2381 = vor.u32 %v2376, %v2380
        %v2383 = vshrl.u32 %v2368, 16
        %v2385 = vshll.u32 %v2368, 16
        %v2387 = vrot.slane %v2385, 1
        %v2388 = vor.u32 %v2383, %v2387
        %v2390 = vshrl.u32 %v2369, 16
        %v2392 = vshll.u32 %v2369, 16
        %v2394 = vrot.slane %v2392, 1
        %v2395 = vor.u32 %v2390, %v2394
        %v2397 = vshrl.u32 %v2370, 16
        %v2399 = vshll.u32 %v2370, 16
        %v2401 = vrot.slane %v2399, 1
        %v2402 = vor.u32 %v2397, %v2401
        %v2404 = vshrl.u32 %v2371, 16
        %v2406 = vshll.u32 %v2371, 16
        %v2408 = vrot.slane %v2406, 1
        %v2409 = vor.u32 %v2404, %v2408
        %v2411 = vshrl.u32 %v2372, 16
        %v2413 = vshll.u32 %v2372, 16
        %v2415 = vrot.slane %v2413, 1
        %v2416 = vor.u32 %v2411, %v2415
        %v2418 = vshrl.u32 %v2373, 16
        %v2420 = vshll.u32 %v2373, 16
        %v2422 = vrot.slane %v2420, 1
        %v2423 = vor.u32 %v2418, %v2422
        %v2425 = vshrl.u32 %v2374, 16
        %v2427 = vshll.u32 %v2374, 16
        %v2429 = vrot.slane %v2427, 1
        %v2430 = vor.u32 %v2425, %v2429
        %v2439 = vunpack.c.l.b16 %v2303
        %v2440 = vunpack.c.l.b16 %v2304
        %v2441 = vunpack.c.l.b16 %v2305
        %v2442 = vunpack.c.l.b16 %v2306
        %v2443 = vunpack.c.l.b16 %v2307
        %v2444 = vunpack.c.l.b16 %v2308
        %v2445 = vunpack.c.l.b16 %v2309
        %v2446 = vunpack.c.l.b16 %v2310
        %v2447 = vpack.c.b16 %v2352, %v2439
        %v2448 = vpack.c.b16 %v2354, %v2440
        %v2449 = vpack.c.b16 %v2356, %v2441
        %v2450 = vpack.c.b16 %v2358, %v2442
        %v2451 = vpack.c.b16 %v2360, %v2443
        %v2452 = vpack.c.b16 %v2362, %v2444
        %v2453 = vpack.c.b16 %v2364, %v2445
        %v2454 = vpack.c.b16 %v2366, %v2446
        %v2455 = vrot.slane %v2447, 1
        %v2456 = vrot.slane %v2448, 1
        %v2457 = vrot.slane %v2449, 1
        %v2458 = vrot.slane %v2450, 1
        %v2459 = vrot.slane %v2451, 1
        %v2460 = vrot.slane %v2452, 1
        %v2461 = vrot.slane %v2453, 1
        %v2462 = vrot.slane %v2454, 1
        %v2479 = vunpack.c.l.b16 %v2311
        %v2480 = vunpack.c.l.b16 %v2319
        %v2481 = vunpack.c.l.b16 %v2312
        %v2482 = vunpack.c.l.b16 %v2320
        %v2483 = vunpack.c.l.b16 %v2313
        %v2484 = vunpack.c.l.b16 %v2321
        %v2485 = vunpack.c.l.b16 %v2314
        %v2486 = vunpack.c.l.b16 %v2322
        %v2487 = vunpack.c.l.b16 %v2315
        %v2488 = vunpack.c.l.b16 %v2323
        %v2489 = vunpack.c.l.b16 %v2316
        %v2490 = vunpack.c.l.b16 %v2324
        %v2491 = vunpack.c.l.b16 %v2317
        %v2492 = vunpack.c.l.b16 %v2325
        %v2493 = vunpack.c.l.b16 %v2318
        %v2494 = vunpack.c.l.b16 %v2326
        %v2495 = vpack.c.b16 %v2480, %v2479
        %v2496 = vpack.c.b16 %v2482, %v2481
        %v2497 = vpack.c.b16 %v2484, %v2483
        %v2498 = vpack.c.b16 %v2486, %v2485
        %v2499 = vpack.c.b16 %v2488, %v2487
        %v2500 = vpack.c.b16 %v2490, %v2489
        %v2501 = vpack.c.b16 %v2492, %v2491
        %v2502 = vpack.c.b16 %v2494, %v2493
        %v2504 = vshrl.u32 %v2495, 16
        %v2506 = vshll.u32 %v2495, 16
        %v2508 = vrot.slane %v2506, 1
        %v2509 = vor.u32 %v2504, %v2508
        %v2511 = vshrl.u32 %v2496, 16
        %v2513 = vshll.u32 %v2496, 16
        %v2515 = vrot.slane %v2513, 1
        %v2516 = vor.u32 %v2511, %v2515
        %v2518 = vshrl.u32 %v2497, 16
        %v2520 = vshll.u32 %v2497, 16
        %v2522 = vrot.slane %v2520, 1
        %v2523 = vor.u32 %v2518, %v2522
        %v2525 = vshrl.u32 %v2498, 16
        %v2527 = vshll.u32 %v2498, 16
        %v2529 = vrot.slane %v2527, 1
        %v2530 = vor.u32 %v2525, %v2529
        %v2532 = vshrl.u32 %v2499, 16
        %v2534 = vshll.u32 %v2499, 16
        %v2536 = vrot.slane %v2534, 1
        %v2537 = vor.u32 %v2532, %v2536
        %v2539 = vshrl.u32 %v2500, 16
        %v2541 = vshll.u32 %v2500, 16
        %v2543 = vrot.slane %v2541, 1
        %v2544 = vor.u32 %v2539, %v2543
        %v2546 = vshrl.u32 %v2501, 16
        %v2548 = vshll.u32 %v2501, 16
        %v2550 = vrot.slane %v2548, 1
        %v2551 = vor.u32 %v2546, %v2550
        %v2553 = vshrl.u32 %v2502, 16
        %v2555 = vshll.u32 %v2502, 16
        %v2557 = vrot.slane %v2555, 1
        %v2558 = vor.u32 %v2553, %v2557
        %v2567 = vunpack.c.l.b16 %v2327
        %v2568 = vunpack.c.l.b16 %v2328
        %v2569 = vunpack.c.l.b16 %v2329
        %v2570 = vunpack.c.l.b16 %v2330
        %v2571 = vunpack.c.l.b16 %v2331
        %v2572 = vunpack.c.l.b16 %v2332
        %v2573 = vunpack.c.l.b16 %v2333
        %v2574 = vunpack.c.l.b16 %v2334
        %v2575 = vpack.c.b16 %v2480, %v2567
        %v2576 = vpack.c.b16 %v2482, %v2568
        %v2577 = vpack.c.b16 %v2484, %v2569
        %v2578 = vpack.c.b16 %v2486, %v2570
        %v2579 = vpack.c.b16 %v2488, %v2571
        %v2580 = vpack.c.b16 %v2490, %v2572
        %v2581 = vpack.c.b16 %v2492, %v2573
        %v2582 = vpack.c.b16 %v2494, %v2574
        %v2583 = vrot.slane %v2575, 1
        %v2584 = vrot.slane %v2576, 1
        %v2585 = vrot.slane %v2577, 1
        %v2586 = vrot.slane %v2578, 1
        %v2587 = vrot.slane %v2579, 1
        %v2588 = vrot.slane %v2580, 1
        %v2589 = vrot.slane %v2581, 1
        %v2590 = vrot.slane %v2582, 1
        %v2591 = vunpack.c.l.b16 %v2381
        %v2592 = vunpack.c.l.b16 %v2455
        %v2593 = vunpack.c.l.b16 %v2509
        %v2594 = vunpack.c.l.b16 %v2583
        %v2595 = vunpack.c.l.b16 %v2388
        %v2596 = vunpack.c.l.b16 %v2456
        %v2597 = vunpack.c.l.b16 %v2516
        %v2598 = vunpack.c.l.b16 %v2584
        %v2599 = vunpack.c.l.b16 %v2395
        %v2600 = vunpack.c.l.b16 %v2457
        %v2601 = vunpack.c.l.b16 %v2523
        %v2602 = vunpack.c.l.b16 %v2585
        %v2603 = vunpack.c.l.b16 %v2402
        %v2604 = vunpack.c.l.b16 %v2458
        %v2605 = vunpack.c.l.b16 %v2530
        %v2606 = vunpack.c.l.b16 %v2586
        %v2607 = vunpack.c.l.b16 %v2409
        %v2608 = vunpack.c.l.b16 %v2459
        %v2609 = vunpack.c.l.b16 %v2537
        %v2610 = vunpack.c.l.b16 %v2587
        %v2611 = vunpack.c.l.b16 %v2416
        %v2612 = vunpack.c.l.b16 %v2460
        %v2613 = vunpack.c.l.b16 %v2544
        %v2614 = vunpack.c.l.b16 %v2588
        %v2615 = vunpack.c.l.b16 %v2423
        %v2616 = vunpack.c.l.b16 %v2461
        %v2617 = vunpack.c.l.b16 %v2551
        %v2618 = vunpack.c.l.b16 %v2589
        %v2619 = vunpack.c.l.b16 %v2430
        %v2620 = vunpack.c.l.b16 %v2462
        %v2621 = vunpack.c.l.b16 %v2558
        %v2622 = vunpack.c.l.b16 %v2590
        %v2623 = vld [vmem:[#allocation6] sm:$0xf]
        %v2624 = vld [vmem:[#allocation6 + $0x4] sm:$0xf]
        %v2625 = vld [vmem:[#allocation6 + $0x8] sm:$0xf]
        %v2626 = vld [vmem:[#allocation6 + $0xc] sm:$0xf]
        %v2627 = vld [vmem:[#allocation6 + $0x10] sm:$0xf]
        %v2628 = vld [vmem:[#allocation6 + $0x14] sm:$0xf]
        %v2629 = vld [vmem:[#allocation6 + $0x18] sm:$0xf]
        %v2630 = vld [vmem:[#allocation6 + $0x1c] sm:$0xf]
        %v2631 = vld [vmem:[#allocation6 + $0x20] sm:$0xf]
        %v2632 = vld [vmem:[#allocation6 + $0x24] sm:$0xf]
        %v2633 = vld [vmem:[#allocation6 + $0x28] sm:$0xf]
        %v2634 = vld [vmem:[#allocation6 + $0x2c] sm:$0xf]
        %v2635 = vld [vmem:[#allocation6 + $0x30] sm:$0xf]
        %v2636 = vld [vmem:[#allocation6 + $0x34] sm:$0xf]
        %v2637 = vld [vmem:[#allocation6 + $0x38] sm:$0xf]
        %v2638 = vld [vmem:[#allocation6 + $0x3c] sm:$0xf]
        %v2639 = vld [vmem:[#allocation6 + $0x40] sm:$0xf]
        %v2640 = vld [vmem:[#allocation6 + $0x44] sm:$0xf]
        %v2641 = vld [vmem:[#allocation6 + $0x48] sm:$0xf]
        %v2642 = vld [vmem:[#allocation6 + $0x4c] sm:$0xf]
        %v2643 = vld [vmem:[#allocation6 + $0x50] sm:$0xf]
        %v2644 = vld [vmem:[#allocation6 + $0x54] sm:$0xf]
        %v2645 = vld [vmem:[#allocation6 + $0x58] sm:$0xf]
        %v2646 = vld [vmem:[#allocation6 + $0x5c] sm:$0xf]
        %v2647 = vld [vmem:[#allocation6 + $0x60] sm:$0xf]
        %v2648 = vld [vmem:[#allocation6 + $0x64] sm:$0xf]
        %v2649 = vld [vmem:[#allocation6 + $0x68] sm:$0xf]
        %v2650 = vld [vmem:[#allocation6 + $0x6c] sm:$0xf]
        %v2651 = vld [vmem:[#allocation6 + $0x70] sm:$0xf]
        %v2652 = vld [vmem:[#allocation6 + $0x74] sm:$0xf]
        %v2653 = vld [vmem:[#allocation6 + $0x78] sm:$0xf]
        %v2654 = vld [vmem:[#allocation6 + $0x7c] sm:$0xf]
        %v2655 = vld [vmem:[#allocation6 + $0x80] sm:$0xf]
        %v2656 = vld [vmem:[#allocation6 + $0x84] sm:$0xf]
        %v2657 = vld [vmem:[#allocation6 + $0x88] sm:$0xf]
        %v2658 = vld [vmem:[#allocation6 + $0x8c] sm:$0xf]
        %v2659 = vld [vmem:[#allocation6 + $0x90] sm:$0xf]
        %v2660 = vld [vmem:[#allocation6 + $0x94] sm:$0xf]
        %v2661 = vld [vmem:[#allocation6 + $0x98] sm:$0xf]
        %v2662 = vld [vmem:[#allocation6 + $0x9c] sm:$0xf]
        %v2663 = vld [vmem:[#allocation6 + $0xa0] sm:$0xf]
        %v2664 = vld [vmem:[#allocation6 + $0xa4] sm:$0xf]
        %v2665 = vld [vmem:[#allocation6 + $0xa8] sm:$0xf]
        %v2666 = vld [vmem:[#allocation6 + $0xac] sm:$0xf]
        %v2667 = vld [vmem:[#allocation6 + $0xb0] sm:$0xf]
        %v2668 = vld [vmem:[#allocation6 + $0xb4] sm:$0xf]
        %v2669 = vld [vmem:[#allocation6 + $0xb8] sm:$0xf]
        %v2670 = vld [vmem:[#allocation6 + $0xbc] sm:$0xf]
        %v2671 = vld [vmem:[#allocation6 + $0xc0] sm:$0xf]
        %v2672 = vld [vmem:[#allocation6 + $0xc4] sm:$0xf]
        %v2673 = vld [vmem:[#allocation6 + $0xc8] sm:$0xf]
        %v2674 = vld [vmem:[#allocation6 + $0xcc] sm:$0xf]
        %v2675 = vld [vmem:[#allocation6 + $0xd0] sm:$0xf]
        %v2676 = vld [vmem:[#allocation6 + $0xd4] sm:$0xf]
        %v2677 = vld [vmem:[#allocation6 + $0xd8] sm:$0xf]
        %v2678 = vld [vmem:[#allocation6 + $0xdc] sm:$0xf]
        %v2679 = vld [vmem:[#allocation6 + $0xe0] sm:$0xf]
        %v2680 = vld [vmem:[#allocation6 + $0xe4] sm:$0xf]
        %v2681 = vld [vmem:[#allocation6 + $0xe8] sm:$0xf]
        %v2682 = vld [vmem:[#allocation6 + $0xec] sm:$0xf]
        %v2683 = vld [vmem:[#allocation6 + $0xf0] sm:$0xf]
        %v2684 = vld [vmem:[#allocation6 + $0xf4] sm:$0xf]
        %v2685 = vld [vmem:[#allocation6 + $0xf8] sm:$0xf]
        %v2686 = vld [vmem:[#allocation6 + $0xfc] sm:$0xf]
        %v2687 = vld [vmem:[#allocation6 + $0x100] sm:$0xf]
        %v2688 = vld [vmem:[#allocation6 + $0x104] sm:$0xf]
        %v2689 = vld [vmem:[#allocation6 + $0x108] sm:$0xf]
        %v2690 = vld [vmem:[#allocation6 + $0x10c] sm:$0xf]
        %v2691 = vld [vmem:[#allocation6 + $0x110] sm:$0xf]
        %v2692 = vld [vmem:[#allocation6 + $0x114] sm:$0xf]
        %v2693 = vld [vmem:[#allocation6 + $0x118] sm:$0xf]
        %v2694 = vld [vmem:[#allocation6 + $0x11c] sm:$0xf]
        %v2695 = vld [vmem:[#allocation6 + $0x120] sm:$0xf]
        %v2696 = vld [vmem:[#allocation6 + $0x124] sm:$0xf]
        %v2697 = vld [vmem:[#allocation6 + $0x128] sm:$0xf]
        %v2698 = vld [vmem:[#allocation6 + $0x12c] sm:$0xf]
        %v2699 = vld [vmem:[#allocation6 + $0x130] sm:$0xf]
        %v2700 = vld [vmem:[#allocation6 + $0x134] sm:$0xf]
        %v2701 = vld [vmem:[#allocation6 + $0x138] sm:$0xf]
        %v2702 = vld [vmem:[#allocation6 + $0x13c] sm:$0xf]
        %v2703 = vld [vmem:[#allocation6 + $0x140] sm:$0xf]
        %v2704 = vld [vmem:[#allocation6 + $0x144] sm:$0xf]
        %v2705 = vld [vmem:[#allocation6 + $0x148] sm:$0xf]
        %v2706 = vld [vmem:[#allocation6 + $0x14c] sm:$0xf]
        %v2707 = vld [vmem:[#allocation6 + $0x150] sm:$0xf]
        %v2708 = vld [vmem:[#allocation6 + $0x154] sm:$0xf]
        %v2709 = vld [vmem:[#allocation6 + $0x158] sm:$0xf]
        %v2710 = vld [vmem:[#allocation6 + $0x15c] sm:$0xf]
        %v2711 = vld [vmem:[#allocation6 + $0x160] sm:$0xf]
        %v2712 = vld [vmem:[#allocation6 + $0x164] sm:$0xf]
        %v2713 = vld [vmem:[#allocation6 + $0x168] sm:$0xf]
        %v2714 = vld [vmem:[#allocation6 + $0x16c] sm:$0xf]
        %v2715 = vld [vmem:[#allocation6 + $0x170] sm:$0xf]
        %v2716 = vld [vmem:[#allocation6 + $0x174] sm:$0xf]
        %v2717 = vld [vmem:[#allocation6 + $0x178] sm:$0xf]
        %v2718 = vld [vmem:[#allocation6 + $0x17c] sm:$0xf]
        %v2720 = vlaneseq
        %v2721 = vshrl.u32 %v2720, 7
        %v2722 = vsub.s32 0, %v2721
        %v2723 = vrot.slane %v2286, %v2722
        %v2725 = vpack.c.b16 %v2353, %v2351
        %v2726 = vpack.c.b16 %v2595, %v2591
        %v2727 = vpack.c.b16 %v2596, %v2592
        %v2728 = vpack.c.b16 %v2481, %v2479
        %v2729 = vpack.c.b16 %v2597, %v2593
        %v2730 = vpack.c.b16 %v2598, %v2594
        %v2731 = vpack.c.b16 %v2357, %v2355
        %v2732 = vpack.c.b16 %v2603, %v2599
        %v2733 = vpack.c.b16 %v2604, %v2600
        %v2734 = vpack.c.b16 %v2485, %v2483
        %v2735 = vpack.c.b16 %v2605, %v2601
        %v2736 = vpack.c.b16 %v2606, %v2602
        %v2737 = vpack.c.b16 %v2361, %v2359
        %v2738 = vpack.c.b16 %v2611, %v2607
        %v2739 = vpack.c.b16 %v2612, %v2608
        %v2740 = vpack.c.b16 %v2489, %v2487
        %v2741 = vpack.c.b16 %v2613, %v2609
        %v2742 = vpack.c.b16 %v2614, %v2610
        %v2743 = vpack.c.b16 %v2365, %v2363
        %v2744 = vpack.c.b16 %v2619, %v2615
        %v2745 = vpack.c.b16 %v2620, %v2616
        %v2746 = vpack.c.b16 %v2493, %v2491
        %v2747 = vpack.c.b16 %v2621, %v2617
        %v2748 = vpack.c.b16 %v2622, %v2618
        %v2869 = vunpack.c.l.b16 %v2623
        %v2870 = vunpack.c.l.b16 %v2624
        %v2871 = vunpack.c.l.b16 %v2625
        %v2872 = vunpack.c.l.b16 %v2626
        %v2873 = vunpack.c.l.b16 %v2627
        %v2874 = vunpack.c.l.b16 %v2628
        %v2875 = vunpack.c.l.b16 %v2629
        %v2876 = vunpack.c.l.b16 %v2630
        %v2877 = vunpack.c.l.b16 %v2631
        %v2878 = vunpack.c.l.b16 %v2632
        %v2879 = vunpack.c.l.b16 %v2633
        %v2880 = vunpack.c.l.b16 %v2634
        %v2881 = vunpack.c.l.b16 %v2635
        %v2882 = vunpack.c.l.b16 %v2636
        %v2883 = vunpack.c.l.b16 %v2637
        %v2884 = vunpack.c.l.b16 %v2638
        %v2885 = vunpack.c.l.b16 %v2639
        %v2886 = vunpack.c.l.b16 %v2640
        %v2887 = vunpack.c.l.b16 %v2641
        %v2888 = vunpack.c.l.b16 %v2642
        %v2889 = vunpack.c.l.b16 %v2643
        %v2890 = vunpack.c.l.b16 %v2644
        %v2891 = vunpack.c.l.b16 %v2645
        %v2892 = vunpack.c.l.b16 %v2646
        %v2893 = vunpack.c.l.b16 %v2647
        %v2894 = vunpack.c.l.b16 %v2648
        %v2895 = vunpack.c.l.b16 %v2649
        %v2896 = vunpack.c.l.b16 %v2650
        %v2897 = vunpack.c.l.b16 %v2651
        %v2898 = vunpack.c.l.b16 %v2652
        %v2899 = vunpack.c.l.b16 %v2653
        %v2900 = vunpack.c.l.b16 %v2654
        %v2901 = vunpack.c.l.b16 %v2655
        %v2902 = vunpack.c.l.b16 %v2656
        %v2903 = vunpack.c.l.b16 %v2657
        %v2904 = vunpack.c.l.b16 %v2658
        %v2905 = vunpack.c.l.b16 %v2659
        %v2906 = vunpack.c.l.b16 %v2660
        %v2907 = vunpack.c.l.b16 %v2661
        %v2908 = vunpack.c.l.b16 %v2662
        %v2909 = vunpack.c.l.b16 %v2663
        %v2910 = vunpack.c.l.b16 %v2664
        %v2911 = vunpack.c.l.b16 %v2665
        %v2912 = vunpack.c.l.b16 %v2666
        %v2913 = vunpack.c.l.b16 %v2667
        %v2914 = vunpack.c.l.b16 %v2668
        %v2915 = vunpack.c.l.b16 %v2669
        %v2916 = vunpack.c.l.b16 %v2670
        %v2917 = vunpack.c.l.b16 %v2671
        %v2918 = vunpack.c.l.b16 %v2672
        %v2919 = vunpack.c.l.b16 %v2673
        %v2920 = vunpack.c.l.b16 %v2674
        %v2921 = vunpack.c.l.b16 %v2675
        %v2922 = vunpack.c.l.b16 %v2676
        %v2923 = vunpack.c.l.b16 %v2677
        %v2924 = vunpack.c.l.b16 %v2678
        %v2925 = vunpack.c.l.b16 %v2679
        %v2926 = vunpack.c.l.b16 %v2680
        %v2927 = vunpack.c.l.b16 %v2681
        %v2928 = vunpack.c.l.b16 %v2682
        %v2929 = vunpack.c.l.b16 %v2683
        %v2930 = vunpack.c.l.b16 %v2684
        %v2931 = vunpack.c.l.b16 %v2685
        %v2932 = vunpack.c.l.b16 %v2686
        %v2933 = vunpack.c.l.b16 %v2687
        %v2934 = vunpack.c.l.b16 %v2688
        %v2935 = vunpack.c.l.b16 %v2689
        %v2936 = vunpack.c.l.b16 %v2690
        %v2937 = vunpack.c.l.b16 %v2691
        %v2938 = vunpack.c.l.b16 %v2692
        %v2939 = vunpack.c.l.b16 %v2693
        %v2940 = vunpack.c.l.b16 %v2694
        %v2941 = vunpack.c.l.b16 %v2695
        %v2942 = vunpack.c.l.b16 %v2696
        %v2943 = vunpack.c.l.b16 %v2697
        %v2944 = vunpack.c.l.b16 %v2698
        %v2945 = vunpack.c.l.b16 %v2699
        %v2946 = vunpack.c.l.b16 %v2700
        %v2947 = vunpack.c.l.b16 %v2701
        %v2948 = vunpack.c.l.b16 %v2702
        %v2949 = vunpack.c.l.b16 %v2703
        %v2950 = vunpack.c.l.b16 %v2704
        %v2951 = vunpack.c.l.b16 %v2705
        %v2952 = vunpack.c.l.b16 %v2706
        %v2953 = vunpack.c.l.b16 %v2707
        %v2954 = vunpack.c.l.b16 %v2708
        %v2955 = vunpack.c.l.b16 %v2709
        %v2956 = vunpack.c.l.b16 %v2710
        %v2957 = vunpack.c.l.b16 %v2711
        %v2958 = vunpack.c.l.b16 %v2712
        %v2959 = vunpack.c.l.b16 %v2713
        %v2960 = vunpack.c.l.b16 %v2714
        %v2961 = vunpack.c.l.b16 %v2715
        %v2962 = vunpack.c.l.b16 %v2716
        %v2963 = vunpack.c.l.b16 %v2717
        %v2964 = vunpack.c.l.b16 %v2718
        %v2965 = vpack.c.b16 %v2870, %v2869
        %v2966 = vpack.c.b16 %v2872, %v2871
        %v2967 = vpack.c.b16 %v2874, %v2873
        %v2968 = vpack.c.b16 %v2876, %v2875
        %v2969 = vpack.c.b16 %v2878, %v2877
        %v2970 = vpack.c.b16 %v2880, %v2879
        %v2971 = vpack.c.b16 %v2882, %v2881
        %v2972 = vpack.c.b16 %v2884, %v2883
        %v2973 = vpack.c.b16 %v2886, %v2885
        %v2974 = vpack.c.b16 %v2888, %v2887
        %v2975 = vpack.c.b16 %v2890, %v2889
        %v2976 = vpack.c.b16 %v2892, %v2891
        %v2977 = vpack.c.b16 %v2894, %v2893
        %v2978 = vpack.c.b16 %v2896, %v2895
        %v2979 = vpack.c.b16 %v2898, %v2897
        %v2980 = vpack.c.b16 %v2900, %v2899
        %v2981 = vpack.c.b16 %v2902, %v2901
        %v2982 = vpack.c.b16 %v2904, %v2903
        %v2983 = vpack.c.b16 %v2906, %v2905
        %v2984 = vpack.c.b16 %v2908, %v2907
        %v2985 = vpack.c.b16 %v2910, %v2909
        %v2986 = vpack.c.b16 %v2912, %v2911
        %v2987 = vpack.c.b16 %v2914, %v2913
        %v2988 = vpack.c.b16 %v2916, %v2915
        %v2989 = vpack.c.b16 %v2918, %v2917
        %v2990 = vpack.c.b16 %v2920, %v2919
        %v2991 = vpack.c.b16 %v2922, %v2921
        %v2992 = vpack.c.b16 %v2924, %v2923
        %v2993 = vpack.c.b16 %v2926, %v2925
        %v2994 = vpack.c.b16 %v2928, %v2927
        %v2995 = vpack.c.b16 %v2930, %v2929
        %v2996 = vpack.c.b16 %v2932, %v2931
        %v2997 = vpack.c.b16 %v2934, %v2933
        %v2998 = vpack.c.b16 %v2936, %v2935
        %v2999 = vpack.c.b16 %v2938, %v2937
        %v3000 = vpack.c.b16 %v2940, %v2939
        %v3001 = vpack.c.b16 %v2942, %v2941
        %v3002 = vpack.c.b16 %v2944, %v2943
        %v3003 = vpack.c.b16 %v2946, %v2945
        %v3004 = vpack.c.b16 %v2948, %v2947
        %v3005 = vpack.c.b16 %v2950, %v2949
        %v3006 = vpack.c.b16 %v2952, %v2951
        %v3007 = vpack.c.b16 %v2954, %v2953
        %v3008 = vpack.c.b16 %v2956, %v2955
        %v3009 = vpack.c.b16 %v2958, %v2957
        %v3010 = vpack.c.b16 %v2960, %v2959
        %v3011 = vpack.c.b16 %v2962, %v2961
        %v3012 = vpack.c.b16 %v2964, %v2963
        %3061 = vmatprep.subr.bf16.mxu0 0
        %3062 = vmatpush1.bf16.msra.mxu0 %v2972
        %3063 = vmatprep.subr.bf16.mxu0 0
        %3064 = vmatpush1.bf16.msra.mxu0 %v2971
        %3065 = vmatprep.subr.bf16.mxu0 0
        %3066 = vmatpush1.bf16.msra.mxu0 %v2970
        %3067 = vmatprep.subr.bf16.mxu0 0
        %3068 = vmatpush1.bf16.msra.mxu0 %v2969
        %3069 = vmatprep.subr.bf16.mxu0 0
        %3070 = vmatpush1.bf16.msra.mxu0 %v2968
        %3071 = vmatprep.subr.bf16.mxu0 0
        %3072 = vmatpush1.bf16.msra.mxu0 %v2967
        %3073 = vmatprep.subr.bf16.mxu0 0
        %3074 = vmatpush1.bf16.msra.mxu0 %v2966
        %3075 = vmatprep.subr.bf16.mxu0 0
        %3076 = vmatpush1.bf16.msra.mxu0 %v2965
        %3077 = vmatprep.subr.bf16.mxu0 0
        %3078 = vmatpush2.bf16.msra.mxu0 %v2980
        %3079 = vmatprep.subr.bf16.mxu0 0
        %3080 = vmatpush2.bf16.msra.mxu0 %v2979
        %3081 = vmatprep.subr.bf16.mxu0 0
        %3082 = vmatpush2.bf16.msra.mxu0 %v2978
        %3083 = vmatprep.subr.bf16.mxu0 0
        %3084 = vmatpush2.bf16.msra.mxu0 %v2977
        %3085 = vmatprep.subr.bf16.mxu0 0
        %3086 = vmatpush2.bf16.msra.mxu0 %v2976
        %3087 = vmatprep.subr.bf16.mxu0 0
        %3088 = vmatpush2.bf16.msra.mxu0 %v2975
        %3089 = vmatprep.subr.bf16.mxu0 0
        %3090 = vmatpush2.bf16.msra.mxu0 %v2974
        %3091 = vmatprep.subr.bf16.mxu0 0
        %3092 = vmatpush2.bf16.msra.mxu0 %v2973
        %3093 = vmatprep.mubr.bf16.mxu0 %v2726
        %3094 = vmatmul.mubr.bf16.gmra.mxu0 %v2725
        %v3095 = vpop.f32.mrf.mxu0
        %v3096 = vadd.f32 %v2723, %v3095
        %v3097 = vpop.f32.mrf.mxu0
        %v3098 = vpop.f32.mrf.mxu0
        %v3099 = vadd.f32 %v2723, %v3098
        %v3100 = vpop.f32.mrf.mxu0
        %3101 = vmatprep.mubr.bf16.mxu0 %v2732
        %3102 = vmatmul.mubr.bf16.gmra.mxu0 %v2731
        %v3103 = vpop.f32.mrf.mxu0
        %v3104 = vadd.f32 %v2723, %v3103
        %v3105 = vpop.f32.mrf.mxu0
        %v3106 = vpop.f32.mrf.mxu0
        %v3107 = vadd.f32 %v2723, %v3106
        %v3108 = vpop.f32.mrf.mxu0
        %3109 = vmatprep.mubr.bf16.mxu0 %v2738
        %3110 = vmatmul.mubr.bf16.gmra.mxu0 %v2737
        %v3111 = vpop.f32.mrf.mxu0
        %v3112 = vadd.f32 %v2723, %v3111
        %v3113 = vpop.f32.mrf.mxu0
        %v3114 = vpop.f32.mrf.mxu0
        %v3115 = vadd.f32 %v2723, %v3114
        %v3116 = vpop.f32.mrf.mxu0
        %3117 = vmatprep.mubr.bf16.mxu0 %v2744
        %3118 = vmatmul.mubr.bf16.gmra.mxu0 %v2743
        %v3119 = vpop.f32.mrf.mxu0
        %v3120 = vadd.f32 %v2723, %v3119
        %v3121 = vpop.f32.mrf.mxu0
        %v3122 = vpop.f32.mrf.mxu0
        %v3123 = vadd.f32 %v2723, %v3122
        %v3124 = vpop.f32.mrf.mxu0
        %3125 = vdwg.mxu0
        %3126 = vmatprep.subr.bf16.mxu0 0
        %3127 = vmatpush1.bf16.msra.mxu0 %v2988
        %3128 = vmatprep.subr.bf16.mxu0 0
        %3129 = vmatpush1.bf16.msra.mxu0 %v2987
        %3130 = vmatprep.subr.bf16.mxu0 0
        %3131 = vmatpush1.bf16.msra.mxu0 %v2986
        %3132 = vmatprep.subr.bf16.mxu0 0
        %3133 = vmatpush1.bf16.msra.mxu0 %v2985
        %3134 = vmatprep.subr.bf16.mxu0 0
        %3135 = vmatpush1.bf16.msra.mxu0 %v2984
        %3136 = vmatprep.subr.bf16.mxu0 0
        %3137 = vmatpush1.bf16.msra.mxu0 %v2983
        %3138 = vmatprep.subr.bf16.mxu0 0
        %3139 = vmatpush1.bf16.msra.mxu0 %v2982
        %3140 = vmatprep.subr.bf16.mxu0 0
        %3141 = vmatpush1.bf16.msra.mxu0 %v2981
        %3142 = vmatprep.subr.bf16.mxu0 0
        %3143 = vmatpush2.bf16.msra.mxu0 %v2996
        %3144 = vmatprep.subr.bf16.mxu0 0
        %3145 = vmatpush2.bf16.msra.mxu0 %v2995
        %3146 = vmatprep.subr.bf16.mxu0 0
        %3147 = vmatpush2.bf16.msra.mxu0 %v2994
        %3148 = vmatprep.subr.bf16.mxu0 0
        %3149 = vmatpush2.bf16.msra.mxu0 %v2993
        %3150 = vmatprep.subr.bf16.mxu0 0
        %3151 = vmatpush2.bf16.msra.mxu0 %v2992
        %3152 = vmatprep.subr.bf16.mxu0 0
        %3153 = vmatpush2.bf16.msra.mxu0 %v2991
        %3154 = vmatprep.subr.bf16.mxu0 0
        %3155 = vmatpush2.bf16.msra.mxu0 %v2990
        %3156 = vmatprep.subr.bf16.mxu0 0
        %3157 = vmatpush2.bf16.msra.mxu0 %v2989
        %3158 = vmatprep.mubr.bf16.mxu0 %v2728
        %3159 = vmatmul.mubr.bf16.gmra.mxu0 %v2727
        %v3160 = vpop.f32.mrf.mxu0
        %v3161 = vadd.f32 %v3096, %v3160
        %v3162 = vpop.f32.mrf.mxu0
        %v3163 = vpop.f32.mrf.mxu0
        %v3164 = vadd.f32 %v3099, %v3163
        %v3165 = vpop.f32.mrf.mxu0
        %3166 = vmatprep.mubr.bf16.mxu0 %v2734
        %3167 = vmatmul.mubr.bf16.gmra.mxu0 %v2733
        %v3168 = vpop.f32.mrf.mxu0
        %v3169 = vadd.f32 %v3104, %v3168
        %v3170 = vpop.f32.mrf.mxu0
        %v3171 = vpop.f32.mrf.mxu0
        %v3172 = vadd.f32 %v3107, %v3171
        %v3173 = vpop.f32.mrf.mxu0
        %3174 = vmatprep.mubr.bf16.mxu0 %v2740
        %3175 = vmatmul.mubr.bf16.gmra.mxu0 %v2739
        %v3176 = vpop.f32.mrf.mxu0
        %v3177 = vadd.f32 %v3112, %v3176
        %v3178 = vpop.f32.mrf.mxu0
        %v3179 = vpop.f32.mrf.mxu0
        %v3180 = vadd.f32 %v3115, %v3179
        %v3181 = vpop.f32.mrf.mxu0
        %3182 = vmatprep.mubr.bf16.mxu0 %v2746
        %3183 = vmatmul.mubr.bf16.gmra.mxu0 %v2745
        %v3184 = vpop.f32.mrf.mxu0
        %v3185 = vadd.f32 %v3120, %v3184
        %v3186 = vpop.f32.mrf.mxu0
        %v3187 = vpop.f32.mrf.mxu0
        %v3188 = vadd.f32 %v3123, %v3187
        %v3189 = vpop.f32.mrf.mxu0
        %3190 = vdwg.mxu0
        %3191 = vmatprep.subr.bf16.mxu0 0
        %3192 = vmatpush1.bf16.msra.mxu0 %v3004
        %3193 = vmatprep.subr.bf16.mxu0 0
        %3194 = vmatpush1.bf16.msra.mxu0 %v3003
        %3195 = vmatprep.subr.bf16.mxu0 0
        %3196 = vmatpush1.bf16.msra.mxu0 %v3002
        %3197 = vmatprep.subr.bf16.mxu0 0
        %3198 = vmatpush1.bf16.msra.mxu0 %v3001
        %3199 = vmatprep.subr.bf16.mxu0 0
        %3200 = vmatpush1.bf16.msra.mxu0 %v3000
        %3201 = vmatprep.subr.bf16.mxu0 0
        %3202 = vmatpush1.bf16.msra.mxu0 %v2999
        %3203 = vmatprep.subr.bf16.mxu0 0
        %3204 = vmatpush1.bf16.msra.mxu0 %v2998
        %3205 = vmatprep.subr.bf16.mxu0 0
        %3206 = vmatpush1.bf16.msra.mxu0 %v2997
        %3207 = vmatprep.subr.bf16.mxu0 0
        %3208 = vmatpush2.bf16.msra.mxu0 %v3012
        %3209 = vmatprep.subr.bf16.mxu0 0
        %3210 = vmatpush2.bf16.msra.mxu0 %v3011
        %3211 = vmatprep.subr.bf16.mxu0 0
        %3212 = vmatpush2.bf16.msra.mxu0 %v3010
        %3213 = vmatprep.subr.bf16.mxu0 0
        %3214 = vmatpush2.bf16.msra.mxu0 %v3009
        %3215 = vmatprep.subr.bf16.mxu0 0
        %3216 = vmatpush2.bf16.msra.mxu0 %v3008
        %3217 = vmatprep.subr.bf16.mxu0 0
        %3218 = vmatpush2.bf16.msra.mxu0 %v3007
        %3219 = vmatprep.subr.bf16.mxu0 0
        %3220 = vmatpush2.bf16.msra.mxu0 %v3006
        %3221 = vmatprep.subr.bf16.mxu0 0
        %3222 = vmatpush2.bf16.msra.mxu0 %v3005
        %3223 = vmatprep.mubr.bf16.mxu0 %v2730
        %3224 = vmatmul.mubr.bf16.gmra.mxu0 %v2729
        %v3225 = vpop.f32.mrf.mxu0
        %v3226 = vadd.f32 %v3161, %v3225
        %v3227 = vpop.f32.mrf.mxu0
        %v3228 = vpop.f32.mrf.mxu0
        %v3229 = vadd.f32 %v3164, %v3228
        %v3230 = vpop.f32.mrf.mxu0
        %3231 = vmatprep.mubr.bf16.mxu0 %v2736
        %3232 = vmatmul.mubr.bf16.gmra.mxu0 %v2735
        %v3233 = vpop.f32.mrf.mxu0
        %v3234 = vadd.f32 %v3169, %v3233
        %v3235 = vpop.f32.mrf.mxu0
        %v3236 = vpop.f32.mrf.mxu0
        %v3237 = vadd.f32 %v3172, %v3236
        %v3238 = vpop.f32.mrf.mxu0
        %3239 = vmatprep.mubr.bf16.mxu0 %v2742
        %3240 = vmatmul.mubr.bf16.gmra.mxu0 %v2741
        %v3241 = vpop.f32.mrf.mxu0
        %v3242 = vadd.f32 %v3177, %v3241
        %v3243 = vpop.f32.mrf.mxu0
        %v3244 = vpop.f32.mrf.mxu0
        %v3245 = vadd.f32 %v3180, %v3244
        %v3246 = vpop.f32.mrf.mxu0
        %3247 = vmatprep.mubr.bf16.mxu0 %v2748
        %3248 = vmatmul.mubr.bf16.gmra.mxu0 %v2747
        %v3249 = vpop.f32.mrf.mxu0
        %v3250 = vadd.f32 %v3185, %v3249
        %v3251 = vpop.f32.mrf.mxu0
        %v3252 = vpop.f32.mrf.mxu0
        %v3253 = vadd.f32 %v3188, %v3252
        %v3254 = vpop.f32.mrf.mxu0
        %3255 = vdwg.mxu0
        %v3256 = vmax.f32 %v3226, 0.0
        %v3257 = vmax.f32 %v3229, 0.0
        %v3258 = vmax.f32 %v3234, 0.0
        %v3259 = vmax.f32 %v3237, 0.0
        %v3260 = vmax.f32 %v3242, 0.0
        %v3261 = vmax.f32 %v3245, 0.0
        %v3262 = vmax.f32 %v3250, 0.0
        %v3263 = vmax.f32 %v3253, 0.0
        %v3264 = vpack.c.bf16 %v3256, %v3256
        %v3265 = vpack.c.bf16 %v3257, %v3257
        %v3266 = vpack.c.bf16 %v3258, %v3258
        %v3267 = vpack.c.bf16 %v3259, %v3259
        %v3268 = vpack.c.bf16 %v3260, %v3260
        %v3269 = vpack.c.bf16 %v3261, %v3261
        %v3270 = vpack.c.bf16 %v3262, %v3262
        %v3271 = vpack.c.bf16 %v3263, %v3263
        %vm3272 = vcmask 125952
        %3273 = vst.msk [vmem:[%s254] sm:$0xf] %vm3272, %v3264
        %3274 = vst.msk [vmem:[%s254 + $0x8] sm:$0xf] %vm3272, %v3265
        %3275 = vst.msk [vmem:[%s254 + $0x10] sm:$0xf] %vm3272, %v3266
        %3276 = vst.msk [vmem:[%s254 + $0x18] sm:$0xf] %vm3272, %v3267
        %3277 = vst.msk [vmem:[%s254 + $0x20] sm:$0xf] %vm3272, %v3268
        %3278 = vst.msk [vmem:[%s254 + $0x28] sm:$0xf] %vm3272, %v3269
        %3279 = vst.msk [vmem:[%s254 + $0x30] sm:$0xf] %vm3272, %v3270
        %3280 = vst.msk [vmem:[%s254 + $0x38] sm:$0xf] %vm3272, %v3271
        %s3281 = scalar_lea.vmem [#allocation3], 16
        %v3282 = vld [vmem:[%s3281] sm:$0xf]
        %v3283 = vld [vmem:[%s3281 + $0x8] sm:$0xf]
        %v3284 = vld [vmem:[%s3281 + $0x10] sm:$0xf]
        %v3285 = vld [vmem:[%s3281 + $0x18] sm:$0xf]
        %v3286 = vld [vmem:[%s3281 + $0x20] sm:$0xf]
        %v3287 = vld [vmem:[%s3281 + $0x28] sm:$0xf]
        %v3288 = vld [vmem:[%s3281 + $0x30] sm:$0xf]
        %v3289 = vld [vmem:[%s3281 + $0x38] sm:$0xf]
        %v3290 = vld [vmem:[%s3281 + $0x4] sm:$0x1]
        %v3291 = vld [vmem:[%s3281 + $0xc] sm:$0x1]
        %v3292 = vld [vmem:[%s3281 + $0x14] sm:$0x1]
        %v3293 = vld [vmem:[%s3281 + $0x1c] sm:$0x1]
        %v3294 = vld [vmem:[%s3281 + $0x24] sm:$0x1]
        %v3295 = vld [vmem:[%s3281 + $0x2c] sm:$0x1]
        %v3296 = vld [vmem:[%s3281 + $0x34] sm:$0x1]
        %v3297 = vld [vmem:[%s3281 + $0x3c] sm:$0x1]
        %v3298 = vld [vmem:[%s3281] sm:$0xe]
        %v3299 = vld [vmem:[%s3281 + $0x8] sm:$0xe]
        %v3300 = vld [vmem:[%s3281 + $0x10] sm:$0xe]
        %v3301 = vld [vmem:[%s3281 + $0x18] sm:$0xe]
        %v3302 = vld [vmem:[%s3281 + $0x20] sm:$0xe]
        %v3303 = vld [vmem:[%s3281 + $0x28] sm:$0xe]
        %v3304 = vld [vmem:[%s3281 + $0x30] sm:$0xe]
        %v3305 = vld [vmem:[%s3281 + $0x38] sm:$0xe]
        %v3306 = vld [vmem:[%s2077] sm:$0xf]
        %v3307 = vld [vmem:[%s2077 + $0x8] sm:$0xf]
        %v3308 = vld [vmem:[%s2077 + $0x10] sm:$0xf]
        %v3309 = vld [vmem:[%s2077 + $0x18] sm:$0xf]
        %v3310 = vld [vmem:[%s2077 + $0x20] sm:$0xf]
        %v3311 = vld [vmem:[%s2077 + $0x28] sm:$0xf]
        %v3312 = vld [vmem:[%s2077 + $0x30] sm:$0xf]
        %v3313 = vld [vmem:[%s2077 + $0x38] sm:$0xf]
        %v3314 = vld [vmem:[%s2077 + $0x4] sm:$0x1]
        %v3315 = vld [vmem:[%s2077 + $0xc] sm:$0x1]
        %v3316 = vld [vmem:[%s2077 + $0x14] sm:$0x1]
        %v3317 = vld [vmem:[%s2077 + $0x1c] sm:$0x1]
        %v3318 = vld [vmem:[%s2077 + $0x24] sm:$0x1]
        %v3319 = vld [vmem:[%s2077 + $0x2c] sm:$0x1]
        %v3320 = vld [vmem:[%s2077 + $0x34] sm:$0x1]
        %v3321 = vld [vmem:[%s2077 + $0x3c] sm:$0x1]
        %v3322 = vld [vmem:[%s2077] sm:$0xe]
        %v3323 = vld [vmem:[%s2077 + $0x8] sm:$0xe]
        %v3324 = vld [vmem:[%s2077 + $0x10] sm:$0xe]
        %v3325 = vld [vmem:[%s2077 + $0x18] sm:$0xe]
        %v3326 = vld [vmem:[%s2077 + $0x20] sm:$0xe]
        %v3327 = vld [vmem:[%s2077 + $0x28] sm:$0xe]
        %v3328 = vld [vmem:[%s2077 + $0x30] sm:$0xe]
        %v3329 = vld [vmem:[%s2077 + $0x38] sm:$0xe]
        %v3346 = vunpack.c.l.b16 %v3282
        %v3347 = vunpack.c.l.b16 %v3290
        %v3348 = vunpack.c.l.b16 %v3283
        %v3349 = vunpack.c.l.b16 %v3291
        %v3350 = vunpack.c.l.b16 %v3284
        %v3351 = vunpack.c.l.b16 %v3292
        %v3352 = vunpack.c.l.b16 %v3285
        %v3353 = vunpack.c.l.b16 %v3293
        %v3354 = vunpack.c.l.b16 %v3286
        %v3355 = vunpack.c.l.b16 %v3294
        %v3356 = vunpack.c.l.b16 %v3287
        %v3357 = vunpack.c.l.b16 %v3295
        %v3358 = vunpack.c.l.b16 %v3288
        %v3359 = vunpack.c.l.b16 %v3296
        %v3360 = vunpack.c.l.b16 %v3289
        %v3361 = vunpack.c.l.b16 %v3297
        %v3362 = vpack.c.b16 %v3347, %v3346
        %v3363 = vpack.c.b16 %v3349, %v3348
        %v3364 = vpack.c.b16 %v3351, %v3350
        %v3365 = vpack.c.b16 %v3353, %v3352
        %v3366 = vpack.c.b16 %v3355, %v3354
        %v3367 = vpack.c.b16 %v3357, %v3356
        %v3368 = vpack.c.b16 %v3359, %v3358
        %v3369 = vpack.c.b16 %v3361, %v3360
        %v3371 = vshrl.u32 %v3362, 16
        %v3373 = vshll.u32 %v3362, 16
        %v3375 = vrot.slane %v3373, 1
        %v3376 = vor.u32 %v3371, %v3375
        %v3378 = vshrl.u32 %v3363, 16
        %v3380 = vshll.u32 %v3363, 16
        %v3382 = vrot.slane %v3380, 1
        %v3383 = vor.u32 %v3378, %v3382
        %v3385 = vshrl.u32 %v3364, 16
        %v3387 = vshll.u32 %v3364, 16
        %v3389 = vrot.slane %v3387, 1
        %v3390 = vor.u32 %v3385, %v3389
        %v3392 = vshrl.u32 %v3365, 16
        %v3394 = vshll.u32 %v3365, 16
        %v3396 = vrot.slane %v3394, 1
        %v3397 = vor.u32 %v3392, %v3396
        %v3399 = vshrl.u32 %v3366, 16
        %v3401 = vshll.u32 %v3366, 16
        %v3403 = vrot.slane %v3401, 1
        %v3404 = vor.u32 %v3399, %v3403
        %v3406 = vshrl.u32 %v3367, 16
        %v3408 = vshll.u32 %v3367, 16
        %v3410 = vrot.slane %v3408, 1
        %v3411 = vor.u32 %v3406, %v3410
        %v3413 = vshrl.u32 %v3368, 16
        %v3415 = vshll.u32 %v3368, 16
        %v3417 = vrot.slane %v3415, 1
        %v3418 = vor.u32 %v3413, %v3417
        %v3420 = vshrl.u32 %v3369, 16
        %v3422 = vshll.u32 %v3369, 16
        %v3424 = vrot.slane %v3422, 1
        %v3425 = vor.u32 %v3420, %v3424
        %v3434 = vunpack.c.l.b16 %v3298
        %v3435 = vunpack.c.l.b16 %v3299
        %v3436 = vunpack.c.l.b16 %v3300
        %v3437 = vunpack.c.l.b16 %v3301
        %v3438 = vunpack.c.l.b16 %v3302
        %v3439 = vunpack.c.l.b16 %v3303
        %v3440 = vunpack.c.l.b16 %v3304
        %v3441 = vunpack.c.l.b16 %v3305
        %v3442 = vpack.c.b16 %v3347, %v3434
        %v3443 = vpack.c.b16 %v3349, %v3435
        %v3444 = vpack.c.b16 %v3351, %v3436
        %v3445 = vpack.c.b16 %v3353, %v3437
        %v3446 = vpack.c.b16 %v3355, %v3438
        %v3447 = vpack.c.b16 %v3357, %v3439
        %v3448 = vpack.c.b16 %v3359, %v3440
        %v3449 = vpack.c.b16 %v3361, %v3441
        %v3450 = vrot.slane %v3442, 1
        %v3451 = vrot.slane %v3443, 1
        %v3452 = vrot.slane %v3444, 1
        %v3453 = vrot.slane %v3445, 1
        %v3454 = vrot.slane %v3446, 1
        %v3455 = vrot.slane %v3447, 1
        %v3456 = vrot.slane %v3448, 1
        %v3457 = vrot.slane %v3449, 1
        %v3474 = vunpack.c.l.b16 %v3306
        %v3475 = vunpack.c.l.b16 %v3314
        %v3476 = vunpack.c.l.b16 %v3307
        %v3477 = vunpack.c.l.b16 %v3315
        %v3478 = vunpack.c.l.b16 %v3308
        %v3479 = vunpack.c.l.b16 %v3316
        %v3480 = vunpack.c.l.b16 %v3309
        %v3481 = vunpack.c.l.b16 %v3317
        %v3482 = vunpack.c.l.b16 %v3310
        %v3483 = vunpack.c.l.b16 %v3318
        %v3484 = vunpack.c.l.b16 %v3311
        %v3485 = vunpack.c.l.b16 %v3319
        %v3486 = vunpack.c.l.b16 %v3312
        %v3487 = vunpack.c.l.b16 %v3320
        %v3488 = vunpack.c.l.b16 %v3313
        %v3489 = vunpack.c.l.b16 %v3321
        %v3490 = vpack.c.b16 %v3475, %v3474
        %v3491 = vpack.c.b16 %v3477, %v3476
        %v3492 = vpack.c.b16 %v3479, %v3478
        %v3493 = vpack.c.b16 %v3481, %v3480
        %v3494 = vpack.c.b16 %v3483, %v3482
        %v3495 = vpack.c.b16 %v3485, %v3484
        %v3496 = vpack.c.b16 %v3487, %v3486
        %v3497 = vpack.c.b16 %v3489, %v3488
        %v3499 = vshrl.u32 %v3490, 16
        %v3501 = vshll.u32 %v3490, 16
        %v3503 = vrot.slane %v3501, 1
        %v3504 = vor.u32 %v3499, %v3503
        %v3506 = vshrl.u32 %v3491, 16
        %v3508 = vshll.u32 %v3491, 16
        %v3510 = vrot.slane %v3508, 1
        %v3511 = vor.u32 %v3506, %v3510
        %v3513 = vshrl.u32 %v3492, 16
        %v3515 = vshll.u32 %v3492, 16
        %v3517 = vrot.slane %v3515, 1
        %v3518 = vor.u32 %v3513, %v3517
        %v3520 = vshrl.u32 %v3493, 16
        %v3522 = vshll.u32 %v3493, 16
        %v3524 = vrot.slane %v3522, 1
        %v3525 = vor.u32 %v3520, %v3524
        %v3527 = vshrl.u32 %v3494, 16
        %v3529 = vshll.u32 %v3494, 16
        %v3531 = vrot.slane %v3529, 1
        %v3532 = vor.u32 %v3527, %v3531
        %v3534 = vshrl.u32 %v3495, 16
        %v3536 = vshll.u32 %v3495, 16
        %v3538 = vrot.slane %v3536, 1
        %v3539 = vor.u32 %v3534, %v3538
        %v3541 = vshrl.u32 %v3496, 16
        %v3543 = vshll.u32 %v3496, 16
        %v3545 = vrot.slane %v3543, 1
        %v3546 = vor.u32 %v3541, %v3545
        %v3548 = vshrl.u32 %v3497, 16
        %v3550 = vshll.u32 %v3497, 16
        %v3552 = vrot.slane %v3550, 1
        %v3553 = vor.u32 %v3548, %v3552
        %v3562 = vunpack.c.l.b16 %v3322
        %v3563 = vunpack.c.l.b16 %v3323
        %v3564 = vunpack.c.l.b16 %v3324
        %v3565 = vunpack.c.l.b16 %v3325
        %v3566 = vunpack.c.l.b16 %v3326
        %v3567 = vunpack.c.l.b16 %v3327
        %v3568 = vunpack.c.l.b16 %v3328
        %v3569 = vunpack.c.l.b16 %v3329
        %v3570 = vpack.c.b16 %v3475, %v3562
        %v3571 = vpack.c.b16 %v3477, %v3563
        %v3572 = vpack.c.b16 %v3479, %v3564
        %v3573 = vpack.c.b16 %v3481, %v3565
        %v3574 = vpack.c.b16 %v3483, %v3566
        %v3575 = vpack.c.b16 %v3485, %v3567
        %v3576 = vpack.c.b16 %v3487, %v3568
        %v3577 = vpack.c.b16 %v3489, %v3569
        %v3578 = vrot.slane %v3570, 1
        %v3579 = vrot.slane %v3571, 1
        %v3580 = vrot.slane %v3572, 1
        %v3581 = vrot.slane %v3573, 1
        %v3582 = vrot.slane %v3574, 1
        %v3583 = vrot.slane %v3575, 1
        %v3584 = vrot.slane %v3576, 1
        %v3585 = vrot.slane %v3577, 1
        %v3586 = vunpack.c.l.b16 %v3376
        %v3587 = vunpack.c.l.b16 %v3450
        %v3588 = vunpack.c.l.b16 %v3504
        %v3589 = vunpack.c.l.b16 %v3578
        %v3590 = vunpack.c.l.b16 %v3383
        %v3591 = vunpack.c.l.b16 %v3451
        %v3592 = vunpack.c.l.b16 %v3511
        %v3593 = vunpack.c.l.b16 %v3579
        %v3594 = vunpack.c.l.b16 %v3390
        %v3595 = vunpack.c.l.b16 %v3452
        %v3596 = vunpack.c.l.b16 %v3518
        %v3597 = vunpack.c.l.b16 %v3580
        %v3598 = vunpack.c.l.b16 %v3397
        %v3599 = vunpack.c.l.b16 %v3453
        %v3600 = vunpack.c.l.b16 %v3525
        %v3601 = vunpack.c.l.b16 %v3581
        %v3602 = vunpack.c.l.b16 %v3404
        %v3603 = vunpack.c.l.b16 %v3454
        %v3604 = vunpack.c.l.b16 %v3532
        %v3605 = vunpack.c.l.b16 %v3582
        %v3606 = vunpack.c.l.b16 %v3411
        %v3607 = vunpack.c.l.b16 %v3455
        %v3608 = vunpack.c.l.b16 %v3539
        %v3609 = vunpack.c.l.b16 %v3583
        %v3610 = vunpack.c.l.b16 %v3418
        %v3611 = vunpack.c.l.b16 %v3456
        %v3612 = vunpack.c.l.b16 %v3546
        %v3613 = vunpack.c.l.b16 %v3584
        %v3614 = vunpack.c.l.b16 %v3425
        %v3615 = vunpack.c.l.b16 %v3457
        %v3616 = vunpack.c.l.b16 %v3553
        %v3617 = vunpack.c.l.b16 %v3585
        %s3618 = scalar_lea.vmem [#allocation6], 384
        %v3619 = vld [vmem:[%s3618] sm:$0xf]
        %v3620 = vld [vmem:[%s3618 + $0x4] sm:$0xf]
        %v3621 = vld [vmem:[%s3618 + $0x8] sm:$0xf]
        %v3622 = vld [vmem:[%s3618 + $0xc] sm:$0xf]
        %v3623 = vld [vmem:[%s3618 + $0x10] sm:$0xf]
        %v3624 = vld [vmem:[%s3618 + $0x14] sm:$0xf]
        %v3625 = vld [vmem:[%s3618 + $0x18] sm:$0xf]
        %v3626 = vld [vmem:[%s3618 + $0x1c] sm:$0xf]
        %v3627 = vld [vmem:[%s3618 + $0x20] sm:$0xf]
        %v3628 = vld [vmem:[%s3618 + $0x24] sm:$0xf]
        %v3629 = vld [vmem:[%s3618 + $0x28] sm:$0xf]
        %v3630 = vld [vmem:[%s3618 + $0x2c] sm:$0xf]
        %v3631 = vld [vmem:[%s3618 + $0x30] sm:$0xf]
        %v3632 = vld [vmem:[%s3618 + $0x34] sm:$0xf]
        %v3633 = vld [vmem:[%s3618 + $0x38] sm:$0xf]
        %v3634 = vld [vmem:[%s3618 + $0x3c] sm:$0xf]
        %v3635 = vld [vmem:[%s3618 + $0x40] sm:$0xf]
        %v3636 = vld [vmem:[%s3618 + $0x44] sm:$0xf]
        %v3637 = vld [vmem:[%s3618 + $0x48] sm:$0xf]
        %v3638 = vld [vmem:[%s3618 + $0x4c] sm:$0xf]
        %v3639 = vld [vmem:[%s3618 + $0x50] sm:$0xf]
        %v3640 = vld [vmem:[%s3618 + $0x54] sm:$0xf]
        %v3641 = vld [vmem:[%s3618 + $0x58] sm:$0xf]
        %v3642 = vld [vmem:[%s3618 + $0x5c] sm:$0xf]
        %v3643 = vld [vmem:[%s3618 + $0x60] sm:$0xf]
        %v3644 = vld [vmem:[%s3618 + $0x64] sm:$0xf]
        %v3645 = vld [vmem:[%s3618 + $0x68] sm:$0xf]
        %v3646 = vld [vmem:[%s3618 + $0x6c] sm:$0xf]
        %v3647 = vld [vmem:[%s3618 + $0x70] sm:$0xf]
        %v3648 = vld [vmem:[%s3618 + $0x74] sm:$0xf]
        %v3649 = vld [vmem:[%s3618 + $0x78] sm:$0xf]
        %v3650 = vld [vmem:[%s3618 + $0x7c] sm:$0xf]
        %v3651 = vld [vmem:[%s3618 + $0x80] sm:$0xf]
        %v3652 = vld [vmem:[%s3618 + $0x84] sm:$0xf]
        %v3653 = vld [vmem:[%s3618 + $0x88] sm:$0xf]
        %v3654 = vld [vmem:[%s3618 + $0x8c] sm:$0xf]
        %v3655 = vld [vmem:[%s3618 + $0x90] sm:$0xf]
        %v3656 = vld [vmem:[%s3618 + $0x94] sm:$0xf]
        %v3657 = vld [vmem:[%s3618 + $0x98] sm:$0xf]
        %v3658 = vld [vmem:[%s3618 + $0x9c] sm:$0xf]
        %v3659 = vld [vmem:[%s3618 + $0xa0] sm:$0xf]
        %v3660 = vld [vmem:[%s3618 + $0xa4] sm:$0xf]
        %v3661 = vld [vmem:[%s3618 + $0xa8] sm:$0xf]
        %v3662 = vld [vmem:[%s3618 + $0xac] sm:$0xf]
        %v3663 = vld [vmem:[%s3618 + $0xb0] sm:$0xf]
        %v3664 = vld [vmem:[%s3618 + $0xb4] sm:$0xf]
        %v3665 = vld [vmem:[%s3618 + $0xb8] sm:$0xf]
        %v3666 = vld [vmem:[%s3618 + $0xbc] sm:$0xf]
        %v3667 = vld [vmem:[%s3618 + $0xc0] sm:$0xf]
        %v3668 = vld [vmem:[%s3618 + $0xc4] sm:$0xf]
        %v3669 = vld [vmem:[%s3618 + $0xc8] sm:$0xf]
        %v3670 = vld [vmem:[%s3618 + $0xcc] sm:$0xf]
        %v3671 = vld [vmem:[%s3618 + $0xd0] sm:$0xf]
        %v3672 = vld [vmem:[%s3618 + $0xd4] sm:$0xf]
        %v3673 = vld [vmem:[%s3618 + $0xd8] sm:$0xf]
        %v3674 = vld [vmem:[%s3618 + $0xdc] sm:$0xf]
        %v3675 = vld [vmem:[%s3618 + $0xe0] sm:$0xf]
        %v3676 = vld [vmem:[%s3618 + $0xe4] sm:$0xf]
        %v3677 = vld [vmem:[%s3618 + $0xe8] sm:$0xf]
        %v3678 = vld [vmem:[%s3618 + $0xec] sm:$0xf]
        %v3679 = vld [vmem:[%s3618 + $0xf0] sm:$0xf]
        %v3680 = vld [vmem:[%s3618 + $0xf4] sm:$0xf]
        %v3681 = vld [vmem:[%s3618 + $0xf8] sm:$0xf]
        %v3682 = vld [vmem:[%s3618 + $0xfc] sm:$0xf]
        %v3683 = vld [vmem:[%s3618 + $0x100] sm:$0xf]
        %v3684 = vld [vmem:[%s3618 + $0x104] sm:$0xf]
        %v3685 = vld [vmem:[%s3618 + $0x108] sm:$0xf]
        %v3686 = vld [vmem:[%s3618 + $0x10c] sm:$0xf]
        %v3687 = vld [vmem:[%s3618 + $0x110] sm:$0xf]
        %v3688 = vld [vmem:[%s3618 + $0x114] sm:$0xf]
        %v3689 = vld [vmem:[%s3618 + $0x118] sm:$0xf]
        %v3690 = vld [vmem:[%s3618 + $0x11c] sm:$0xf]
        %v3691 = vld [vmem:[%s3618 + $0x120] sm:$0xf]
        %v3692 = vld [vmem:[%s3618 + $0x124] sm:$0xf]
        %v3693 = vld [vmem:[%s3618 + $0x128] sm:$0xf]
        %v3694 = vld [vmem:[%s3618 + $0x12c] sm:$0xf]
        %v3695 = vld [vmem:[%s3618 + $0x130] sm:$0xf]
        %v3696 = vld [vmem:[%s3618 + $0x134] sm:$0xf]
        %v3697 = vld [vmem:[%s3618 + $0x138] sm:$0xf]
        %v3698 = vld [vmem:[%s3618 + $0x13c] sm:$0xf]
        %v3699 = vld [vmem:[%s3618 + $0x140] sm:$0xf]
        %v3700 = vld [vmem:[%s3618 + $0x144] sm:$0xf]
        %v3701 = vld [vmem:[%s3618 + $0x148] sm:$0xf]
        %v3702 = vld [vmem:[%s3618 + $0x14c] sm:$0xf]
        %v3703 = vld [vmem:[%s3618 + $0x150] sm:$0xf]
        %v3704 = vld [vmem:[%s3618 + $0x154] sm:$0xf]
        %v3705 = vld [vmem:[%s3618 + $0x158] sm:$0xf]
        %v3706 = vld [vmem:[%s3618 + $0x15c] sm:$0xf]
        %v3707 = vld [vmem:[%s3618 + $0x160] sm:$0xf]
        %v3708 = vld [vmem:[%s3618 + $0x164] sm:$0xf]
        %v3709 = vld [vmem:[%s3618 + $0x168] sm:$0xf]
        %v3710 = vld [vmem:[%s3618 + $0x16c] sm:$0xf]
        %v3711 = vld [vmem:[%s3618 + $0x170] sm:$0xf]
        %v3712 = vld [vmem:[%s3618 + $0x174] sm:$0xf]
        %v3713 = vld [vmem:[%s3618 + $0x178] sm:$0xf]
        %v3714 = vld [vmem:[%s3618 + $0x17c] sm:$0xf]
        %v3715 = vpack.c.b16 %v3348, %v3346
        %v3716 = vpack.c.b16 %v3590, %v3586
        %v3717 = vpack.c.b16 %v3591, %v3587
        %v3718 = vpack.c.b16 %v3476, %v3474
        %v3719 = vpack.c.b16 %v3592, %v3588
        %v3720 = vpack.c.b16 %v3593, %v3589
        %v3721 = vpack.c.b16 %v3352, %v3350
        %v3722 = vpack.c.b16 %v3598, %v3594
        %v3723 = vpack.c.b16 %v3599, %v3595
        %v3724 = vpack.c.b16 %v3480, %v3478
        %v3725 = vpack.c.b16 %v3600, %v3596
        %v3726 = vpack.c.b16 %v3601, %v3597
        %v3727 = vpack.c.b16 %v3356, %v3354
        %v3728 = vpack.c.b16 %v3606, %v3602
        %v3729 = vpack.c.b16 %v3607, %v3603
        %v3730 = vpack.c.b16 %v3484, %v3482
        %v3731 = vpack.c.b16 %v3608, %v3604
        %v3732 = vpack.c.b16 %v3609, %v3605
        %v3733 = vpack.c.b16 %v3360, %v3358
        %v3734 = vpack.c.b16 %v3614, %v3610
        %v3735 = vpack.c.b16 %v3615, %v3611
        %v3736 = vpack.c.b16 %v3488, %v3486
        %v3737 = vpack.c.b16 %v3616, %v3612
        %v3738 = vpack.c.b16 %v3617, %v3613
        %v3859 = vunpack.c.l.b16 %v3619
        %v3860 = vunpack.c.l.b16 %v3620
        %v3861 = vunpack.c.l.b16 %v3621
        %v3862 = vunpack.c.l.b16 %v3622
        %v3863 = vunpack.c.l.b16 %v3623
        %v3864 = vunpack.c.l.b16 %v3624
        %v3865 = vunpack.c.l.b16 %v3625
        %v3866 = vunpack.c.l.b16 %v3626
        %v3867 = vunpack.c.l.b16 %v3627
        %v3868 = vunpack.c.l.b16 %v3628
        %v3869 = vunpack.c.l.b16 %v3629
        %v3870 = vunpack.c.l.b16 %v3630
        %v3871 = vunpack.c.l.b16 %v3631
        %v3872 = vunpack.c.l.b16 %v3632
        %v3873 = vunpack.c.l.b16 %v3633
        %v3874 = vunpack.c.l.b16 %v3634
        %v3875 = vunpack.c.l.b16 %v3635
        %v3876 = vunpack.c.l.b16 %v3636
        %v3877 = vunpack.c.l.b16 %v3637
        %v3878 = vunpack.c.l.b16 %v3638
        %v3879 = vunpack.c.l.b16 %v3639
        %v3880 = vunpack.c.l.b16 %v3640
        %v3881 = vunpack.c.l.b16 %v3641
        %v3882 = vunpack.c.l.b16 %v3642
        %v3883 = vunpack.c.l.b16 %v3643
        %v3884 = vunpack.c.l.b16 %v3644
        %v3885 = vunpack.c.l.b16 %v3645
        %v3886 = vunpack.c.l.b16 %v3646
        %v3887 = vunpack.c.l.b16 %v3647
        %v3888 = vunpack.c.l.b16 %v3648
        %v3889 = vunpack.c.l.b16 %v3649
        %v3890 = vunpack.c.l.b16 %v3650
        %v3891 = vunpack.c.l.b16 %v3651
        %v3892 = vunpack.c.l.b16 %v3652
        %v3893 = vunpack.c.l.b16 %v3653
        %v3894 = vunpack.c.l.b16 %v3654
        %v3895 = vunpack.c.l.b16 %v3655
        %v3896 = vunpack.c.l.b16 %v3656
        %v3897 = vunpack.c.l.b16 %v3657
        %v3898 = vunpack.c.l.b16 %v3658
        %v3899 = vunpack.c.l.b16 %v3659
        %v3900 = vunpack.c.l.b16 %v3660
        %v3901 = vunpack.c.l.b16 %v3661
        %v3902 = vunpack.c.l.b16 %v3662
        %v3903 = vunpack.c.l.b16 %v3663
        %v3904 = vunpack.c.l.b16 %v3664
        %v3905 = vunpack.c.l.b16 %v3665
        %v3906 = vunpack.c.l.b16 %v3666
        %v3907 = vunpack.c.l.b16 %v3667
        %v3908 = vunpack.c.l.b16 %v3668
        %v3909 = vunpack.c.l.b16 %v3669
        %v3910 = vunpack.c.l.b16 %v3670
        %v3911 = vunpack.c.l.b16 %v3671
        %v3912 = vunpack.c.l.b16 %v3672
        %v3913 = vunpack.c.l.b16 %v3673
        %v3914 = vunpack.c.l.b16 %v3674
        %v3915 = vunpack.c.l.b16 %v3675
        %v3916 = vunpack.c.l.b16 %v3676
        %v3917 = vunpack.c.l.b16 %v3677
        %v3918 = vunpack.c.l.b16 %v3678
        %v3919 = vunpack.c.l.b16 %v3679
        %v3920 = vunpack.c.l.b16 %v3680
        %v3921 = vunpack.c.l.b16 %v3681
        %v3922 = vunpack.c.l.b16 %v3682
        %v3923 = vunpack.c.l.b16 %v3683
        %v3924 = vunpack.c.l.b16 %v3684
        %v3925 = vunpack.c.l.b16 %v3685
        %v3926 = vunpack.c.l.b16 %v3686
        %v3927 = vunpack.c.l.b16 %v3687
        %v3928 = vunpack.c.l.b16 %v3688
        %v3929 = vunpack.c.l.b16 %v3689
        %v3930 = vunpack.c.l.b16 %v3690
        %v3931 = vunpack.c.l.b16 %v3691
        %v3932 = vunpack.c.l.b16 %v3692
        %v3933 = vunpack.c.l.b16 %v3693
        %v3934 = vunpack.c.l.b16 %v3694
        %v3935 = vunpack.c.l.b16 %v3695
        %v3936 = vunpack.c.l.b16 %v3696
        %v3937 = vunpack.c.l.b16 %v3697
        %v3938 = vunpack.c.l.b16 %v3698
        %v3939 = vunpack.c.l.b16 %v3699
        %v3940 = vunpack.c.l.b16 %v3700
        %v3941 = vunpack.c.l.b16 %v3701
        %v3942 = vunpack.c.l.b16 %v3702
        %v3943 = vunpack.c.l.b16 %v3703
        %v3944 = vunpack.c.l.b16 %v3704
        %v3945 = vunpack.c.l.b16 %v3705
        %v3946 = vunpack.c.l.b16 %v3706
        %v3947 = vunpack.c.l.b16 %v3707
        %v3948 = vunpack.c.l.b16 %v3708
        %v3949 = vunpack.c.l.b16 %v3709
        %v3950 = vunpack.c.l.b16 %v3710
        %v3951 = vunpack.c.l.b16 %v3711
        %v3952 = vunpack.c.l.b16 %v3712
        %v3953 = vunpack.c.l.b16 %v3713
        %v3954 = vunpack.c.l.b16 %v3714
        %v3955 = vpack.c.b16 %v3860, %v3859
        %v3956 = vpack.c.b16 %v3862, %v3861
        %v3957 = vpack.c.b16 %v3864, %v3863
        %v3958 = vpack.c.b16 %v3866, %v3865
        %v3959 = vpack.c.b16 %v3868, %v3867
        %v3960 = vpack.c.b16 %v3870, %v3869
        %v3961 = vpack.c.b16 %v3872, %v3871
        %v3962 = vpack.c.b16 %v3874, %v3873
        %v3963 = vpack.c.b16 %v3876, %v3875
        %v3964 = vpack.c.b16 %v3878, %v3877
        %v3965 = vpack.c.b16 %v3880, %v3879
        %v3966 = vpack.c.b16 %v3882, %v3881
        %v3967 = vpack.c.b16 %v3884, %v3883
        %v3968 = vpack.c.b16 %v3886, %v3885
        %v3969 = vpack.c.b16 %v3888, %v3887
        %v3970 = vpack.c.b16 %v3890, %v3889
        %v3971 = vpack.c.b16 %v3892, %v3891
        %v3972 = vpack.c.b16 %v3894, %v3893
        %v3973 = vpack.c.b16 %v3896, %v3895
        %v3974 = vpack.c.b16 %v3898, %v3897
        %v3975 = vpack.c.b16 %v3900, %v3899
        %v3976 = vpack.c.b16 %v3902, %v3901
        %v3977 = vpack.c.b16 %v3904, %v3903
        %v3978 = vpack.c.b16 %v3906, %v3905
        %v3979 = vpack.c.b16 %v3908, %v3907
        %v3980 = vpack.c.b16 %v3910, %v3909
        %v3981 = vpack.c.b16 %v3912, %v3911
        %v3982 = vpack.c.b16 %v3914, %v3913
        %v3983 = vpack.c.b16 %v3916, %v3915
        %v3984 = vpack.c.b16 %v3918, %v3917
        %v3985 = vpack.c.b16 %v3920, %v3919
        %v3986 = vpack.c.b16 %v3922, %v3921
        %v3987 = vpack.c.b16 %v3924, %v3923
        %v3988 = vpack.c.b16 %v3926, %v3925
        %v3989 = vpack.c.b16 %v3928, %v3927
        %v3990 = vpack.c.b16 %v3930, %v3929
        %v3991 = vpack.c.b16 %v3932, %v3931
        %v3992 = vpack.c.b16 %v3934, %v3933
        %v3993 = vpack.c.b16 %v3936, %v3935
        %v3994 = vpack.c.b16 %v3938, %v3937
        %v3995 = vpack.c.b16 %v3940, %v3939
        %v3996 = vpack.c.b16 %v3942, %v3941
        %v3997 = vpack.c.b16 %v3944, %v3943
        %v3998 = vpack.c.b16 %v3946, %v3945
        %v3999 = vpack.c.b16 %v3948, %v3947
        %v4000 = vpack.c.b16 %v3950, %v3949
        %v4001 = vpack.c.b16 %v3952, %v3951
        %v4002 = vpack.c.b16 %v3954, %v3953
        %4051 = vmatprep.subr.bf16.mxu0 0
        %4052 = vmatpush1.bf16.msra.mxu0 %v3962
        %4053 = vmatprep.subr.bf16.mxu0 0
        %4054 = vmatpush1.bf16.msra.mxu0 %v3961
        %4055 = vmatprep.subr.bf16.mxu0 0
        %4056 = vmatpush1.bf16.msra.mxu0 %v3960
        %4057 = vmatprep.subr.bf16.mxu0 0
        %4058 = vmatpush1.bf16.msra.mxu0 %v3959
        %4059 = vmatprep.subr.bf16.mxu0 0
        %4060 = vmatpush1.bf16.msra.mxu0 %v3958
        %4061 = vmatprep.subr.bf16.mxu0 0
        %4062 = vmatpush1.bf16.msra.mxu0 %v3957
        %4063 = vmatprep.subr.bf16.mxu0 0
        %4064 = vmatpush1.bf16.msra.mxu0 %v3956
        %4065 = vmatprep.subr.bf16.mxu0 0
        %4066 = vmatpush1.bf16.msra.mxu0 %v3955
        %4067 = vmatprep.subr.bf16.mxu0 0
        %4068 = vmatpush2.bf16.msra.mxu0 %v3970
        %4069 = vmatprep.subr.bf16.mxu0 0
        %4070 = vmatpush2.bf16.msra.mxu0 %v3969
        %4071 = vmatprep.subr.bf16.mxu0 0
        %4072 = vmatpush2.bf16.msra.mxu0 %v3968
        %4073 = vmatprep.subr.bf16.mxu0 0
        %4074 = vmatpush2.bf16.msra.mxu0 %v3967
        %4075 = vmatprep.subr.bf16.mxu0 0
        %4076 = vmatpush2.bf16.msra.mxu0 %v3966
        %4077 = vmatprep.subr.bf16.mxu0 0
        %4078 = vmatpush2.bf16.msra.mxu0 %v3965
        %4079 = vmatprep.subr.bf16.mxu0 0
        %4080 = vmatpush2.bf16.msra.mxu0 %v3964
        %4081 = vmatprep.subr.bf16.mxu0 0
        %4082 = vmatpush2.bf16.msra.mxu0 %v3963
        %4083 = vmatprep.mubr.bf16.mxu0 %v3716
        %4084 = vmatmul.mubr.bf16.gmra.mxu0 %v3715
        %v4085 = vpop.f32.mrf.mxu0
        %v4086 = vadd.f32 %v2723, %v4085
        %v4087 = vpop.f32.mrf.mxu0
        %v4088 = vpop.f32.mrf.mxu0
        %v4089 = vadd.f32 %v2723, %v4088
        %v4090 = vpop.f32.mrf.mxu0
        %4091 = vmatprep.mubr.bf16.mxu0 %v3722
        %4092 = vmatmul.mubr.bf16.gmra.mxu0 %v3721
        %v4093 = vpop.f32.mrf.mxu0
        %v4094 = vadd.f32 %v2723, %v4093
        %v4095 = vpop.f32.mrf.mxu0
        %v4096 = vpop.f32.mrf.mxu0
        %v4097 = vadd.f32 %v2723, %v4096
        %v4098 = vpop.f32.mrf.mxu0
        %4099 = vmatprep.mubr.bf16.mxu0 %v3728
        %4100 = vmatmul.mubr.bf16.gmra.mxu0 %v3727
        %v4101 = vpop.f32.mrf.mxu0
        %v4102 = vadd.f32 %v2723, %v4101
        %v4103 = vpop.f32.mrf.mxu0
        %v4104 = vpop.f32.mrf.mxu0
        %v4105 = vadd.f32 %v2723, %v4104
        %v4106 = vpop.f32.mrf.mxu0
        %4107 = vmatprep.mubr.bf16.mxu0 %v3734
        %4108 = vmatmul.mubr.bf16.gmra.mxu0 %v3733
        %v4109 = vpop.f32.mrf.mxu0
        %v4110 = vadd.f32 %v2723, %v4109
        %v4111 = vpop.f32.mrf.mxu0
        %v4112 = vpop.f32.mrf.mxu0
        %v4113 = vadd.f32 %v2723, %v4112
        %v4114 = vpop.f32.mrf.mxu0
        %4115 = vdwg.mxu0
        %4116 = vmatprep.subr.bf16.mxu0 0
        %4117 = vmatpush1.bf16.msra.mxu0 %v3978
        %4118 = vmatprep.subr.bf16.mxu0 0
        %4119 = vmatpush1.bf16.msra.mxu0 %v3977
        %4120 = vmatprep.subr.bf16.mxu0 0
        %4121 = vmatpush1.bf16.msra.mxu0 %v3976
        %4122 = vmatprep.subr.bf16.mxu0 0
        %4123 = vmatpush1.bf16.msra.mxu0 %v3975
        %4124 = vmatprep.subr.bf16.mxu0 0
        %4125 = vmatpush1.bf16.msra.mxu0 %v3974
        %4126 = vmatprep.subr.bf16.mxu0 0
        %4127 = vmatpush1.bf16.msra.mxu0 %v3973
        %4128 = vmatprep.subr.bf16.mxu0 0
        %4129 = vmatpush1.bf16.msra.mxu0 %v3972
        %4130 = vmatprep.subr.bf16.mxu0 0
        %4131 = vmatpush1.bf16.msra.mxu0 %v3971
        %4132 = vmatprep.subr.bf16.mxu0 0
        %4133 = vmatpush2.bf16.msra.mxu0 %v3986
        %4134 = vmatprep.subr.bf16.mxu0 0
        %4135 = vmatpush2.bf16.msra.mxu0 %v3985
        %4136 = vmatprep.subr.bf16.mxu0 0
        %4137 = vmatpush2.bf16.msra.mxu0 %v3984
        %4138 = vmatprep.subr.bf16.mxu0 0
        %4139 = vmatpush2.bf16.msra.mxu0 %v3983
        %4140 = vmatprep.subr.bf16.mxu0 0
        %4141 = vmatpush2.bf16.msra.mxu0 %v3982
        %4142 = vmatprep.subr.bf16.mxu0 0
        %4143 = vmatpush2.bf16.msra.mxu0 %v3981
        %4144 = vmatprep.subr.bf16.mxu0 0
        %4145 = vmatpush2.bf16.msra.mxu0 %v3980
        %4146 = vmatprep.subr.bf16.mxu0 0
        %4147 = vmatpush2.bf16.msra.mxu0 %v3979
        %4148 = vmatprep.mubr.bf16.mxu0 %v3718
        %4149 = vmatmul.mubr.bf16.gmra.mxu0 %v3717
        %v4150 = vpop.f32.mrf.mxu0
        %v4151 = vadd.f32 %v4086, %v4150
        %v4152 = vpop.f32.mrf.mxu0
        %v4153 = vpop.f32.mrf.mxu0
        %v4154 = vadd.f32 %v4089, %v4153
        %v4155 = vpop.f32.mrf.mxu0
        %4156 = vmatprep.mubr.bf16.mxu0 %v3724
        %4157 = vmatmul.mubr.bf16.gmra.mxu0 %v3723
        %v4158 = vpop.f32.mrf.mxu0
        %v4159 = vadd.f32 %v4094, %v4158
        %v4160 = vpop.f32.mrf.mxu0
        %v4161 = vpop.f32.mrf.mxu0
        %v4162 = vadd.f32 %v4097, %v4161
        %v4163 = vpop.f32.mrf.mxu0
        %4164 = vmatprep.mubr.bf16.mxu0 %v3730
        %4165 = vmatmul.mubr.bf16.gmra.mxu0 %v3729
        %v4166 = vpop.f32.mrf.mxu0
        %v4167 = vadd.f32 %v4102, %v4166
        %v4168 = vpop.f32.mrf.mxu0
        %v4169 = vpop.f32.mrf.mxu0
        %v4170 = vadd.f32 %v4105, %v4169
        %v4171 = vpop.f32.mrf.mxu0
        %4172 = vmatprep.mubr.bf16.mxu0 %v3736
        %4173 = vmatmul.mubr.bf16.gmra.mxu0 %v3735
        %v4174 = vpop.f32.mrf.mxu0
        %v4175 = vadd.f32 %v4110, %v4174
        %v4176 = vpop.f32.mrf.mxu0
        %v4177 = vpop.f32.mrf.mxu0
        %v4178 = vadd.f32 %v4113, %v4177
        %v4179 = vpop.f32.mrf.mxu0
        %4180 = vdwg.mxu0
        %4181 = vmatprep.subr.bf16.mxu0 0
        %4182 = vmatpush1.bf16.msra.mxu0 %v3994
        %4183 = vmatprep.subr.bf16.mxu0 0
        %4184 = vmatpush1.bf16.msra.mxu0 %v3993
        %4185 = vmatprep.subr.bf16.mxu0 0
        %4186 = vmatpush1.bf16.msra.mxu0 %v3992
        %4187 = vmatprep.subr.bf16.mxu0 0
        %4188 = vmatpush1.bf16.msra.mxu0 %v3991
        %4189 = vmatprep.subr.bf16.mxu0 0
        %4190 = vmatpush1.bf16.msra.mxu0 %v3990
        %4191 = vmatprep.subr.bf16.mxu0 0
        %4192 = vmatpush1.bf16.msra.mxu0 %v3989
        %4193 = vmatprep.subr.bf16.mxu0 0
        %4194 = vmatpush1.bf16.msra.mxu0 %v3988
        %4195 = vmatprep.subr.bf16.mxu0 0
        %4196 = vmatpush1.bf16.msra.mxu0 %v3987
        %4197 = vmatprep.subr.bf16.mxu0 0
        %4198 = vmatpush2.bf16.msra.mxu0 %v4002
        %4199 = vmatprep.subr.bf16.mxu0 0
        %4200 = vmatpush2.bf16.msra.mxu0 %v4001
        %4201 = vmatprep.subr.bf16.mxu0 0
        %4202 = vmatpush2.bf16.msra.mxu0 %v4000
        %4203 = vmatprep.subr.bf16.mxu0 0
        %4204 = vmatpush2.bf16.msra.mxu0 %v3999
        %4205 = vmatprep.subr.bf16.mxu0 0
        %4206 = vmatpush2.bf16.msra.mxu0 %v3998
        %4207 = vmatprep.subr.bf16.mxu0 0
        %4208 = vmatpush2.bf16.msra.mxu0 %v3997
        %4209 = vmatprep.subr.bf16.mxu0 0
        %4210 = vmatpush2.bf16.msra.mxu0 %v3996
        %4211 = vmatprep.subr.bf16.mxu0 0
        %4212 = vmatpush2.bf16.msra.mxu0 %v3995
        %4213 = vmatprep.mubr.bf16.mxu0 %v3720
        %4214 = vmatmul.mubr.bf16.gmra.mxu0 %v3719
        %v4215 = vpop.f32.mrf.mxu0
        %v4216 = vadd.f32 %v4151, %v4215
        %v4217 = vpop.f32.mrf.mxu0
        %v4218 = vpop.f32.mrf.mxu0
        %v4219 = vadd.f32 %v4154, %v4218
        %v4220 = vpop.f32.mrf.mxu0
        %4221 = vmatprep.mubr.bf16.mxu0 %v3726
        %4222 = vmatmul.mubr.bf16.gmra.mxu0 %v3725
        %v4223 = vpop.f32.mrf.mxu0
        %v4224 = vadd.f32 %v4159, %v4223
        %v4225 = vpop.f32.mrf.mxu0
        %v4226 = vpop.f32.mrf.mxu0
        %v4227 = vadd.f32 %v4162, %v4226
        %v4228 = vpop.f32.mrf.mxu0
        %4229 = vmatprep.mubr.bf16.mxu0 %v3732
        %4230 = vmatmul.mubr.bf16.gmra.mxu0 %v3731
        %v4231 = vpop.f32.mrf.mxu0
        %v4232 = vadd.f32 %v4167, %v4231
        %v4233 = vpop.f32.mrf.mxu0
        %v4234 = vpop.f32.mrf.mxu0
        %v4235 = vadd.f32 %v4170, %v4234
        %v4236 = vpop.f32.mrf.mxu0
        %4237 = vmatprep.mubr.bf16.mxu0 %v3738
        %4238 = vmatmul.mubr.bf16.gmra.mxu0 %v3737
        %v4239 = vpop.f32.mrf.mxu0
        %v4240 = vadd.f32 %v4175, %v4239
        %v4241 = vpop.f32.mrf.mxu0
        %v4242 = vpop.f32.mrf.mxu0
        %v4243 = vadd.f32 %v4178, %v4242
        %v4244 = vpop.f32.mrf.mxu0
        %4245 = vdwg.mxu0
        %v4246 = vmax.f32 %v4216, 0.0
        %v4247 = vmax.f32 %v4219, 0.0
        %v4248 = vmax.f32 %v4224, 0.0
        %v4249 = vmax.f32 %v4227, 0.0
        %v4250 = vmax.f32 %v4232, 0.0
        %v4251 = vmax.f32 %v4235, 0.0
        %v4252 = vmax.f32 %v4240, 0.0
        %v4253 = vmax.f32 %v4243, 0.0
        %v4254 = vpack.c.bf16 %v4246, %v4246
        %v4255 = vpack.c.bf16 %v4247, %v4247
        %v4256 = vpack.c.bf16 %v4248, %v4248
        %v4257 = vpack.c.bf16 %v4249, %v4249
        %v4258 = vpack.c.bf16 %v4250, %v4250
        %v4259 = vpack.c.bf16 %v4251, %v4251
        %v4260 = vpack.c.bf16 %v4252, %v4252
        %v4261 = vpack.c.bf16 %v4253, %v4253
        %s4262 = scalar_lea.vmem %s254, 4
        %4263 = vst.msk [vmem:[%s4262] sm:$0xf] %vm3272, %v4254
        %4264 = vst.msk [vmem:[%s4262 + $0x8] sm:$0xf] %vm3272, %v4255
        %4265 = vst.msk [vmem:[%s4262 + $0x10] sm:$0xf] %vm3272, %v4256
        %4266 = vst.msk [vmem:[%s4262 + $0x18] sm:$0xf] %vm3272, %v4257
        %4267 = vst.msk [vmem:[%s4262 + $0x20] sm:$0xf] %vm3272, %v4258
        %4268 = vst.msk [vmem:[%s4262 + $0x28] sm:$0xf] %vm3272, %v4259
        %4269 = vst.msk [vmem:[%s4262 + $0x30] sm:$0xf] %vm3272, %v4260
        %4270 = vst.msk [vmem:[%s4262 + $0x38] sm:$0xf] %vm3272, %v4261
        %p4271 = scmp.lt.s32.totalorder %s18, 1
        %s4272 = scalar_select %p4271, %s18, 1
        %s4273 = smul.addr %s4272, 16
        %s4274 = smul.addr %s4273, 4
        %s4275 = scalar_lea.vmem %s5, %s4274
        // Predicated region
        $region49: #{_forward.2} parent=39 // pred_check
          %p4276 = pneg %p146
        $region50: #{_forward.2} parent=39 // pred_check_branch
          %4278 = sbr.rel (%p4276) target = $region52
        $region51: #{_forward.2} parent=39 // pred_region
          _
        $region52: #{_forward.2} parent=39 // pred_fallthru
          _
      $region40: #{_forward.2} parent=5 // pred_fallthru
        _
      %p4279 = scmp.le.s32.totalorder 2, %s13
      // Predicated region
      $region53: #{_forward.2} parent=5 // pred_check
        %p4280 = pneg %p4279
      $region54: #{_forward.2} parent=5 // pred_check_branch
        %4282 = sbr.rel (%p4280) target = $region56
      $region55: #{_forward.2} parent=5 // pred_region
        %s4283 = ssub.s32 %s13, 2
        // Predicated region
        $region57: #{_forward.2} parent=55 // pred_check
          %p4284 = pneg %p152
        $region58: #{_forward.2} parent=55 // pred_check_branch
          %4286 = sbr.rel (%p4284) target = $region60
        $region59: #{_forward.2} parent=55 // pred_region
          %p4287 = scmp.lt.s32.totalorder %s19, 1
          %s4288 = scalar_select %p4287, %s19, 1
          %s4289 = smul.addr %s4288, 16
          %s4290 = smul.addr %s4289, 4
          %s4291 = scalar_lea.vmem %s5, %s4290
        $region60: #{_forward.2} parent=55 // pred_fallthru
          _
      $region56: #{_forward.2} parent=5 // pred_fallthru
        _
    $region6: #{_forward.2} parent=1 // loop_footer
      %s17 = sadd.s32 1, %s13
    $region7: #{_forward.2} parent=1 // loop_footer_branch
      %12 = sbr.rel target = $region3
    $region8: #{_forward.2} parent=1 // loop_exit
      _
    %4292 = vsyncpa [#allocation5], 1
    %s4293 = scalar_lea.sflag [#allocation5], 1
    %4294 = vsyncpa %s4293, 1
    %4295 = vsyncpa [#allocation7], 1

// kernel: _forward.3
$region0: #{_forward.3}
  #allocation0 [shape = 'u32[]', space=smem, size = 0x4, offset = 0x4, fixed_abs, tag = 'smem constant byte address 0x4 - core index']
  #allocation1 [shape = 'u32[144,128]{1,0:T(1,128)}', space=vmem, size = 0x12000, scoped, tag = 'internal scratch']
  #allocation2 [shape = 'bf16[18,18,128]{2,1,0:T(8,128)(2,1)}', space=vmem, size = 0x1b000, scoped, tag = 'scratch operand']
  #allocation3 [shape = 'bf16[18,18,128]{2,1,0:T(8,128)(2,1)}', space=vmem, size = 0x1b000, scoped, tag = 'scratch operand']
  %s0 = inlined_call_operand.vmem [shape: bf16[2,16,16,8], index: 0, kind: input, shape index: {}]
  %s1 = inlined_call_operand.vmem [shape: bf16[1152,8], index: 1, kind: input, shape index: {}]
  %s2 = inlined_call_operand.vmem [shape: f32[1,8], index: 2, kind: input, shape index: {}]
  %s3 = inlined_call_operand.vmem [shape: bf16[2,768,16], index: 3, kind: input, shape index: {}]
  %s4 = inlined_call_operand.vmem [shape: f32[1,16], index: 4, kind: input, shape index: {}]
  %s5 = inlined_call_operand.vmem [shape: bf16[2,16,2,16,16], index: 5, kind: output, shape index: {}]
  %s6 = sld [smem:[#allocation0]]
  $region53: #{_forward.3} parent=0
    _
  %s8 = ssub.s32 1, %s6
  %s9 = scalar_select 0, %s8, %s6
  loop: start=0, step=1, limit=4
  $region2: #{_forward.3} parent=0 // loop_pre_header
    _
  $region3: #{_forward.3} parent=0 // loop_header
    %s11 = sphi 0, %s15
    %p12 = scmp.ge.s32.totalorder %s11, 4
    %s21 = sphi 0, %s23
    %s24 = sphi 0, %s21
    %s25 = sphi 0, %s24
    %s41 = sphi 0, %s25
    %s45 = sphi 0, %s45
    %s47 = sphi 0, %s45
    %s48 = sphi 0, %s47
    %s62 = sphi 0, %s48
    %s66 = sphi 0, %s66
    %s68 = sphi 0, %s66
    %s69 = sphi 0, %s68
    %s83 = sphi 0, %s69
    %s87 = sphi 0, %s87
    %s89 = sphi 0, %s87
    %s90 = sphi 0, %s89
    %s104 = sphi 0, %s90
    %s108 = sphi 0, %s108
    %s110 = sphi 0, %s108
    %s111 = sphi 0, %s110
    %s125 = sphi 0, %s111
    %s131 = sphi 0, %s133
    %s134 = sphi 0, %s131
    %s135 = sphi 0, %s134
    %s151 = sphi 0, %s135
  $region4: #{_forward.3} parent=0 // loop_header_branch
    %14 = sbr.rel (%p12) target = $region8
  $region5: #{_forward.3} parent=0 // loop_body
    %s16 = ssub.s32 %s11, 1
    %s17 = ssub.s32 %s11, 2
    %s18 = sadd.s32 %s11, 1
    %s19 = ssub.s32 %s11, %s18
    %p20 = scmp.eq.s32.totalorder %s19, 0
    %s22 = sadd.s32 %s21, 1
    %s23 = scalar_select %p20, %s21, %s22
    %p26 = pneg %p20
    %p27 = scmp.eq.s32.totalorder %s11, 1
    %p28 = por %p26, %p27
    %p29 = scmp.ne.s32.totalorder %s21, %s24
    %p30 = scmp.eq.s32.totalorder %s11, 0
    %p31 = por %p29, %p30
    %p32 = scmp.ne.s32.totalorder %s21, %s24
    %p33 = scmp.eq.s32.totalorder %s16, 1
    %p34 = por %p32, %p33
    %p35 = scmp.ne.s32.totalorder %s24, %s25
    %p36 = scmp.eq.s32.totalorder %s16, 0
    %p37 = por %p35, %p36
    %p38 = scmp.ne.s32.totalorder %s24, %s25
    %p39 = scmp.eq.s32.totalorder %s17, 1
    %p40 = por %p38, %p39
    %p42 = scmp.ne.s32.totalorder %s25, %s41
    %p43 = scmp.eq.s32.totalorder %s17, 0
    %p44 = por %p42, %p43
    %s46 = sadd.s32 %s45, 1
    %p49 = scmp.eq.s32.totalorder %s11, 1
    %p50 = scmp.ne.s32.totalorder %s45, %s47
    %p51 = scmp.eq.s32.totalorder %s11, 0
    %p52 = por %p50, %p51
    %p53 = scmp.ne.s32.totalorder %s45, %s47
    %p54 = scmp.eq.s32.totalorder %s16, 1
    %p55 = por %p53, %p54
    %p56 = scmp.ne.s32.totalorder %s47, %s48
    %p57 = scmp.eq.s32.totalorder %s16, 0
    %p58 = por %p56, %p57
    %p59 = scmp.ne.s32.totalorder %s47, %s48
    %p60 = scmp.eq.s32.totalorder %s17, 1
    %p61 = por %p59, %p60
    %p63 = scmp.ne.s32.totalorder %s48, %s62
    %p64 = scmp.eq.s32.totalorder %s17, 0
    %p65 = por %p63, %p64
    %s67 = sadd.s32 %s66, 1
    %p70 = scmp.eq.s32.totalorder %s11, 1
    %p71 = scmp.ne.s32.totalorder %s66, %s68
    %p72 = scmp.eq.s32.totalorder %s11, 0
    %p73 = por %p71, %p72
    %p74 = scmp.ne.s32.totalorder %s66, %s68
    %p75 = scmp.eq.s32.totalorder %s16, 1
    %p76 = por %p74, %p75
    %p77 = scmp.ne.s32.totalorder %s68, %s69
    %p78 = scmp.eq.s32.totalorder %s16, 0
    %p79 = por %p77, %p78
    %p80 = scmp.ne.s32.totalorder %s68, %s69
    %p81 = scmp.eq.s32.totalorder %s17, 1
    %p82 = por %p80, %p81
    %p84 = scmp.ne.s32.totalorder %s69, %s83
    %p85 = scmp.eq.s32.totalorder %s17, 0
    %p86 = por %p84, %p85
    %s88 = sadd.s32 %s87, 1
    %p91 = scmp.eq.s32.totalorder %s11, 1
    %p92 = scmp.ne.s32.totalorder %s87, %s89
    %p93 = scmp.eq.s32.totalorder %s11, 0
    %p94 = por %p92, %p93
    %p95 = scmp.ne.s32.totalorder %s87, %s89
    %p96 = scmp.eq.s32.totalorder %s16, 1
    %p97 = por %p95, %p96
    %p98 = scmp.ne.s32.totalorder %s89, %s90
    %p99 = scmp.eq.s32.totalorder %s16, 0
    %p100 = por %p98, %p99
    %p101 = scmp.ne.s32.totalorder %s89, %s90
    %p102 = scmp.eq.s32.totalorder %s17, 1
    %p103 = por %p101, %p102
    %p105 = scmp.ne.s32.totalorder %s90, %s104
    %p106 = scmp.eq.s32.totalorder %s17, 0
    %p107 = por %p105, %p106
    %s109 = sadd.s32 %s108, 1
    %p112 = scmp.eq.s32.totalorder %s11, 1
    %p113 = scmp.ne.s32.totalorder %s108, %s110
    %p114 = scmp.eq.s32.totalorder %s11, 0
    %p115 = por %p113, %p114
    %p116 = scmp.ne.s32.totalorder %s108, %s110
    %p117 = scmp.eq.s32.totalorder %s16, 1
    %p118 = por %p116, %p117
    %p119 = scmp.ne.s32.totalorder %s110, %s111
    %p120 = scmp.eq.s32.totalorder %s16, 0
    %p121 = por %p119, %p120
    %p122 = scmp.ne.s32.totalorder %s110, %s111
    %p123 = scmp.eq.s32.totalorder %s17, 1
    %p124 = por %p122, %p123
    %p126 = scmp.ne.s32.totalorder %s111, %s125
    %p127 = scmp.eq.s32.totalorder %s17, 0
    %p128 = por %p126, %p127
    %s129 = ssub.s32 %s11, %s18
    %p130 = scmp.eq.s32.totalorder %s129, 0
    %s132 = sadd.s32 %s131, 1
    %s133 = scalar_select %p130, %s131, %s132
    %p136 = pneg %p130
    %p137 = scmp.eq.s32.totalorder %s11, 1
    %p138 = por %p136, %p137
    %p139 = scmp.ne.s32.totalorder %s131, %s134
    %p140 = scmp.eq.s32.totalorder %s11, 0
    %p141 = por %p139, %p140
    %p142 = scmp.ne.s32.totalorder %s131, %s134
    %p143 = scmp.eq.s32.totalorder %s16, 1
    %p144 = por %p142, %p143
    %p145 = scmp.ne.s32.totalorder %s134, %s135
    %p146 = scmp.eq.s32.totalorder %s16, 0
    %p147 = por %p145, %p146
    %p148 = scmp.ne.s32.totalorder %s134, %s135
    %p149 = scmp.eq.s32.totalorder %s17, 1
    %p150 = por %p148, %p149
    %p152 = scmp.ne.s32.totalorder %s135, %s151
    %p153 = scmp.eq.s32.totalorder %s17, 0
    %p154 = por %p152, %p153
    %p155 = scmp.le.s32.totalorder 1, %s11
    %p156 = scmp.lt.s32.totalorder %s11, 3
    %p157 = pnand %p155, %p156
    %p158 = pneg %p157
    // Predicated region
    $region9: #{_forward.3} parent=5 // pred_check
      _
    $region10: #{_forward.3} parent=5 // pred_check_branch
      %160 = sbr.rel (%p157) target = $region12
    $region11: #{_forward.3} parent=5 // pred_region
      %s161 = ssub.s32 %s11, 1
      // Predicated region
      $region13: #{_forward.3} parent=11 // pred_check
        %p162 = pneg %p58
      $region14: #{_forward.3} parent=11 // pred_check_branch
        %164 = sbr.rel (%p162) target = $region16
      $region15: #{_forward.3} parent=11 // pred_region
        _
      $region16: #{_forward.3} parent=11 // pred_fallthru
        _
      // Predicated region
      $region17: #{_forward.3} parent=11 // pred_check
        %p165 = pneg %p79
      $region18: #{_forward.3} parent=11 // pred_check_branch
        %167 = sbr.rel (%p165) target = $region20
      $region19: #{_forward.3} parent=11 // pred_region
        _
      $region20: #{_forward.3} parent=11 // pred_fallthru
        _
      // Predicated region
      $region21: #{_forward.3} parent=11 // pred_check
        %p168 = pneg %p100
      $region22: #{_forward.3} parent=11 // pred_check_branch
        %170 = sbr.rel (%p168) target = $region24
      $region23: #{_forward.3} parent=11 // pred_region
        _
      $region24: #{_forward.3} parent=11 // pred_fallthru
        _
      // Predicated region
      $region25: #{_forward.3} parent=11 // pred_check
        %p171 = pneg %p121
      $region26: #{_forward.3} parent=11 // pred_check_branch
        %173 = sbr.rel (%p171) target = $region28
      $region27: #{_forward.3} parent=11 // pred_region
        _
      $region28: #{_forward.3} parent=11 // pred_fallthru
        _
    $region12: #{_forward.3} parent=5 // pred_fallthru
      _
    %p174 = scmp.lt.s32.totalorder %s11, 2
    // Predicated region
    $region29: #{_forward.3} parent=5 // pred_check
      %p175 = pneg %p174
    $region30: #{_forward.3} parent=5 // pred_check_branch
      %177 = sbr.rel (%p175) target = $region32
    $region31: #{_forward.3} parent=5 // pred_region
      // Predicated region
      $region33: #{_forward.3} parent=31 // pred_check
        %p178 = pneg %p31
      $region34: #{_forward.3} parent=31 // pred_check_branch
        %180 = sbr.rel (%p178) target = $region36
      $region35: #{_forward.3} parent=31 // pred_region
        %p181 = scmp.lt.s32.totalorder %s11, 1
        %s182 = scalar_select %p181, %s11, 1
        %s183 = smul.addr %s182, 32
        %s184 = smul.addr %s183, 4
        %s185 = scalar_lea.vmem %s0, %s184
      $region36: #{_forward.3} parent=31 // pred_fallthru
        _
    $region32: #{_forward.3} parent=5 // pred_fallthru
      _
    %p186 = scmp.le.s32.totalorder 1, %s11
    %p187 = scmp.lt.s32.totalorder %s11, 3
    %p188 = pnand %p186, %p187
    %p189 = pneg %p188
    // Predicated region
    $region37: #{_forward.3} parent=5 // pred_check
      _
    $region38: #{_forward.3} parent=5 // pred_check_branch
      %191 = sbr.rel (%p188) target = $region40
    $region39: #{_forward.3} parent=5 // pred_region
      %s192 = ssub.s32 %s11, 1
      %p193 = scmp.lt.s32.totalorder %s16, 1
      %s194 = scalar_select %p193, %s16, 1
      %s195 = smul.addr %s194, 32
      %s196 = smul.addr %s195, 4
      %s197 = scalar_lea.vmem %s0, %s196
      %p198 = pneg %p37
      %p199 = pneg %p34
      %p200 = pneg %p58
      %p201 = pneg %p55
      %p202 = pneg %p79
      %p203 = pneg %p76
      %p204 = pneg %p100
      %p205 = pneg %p97
      %p206 = pneg %p121
      %p207 = pneg %p118
      %p208 = pneg %p147
      %p209 = pneg %p144
      %p210 = scmp.lt.s32.totalorder %s16, 1
      %s211 = scalar_select %p210, %s16, 1
      %s212 = smul.addr %s211, 64
      %s213 = smul.addr %s212, 4
      %s214 = scalar_lea.vmem %s5, %s213
      %p215 = scmp.lt.s32.totalorder %s16, 1
      %s216 = scalar_select %p215, %s16, 1
      %s217 = smul.addr %s216, 32
      %s218 = smul.addr %s217, 4
      %s219 = scalar_lea.vmem %s0, %s218
      %p220 = scmp.lt.s32.totalorder %s16, 1
      %s221 = scalar_select %p220, %s16, 1
      %s222 = smul.addr %s221, 64
      %s223 = smul.addr %s222, 4
      %s224 = scalar_lea.vmem %s5, %s223
      %226 = vst [vmem:[#allocation2] sm:$0xf] 0
      %227 = vst [vmem:[#allocation2 + $0x4] sm:$0xf] 0
      %228 = vst [vmem:[#allocation2 + $0x8] sm:$0x1] 0
      %s229 = scalar_lea.vmem [#allocation2], 204
      %230 = vst [vmem:[%s229] sm:$0xf] 0
      %231 = vst [vmem:[%s229 + $0x4] sm:$0xf] 0
      %232 = vst [vmem:[%s229 + $0x8] sm:$0x1] 0
      %vm233 = vcmask 1040384
      %vm234 = vsmask.f32 256
      %vm235 = vmand %vm233, %vm234
      %v236 = vld [vmem:[#allocation2] sm:$0x1]
      %v237 = vsel %vm235, 0, %v236
      %238 = vst [vmem:[#allocation2] sm:$0x1] %v237
      %v239 = vld [vmem:[#allocation2 + $0xc] sm:$0x1]
      %v240 = vsel %vm235, 0, %v239
      %241 = vst [vmem:[#allocation2 + $0xc] sm:$0x1] %v240
      %v242 = vld [vmem:[#allocation2 + $0x18] sm:$0x1]
      %v243 = vsel %vm235, 0, %v242
      %244 = vst [vmem:[#allocation2 + $0x18] sm:$0x1] %v243
      %v245 = vld [vmem:[#allocation2 + $0x24] sm:$0x1]
      %v246 = vsel %vm235, 0, %v245
      %247 = vst [vmem:[#allocation2 + $0x24] sm:$0x1] %v246
      %v248 = vld [vmem:[#allocation2 + $0x30] sm:$0x1]
      %v249 = vsel %vm235, 0, %v248
      %250 = vst [vmem:[#allocation2 + $0x30] sm:$0x1] %v249
      %v251 = vld [vmem:[#allocation2 + $0x3c] sm:$0x1]
      %v252 = vsel %vm235, 0, %v251
      %253 = vst [vmem:[#allocation2 + $0x3c] sm:$0x1] %v252
      %v254 = vld [vmem:[#allocation2 + $0x48] sm:$0x1]
      %v255 = vsel %vm235, 0, %v254
      %256 = vst [vmem:[#allocation2 + $0x48] sm:$0x1] %v255
      %v257 = vld [vmem:[#allocation2 + $0x54] sm:$0x1]
      %v258 = vsel %vm235, 0, %v257
      %259 = vst [vmem:[#allocation2 + $0x54] sm:$0x1] %v258
      %v260 = vld [vmem:[#allocation2 + $0x60] sm:$0x1]
      %v261 = vsel %vm235, 0, %v260
      %262 = vst [vmem:[#allocation2 + $0x60] sm:$0x1] %v261
      %v263 = vld [vmem:[#allocation2 + $0x6c] sm:$0x1]
      %v264 = vsel %vm235, 0, %v263
      %265 = vst [vmem:[#allocation2 + $0x6c] sm:$0x1] %v264
      %v266 = vld [vmem:[#allocation2 + $0x78] sm:$0x1]
      %v267 = vsel %vm235, 0, %v266
      %268 = vst [vmem:[#allocation2 + $0x78] sm:$0x1] %v267
      %v269 = vld [vmem:[#allocation2 + $0x84] sm:$0x1]
      %v270 = vsel %vm235, 0, %v269
      %271 = vst [vmem:[#allocation2 + $0x84] sm:$0x1] %v270
      %v272 = vld [vmem:[#allocation2 + $0x90] sm:$0x1]
      %v273 = vsel %vm235, 0, %v272
      %274 = vst [vmem:[#allocation2 + $0x90] sm:$0x1] %v273
      %v275 = vld [vmem:[#allocation2 + $0x9c] sm:$0x1]
      %v276 = vsel %vm235, 0, %v275
      %277 = vst [vmem:[#allocation2 + $0x9c] sm:$0x1] %v276
      %v278 = vld [vmem:[#allocation2 + $0xa8] sm:$0x1]
      %v279 = vsel %vm235, 0, %v278
      %280 = vst [vmem:[#allocation2 + $0xa8] sm:$0x1] %v279
      %v281 = vld [vmem:[#allocation2 + $0xb4] sm:$0x1]
      %v282 = vsel %vm235, 0, %v281
      %283 = vst [vmem:[#allocation2 + $0xb4] sm:$0x1] %v282
      %v284 = vld [vmem:[#allocation2 + $0xc0] sm:$0x1]
      %v285 = vsel %vm235, 0, %v284
      %286 = vst [vmem:[#allocation2 + $0xc0] sm:$0x1] %v285
      %v287 = vld [vmem:[#allocation2 + $0xcc] sm:$0x1]
      %v288 = vsel %vm235, 0, %v287
      %289 = vst [vmem:[#allocation2 + $0xcc] sm:$0x1] %v288
      %vm290 = vsmask.f32 7938
      %vm291 = vmand %vm233, %vm290
      %v292 = vld [vmem:[#allocation2 + $0x8] sm:$0x1]
      %v293 = vsel %vm291, 0, %v292
      %294 = vst [vmem:[#allocation2 + $0x8] sm:$0x1] %v293
      %v295 = vld [vmem:[#allocation2 + $0x14] sm:$0x1]
      %v296 = vsel %vm291, 0, %v295
      %297 = vst [vmem:[#allocation2 + $0x14] sm:$0x1] %v296
      %v298 = vld [vmem:[#allocation2 + $0x20] sm:$0x1]
      %v299 = vsel %vm291, 0, %v298
      %300 = vst [vmem:[#allocation2 + $0x20] sm:$0x1] %v299
      %v301 = vld [vmem:[#allocation2 + $0x2c] sm:$0x1]
      %v302 = vsel %vm291, 0, %v301
      %303 = vst [vmem:[#allocation2 + $0x2c] sm:$0x1] %v302
      %v304 = vld [vmem:[#allocation2 + $0x38] sm:$0x1]
      %v305 = vsel %vm291, 0, %v304
      %306 = vst [vmem:[#allocation2 + $0x38] sm:$0x1] %v305
      %v307 = vld [vmem:[#allocation2 + $0x44] sm:$0x1]
      %v308 = vsel %vm291, 0, %v307
      %309 = vst [vmem:[#allocation2 + $0x44] sm:$0x1] %v308
      %v310 = vld [vmem:[#allocation2 + $0x50] sm:$0x1]
      %v311 = vsel %vm291, 0, %v310
      %312 = vst [vmem:[#allocation2 + $0x50] sm:$0x1] %v311
      %v313 = vld [vmem:[#allocation2 + $0x5c] sm:$0x1]
      %v314 = vsel %vm291, 0, %v313
      %315 = vst [vmem:[#allocation2 + $0x5c] sm:$0x1] %v314
      %v316 = vld [vmem:[#allocation2 + $0x68] sm:$0x1]
      %v317 = vsel %vm291, 0, %v316
      %318 = vst [vmem:[#allocation2 + $0x68] sm:$0x1] %v317
      %v319 = vld [vmem:[#allocation2 + $0x74] sm:$0x1]
      %v320 = vsel %vm291, 0, %v319
      %321 = vst [vmem:[#allocation2 + $0x74] sm:$0x1] %v320
      %v322 = vld [vmem:[#allocation2 + $0x80] sm:$0x1]
      %v323 = vsel %vm291, 0, %v322
      %324 = vst [vmem:[#allocation2 + $0x80] sm:$0x1] %v323
      %v325 = vld [vmem:[#allocation2 + $0x8c] sm:$0x1]
      %v326 = vsel %vm291, 0, %v325
      %327 = vst [vmem:[#allocation2 + $0x8c] sm:$0x1] %v326
      %v328 = vld [vmem:[#allocation2 + $0x98] sm:$0x1]
      %v329 = vsel %vm291, 0, %v328
      %330 = vst [vmem:[#allocation2 + $0x98] sm:$0x1] %v329
      %v331 = vld [vmem:[#allocation2 + $0xa4] sm:$0x1]
      %v332 = vsel %vm291, 0, %v331
      %333 = vst [vmem:[#allocation2 + $0xa4] sm:$0x1] %v332
      %v334 = vld [vmem:[#allocation2 + $0xb0] sm:$0x1]
      %v335 = vsel %vm291, 0, %v334
      %336 = vst [vmem:[#allocation2 + $0xb0] sm:$0x1] %v335
      %v337 = vld [vmem:[#allocation2 + $0xbc] sm:$0x1]
      %v338 = vsel %vm291, 0, %v337
      %339 = vst [vmem:[#allocation2 + $0xbc] sm:$0x1] %v338
      %v340 = vld [vmem:[#allocation2 + $0xc8] sm:$0x1]
      %v341 = vsel %vm291, 0, %v340
      %342 = vst [vmem:[#allocation2 + $0xc8] sm:$0x1] %v341
      %v343 = vld [vmem:[#allocation2 + $0xd4] sm:$0x1]
      %v344 = vsel %vm291, 0, %v343
      %345 = vst [vmem:[#allocation2 + $0xd4] sm:$0x1] %v344
      %s346 = scalar_lea.vmem [#allocation2], 12
      %vm347 = vcmask 1043520
      %vm348 = vmand %vm347, %vm290
      %v349 = vld [vmem:[%s346] sm:$0xf]
      %v350 = vsel %vm348, 0, %v349
      %351 = vst [vmem:[%s346] sm:$0xf] %v350
      %vm352 = vcmask 1043520
      %353 = vst.msk [vmem:[%s346 + $0x4] sm:$0xf] %vm352, 0
      %vm354 = vcmask 1040448
      %vm355 = vmand %vm354, %vm234
      %v356 = vld [vmem:[%s346 + $0x8] sm:$0x1]
      %v357 = vsel %vm355, 0, %v356
      %358 = vst [vmem:[%s346 + $0x8] sm:$0x1] %v357
      %v359 = vld [vmem:[%s346 + $0xc] sm:$0xf]
      %v360 = vsel %vm348, 0, %v359
      %361 = vst [vmem:[%s346 + $0xc] sm:$0xf] %v360
      %362 = vst.msk [vmem:[%s346 + $0x10] sm:$0xf] %vm352, 0
      %v363 = vld [vmem:[%s346 + $0x14] sm:$0x1]
      %v364 = vsel %vm355, 0, %v363
      %365 = vst [vmem:[%s346 + $0x14] sm:$0x1] %v364
      %v366 = vld [vmem:[%s346 + $0x18] sm:$0xf]
      %v367 = vsel %vm348, 0, %v366
      %368 = vst [vmem:[%s346 + $0x18] sm:$0xf] %v367
      %369 = vst.msk [vmem:[%s346 + $0x1c] sm:$0xf] %vm352, 0
      %v370 = vld [vmem:[%s346 + $0x20] sm:$0x1]
      %v371 = vsel %vm355, 0, %v370
      %372 = vst [vmem:[%s346 + $0x20] sm:$0x1] %v371
      %v373 = vld [vmem:[%s346 + $0x24] sm:$0xf]
      %v374 = vsel %vm348, 0, %v373
      %375 = vst [vmem:[%s346 + $0x24] sm:$0xf] %v374
      %376 = vst.msk [vmem:[%s346 + $0x28] sm:$0xf] %vm352, 0
      %v377 = vld [vmem:[%s346 + $0x2c] sm:$0x1]
      %v378 = vsel %vm355, 0, %v377
      %379 = vst [vmem:[%s346 + $0x2c] sm:$0x1] %v378
      %v380 = vld [vmem:[%s346 + $0x30] sm:$0xf]
      %v381 = vsel %vm348, 0, %v380
      %382 = vst [vmem:[%s346 + $0x30] sm:$0xf] %v381
      %383 = vst.msk [vmem:[%s346 + $0x34] sm:$0xf] %vm352, 0
      %v384 = vld [vmem:[%s346 + $0x38] sm:$0x1]
      %v385 = vsel %vm355, 0, %v384
      %386 = vst [vmem:[%s346 + $0x38] sm:$0x1] %v385
      %v387 = vld [vmem:[%s346 + $0x3c] sm:$0xf]
      %v388 = vsel %vm348, 0, %v387
      %389 = vst [vmem:[%s346 + $0x3c] sm:$0xf] %v388
      %390 = vst.msk [vmem:[%s346 + $0x40] sm:$0xf] %vm352, 0
      %v391 = vld [vmem:[%s346 + $0x44] sm:$0x1]
      %v392 = vsel %vm355, 0, %v391
      %393 = vst [vmem:[%s346 + $0x44] sm:$0x1] %v392
      %v394 = vld [vmem:[%s346 + $0x48] sm:$0xf]
      %v395 = vsel %vm348, 0, %v394
      %396 = vst [vmem:[%s346 + $0x48] sm:$0xf] %v395
      %397 = vst.msk [vmem:[%s346 + $0x4c] sm:$0xf] %vm352, 0
      %v398 = vld [vmem:[%s346 + $0x50] sm:$0x1]
      %v399 = vsel %vm355, 0, %v398
      %400 = vst [vmem:[%s346 + $0x50] sm:$0x1] %v399
      %v401 = vld [vmem:[%s346 + $0x54] sm:$0xf]
      %v402 = vsel %vm348, 0, %v401
      %403 = vst [vmem:[%s346 + $0x54] sm:$0xf] %v402
      %404 = vst.msk [vmem:[%s346 + $0x58] sm:$0xf] %vm352, 0
      %v405 = vld [vmem:[%s346 + $0x5c] sm:$0x1]
      %v406 = vsel %vm355, 0, %v405
      %407 = vst [vmem:[%s346 + $0x5c] sm:$0x1] %v406
      %v408 = vld [vmem:[%s346 + $0x60] sm:$0xf]
      %v409 = vsel %vm348, 0, %v408
      %410 = vst [vmem:[%s346 + $0x60] sm:$0xf] %v409
      %411 = vst.msk [vmem:[%s346 + $0x64] sm:$0xf] %vm352, 0
      %v412 = vld [vmem:[%s346 + $0x68] sm:$0x1]
      %v413 = vsel %vm355, 0, %v412
      %414 = vst [vmem:[%s346 + $0x68] sm:$0x1] %v413
      %v415 = vld [vmem:[%s346 + $0x6c] sm:$0xf]
      %v416 = vsel %vm348, 0, %v415
      %417 = vst [vmem:[%s346 + $0x6c] sm:$0xf] %v416
      %418 = vst.msk [vmem:[%s346 + $0x70] sm:$0xf] %vm352, 0
      %v419 = vld [vmem:[%s346 + $0x74] sm:$0x1]
      %v420 = vsel %vm355, 0, %v419
      %421 = vst [vmem:[%s346 + $0x74] sm:$0x1] %v420
      %v422 = vld [vmem:[%s346 + $0x78] sm:$0xf]
      %v423 = vsel %vm348, 0, %v422
      %424 = vst [vmem:[%s346 + $0x78] sm:$0xf] %v423
      %425 = vst.msk [vmem:[%s346 + $0x7c] sm:$0xf] %vm352, 0
      %v426 = vld [vmem:[%s346 + $0x80] sm:$0x1]
      %v427 = vsel %vm355, 0, %v426
      %428 = vst [vmem:[%s346 + $0x80] sm:$0x1] %v427
      %v429 = vld [vmem:[%s346 + $0x84] sm:$0xf]
      %v430 = vsel %vm348, 0, %v429
      %431 = vst [vmem:[%s346 + $0x84] sm:$0xf] %v430
      %432 = vst.msk [vmem:[%s346 + $0x88] sm:$0xf] %vm352, 0
      %v433 = vld [vmem:[%s346 + $0x8c] sm:$0x1]
      %v434 = vsel %vm355, 0, %v433
      %435 = vst [vmem:[%s346 + $0x8c] sm:$0x1] %v434
      %v436 = vld [vmem:[%s346 + $0x90] sm:$0xf]
      %v437 = vsel %vm348, 0, %v436
      %438 = vst [vmem:[%s346 + $0x90] sm:$0xf] %v437
      %439 = vst.msk [vmem:[%s346 + $0x94] sm:$0xf] %vm352, 0
      %v440 = vld [vmem:[%s346 + $0x98] sm:$0x1]
      %v441 = vsel %vm355, 0, %v440
      %442 = vst [vmem:[%s346 + $0x98] sm:$0x1] %v441
      %v443 = vld [vmem:[%s346 + $0x9c] sm:$0xf]
      %v444 = vsel %vm348, 0, %v443
      %445 = vst [vmem:[%s346 + $0x9c] sm:$0xf] %v444
      %446 = vst.msk [vmem:[%s346 + $0xa0] sm:$0xf] %vm352, 0
      %v447 = vld [vmem:[%s346 + $0xa4] sm:$0x1]
      %v448 = vsel %vm355, 0, %v447
      %449 = vst [vmem:[%s346 + $0xa4] sm:$0x1] %v448
      %v450 = vld [vmem:[%s346 + $0xa8] sm:$0xf]
      %v451 = vsel %vm348, 0, %v450
      %452 = vst [vmem:[%s346 + $0xa8] sm:$0xf] %v451
      %453 = vst.msk [vmem:[%s346 + $0xac] sm:$0xf] %vm352, 0
      %v454 = vld [vmem:[%s346 + $0xb0] sm:$0x1]
      %v455 = vsel %vm355, 0, %v454
      %456 = vst [vmem:[%s346 + $0xb0] sm:$0x1] %v455
      %v457 = vld [vmem:[%s346 + $0xb4] sm:$0xf]
      %v458 = vsel %vm348, 0, %v457
      %459 = vst [vmem:[%s346 + $0xb4] sm:$0xf] %v458
      %460 = vst.msk [vmem:[%s346 + $0xb8] sm:$0xf] %vm352, 0
      %v461 = vld [vmem:[%s346 + $0xbc] sm:$0x1]
      %v462 = vsel %vm355, 0, %v461
      %463 = vst [vmem:[%s346 + $0xbc] sm:$0x1] %v462
      %v464 = vld [vmem:[%s219] sm:$0xf]
      %v465 = vld [vmem:[%s219 + $0x4] sm:$0xf]
      %v466 = vld [vmem:[%s219 + $0x8] sm:$0xf]
      %v467 = vld [vmem:[%s219 + $0xc] sm:$0xf]
      %v468 = vld [vmem:[%s219 + $0x10] sm:$0xf]
      %v469 = vld [vmem:[%s219 + $0x14] sm:$0xf]
      %v470 = vld [vmem:[%s219 + $0x18] sm:$0xf]
      %v471 = vld [vmem:[%s219 + $0x1c] sm:$0xf]
      %v472 = vld [vmem:[%s219 + $0x20] sm:$0xf]
      %v473 = vld [vmem:[%s219 + $0x24] sm:$0xf]
      %v474 = vld [vmem:[%s219 + $0x28] sm:$0xf]
      %v475 = vld [vmem:[%s219 + $0x2c] sm:$0xf]
      %v476 = vld [vmem:[%s219 + $0x30] sm:$0xf]
      %v477 = vld [vmem:[%s219 + $0x34] sm:$0xf]
      %v478 = vld [vmem:[%s219 + $0x38] sm:$0xf]
      %v479 = vld [vmem:[%s219 + $0x3c] sm:$0xf]
      %v480 = vld [vmem:[%s219 + $0x40] sm:$0xf]
      %v481 = vld [vmem:[%s219 + $0x44] sm:$0xf]
      %v482 = vld [vmem:[%s219 + $0x48] sm:$0xf]
      %v483 = vld [vmem:[%s219 + $0x4c] sm:$0xf]
      %v484 = vld [vmem:[%s219 + $0x50] sm:$0xf]
      %v485 = vld [vmem:[%s219 + $0x54] sm:$0xf]
      %v486 = vld [vmem:[%s219 + $0x58] sm:$0xf]
      %v487 = vld [vmem:[%s219 + $0x5c] sm:$0xf]
      %v488 = vld [vmem:[%s219 + $0x60] sm:$0xf]
      %v489 = vld [vmem:[%s219 + $0x64] sm:$0xf]
      %v490 = vld [vmem:[%s219 + $0x68] sm:$0xf]
      %v491 = vld [vmem:[%s219 + $0x6c] sm:$0xf]
      %v492 = vld [vmem:[%s219 + $0x70] sm:$0xf]
      %v493 = vld [vmem:[%s219 + $0x74] sm:$0xf]
      %v494 = vld [vmem:[%s219 + $0x78] sm:$0xf]
      %v495 = vld [vmem:[%s219 + $0x7c] sm:$0xf]
      %vm496 = vsmask.f32 4368
      %vm497 = vmor %vm234, %vm496
      %v499 = vshrl.u32 %v464, 16
      %v501 = vrot.slane %v499, 7
      %v502 = vshll.u32 %v464, 16
      %v504 = vor.u32 %v501, %v502
      %v505 = vrot.slane %v501, 4
      %v507 = vshrl.u32 %v465, 16
      %v509 = vrot.slane %v507, 7
      %v510 = vshll.u32 %v465, 16
      %v512 = vor.u32 %v509, %v510
      %v513 = vsel %vm497, %v505, %v512
      %v514 = vrot.slane %v509, 4
      %v516 = vshrl.u32 %v466, 16
      %v518 = vrot.slane %v516, 7
      %v519 = vshll.u32 %v466, 16
      %v521 = vor.u32 %v518, %v519
      %v522 = vrot.slane %v518, 4
      %v524 = vshrl.u32 %v467, 16
      %v526 = vrot.slane %v524, 7
      %v527 = vshll.u32 %v467, 16
      %v529 = vor.u32 %v526, %v527
      %v530 = vsel %vm497, %v522, %v529
      %v531 = vrot.slane %v526, 4
      %v533 = vshrl.u32 %v468, 16
      %v535 = vrot.slane %v533, 7
      %v536 = vshll.u32 %v468, 16
      %v538 = vor.u32 %v535, %v536
      %v539 = vrot.slane %v535, 4
      %v541 = vshrl.u32 %v469, 16
      %v543 = vrot.slane %v541, 7
      %v544 = vshll.u32 %v469, 16
      %v546 = vor.u32 %v543, %v544
      %v547 = vsel %vm497, %v539, %v546
      %v548 = vrot.slane %v543, 4
      %v550 = vshrl.u32 %v470, 16
      %v552 = vrot.slane %v550, 7
      %v553 = vshll.u32 %v470, 16
      %v555 = vor.u32 %v552, %v553
      %v556 = vrot.slane %v552, 4
      %v558 = vshrl.u32 %v471, 16
      %v560 = vrot.slane %v558, 7
      %v561 = vshll.u32 %v471, 16
      %v563 = vor.u32 %v560, %v561
      %v564 = vsel %vm497, %v556, %v563
      %v565 = vrot.slane %v560, 4
      %v567 = vshrl.u32 %v472, 16
      %v569 = vrot.slane %v567, 7
      %v570 = vshll.u32 %v472, 16
      %v572 = vor.u32 %v569, %v570
      %v573 = vrot.slane %v569, 4
      %v575 = vshrl.u32 %v473, 16
      %v577 = vrot.slane %v575, 7
      %v578 = vshll.u32 %v473, 16
      %v580 = vor.u32 %v577, %v578
      %v581 = vsel %vm497, %v573, %v580
      %v582 = vrot.slane %v577, 4
      %v584 = vshrl.u32 %v474, 16
      %v586 = vrot.slane %v584, 7
      %v587 = vshll.u32 %v474, 16
      %v589 = vor.u32 %v586, %v587
      %v590 = vrot.slane %v586, 4
      %v592 = vshrl.u32 %v475, 16
      %v594 = vrot.slane %v592, 7
      %v595 = vshll.u32 %v475, 16
      %v597 = vor.u32 %v594, %v595
      %v598 = vsel %vm497, %v590, %v597
      %v599 = vrot.slane %v594, 4
      %v601 = vshrl.u32 %v476, 16
      %v603 = vrot.slane %v601, 7
      %v604 = vshll.u32 %v476, 16
      %v606 = vor.u32 %v603, %v604
      %v607 = vrot.slane %v603, 4
      %v609 = vshrl.u32 %v477, 16
      %v611 = vrot.slane %v609, 7
      %v612 = vshll.u32 %v477, 16
      %v614 = vor.u32 %v611, %v612
      %v615 = vsel %vm497, %v607, %v614
      %v616 = vrot.slane %v611, 4
      %v618 = vshrl.u32 %v478, 16
      %v620 = vrot.slane %v618, 7
      %v621 = vshll.u32 %v478, 16
      %v623 = vor.u32 %v620, %v621
      %v624 = vrot.slane %v620, 4
      %v626 = vshrl.u32 %v479, 16
      %v628 = vrot.slane %v626, 7
      %v629 = vshll.u32 %v479, 16
      %v631 = vor.u32 %v628, %v629
      %v632 = vsel %vm497, %v624, %v631
      %v633 = vrot.slane %v628, 4
      %v635 = vshrl.u32 %v480, 16
      %v637 = vrot.slane %v635, 7
      %v638 = vshll.u32 %v480, 16
      %v640 = vor.u32 %v637, %v638
      %v641 = vrot.slane %v637, 4
      %v643 = vshrl.u32 %v481, 16
      %v645 = vrot.slane %v643, 7
      %v646 = vshll.u32 %v481, 16
      %v648 = vor.u32 %v645, %v646
      %v649 = vsel %vm497, %v641, %v648
      %v650 = vrot.slane %v645, 4
      %v652 = vshrl.u32 %v482, 16
      %v654 = vrot.slane %v652, 7
      %v655 = vshll.u32 %v482, 16
      %v657 = vor.u32 %v654, %v655
      %v658 = vrot.slane %v654, 4
      %v660 = vshrl.u32 %v483, 16
      %v662 = vrot.slane %v660, 7
      %v663 = vshll.u32 %v483, 16
      %v665 = vor.u32 %v662, %v663
      %v666 = vsel %vm497, %v658, %v665
      %v667 = vrot.slane %v662, 4
      %v669 = vshrl.u32 %v484, 16
      %v671 = vrot.slane %v669, 7
      %v672 = vshll.u32 %v484, 16
      %v674 = vor.u32 %v671, %v672
      %v675 = vrot.slane %v671, 4
      %v677 = vshrl.u32 %v485, 16
      %v679 = vrot.slane %v677, 7
      %v680 = vshll.u32 %v485, 16
      %v682 = vor.u32 %v679, %v680
      %v683 = vsel %vm497, %v675, %v682
      %v684 = vrot.slane %v679, 4
      %v686 = vshrl.u32 %v486, 16
      %v688 = vrot.slane %v686, 7
      %v689 = vshll.u32 %v486, 16
      %v691 = vor.u32 %v688, %v689
      %v692 = vrot.slane %v688, 4
      %v694 = vshrl.u32 %v487, 16
      %v696 = vrot.slane %v694, 7
      %v697 = vshll.u32 %v487, 16
      %v699 = vor.u32 %v696, %v697
      %v700 = vsel %vm497, %v692, %v699
      %v701 = vrot.slane %v696, 4
      %v703 = vshrl.u32 %v488, 16
      %v705 = vrot.slane %v703, 7
      %v706 = vshll.u32 %v488, 16
      %v708 = vor.u32 %v705, %v706
      %v709 = vrot.slane %v705, 4
      %v711 = vshrl.u32 %v489, 16
      %v713 = vrot.slane %v711, 7
      %v714 = vshll.u32 %v489, 16
      %v716 = vor.u32 %v713, %v714
      %v717 = vsel %vm497, %v709, %v716
      %v718 = vrot.slane %v713, 4
      %v720 = vshrl.u32 %v490, 16
      %v722 = vrot.slane %v720, 7
      %v723 = vshll.u32 %v490, 16
      %v725 = vor.u32 %v722, %v723
      %v726 = vrot.slane %v722, 4
      %v728 = vshrl.u32 %v491, 16
      %v730 = vrot.slane %v728, 7
      %v731 = vshll.u32 %v491, 16
      %v733 = vor.u32 %v730, %v731
      %v734 = vsel %vm497, %v726, %v733
      %v735 = vrot.slane %v730, 4
      %v737 = vshrl.u32 %v492, 16
      %v739 = vrot.slane %v737, 7
      %v740 = vshll.u32 %v492, 16
      %v742 = vor.u32 %v739, %v740
      %v743 = vrot.slane %v739, 4
      %v745 = vshrl.u32 %v493, 16
      %v747 = vrot.slane %v745, 7
      %v748 = vshll.u32 %v493, 16
      %v750 = vor.u32 %v747, %v748
      %v751 = vsel %vm497, %v743, %v750
      %v752 = vrot.slane %v747, 4
      %v754 = vshrl.u32 %v494, 16
      %v756 = vrot.slane %v754, 7
      %v757 = vshll.u32 %v494, 16
      %v759 = vor.u32 %v756, %v757
      %v760 = vrot.slane %v756, 4
      %v762 = vshrl.u32 %v495, 16
      %v764 = vrot.slane %v762, 7
      %v765 = vshll.u32 %v495, 16
      %v767 = vor.u32 %v764, %v765
      %v768 = vsel %vm497, %v760, %v767
      %v769 = vrot.slane %v764, 4
      %vm818 = vcmask 60416
      %vm819 = vmand %vm818, %vm290
      %v820 = vld [vmem:[%s346] sm:$0xf]
      %v821 = vsel %vm819, %v504, %v820
      %822 = vst [vmem:[%s346] sm:$0xf] %v821
      %vm823 = vcmask 60416
      %824 = vst.msk [vmem:[%s346 + $0x4] sm:$0xf] %vm823, %v513
      %vm825 = vcmask 57344
      %vm826 = vmand %vm825, %vm234
      %v827 = vld [vmem:[%s346 + $0x8] sm:$0x1]
      %v828 = vsel %vm826, %v514, %v827
      %829 = vst [vmem:[%s346 + $0x8] sm:$0x1] %v828
      %v830 = vld [vmem:[%s346 + $0xc] sm:$0xf]
      %v831 = vsel %vm819, %v521, %v830
      %832 = vst [vmem:[%s346 + $0xc] sm:$0xf] %v831
      %833 = vst.msk [vmem:[%s346 + $0x10] sm:$0xf] %vm823, %v530
      %v834 = vld [vmem:[%s346 + $0x14] sm:$0x1]
      %v835 = vsel %vm826, %v531, %v834
      %836 = vst [vmem:[%s346 + $0x14] sm:$0x1] %v835
      %v837 = vld [vmem:[%s346 + $0x18] sm:$0xf]
      %v838 = vsel %vm819, %v538, %v837
      %839 = vst [vmem:[%s346 + $0x18] sm:$0xf] %v838
      %840 = vst.msk [vmem:[%s346 + $0x1c] sm:$0xf] %vm823, %v547
      %v841 = vld [vmem:[%s346 + $0x20] sm:$0x1]
      %v842 = vsel %vm826, %v548, %v841
      %843 = vst [vmem:[%s346 + $0x20] sm:$0x1] %v842
      %v844 = vld [vmem:[%s346 + $0x24] sm:$0xf]
      %v845 = vsel %vm819, %v555, %v844
      %846 = vst [vmem:[%s346 + $0x24] sm:$0xf] %v845
      %847 = vst.msk [vmem:[%s346 + $0x28] sm:$0xf] %vm823, %v564
      %v848 = vld [vmem:[%s346 + $0x2c] sm:$0x1]
      %v849 = vsel %vm826, %v565, %v848
      %850 = vst [vmem:[%s346 + $0x2c] sm:$0x1] %v849
      %v851 = vld [vmem:[%s346 + $0x30] sm:$0xf]
      %v852 = vsel %vm819, %v572, %v851
      %853 = vst [vmem:[%s346 + $0x30] sm:$0xf] %v852
      %854 = vst.msk [vmem:[%s346 + $0x34] sm:$0xf] %vm823, %v581
      %v855 = vld [vmem:[%s346 + $0x38] sm:$0x1]
      %v856 = vsel %vm826, %v582, %v855
      %857 = vst [vmem:[%s346 + $0x38] sm:$0x1] %v856
      %v858 = vld [vmem:[%s346 + $0x3c] sm:$0xf]
      %v859 = vsel %vm819, %v589, %v858
      %860 = vst [vmem:[%s346 + $0x3c] sm:$0xf] %v859
      %861 = vst.msk [vmem:[%s346 + $0x40] sm:$0xf] %vm823, %v598
      %v862 = vld [vmem:[%s346 + $0x44] sm:$0x1]
      %v863 = vsel %vm826, %v599, %v862
      %864 = vst [vmem:[%s346 + $0x44] sm:$0x1] %v863
      %v865 = vld [vmem:[%s346 + $0x48] sm:$0xf]
      %v866 = vsel %vm819, %v606, %v865
      %867 = vst [vmem:[%s346 + $0x48] sm:$0xf] %v866
      %868 = vst.msk [vmem:[%s346 + $0x4c] sm:$0xf] %vm823, %v615
      %v869 = vld [vmem:[%s346 + $0x50] sm:$0x1]
      %v870 = vsel %vm826, %v616, %v869
      %871 = vst [vmem:[%s346 + $0x50] sm:$0x1] %v870
      %v872 = vld [vmem:[%s346 + $0x54] sm:$0xf]
      %v873 = vsel %vm819, %v623, %v872
      %874 = vst [vmem:[%s346 + $0x54] sm:$0xf] %v873
      %875 = vst.msk [vmem:[%s346 + $0x58] sm:$0xf] %vm823, %v632
      %v876 = vld [vmem:[%s346 + $0x5c] sm:$0x1]
      %v877 = vsel %vm826, %v633, %v876
      %878 = vst [vmem:[%s346 + $0x5c] sm:$0x1] %v877
      %v879 = vld [vmem:[%s346 + $0x60] sm:$0xf]
      %v880 = vsel %vm819, %v640, %v879
      %881 = vst [vmem:[%s346 + $0x60] sm:$0xf] %v880
      %882 = vst.msk [vmem:[%s346 + $0x64] sm:$0xf] %vm823, %v649
      %v883 = vld [vmem:[%s346 + $0x68] sm:$0x1]
      %v884 = vsel %vm826, %v650, %v883
      %885 = vst [vmem:[%s346 + $0x68] sm:$0x1] %v884
      %v886 = vld [vmem:[%s346 + $0x6c] sm:$0xf]
      %v887 = vsel %vm819, %v657, %v886
      %888 = vst [vmem:[%s346 + $0x6c] sm:$0xf] %v887
      %889 = vst.msk [vmem:[%s346 + $0x70] sm:$0xf] %vm823, %v666
      %v890 = vld [vmem:[%s346 + $0x74] sm:$0x1]
      %v891 = vsel %vm826, %v667, %v890
      %892 = vst [vmem:[%s346 + $0x74] sm:$0x1] %v891
      %v893 = vld [vmem:[%s346 + $0x78] sm:$0xf]
      %v894 = vsel %vm819, %v674, %v893
      %895 = vst [vmem:[%s346 + $0x78] sm:$0xf] %v894
      %896 = vst.msk [vmem:[%s346 + $0x7c] sm:$0xf] %vm823, %v683
      %v897 = vld [vmem:[%s346 + $0x80] sm:$0x1]
      %v898 = vsel %vm826, %v684, %v897
      %899 = vst [vmem:[%s346 + $0x80] sm:$0x1] %v898
      %v900 = vld [vmem:[%s346 + $0x84] sm:$0xf]
      %v901 = vsel %vm819, %v691, %v900
      %902 = vst [vmem:[%s346 + $0x84] sm:$0xf] %v901
      %903 = vst.msk [vmem:[%s346 + $0x88] sm:$0xf] %vm823, %v700
      %v904 = vld [vmem:[%s346 + $0x8c] sm:$0x1]
      %v905 = vsel %vm826, %v701, %v904
      %906 = vst [vmem:[%s346 + $0x8c] sm:$0x1] %v905
      %v907 = vld [vmem:[%s346 + $0x90] sm:$0xf]
      %v908 = vsel %vm819, %v708, %v907
      %909 = vst [vmem:[%s346 + $0x90] sm:$0xf] %v908
      %910 = vst.msk [vmem:[%s346 + $0x94] sm:$0xf] %vm823, %v717
      %v911 = vld [vmem:[%s346 + $0x98] sm:$0x1]
      %v912 = vsel %vm826, %v718, %v911
      %913 = vst [vmem:[%s346 + $0x98] sm:$0x1] %v912
      %v914 = vld [vmem:[%s346 + $0x9c] sm:$0xf]
      %v915 = vsel %vm819, %v725, %v914
      %916 = vst [vmem:[%s346 + $0x9c] sm:$0xf] %v915
      %917 = vst.msk [vmem:[%s346 + $0xa0] sm:$0xf] %vm823, %v734
      %v918 = vld [vmem:[%s346 + $0xa4] sm:$0x1]
      %v919 = vsel %vm826, %v735, %v918
      %920 = vst [vmem:[%s346 + $0xa4] sm:$0x1] %v919
      %v921 = vld [vmem:[%s346 + $0xa8] sm:$0xf]
      %v922 = vsel %vm819, %v742, %v921
      %923 = vst [vmem:[%s346 + $0xa8] sm:$0xf] %v922
      %924 = vst.msk [vmem:[%s346 + $0xac] sm:$0xf] %vm823, %v751
      %v925 = vld [vmem:[%s346 + $0xb0] sm:$0x1]
      %v926 = vsel %vm826, %v752, %v925
      %927 = vst [vmem:[%s346 + $0xb0] sm:$0x1] %v926
      %v928 = vld [vmem:[%s346 + $0xb4] sm:$0xf]
      %v929 = vsel %vm819, %v759, %v928
      %930 = vst [vmem:[%s346 + $0xb4] sm:$0xf] %v929
      %931 = vst.msk [vmem:[%s346 + $0xb8] sm:$0xf] %vm823, %v768
      %v932 = vld [vmem:[%s346 + $0xbc] sm:$0x1]
      %v933 = vsel %vm826, %v769, %v932
      %934 = vst [vmem:[%s346 + $0xbc] sm:$0x1] %v933
      %v935 = vld [vmem:[#allocation2] sm:$0xf]
      %v936 = vld [vmem:[#allocation2 + $0x4] sm:$0xf]
      %v937 = vld [vmem:[#allocation2 + $0xc] sm:$0xf]
      %v938 = vld [vmem:[#allocation2 + $0x10] sm:$0xf]
      %v939 = vld [vmem:[#allocation2 + $0x18] sm:$0xf]
      %v940 = vld [vmem:[#allocation2 + $0x1c] sm:$0xf]
      %v941 = vld [vmem:[#allocation2 + $0x24] sm:$0xf]
      %v942 = vld [vmem:[#allocation2 + $0x28] sm:$0xf]
      %v943 = vld [vmem:[#allocation2 + $0x30] sm:$0xf]
      %v944 = vld [vmem:[#allocation2 + $0x34] sm:$0xf]
      %v945 = vld [vmem:[#allocation2 + $0x3c] sm:$0xf]
      %v946 = vld [vmem:[#allocation2 + $0x40] sm:$0xf]
      %v947 = vld [vmem:[#allocation2 + $0x48] sm:$0xf]
      %v948 = vld [vmem:[#allocation2 + $0x4c] sm:$0xf]
      %v949 = vld [vmem:[#allocation2 + $0x54] sm:$0xf]
      %v950 = vld [vmem:[#allocation2 + $0x58] sm:$0xf]
      %v951 = vld [vmem:[#allocation2 + $0x60] sm:$0xf]
      %v952 = vld [vmem:[#allocation2 + $0x64] sm:$0xf]
      %v953 = vld [vmem:[#allocation2 + $0x6c] sm:$0xf]
      %v954 = vld [vmem:[#allocation2 + $0x70] sm:$0xf]
      %v955 = vld [vmem:[#allocation2 + $0x78] sm:$0xf]
      %v956 = vld [vmem:[#allocation2 + $0x7c] sm:$0xf]
      %v957 = vld [vmem:[#allocation2 + $0x84] sm:$0xf]
      %v958 = vld [vmem:[#allocation2 + $0x88] sm:$0xf]
      %v959 = vld [vmem:[#allocation2 + $0x90] sm:$0xf]
      %v960 = vld [vmem:[#allocation2 + $0x94] sm:$0xf]
      %v961 = vld [vmem:[#allocation2 + $0x9c] sm:$0xf]
      %v962 = vld [vmem:[#allocation2 + $0xa0] sm:$0xf]
      %v963 = vld [vmem:[#allocation2 + $0xa8] sm:$0xf]
      %v964 = vld [vmem:[#allocation2 + $0xac] sm:$0xf]
      %v965 = vld [vmem:[#allocation2 + $0xb4] sm:$0xf]
      %v966 = vld [vmem:[#allocation2 + $0xb8] sm:$0xf]
      %v967 = vld [vmem:[#allocation2 + $0x8] sm:$0x1]
      %v968 = vld [vmem:[#allocation2 + $0x14] sm:$0x1]
      %v969 = vld [vmem:[#allocation2 + $0x20] sm:$0x1]
      %v970 = vld [vmem:[#allocation2 + $0x2c] sm:$0x1]
      %v971 = vld [vmem:[#allocation2 + $0x38] sm:$0x1]
      %v972 = vld [vmem:[#allocation2 + $0x44] sm:$0x1]
      %v973 = vld [vmem:[#allocation2 + $0x50] sm:$0x1]
      %v974 = vld [vmem:[#allocation2 + $0x5c] sm:$0x1]
      %v975 = vld [vmem:[#allocation2 + $0x68] sm:$0x1]
      %v976 = vld [vmem:[#allocation2 + $0x74] sm:$0x1]
      %v977 = vld [vmem:[#allocation2 + $0x80] sm:$0x1]
      %v978 = vld [vmem:[#allocation2 + $0x8c] sm:$0x1]
      %v979 = vld [vmem:[#allocation2 + $0x98] sm:$0x1]
      %v980 = vld [vmem:[#allocation2 + $0xa4] sm:$0x1]
      %v981 = vld [vmem:[#allocation2 + $0xb0] sm:$0x1]
      %v982 = vld [vmem:[#allocation2 + $0xbc] sm:$0x1]
      %v983 = vld [vmem:[#allocation2] sm:$0xe]
      %v984 = vld [vmem:[#allocation2 + $0xc] sm:$0xe]
      %v985 = vld [vmem:[#allocation2 + $0x18] sm:$0xe]
      %v986 = vld [vmem:[#allocation2 + $0x24] sm:$0xe]
      %v987 = vld [vmem:[#allocation2 + $0x30] sm:$0xe]
      %v988 = vld [vmem:[#allocation2 + $0x3c] sm:$0xe]
      %v989 = vld [vmem:[#allocation2 + $0x48] sm:$0xe]
      %v990 = vld [vmem:[#allocation2 + $0x54] sm:$0xe]
      %v991 = vld [vmem:[#allocation2 + $0x60] sm:$0xe]
      %v992 = vld [vmem:[#allocation2 + $0x6c] sm:$0xe]
      %v993 = vld [vmem:[#allocation2 + $0x78] sm:$0xe]
      %v994 = vld [vmem:[#allocation2 + $0x84] sm:$0xe]
      %v995 = vld [vmem:[#allocation2 + $0x90] sm:$0xe]
      %v996 = vld [vmem:[#allocation2 + $0x9c] sm:$0xe]
      %v997 = vld [vmem:[#allocation2 + $0xa8] sm:$0xe]
      %v998 = vld [vmem:[#allocation2 + $0xb4] sm:$0xe]
      %v999 = vld [vmem:[%s346] sm:$0xf]
      %v1000 = vld [vmem:[%s346 + $0x4] sm:$0xf]
      %v1001 = vld [vmem:[%s346 + $0xc] sm:$0xf]
      %v1002 = vld [vmem:[%s346 + $0x10] sm:$0xf]
      %v1003 = vld [vmem:[%s346 + $0x18] sm:$0xf]
      %v1004 = vld [vmem:[%s346 + $0x1c] sm:$0xf]
      %v1005 = vld [vmem:[%s346 + $0x24] sm:$0xf]
      %v1006 = vld [vmem:[%s346 + $0x28] sm:$0xf]
      %v1007 = vld [vmem:[%s346 + $0x30] sm:$0xf]
      %v1008 = vld [vmem:[%s346 + $0x34] sm:$0xf]
      %v1009 = vld [vmem:[%s346 + $0x3c] sm:$0xf]
      %v1010 = vld [vmem:[%s346 + $0x40] sm:$0xf]
      %v1011 = vld [vmem:[%s346 + $0x48] sm:$0xf]
      %v1012 = vld [vmem:[%s346 + $0x4c] sm:$0xf]
      %v1013 = vld [vmem:[%s346 + $0x54] sm:$0xf]
      %v1014 = vld [vmem:[%s346 + $0x58] sm:$0xf]
      %v1015 = vld [vmem:[%s346 + $0x60] sm:$0xf]
      %v1016 = vld [vmem:[%s346 + $0x64] sm:$0xf]
      %v1017 = vld [vmem:[%s346 + $0x6c] sm:$0xf]
      %v1018 = vld [vmem:[%s346 + $0x70] sm:$0xf]
      %v1019 = vld [vmem:[%s346 + $0x78] sm:$0xf]
      %v1020 = vld [vmem:[%s346 + $0x7c] sm:$0xf]
      %v1021 = vld [vmem:[%s346 + $0x84] sm:$0xf]
      %v1022 = vld [vmem:[%s346 + $0x88] sm:$0xf]
      %v1023 = vld [vmem:[%s346 + $0x90] sm:$0xf]
      %v1024 = vld [vmem:[%s346 + $0x94] sm:$0xf]
      %v1025 = vld [vmem:[%s346 + $0x9c] sm:$0xf]
      %v1026 = vld [vmem:[%s346 + $0xa0] sm:$0xf]
      %v1027 = vld [vmem:[%s346 + $0xa8] sm:$0xf]
      %v1028 = vld [vmem:[%s346 + $0xac] sm:$0xf]
      %v1029 = vld [vmem:[%s346 + $0xb4] sm:$0xf]
      %v1030 = vld [vmem:[%s346 + $0xb8] sm:$0xf]
      %v1031 = vld [vmem:[%s346 + $0x8] sm:$0x1]
      %v1032 = vld [vmem:[%s346 + $0x14] sm:$0x1]
      %v1033 = vld [vmem:[%s346 + $0x20] sm:$0x1]
      %v1034 = vld [vmem:[%s346 + $0x2c] sm:$0x1]
      %v1035 = vld [vmem:[%s346 + $0x38] sm:$0x1]
      %v1036 = vld [vmem:[%s346 + $0x44] sm:$0x1]
      %v1037 = vld [vmem:[%s346 + $0x50] sm:$0x1]
      %v1038 = vld [vmem:[%s346 + $0x5c] sm:$0x1]
      %v1039 = vld [vmem:[%s346 + $0x68] sm:$0x1]
      %v1040 = vld [vmem:[%s346 + $0x74] sm:$0x1]
      %v1041 = vld [vmem:[%s346 + $0x80] sm:$0x1]
      %v1042 = vld [vmem:[%s346 + $0x8c] sm:$0x1]
      %v1043 = vld [vmem:[%s346 + $0x98] sm:$0x1]
      %v1044 = vld [vmem:[%s346 + $0xa4] sm:$0x1]
      %v1045 = vld [vmem:[%s346 + $0xb0] sm:$0x1]
      %v1046 = vld [vmem:[%s346 + $0xbc] sm:$0x1]
      %v1047 = vld [vmem:[%s346] sm:$0xe]
      %v1048 = vld [vmem:[%s346 + $0xc] sm:$0xe]
      %v1049 = vld [vmem:[%s346 + $0x18] sm:$0xe]
      %v1050 = vld [vmem:[%s346 + $0x24] sm:$0xe]
      %v1051 = vld [vmem:[%s346 + $0x30] sm:$0xe]
      %v1052 = vld [vmem:[%s346 + $0x3c] sm:$0xe]
      %v1053 = vld [vmem:[%s346 + $0x48] sm:$0xe]
      %v1054 = vld [vmem:[%s346 + $0x54] sm:$0xe]
      %v1055 = vld [vmem:[%s346 + $0x60] sm:$0xe]
      %v1056 = vld [vmem:[%s346 + $0x6c] sm:$0xe]
      %v1057 = vld [vmem:[%s346 + $0x78] sm:$0xe]
      %v1058 = vld [vmem:[%s346 + $0x84] sm:$0xe]
      %v1059 = vld [vmem:[%s346 + $0x90] sm:$0xe]
      %v1060 = vld [vmem:[%s346 + $0x9c] sm:$0xe]
      %v1061 = vld [vmem:[%s346 + $0xa8] sm:$0xe]
      %v1062 = vld [vmem:[%s346 + $0xb4] sm:$0xe]
      %s1063 = scalar_lea.vmem [#allocation2], 24
      %v1064 = vld [vmem:[%s1063] sm:$0xf]
      %v1065 = vld [vmem:[%s1063 + $0x4] sm:$0xf]
      %v1066 = vld [vmem:[%s1063 + $0xc] sm:$0xf]
      %v1067 = vld [vmem:[%s1063 + $0x10] sm:$0xf]
      %v1068 = vld [vmem:[%s1063 + $0x18] sm:$0xf]
      %v1069 = vld [vmem:[%s1063 + $0x1c] sm:$0xf]
      %v1070 = vld [vmem:[%s1063 + $0x24] sm:$0xf]
      %v1071 = vld [vmem:[%s1063 + $0x28] sm:$0xf]
      %v1072 = vld [vmem:[%s1063 + $0x30] sm:$0xf]
      %v1073 = vld [vmem:[%s1063 + $0x34] sm:$0xf]
      %v1074 = vld [vmem:[%s1063 + $0x3c] sm:$0xf]
      %v1075 = vld [vmem:[%s1063 + $0x40] sm:$0xf]
      %v1076 = vld [vmem:[%s1063 + $0x48] sm:$0xf]
      %v1077 = vld [vmem:[%s1063 + $0x4c] sm:$0xf]
      %v1078 = vld [vmem:[%s1063 + $0x54] sm:$0xf]
      %v1079 = vld [vmem:[%s1063 + $0x58] sm:$0xf]
      %v1080 = vld [vmem:[%s1063 + $0x60] sm:$0xf]
      %v1081 = vld [vmem:[%s1063 + $0x64] sm:$0xf]
      %v1082 = vld [vmem:[%s1063 + $0x6c] sm:$0xf]
      %v1083 = vld [vmem:[%s1063 + $0x70] sm:$0xf]
      %v1084 = vld [vmem:[%s1063 + $0x78] sm:$0xf]
      %v1085 = vld [vmem:[%s1063 + $0x7c] sm:$0xf]
      %v1086 = vld [vmem:[%s1063 + $0x84] sm:$0xf]
      %v1087 = vld [vmem:[%s1063 + $0x88] sm:$0xf]
      %v1088 = vld [vmem:[%s1063 + $0x90] sm:$0xf]
      %v1089 = vld [vmem:[%s1063 + $0x94] sm:$0xf]
      %v1090 = vld [vmem:[%s1063 + $0x9c] sm:$0xf]
      %v1091 = vld [vmem:[%s1063 + $0xa0] sm:$0xf]
      %v1092 = vld [vmem:[%s1063 + $0xa8] sm:$0xf]
      %v1093 = vld [vmem:[%s1063 + $0xac] sm:$0xf]
      %v1094 = vld [vmem:[%s1063 + $0xb4] sm:$0xf]
      %v1095 = vld [vmem:[%s1063 + $0xb8] sm:$0xf]
      %v1096 = vld [vmem:[%s1063 + $0x8] sm:$0x1]
      %v1097 = vld [vmem:[%s1063 + $0x14] sm:$0x1]
      %v1098 = vld [vmem:[%s1063 + $0x20] sm:$0x1]
      %v1099 = vld [vmem:[%s1063 + $0x2c] sm:$0x1]
      %v1100 = vld [vmem:[%s1063 + $0x38] sm:$0x1]
      %v1101 = vld [vmem:[%s1063 + $0x44] sm:$0x1]
      %v1102 = vld [vmem:[%s1063 + $0x50] sm:$0x1]
      %v1103 = vld [vmem:[%s1063 + $0x5c] sm:$0x1]
      %v1104 = vld [vmem:[%s1063 + $0x68] sm:$0x1]
      %v1105 = vld [vmem:[%s1063 + $0x74] sm:$0x1]
      %v1106 = vld [vmem:[%s1063 + $0x80] sm:$0x1]
      %v1107 = vld [vmem:[%s1063 + $0x8c] sm:$0x1]
      %v1108 = vld [vmem:[%s1063 + $0x98] sm:$0x1]
      %v1109 = vld [vmem:[%s1063 + $0xa4] sm:$0x1]
      %v1110 = vld [vmem:[%s1063 + $0xb0] sm:$0x1]
      %v1111 = vld [vmem:[%s1063 + $0xbc] sm:$0x1]
      %v1112 = vld [vmem:[%s1063] sm:$0xe]
      %v1113 = vld [vmem:[%s1063 + $0xc] sm:$0xe]
      %v1114 = vld [vmem:[%s1063 + $0x18] sm:$0xe]
      %v1115 = vld [vmem:[%s1063 + $0x24] sm:$0xe]
      %v1116 = vld [vmem:[%s1063 + $0x30] sm:$0xe]
      %v1117 = vld [vmem:[%s1063 + $0x3c] sm:$0xe]
      %v1118 = vld [vmem:[%s1063 + $0x48] sm:$0xe]
      %v1119 = vld [vmem:[%s1063 + $0x54] sm:$0xe]
      %v1120 = vld [vmem:[%s1063 + $0x60] sm:$0xe]
      %v1121 = vld [vmem:[%s1063 + $0x6c] sm:$0xe]
      %v1122 = vld [vmem:[%s1063 + $0x78] sm:$0xe]
      %v1123 = vld [vmem:[%s1063 + $0x84] sm:$0xe]
      %v1124 = vld [vmem:[%s1063 + $0x90] sm:$0xe]
      %v1125 = vld [vmem:[%s1063 + $0x9c] sm:$0xe]
      %v1126 = vld [vmem:[%s1063 + $0xa8] sm:$0xe]
      %v1127 = vld [vmem:[%s1063 + $0xb4] sm:$0xe]
      %v1160 = vunpack.c.l.b16 %v935
      %v1161 = vunpack.c.l.b16 %v936
      %v1162 = vunpack.c.l.b16 %v937
      %v1163 = vunpack.c.l.b16 %v938
      %v1164 = vunpack.c.l.b16 %v939
      %v1165 = vunpack.c.l.b16 %v940
      %v1166 = vunpack.c.l.b16 %v941
      %v1167 = vunpack.c.l.b16 %v942
      %v1168 = vunpack.c.l.b16 %v943
      %v1169 = vunpack.c.l.b16 %v944
      %v1170 = vunpack.c.l.b16 %v945
      %v1171 = vunpack.c.l.b16 %v946
      %v1172 = vunpack.c.l.b16 %v947
      %v1173 = vunpack.c.l.b16 %v948
      %v1174 = vunpack.c.l.b16 %v949
      %v1175 = vunpack.c.l.b16 %v950
      %v1176 = vunpack.c.l.b16 %v951
      %v1177 = vunpack.c.l.b16 %v952
      %v1178 = vunpack.c.l.b16 %v953
      %v1179 = vunpack.c.l.b16 %v954
      %v1180 = vunpack.c.l.b16 %v955
      %v1181 = vunpack.c.l.b16 %v956
      %v1182 = vunpack.c.l.b16 %v957
      %v1183 = vunpack.c.l.b16 %v958
      %v1184 = vunpack.c.l.b16 %v959
      %v1185 = vunpack.c.l.b16 %v960
      %v1186 = vunpack.c.l.b16 %v961
      %v1187 = vunpack.c.l.b16 %v962
      %v1188 = vunpack.c.l.b16 %v963
      %v1189 = vunpack.c.l.b16 %v964
      %v1190 = vunpack.c.l.b16 %v965
      %v1191 = vunpack.c.l.b16 %v966
      %v1192 = vpack.c.b16 %v1161, %v1160
      %v1193 = vpack.c.b16 %v1163, %v1162
      %v1194 = vpack.c.b16 %v1165, %v1164
      %v1195 = vpack.c.b16 %v1167, %v1166
      %v1196 = vpack.c.b16 %v1169, %v1168
      %v1197 = vpack.c.b16 %v1171, %v1170
      %v1198 = vpack.c.b16 %v1173, %v1172
      %v1199 = vpack.c.b16 %v1175, %v1174
      %v1200 = vpack.c.b16 %v1177, %v1176
      %v1201 = vpack.c.b16 %v1179, %v1178
      %v1202 = vpack.c.b16 %v1181, %v1180
      %v1203 = vpack.c.b16 %v1183, %v1182
      %v1204 = vpack.c.b16 %v1185, %v1184
      %v1205 = vpack.c.b16 %v1187, %v1186
      %v1206 = vpack.c.b16 %v1189, %v1188
      %v1207 = vpack.c.b16 %v1191, %v1190
      %v1240 = vunpack.c.l.b16 %v967
      %v1241 = vunpack.c.l.b16 %v968
      %v1242 = vunpack.c.l.b16 %v969
      %v1243 = vunpack.c.l.b16 %v970
      %v1244 = vunpack.c.l.b16 %v971
      %v1245 = vunpack.c.l.b16 %v972
      %v1246 = vunpack.c.l.b16 %v973
      %v1247 = vunpack.c.l.b16 %v974
      %v1248 = vunpack.c.l.b16 %v975
      %v1249 = vunpack.c.l.b16 %v976
      %v1250 = vunpack.c.l.b16 %v977
      %v1251 = vunpack.c.l.b16 %v978
      %v1252 = vunpack.c.l.b16 %v979
      %v1253 = vunpack.c.l.b16 %v980
      %v1254 = vunpack.c.l.b16 %v981
      %v1255 = vunpack.c.l.b16 %v982
      %v1256 = vpack.c.b16 %v1240, %v1240
      %v1257 = vpack.c.b16 %v1241, %v1241
      %v1258 = vpack.c.b16 %v1242, %v1242
      %v1259 = vpack.c.b16 %v1243, %v1243
      %v1260 = vpack.c.b16 %v1244, %v1244
      %v1261 = vpack.c.b16 %v1245, %v1245
      %v1262 = vpack.c.b16 %v1246, %v1246
      %v1263 = vpack.c.b16 %v1247, %v1247
      %v1264 = vpack.c.b16 %v1248, %v1248
      %v1265 = vpack.c.b16 %v1249, %v1249
      %v1266 = vpack.c.b16 %v1250, %v1250
      %v1267 = vpack.c.b16 %v1251, %v1251
      %v1268 = vpack.c.b16 %v1252, %v1252
      %v1269 = vpack.c.b16 %v1253, %v1253
      %v1270 = vpack.c.b16 %v1254, %v1254
      %v1271 = vpack.c.b16 %v1255, %v1255
      %vm1272 = vsmask.f32 7424
      %v1274 = vshrl.u32 %v1192, 16
      %v1276 = vshll.u32 %v1192, 16
      %v1278 = vrot.slane %v1276, 1
      %v1279 = vor.u32 %v1274, %v1278
      %v1281 = vshll.u32 %v1256, 16
      %v1283 = vrot.slane %v1281, 1
      %v1284 = vsel %vm1272, %v1279, %v1283
      %v1286 = vshrl.u32 %v1193, 16
      %v1288 = vshll.u32 %v1193, 16
      %v1290 = vrot.slane %v1288, 1
      %v1291 = vor.u32 %v1286, %v1290
      %v1293 = vshll.u32 %v1257, 16
      %v1295 = vrot.slane %v1293, 1
      %v1296 = vsel %vm1272, %v1291, %v1295
      %v1298 = vshrl.u32 %v1194, 16
      %v1300 = vshll.u32 %v1194, 16
      %v1302 = vrot.slane %v1300, 1
      %v1303 = vor.u32 %v1298, %v1302
      %v1305 = vshll.u32 %v1258, 16
      %v1307 = vrot.slane %v1305, 1
      %v1308 = vsel %vm1272, %v1303, %v1307
      %v1310 = vshrl.u32 %v1195, 16
      %v1312 = vshll.u32 %v1195, 16
      %v1314 = vrot.slane %v1312, 1
      %v1315 = vor.u32 %v1310, %v1314
      %v1317 = vshll.u32 %v1259, 16
      %v1319 = vrot.slane %v1317, 1
      %v1320 = vsel %vm1272, %v1315, %v1319
      %v1322 = vshrl.u32 %v1196, 16
      %v1324 = vshll.u32 %v1196, 16
      %v1326 = vrot.slane %v1324, 1
      %v1327 = vor.u32 %v1322, %v1326
      %v1329 = vshll.u32 %v1260, 16
      %v1331 = vrot.slane %v1329, 1
      %v1332 = vsel %vm1272, %v1327, %v1331
      %v1334 = vshrl.u32 %v1197, 16
      %v1336 = vshll.u32 %v1197, 16
      %v1338 = vrot.slane %v1336, 1
      %v1339 = vor.u32 %v1334, %v1338
      %v1341 = vshll.u32 %v1261, 16
      %v1343 = vrot.slane %v1341, 1
      %v1344 = vsel %vm1272, %v1339, %v1343
      %v1346 = vshrl.u32 %v1198, 16
      %v1348 = vshll.u32 %v1198, 16
      %v1350 = vrot.slane %v1348, 1
      %v1351 = vor.u32 %v1346, %v1350
      %v1353 = vshll.u32 %v1262, 16
      %v1355 = vrot.slane %v1353, 1
      %v1356 = vsel %vm1272, %v1351, %v1355
      %v1358 = vshrl.u32 %v1199, 16
      %v1360 = vshll.u32 %v1199, 16
      %v1362 = vrot.slane %v1360, 1
      %v1363 = vor.u32 %v1358, %v1362
      %v1365 = vshll.u32 %v1263, 16
      %v1367 = vrot.slane %v1365, 1
      %v1368 = vsel %vm1272, %v1363, %v1367
      %v1370 = vshrl.u32 %v1200, 16
      %v1372 = vshll.u32 %v1200, 16
      %v1374 = vrot.slane %v1372, 1
      %v1375 = vor.u32 %v1370, %v1374
      %v1377 = vshll.u32 %v1264, 16
      %v1379 = vrot.slane %v1377, 1
      %v1380 = vsel %vm1272, %v1375, %v1379
      %v1382 = vshrl.u32 %v1201, 16
      %v1384 = vshll.u32 %v1201, 16
      %v1386 = vrot.slane %v1384, 1
      %v1387 = vor.u32 %v1382, %v1386
      %v1389 = vshll.u32 %v1265, 16
      %v1391 = vrot.slane %v1389, 1
      %v1392 = vsel %vm1272, %v1387, %v1391
      %v1394 = vshrl.u32 %v1202, 16
      %v1396 = vshll.u32 %v1202, 16
      %v1398 = vrot.slane %v1396, 1
      %v1399 = vor.u32 %v1394, %v1398
      %v1401 = vshll.u32 %v1266, 16
      %v1403 = vrot.slane %v1401, 1
      %v1404 = vsel %vm1272, %v1399, %v1403
      %v1406 = vshrl.u32 %v1203, 16
      %v1408 = vshll.u32 %v1203, 16
      %v1410 = vrot.slane %v1408, 1
      %v1411 = vor.u32 %v1406, %v1410
      %v1413 = vshll.u32 %v1267, 16
      %v1415 = vrot.slane %v1413, 1
      %v1416 = vsel %vm1272, %v1411, %v1415
      %v1418 = vshrl.u32 %v1204, 16
      %v1420 = vshll.u32 %v1204, 16
      %v1422 = vrot.slane %v1420, 1
      %v1423 = vor.u32 %v1418, %v1422
      %v1425 = vshll.u32 %v1268, 16
      %v1427 = vrot.slane %v1425, 1
      %v1428 = vsel %vm1272, %v1423, %v1427
      %v1430 = vshrl.u32 %v1205, 16
      %v1432 = vshll.u32 %v1205, 16
      %v1434 = vrot.slane %v1432, 1
      %v1435 = vor.u32 %v1430, %v1434
      %v1437 = vshll.u32 %v1269, 16
      %v1439 = vrot.slane %v1437, 1
      %v1440 = vsel %vm1272, %v1435, %v1439
      %v1442 = vshrl.u32 %v1206, 16
      %v1444 = vshll.u32 %v1206, 16
      %v1446 = vrot.slane %v1444, 1
      %v1447 = vor.u32 %v1442, %v1446
      %v1449 = vshll.u32 %v1270, 16
      %v1451 = vrot.slane %v1449, 1
      %v1452 = vsel %vm1272, %v1447, %v1451
      %v1454 = vshrl.u32 %v1207, 16
      %v1456 = vshll.u32 %v1207, 16
      %v1458 = vrot.slane %v1456, 1
      %v1459 = vor.u32 %v1454, %v1458
      %v1461 = vshll.u32 %v1271, 16
      %v1463 = vrot.slane %v1461, 1
      %v1464 = vsel %vm1272, %v1459, %v1463
      %v1497 = vunpack.c.l.b16 %v983
      %v1498 = vunpack.c.l.b16 %v984
      %v1499 = vunpack.c.l.b16 %v985
      %v1500 = vunpack.c.l.b16 %v986
      %v1501 = vunpack.c.l.b16 %v987
      %v1502 = vunpack.c.l.b16 %v988
      %v1503 = vunpack.c.l.b16 %v989
      %v1504 = vunpack.c.l.b16 %v990
      %v1505 = vunpack.c.l.b16 %v991
      %v1506 = vunpack.c.l.b16 %v992
      %v1507 = vunpack.c.l.b16 %v993
      %v1508 = vunpack.c.l.b16 %v994
      %v1509 = vunpack.c.l.b16 %v995
      %v1510 = vunpack.c.l.b16 %v996
      %v1511 = vunpack.c.l.b16 %v997
      %v1512 = vunpack.c.l.b16 %v998
      %v1513 = vpack.c.b16 %v1161, %v1497
      %v1514 = vpack.c.b16 %v1163, %v1498
      %v1515 = vpack.c.b16 %v1165, %v1499
      %v1516 = vpack.c.b16 %v1167, %v1500
      %v1517 = vpack.c.b16 %v1169, %v1501
      %v1518 = vpack.c.b16 %v1171, %v1502
      %v1519 = vpack.c.b16 %v1173, %v1503
      %v1520 = vpack.c.b16 %v1175, %v1504
      %v1521 = vpack.c.b16 %v1177, %v1505
      %v1522 = vpack.c.b16 %v1179, %v1506
      %v1523 = vpack.c.b16 %v1181, %v1507
      %v1524 = vpack.c.b16 %v1183, %v1508
      %v1525 = vpack.c.b16 %v1185, %v1509
      %v1526 = vpack.c.b16 %v1187, %v1510
      %v1527 = vpack.c.b16 %v1189, %v1511
      %v1528 = vpack.c.b16 %v1191, %v1512
      %vm1529 = vcmask 1046528
      %v1530 = vrot.slane %v1513, 1
      %v1531 = vrot.slane %v1256, 1
      %v1532 = vsel %vm1529, %v1530, %v1531
      %v1533 = vrot.slane %v1514, 1
      %v1534 = vrot.slane %v1257, 1
      %v1535 = vsel %vm1529, %v1533, %v1534
      %v1536 = vrot.slane %v1515, 1
      %v1537 = vrot.slane %v1258, 1
      %v1538 = vsel %vm1529, %v1536, %v1537
      %v1539 = vrot.slane %v1516, 1
      %v1540 = vrot.slane %v1259, 1
      %v1541 = vsel %vm1529, %v1539, %v1540
      %v1542 = vrot.slane %v1517, 1
      %v1543 = vrot.slane %v1260, 1
      %v1544 = vsel %vm1529, %v1542, %v1543
      %v1545 = vrot.slane %v1518, 1
      %v1546 = vrot.slane %v1261, 1
      %v1547 = vsel %vm1529, %v1545, %v1546
      %v1548 = vrot.slane %v1519, 1
      %v1549 = vrot.slane %v1262, 1
      %v1550 = vsel %vm1529, %v1548, %v1549
      %v1551 = vrot.slane %v1520, 1
      %v1552 = vrot.slane %v1263, 1
      %v1553 = vsel %vm1529, %v1551, %v1552
      %v1554 = vrot.slane %v1521, 1
      %v1555 = vrot.slane %v1264, 1
      %v1556 = vsel %vm1529, %v1554, %v1555
      %v1557 = vrot.slane %v1522, 1
      %v1558 = vrot.slane %v1265, 1
      %v1559 = vsel %vm1529, %v1557, %v1558
      %v1560 = vrot.slane %v1523, 1
      %v1561 = vrot.slane %v1266, 1
      %v1562 = vsel %vm1529, %v1560, %v1561
      %v1563 = vrot.slane %v1524, 1
      %v1564 = vrot.slane %v1267, 1
      %v1565 = vsel %vm1529, %v1563, %v1564
      %v1566 = vrot.slane %v1525, 1
      %v1567 = vrot.slane %v1268, 1
      %v1568 = vsel %vm1529, %v1566, %v1567
      %v1569 = vrot.slane %v1526, 1
      %v1570 = vrot.slane %v1269, 1
      %v1571 = vsel %vm1529, %v1569, %v1570
      %v1572 = vrot.slane %v1527, 1
      %v1573 = vrot.slane %v1270, 1
      %v1574 = vsel %vm1529, %v1572, %v1573
      %v1575 = vrot.slane %v1528, 1
      %v1576 = vrot.slane %v1271, 1
      %v1577 = vsel %vm1529, %v1575, %v1576
      %v1626 = vunpack.c.l.b16 %v999
      %v1627 = vunpack.c.l.b16 %v1000
      %v1628 = vunpack.c.l.b16 %v1001
      %v1629 = vunpack.c.l.b16 %v1002
      %v1630 = vunpack.c.l.b16 %v1003
      %v1631 = vunpack.c.l.b16 %v1004
      %v1632 = vunpack.c.l.b16 %v1005
      %v1633 = vunpack.c.l.b16 %v1006
      %v1634 = vunpack.c.l.b16 %v1007
      %v1635 = vunpack.c.l.b16 %v1008
      %v1636 = vunpack.c.l.b16 %v1009
      %v1637 = vunpack.c.l.b16 %v1010
      %v1638 = vunpack.c.l.b16 %v1011
      %v1639 = vunpack.c.l.b16 %v1012
      %v1640 = vunpack.c.l.b16 %v1013
      %v1641 = vunpack.c.l.b16 %v1014
      %v1642 = vunpack.c.l.b16 %v1015
      %v1643 = vunpack.c.l.b16 %v1016
      %v1644 = vunpack.c.l.b16 %v1017
      %v1645 = vunpack.c.l.b16 %v1018
      %v1646 = vunpack.c.l.b16 %v1019
      %v1647 = vunpack.c.l.b16 %v1020
      %v1648 = vunpack.c.l.b16 %v1021
      %v1649 = vunpack.c.l.b16 %v1022
      %v1650 = vunpack.c.l.b16 %v1023
      %v1651 = vunpack.c.l.b16 %v1024
      %v1652 = vunpack.c.l.b16 %v1025
      %v1653 = vunpack.c.l.b16 %v1026
      %v1654 = vunpack.c.l.b16 %v1027
      %v1655 = vunpack.c.l.b16 %v1028
      %v1656 = vunpack.c.l.b16 %v1029
      %v1657 = vunpack.c.l.b16 %v1030
      %v1658 = vpack.c.b16 %v1627, %v1626
      %v1659 = vpack.c.b16 %v1629, %v1628
      %v1660 = vpack.c.b16 %v1631, %v1630
      %v1661 = vpack.c.b16 %v1633, %v1632
      %v1662 = vpack.c.b16 %v1635, %v1634
      %v1663 = vpack.c.b16 %v1637, %v1636
      %v1664 = vpack.c.b16 %v1639, %v1638
      %v1665 = vpack.c.b16 %v1641, %v1640
      %v1666 = vpack.c.b16 %v1643, %v1642
      %v1667 = vpack.c.b16 %v1645, %v1644
      %v1668 = vpack.c.b16 %v1647, %v1646
      %v1669 = vpack.c.b16 %v1649, %v1648
      %v1670 = vpack.c.b16 %v1651, %v1650
      %v1671 = vpack.c.b16 %v1653, %v1652
      %v1672 = vpack.c.b16 %v1655, %v1654
      %v1673 = vpack.c.b16 %v1657, %v1656
      %v1706 = vunpack.c.l.b16 %v1031
      %v1707 = vunpack.c.l.b16 %v1032
      %v1708 = vunpack.c.l.b16 %v1033
      %v1709 = vunpack.c.l.b16 %v1034
      %v1710 = vunpack.c.l.b16 %v1035
      %v1711 = vunpack.c.l.b16 %v1036
      %v1712 = vunpack.c.l.b16 %v1037
      %v1713 = vunpack.c.l.b16 %v1038
      %v1714 = vunpack.c.l.b16 %v1039
      %v1715 = vunpack.c.l.b16 %v1040
      %v1716 = vunpack.c.l.b16 %v1041
      %v1717 = vunpack.c.l.b16 %v1042
      %v1718 = vunpack.c.l.b16 %v1043
      %v1719 = vunpack.c.l.b16 %v1044
      %v1720 = vunpack.c.l.b16 %v1045
      %v1721 = vunpack.c.l.b16 %v1046
      %v1722 = vpack.c.b16 %v1706, %v1706
      %v1723 = vpack.c.b16 %v1707, %v1707
      %v1724 = vpack.c.b16 %v1708, %v1708
      %v1725 = vpack.c.b16 %v1709, %v1709
      %v1726 = vpack.c.b16 %v1710, %v1710
      %v1727 = vpack.c.b16 %v1711, %v1711
      %v1728 = vpack.c.b16 %v1712, %v1712
      %v1729 = vpack.c.b16 %v1713, %v1713
      %v1730 = vpack.c.b16 %v1714, %v1714
      %v1731 = vpack.c.b16 %v1715, %v1715
      %v1732 = vpack.c.b16 %v1716, %v1716
      %v1733 = vpack.c.b16 %v1717, %v1717
      %v1734 = vpack.c.b16 %v1718, %v1718
      %v1735 = vpack.c.b16 %v1719, %v1719
      %v1736 = vpack.c.b16 %v1720, %v1720
      %v1737 = vpack.c.b16 %v1721, %v1721
      %v1739 = vshrl.u32 %v1658, 16
      %v1741 = vshll.u32 %v1658, 16
      %v1743 = vrot.slane %v1741, 1
      %v1744 = vor.u32 %v1739, %v1743
      %v1746 = vshll.u32 %v1722, 16
      %v1748 = vrot.slane %v1746, 1
      %v1749 = vsel %vm1272, %v1744, %v1748
      %v1751 = vshrl.u32 %v1659, 16
      %v1753 = vshll.u32 %v1659, 16
      %v1755 = vrot.slane %v1753, 1
      %v1756 = vor.u32 %v1751, %v1755
      %v1758 = vshll.u32 %v1723, 16
      %v1760 = vrot.slane %v1758, 1
      %v1761 = vsel %vm1272, %v1756, %v1760
      %v1763 = vshrl.u32 %v1660, 16
      %v1765 = vshll.u32 %v1660, 16
      %v1767 = vrot.slane %v1765, 1
      %v1768 = vor.u32 %v1763, %v1767
      %v1770 = vshll.u32 %v1724, 16
      %v1772 = vrot.slane %v1770, 1
      %v1773 = vsel %vm1272, %v1768, %v1772
      %v1775 = vshrl.u32 %v1661, 16
      %v1777 = vshll.u32 %v1661, 16
      %v1779 = vrot.slane %v1777, 1
      %v1780 = vor.u32 %v1775, %v1779
      %v1782 = vshll.u32 %v1725, 16
      %v1784 = vrot.slane %v1782, 1
      %v1785 = vsel %vm1272, %v1780, %v1784
      %v1787 = vshrl.u32 %v1662, 16
      %v1789 = vshll.u32 %v1662, 16
      %v1791 = vrot.slane %v1789, 1
      %v1792 = vor.u32 %v1787, %v1791
      %v1794 = vshll.u32 %v1726, 16
      %v1796 = vrot.slane %v1794, 1
      %v1797 = vsel %vm1272, %v1792, %v1796
      %v1799 = vshrl.u32 %v1663, 16
      %v1801 = vshll.u32 %v1663, 16
      %v1803 = vrot.slane %v1801, 1
      %v1804 = vor.u32 %v1799, %v1803
      %v1806 = vshll.u32 %v1727, 16
      %v1808 = vrot.slane %v1806, 1
      %v1809 = vsel %vm1272, %v1804, %v1808
      %v1811 = vshrl.u32 %v1664, 16
      %v1813 = vshll.u32 %v1664, 16
      %v1815 = vrot.slane %v1813, 1
      %v1816 = vor.u32 %v1811, %v1815
      %v1818 = vshll.u32 %v1728, 16
      %v1820 = vrot.slane %v1818, 1
      %v1821 = vsel %vm1272, %v1816, %v1820
      %v1823 = vshrl.u32 %v1665, 16
      %v1825 = vshll.u32 %v1665, 16
      %v1827 = vrot.slane %v1825, 1
      %v1828 = vor.u32 %v1823, %v1827
      %v1830 = vshll.u32 %v1729, 16
      %v1832 = vrot.slane %v1830, 1
      %v1833 = vsel %vm1272, %v1828, %v1832
      %v1835 = vshrl.u32 %v1666, 16
      %v1837 = vshll.u32 %v1666, 16
      %v1839 = vrot.slane %v1837, 1
      %v1840 = vor.u32 %v1835, %v1839
      %v1842 = vshll.u32 %v1730, 16
      %v1844 = vrot.slane %v1842, 1
      %v1845 = vsel %vm1272, %v1840, %v1844
      %v1847 = vshrl.u32 %v1667, 16
      %v1849 = vshll.u32 %v1667, 16
      %v1851 = vrot.slane %v1849, 1
      %v1852 = vor.u32 %v1847, %v1851
      %v1854 = vshll.u32 %v1731, 16
      %v1856 = vrot.slane %v1854, 1
      %v1857 = vsel %vm1272, %v1852, %v1856
      %v1859 = vshrl.u32 %v1668, 16
      %v1861 = vshll.u32 %v1668, 16
      %v1863 = vrot.slane %v1861, 1
      %v1864 = vor.u32 %v1859, %v1863
      %v1866 = vshll.u32 %v1732, 16
      %v1868 = vrot.slane %v1866, 1
      %v1869 = vsel %vm1272, %v1864, %v1868
      %v1871 = vshrl.u32 %v1669, 16
      %v1873 = vshll.u32 %v1669, 16
      %v1875 = vrot.slane %v1873, 1
      %v1876 = vor.u32 %v1871, %v1875
      %v1878 = vshll.u32 %v1733, 16
      %v1880 = vrot.slane %v1878, 1
      %v1881 = vsel %vm1272, %v1876, %v1880
      %v1883 = vshrl.u32 %v1670, 16
      %v1885 = vshll.u32 %v1670, 16
      %v1887 = vrot.slane %v1885, 1
      %v1888 = vor.u32 %v1883, %v1887
      %v1890 = vshll.u32 %v1734, 16
      %v1892 = vrot.slane %v1890, 1
      %v1893 = vsel %vm1272, %v1888, %v1892
      %v1895 = vshrl.u32 %v1671, 16
      %v1897 = vshll.u32 %v1671, 16
      %v1899 = vrot.slane %v1897, 1
      %v1900 = vor.u32 %v1895, %v1899
      %v1902 = vshll.u32 %v1735, 16
      %v1904 = vrot.slane %v1902, 1
      %v1905 = vsel %vm1272, %v1900, %v1904
      %v1907 = vshrl.u32 %v1672, 16
      %v1909 = vshll.u32 %v1672, 16
      %v1911 = vrot.slane %v1909, 1
      %v1912 = vor.u32 %v1907, %v1911
      %v1914 = vshll.u32 %v1736, 16
      %v1916 = vrot.slane %v1914, 1
      %v1917 = vsel %vm1272, %v1912, %v1916
      %v1919 = vshrl.u32 %v1673, 16
      %v1921 = vshll.u32 %v1673, 16
      %v1923 = vrot.slane %v1921, 1
      %v1924 = vor.u32 %v1919, %v1923
      %v1926 = vshll.u32 %v1737, 16
      %v1928 = vrot.slane %v1926, 1
      %v1929 = vsel %vm1272, %v1924, %v1928
      %v1962 = vunpack.c.l.b16 %v1047
      %v1963 = vunpack.c.l.b16 %v1048
      %v1964 = vunpack.c.l.b16 %v1049
      %v1965 = vunpack.c.l.b16 %v1050
      %v1966 = vunpack.c.l.b16 %v1051
      %v1967 = vunpack.c.l.b16 %v1052
      %v1968 = vunpack.c.l.b16 %v1053
      %v1969 = vunpack.c.l.b16 %v1054
      %v1970 = vunpack.c.l.b16 %v1055
      %v1971 = vunpack.c.l.b16 %v1056
      %v1972 = vunpack.c.l.b16 %v1057
      %v1973 = vunpack.c.l.b16 %v1058
      %v1974 = vunpack.c.l.b16 %v1059
      %v1975 = vunpack.c.l.b16 %v1060
      %v1976 = vunpack.c.l.b16 %v1061
      %v1977 = vunpack.c.l.b16 %v1062
      %v1978 = vpack.c.b16 %v1627, %v1962
      %v1979 = vpack.c.b16 %v1629, %v1963
      %v1980 = vpack.c.b16 %v1631, %v1964
      %v1981 = vpack.c.b16 %v1633, %v1965
      %v1982 = vpack.c.b16 %v1635, %v1966
      %v1983 = vpack.c.b16 %v1637, %v1967
      %v1984 = vpack.c.b16 %v1639, %v1968
      %v1985 = vpack.c.b16 %v1641, %v1969
      %v1986 = vpack.c.b16 %v1643, %v1970
      %v1987 = vpack.c.b16 %v1645, %v1971
      %v1988 = vpack.c.b16 %v1647, %v1972
      %v1989 = vpack.c.b16 %v1649, %v1973
      %v1990 = vpack.c.b16 %v1651, %v1974
      %v1991 = vpack.c.b16 %v1653, %v1975
      %v1992 = vpack.c.b16 %v1655, %v1976
      %v1993 = vpack.c.b16 %v1657, %v1977
      %v1994 = vrot.slane %v1978, 1
      %v1995 = vrot.slane %v1722, 1
      %v1996 = vsel %vm1529, %v1994, %v1995
      %v1997 = vrot.slane %v1979, 1
      %v1998 = vrot.slane %v1723, 1
      %v1999 = vsel %vm1529, %v1997, %v1998
      %v2000 = vrot.slane %v1980, 1
      %v2001 = vrot.slane %v1724, 1
      %v2002 = vsel %vm1529, %v2000, %v2001
      %v2003 = vrot.slane %v1981, 1
      %v2004 = vrot.slane %v1725, 1
      %v2005 = vsel %vm1529, %v2003, %v2004
      %v2006 = vrot.slane %v1982, 1
      %v2007 = vrot.slane %v1726, 1
      %v2008 = vsel %vm1529, %v2006, %v2007
      %v2009 = vrot.slane %v1983, 1
      %v2010 = vrot.slane %v1727, 1
      %v2011 = vsel %vm1529, %v2009, %v2010
      %v2012 = vrot.slane %v1984, 1
      %v2013 = vrot.slane %v1728, 1
      %v2014 = vsel %vm1529, %v2012, %v2013
      %v2015 = vrot.slane %v1985, 1
      %v2016 = vrot.slane %v1729, 1
      %v2017 = vsel %vm1529, %v2015, %v2016
      %v2018 = vrot.slane %v1986, 1
      %v2019 = vrot.slane %v1730, 1
      %v2020 = vsel %vm1529, %v2018, %v2019
      %v2021 = vrot.slane %v1987, 1
      %v2022 = vrot.slane %v1731, 1
      %v2023 = vsel %vm1529, %v2021, %v2022
      %v2024 = vrot.slane %v1988, 1
      %v2025 = vrot.slane %v1732, 1
      %v2026 = vsel %vm1529, %v2024, %v2025
      %v2027 = vrot.slane %v1989, 1
      %v2028 = vrot.slane %v1733, 1
      %v2029 = vsel %vm1529, %v2027, %v2028
      %v2030 = vrot.slane %v1990, 1
      %v2031 = vrot.slane %v1734, 1
      %v2032 = vsel %vm1529, %v2030, %v2031
      %v2033 = vrot.slane %v1991, 1
      %v2034 = vrot.slane %v1735, 1
      %v2035 = vsel %vm1529, %v2033, %v2034
      %v2036 = vrot.slane %v1992, 1
      %v2037 = vrot.slane %v1736, 1
      %v2038 = vsel %vm1529, %v2036, %v2037
      %v2039 = vrot.slane %v1993, 1
      %v2040 = vrot.slane %v1737, 1
      %v2041 = vsel %vm1529, %v2039, %v2040
      %v2090 = vunpack.c.l.b16 %v1064
      %v2091 = vunpack.c.l.b16 %v1065
      %v2092 = vunpack.c.l.b16 %v1066
      %v2093 = vunpack.c.l.b16 %v1067
      %v2094 = vunpack.c.l.b16 %v1068
      %v2095 = vunpack.c.l.b16 %v1069
      %v2096 = vunpack.c.l.b16 %v1070
      %v2097 = vunpack.c.l.b16 %v1071
      %v2098 = vunpack.c.l.b16 %v1072
      %v2099 = vunpack.c.l.b16 %v1073
      %v2100 = vunpack.c.l.b16 %v1074
      %v2101 = vunpack.c.l.b16 %v1075
      %v2102 = vunpack.c.l.b16 %v1076
      %v2103 = vunpack.c.l.b16 %v1077
      %v2104 = vunpack.c.l.b16 %v1078
      %v2105 = vunpack.c.l.b16 %v1079
      %v2106 = vunpack.c.l.b16 %v1080
      %v2107 = vunpack.c.l.b16 %v1081
      %v2108 = vunpack.c.l.b16 %v1082
      %v2109 = vunpack.c.l.b16 %v1083
      %v2110 = vunpack.c.l.b16 %v1084
      %v2111 = vunpack.c.l.b16 %v1085
      %v2112 = vunpack.c.l.b16 %v1086
      %v2113 = vunpack.c.l.b16 %v1087
      %v2114 = vunpack.c.l.b16 %v1088
      %v2115 = vunpack.c.l.b16 %v1089
      %v2116 = vunpack.c.l.b16 %v1090
      %v2117 = vunpack.c.l.b16 %v1091
      %v2118 = vunpack.c.l.b16 %v1092
      %v2119 = vunpack.c.l.b16 %v1093
      %v2120 = vunpack.c.l.b16 %v1094
      %v2121 = vunpack.c.l.b16 %v1095
      %v2122 = vpack.c.b16 %v2091, %v2090
      %v2123 = vpack.c.b16 %v2093, %v2092
      %v2124 = vpack.c.b16 %v2095, %v2094
      %v2125 = vpack.c.b16 %v2097, %v2096
      %v2126 = vpack.c.b16 %v2099, %v2098
      %v2127 = vpack.c.b16 %v2101, %v2100
      %v2128 = vpack.c.b16 %v2103, %v2102
      %v2129 = vpack.c.b16 %v2105, %v2104
      %v2130 = vpack.c.b16 %v2107, %v2106
      %v2131 = vpack.c.b16 %v2109, %v2108
      %v2132 = vpack.c.b16 %v2111, %v2110
      %v2133 = vpack.c.b16 %v2113, %v2112
      %v2134 = vpack.c.b16 %v2115, %v2114
      %v2135 = vpack.c.b16 %v2117, %v2116
      %v2136 = vpack.c.b16 %v2119, %v2118
      %v2137 = vpack.c.b16 %v2121, %v2120
      %v2170 = vunpack.c.l.b16 %v1096
      %v2171 = vunpack.c.l.b16 %v1097
      %v2172 = vunpack.c.l.b16 %v1098
      %v2173 = vunpack.c.l.b16 %v1099
      %v2174 = vunpack.c.l.b16 %v1100
      %v2175 = vunpack.c.l.b16 %v1101
      %v2176 = vunpack.c.l.b16 %v1102
      %v2177 = vunpack.c.l.b16 %v1103
      %v2178 = vunpack.c.l.b16 %v1104
      %v2179 = vunpack.c.l.b16 %v1105
      %v2180 = vunpack.c.l.b16 %v1106
      %v2181 = vunpack.c.l.b16 %v1107
      %v2182 = vunpack.c.l.b16 %v1108
      %v2183 = vunpack.c.l.b16 %v1109
      %v2184 = vunpack.c.l.b16 %v1110
      %v2185 = vunpack.c.l.b16 %v1111
      %v2186 = vpack.c.b16 %v2170, %v2170
      %v2187 = vpack.c.b16 %v2171, %v2171
      %v2188 = vpack.c.b16 %v2172, %v2172
      %v2189 = vpack.c.b16 %v2173, %v2173
      %v2190 = vpack.c.b16 %v2174, %v2174
      %v2191 = vpack.c.b16 %v2175, %v2175
      %v2192 = vpack.c.b16 %v2176, %v2176
      %v2193 = vpack.c.b16 %v2177, %v2177
      %v2194 = vpack.c.b16 %v2178, %v2178
      %v2195 = vpack.c.b16 %v2179, %v2179
      %v2196 = vpack.c.b16 %v2180, %v2180
      %v2197 = vpack.c.b16 %v2181, %v2181
      %v2198 = vpack.c.b16 %v2182, %v2182
      %v2199 = vpack.c.b16 %v2183, %v2183
      %v2200 = vpack.c.b16 %v2184, %v2184
      %v2201 = vpack.c.b16 %v2185, %v2185
      %v2203 = vshrl.u32 %v2122, 16
      %v2205 = vshll.u32 %v2122, 16
      %v2207 = vrot.slane %v2205, 1
      %v2208 = vor.u32 %v2203, %v2207
      %v2210 = vshll.u32 %v2186, 16
      %v2212 = vrot.slane %v2210, 1
      %v2213 = vsel %vm1272, %v2208, %v2212
      %v2215 = vshrl.u32 %v2123, 16
      %v2217 = vshll.u32 %v2123, 16
      %v2219 = vrot.slane %v2217, 1
      %v2220 = vor.u32 %v2215, %v2219
      %v2222 = vshll.u32 %v2187, 16
      %v2224 = vrot.slane %v2222, 1
      %v2225 = vsel %vm1272, %v2220, %v2224
      %v2227 = vshrl.u32 %v2124, 16
      %v2229 = vshll.u32 %v2124, 16
      %v2231 = vrot.slane %v2229, 1
      %v2232 = vor.u32 %v2227, %v2231
      %v2234 = vshll.u32 %v2188, 16
      %v2236 = vrot.slane %v2234, 1
      %v2237 = vsel %vm1272, %v2232, %v2236
      %v2239 = vshrl.u32 %v2125, 16
      %v2241 = vshll.u32 %v2125, 16
      %v2243 = vrot.slane %v2241, 1
      %v2244 = vor.u32 %v2239, %v2243
      %v2246 = vshll.u32 %v2189, 16
      %v2248 = vrot.slane %v2246, 1
      %v2249 = vsel %vm1272, %v2244, %v2248
      %v2251 = vshrl.u32 %v2126, 16
      %v2253 = vshll.u32 %v2126, 16
      %v2255 = vrot.slane %v2253, 1
      %v2256 = vor.u32 %v2251, %v2255
      %v2258 = vshll.u32 %v2190, 16
      %v2260 = vrot.slane %v2258, 1
      %v2261 = vsel %vm1272, %v2256, %v2260
      %v2263 = vshrl.u32 %v2127, 16
      %v2265 = vshll.u32 %v2127, 16
      %v2267 = vrot.slane %v2265, 1
      %v2268 = vor.u32 %v2263, %v2267
      %v2270 = vshll.u32 %v2191, 16
      %v2272 = vrot.slane %v2270, 1
      %v2273 = vsel %vm1272, %v2268, %v2272
      %v2275 = vshrl.u32 %v2128, 16
      %v2277 = vshll.u32 %v2128, 16
      %v2279 = vrot.slane %v2277, 1
      %v2280 = vor.u32 %v2275, %v2279
      %v2282 = vshll.u32 %v2192, 16
      %v2284 = vrot.slane %v2282, 1
      %v2285 = vsel %vm1272, %v2280, %v2284
      %v2287 = vshrl.u32 %v2129, 16
      %v2289 = vshll.u32 %v2129, 16
      %v2291 = vrot.slane %v2289, 1
      %v2292 = vor.u32 %v2287, %v2291
      %v2294 = vshll.u32 %v2193, 16
      %v2296 = vrot.slane %v2294, 1
      %v2297 = vsel %vm1272, %v2292, %v2296
      %v2299 = vshrl.u32 %v2130, 16
      %v2301 = vshll.u32 %v2130, 16
      %v2303 = vrot.slane %v2301, 1
      %v2304 = vor.u32 %v2299, %v2303
      %v2306 = vshll.u32 %v2194, 16
      %v2308 = vrot.slane %v2306, 1
      %v2309 = vsel %vm1272, %v2304, %v2308
      %v2311 = vshrl.u32 %v2131, 16
      %v2313 = vshll.u32 %v2131, 16
      %v2315 = vrot.slane %v2313, 1
      %v2316 = vor.u32 %v2311, %v2315
      %v2318 = vshll.u32 %v2195, 16
      %v2320 = vrot.slane %v2318, 1
      %v2321 = vsel %vm1272, %v2316, %v2320
      %v2323 = vshrl.u32 %v2132, 16
      %v2325 = vshll.u32 %v2132, 16
      %v2327 = vrot.slane %v2325, 1
      %v2328 = vor.u32 %v2323, %v2327
      %v2330 = vshll.u32 %v2196, 16
      %v2332 = vrot.slane %v2330, 1
      %v2333 = vsel %vm1272, %v2328, %v2332
      %v2335 = vshrl.u32 %v2133, 16
      %v2337 = vshll.u32 %v2133, 16
      %v2339 = vrot.slane %v2337, 1
      %v2340 = vor.u32 %v2335, %v2339
      %v2342 = vshll.u32 %v2197, 16
      %v2344 = vrot.slane %v2342, 1
      %v2345 = vsel %vm1272, %v2340, %v2344
      %v2347 = vshrl.u32 %v2134, 16
      %v2349 = vshll.u32 %v2134, 16
      %v2351 = vrot.slane %v2349, 1
      %v2352 = vor.u32 %v2347, %v2351
      %v2354 = vshll.u32 %v2198, 16
      %v2356 = vrot.slane %v2354, 1
      %v2357 = vsel %vm1272, %v2352, %v2356
      %v2359 = vshrl.u32 %v2135, 16
      %v2361 = vshll.u32 %v2135, 16
      %v2363 = vrot.slane %v2361, 1
      %v2364 = vor.u32 %v2359, %v2363
      %v2366 = vshll.u32 %v2199, 16
      %v2368 = vrot.slane %v2366, 1
      %v2369 = vsel %vm1272, %v2364, %v2368
      %v2371 = vshrl.u32 %v2136, 16
      %v2373 = vshll.u32 %v2136, 16
      %v2375 = vrot.slane %v2373, 1
      %v2376 = vor.u32 %v2371, %v2375
      %v2378 = vshll.u32 %v2200, 16
      %v2380 = vrot.slane %v2378, 1
      %v2381 = vsel %vm1272, %v2376, %v2380
      %v2383 = vshrl.u32 %v2137, 16
      %v2385 = vshll.u32 %v2137, 16
      %v2387 = vrot.slane %v2385, 1
      %v2388 = vor.u32 %v2383, %v2387
      %v2390 = vshll.u32 %v2201, 16
      %v2392 = vrot.slane %v2390, 1
      %v2393 = vsel %vm1272, %v2388, %v2392
      %v2426 = vunpack.c.l.b16 %v1112
      %v2427 = vunpack.c.l.b16 %v1113
      %v2428 = vunpack.c.l.b16 %v1114
      %v2429 = vunpack.c.l.b16 %v1115
      %v2430 = vunpack.c.l.b16 %v1116
      %v2431 = vunpack.c.l.b16 %v1117
      %v2432 = vunpack.c.l.b16 %v1118
      %v2433 = vunpack.c.l.b16 %v1119
      %v2434 = vunpack.c.l.b16 %v1120
      %v2435 = vunpack.c.l.b16 %v1121
      %v2436 = vunpack.c.l.b16 %v1122
      %v2437 = vunpack.c.l.b16 %v1123
      %v2438 = vunpack.c.l.b16 %v1124
      %v2439 = vunpack.c.l.b16 %v1125
      %v2440 = vunpack.c.l.b16 %v1126
      %v2441 = vunpack.c.l.b16 %v1127
      %v2442 = vpack.c.b16 %v2091, %v2426
      %v2443 = vpack.c.b16 %v2093, %v2427
      %v2444 = vpack.c.b16 %v2095, %v2428
      %v2445 = vpack.c.b16 %v2097, %v2429
      %v2446 = vpack.c.b16 %v2099, %v2430
      %v2447 = vpack.c.b16 %v2101, %v2431
      %v2448 = vpack.c.b16 %v2103, %v2432
      %v2449 = vpack.c.b16 %v2105, %v2433
      %v2450 = vpack.c.b16 %v2107, %v2434
      %v2451 = vpack.c.b16 %v2109, %v2435
      %v2452 = vpack.c.b16 %v2111, %v2436
      %v2453 = vpack.c.b16 %v2113, %v2437
      %v2454 = vpack.c.b16 %v2115, %v2438
      %v2455 = vpack.c.b16 %v2117, %v2439
      %v2456 = vpack.c.b16 %v2119, %v2440
      %v2457 = vpack.c.b16 %v2121, %v2441
      %v2458 = vrot.slane %v2442, 1
      %v2459 = vrot.slane %v2186, 1
      %v2460 = vsel %vm1529, %v2458, %v2459
      %v2461 = vrot.slane %v2443, 1
      %v2462 = vrot.slane %v2187, 1
      %v2463 = vsel %vm1529, %v2461, %v2462
      %v2464 = vrot.slane %v2444, 1
      %v2465 = vrot.slane %v2188, 1
      %v2466 = vsel %vm1529, %v2464, %v2465
      %v2467 = vrot.slane %v2445, 1
      %v2468 = vrot.slane %v2189, 1
      %v2469 = vsel %vm1529, %v2467, %v2468
      %v2470 = vrot.slane %v2446, 1
      %v2471 = vrot.slane %v2190, 1
      %v2472 = vsel %vm1529, %v2470, %v2471
      %v2473 = vrot.slane %v2447, 1
      %v2474 = vrot.slane %v2191, 1
      %v2475 = vsel %vm1529, %v2473, %v2474
      %v2476 = vrot.slane %v2448, 1
      %v2477 = vrot.slane %v2192, 1
      %v2478 = vsel %vm1529, %v2476, %v2477
      %v2479 = vrot.slane %v2449, 1
      %v2480 = vrot.slane %v2193, 1
      %v2481 = vsel %vm1529, %v2479, %v2480
      %v2482 = vrot.slane %v2450, 1
      %v2483 = vrot.slane %v2194, 1
      %v2484 = vsel %vm1529, %v2482, %v2483
      %v2485 = vrot.slane %v2451, 1
      %v2486 = vrot.slane %v2195, 1
      %v2487 = vsel %vm1529, %v2485, %v2486
      %v2488 = vrot.slane %v2452, 1
      %v2489 = vrot.slane %v2196, 1
      %v2490 = vsel %vm1529, %v2488, %v2489
      %v2491 = vrot.slane %v2453, 1
      %v2492 = vrot.slane %v2197, 1
      %v2493 = vsel %vm1529, %v2491, %v2492
      %v2494 = vrot.slane %v2454, 1
      %v2495 = vrot.slane %v2198, 1
      %v2496 = vsel %vm1529, %v2494, %v2495
      %v2497 = vrot.slane %v2455, 1
      %v2498 = vrot.slane %v2199, 1
      %v2499 = vsel %vm1529, %v2497, %v2498
      %v2500 = vrot.slane %v2456, 1
      %v2501 = vrot.slane %v2200, 1
      %v2502 = vsel %vm1529, %v2500, %v2501
      %v2503 = vrot.slane %v2457, 1
      %v2504 = vrot.slane %v2201, 1
      %v2505 = vsel %vm1529, %v2503, %v2504
      %v2522 = vld [vmem:[%s1] sm:$0xf]
      %v2523 = vld [vmem:[%s1 + $0x4] sm:$0xf]
      %v2524 = vld [vmem:[%s1 + $0x8] sm:$0xf]
      %v2525 = vld [vmem:[%s1 + $0xc] sm:$0xf]
      %v2526 = vld [vmem:[%s1 + $0x10] sm:$0xf]
      %v2527 = vld [vmem:[%s1 + $0x14] sm:$0xf]
      %v2528 = vld [vmem:[%s1 + $0x18] sm:$0xf]
      %v2529 = vld [vmem:[%s1 + $0x1c] sm:$0xf]
      %v2530 = vld [vmem:[%s1 + $0x20] sm:$0xf]
      %v2531 = vld [vmem:[%s1 + $0x24] sm:$0xf]
      %v2532 = vld [vmem:[%s1 + $0x28] sm:$0xf]
      %v2533 = vld [vmem:[%s1 + $0x2c] sm:$0xf]
      %v2534 = vld [vmem:[%s1 + $0x30] sm:$0xf]
      %v2535 = vld [vmem:[%s1 + $0x34] sm:$0xf]
      %v2536 = vld [vmem:[%s1 + $0x38] sm:$0xf]
      %v2537 = vld [vmem:[%s1 + $0x3c] sm:$0xf]
      %v2538 = vld [vmem:[%s1 + $0x40] sm:$0xf]
      %v2539 = vld [vmem:[%s1 + $0x44] sm:$0xf]
      %v2540 = vld [vmem:[%s1 + $0x48] sm:$0xf]
      %v2541 = vld [vmem:[%s1 + $0x4c] sm:$0xf]
      %v2542 = vld [vmem:[%s1 + $0x50] sm:$0xf]
      %v2543 = vld [vmem:[%s1 + $0x54] sm:$0xf]
      %v2544 = vld [vmem:[%s1 + $0x58] sm:$0xf]
      %v2545 = vld [vmem:[%s1 + $0x5c] sm:$0xf]
      %v2546 = vld [vmem:[%s1 + $0x60] sm:$0xf]
      %v2547 = vld [vmem:[%s1 + $0x64] sm:$0xf]
      %v2548 = vld [vmem:[%s1 + $0x68] sm:$0xf]
      %v2549 = vld [vmem:[%s1 + $0x6c] sm:$0xf]
      %v2550 = vld [vmem:[%s1 + $0x70] sm:$0xf]
      %v2551 = vld [vmem:[%s1 + $0x74] sm:$0xf]
      %v2552 = vld [vmem:[%s1 + $0x78] sm:$0xf]
      %v2553 = vld [vmem:[%s1 + $0x7c] sm:$0xf]
      %v2554 = vld [vmem:[%s1 + $0x80] sm:$0xf]
      %v2555 = vld [vmem:[%s1 + $0x84] sm:$0xf]
      %v2556 = vld [vmem:[%s1 + $0x88] sm:$0xf]
      %v2557 = vld [vmem:[%s1 + $0x8c] sm:$0xf]
      %v2558 = vld [vmem:[%s1 + $0x90] sm:$0xf]
      %v2559 = vld [vmem:[%s1 + $0x94] sm:$0xf]
      %v2560 = vld [vmem:[%s1 + $0x98] sm:$0xf]
      %v2561 = vld [vmem:[%s1 + $0x9c] sm:$0xf]
      %v2562 = vld [vmem:[%s1 + $0xa0] sm:$0xf]
      %v2563 = vld [vmem:[%s1 + $0xa4] sm:$0xf]
      %v2564 = vld [vmem:[%s1 + $0xa8] sm:$0xf]
      %v2565 = vld [vmem:[%s1 + $0xac] sm:$0xf]
      %v2566 = vld [vmem:[%s1 + $0xb0] sm:$0xf]
      %v2567 = vld [vmem:[%s1 + $0xb4] sm:$0xf]
      %v2568 = vld [vmem:[%s1 + $0xb8] sm:$0xf]
      %v2569 = vld [vmem:[%s1 + $0xbc] sm:$0xf]
      %v2570 = vld [vmem:[%s1 + $0xc0] sm:$0xf]
      %v2571 = vld [vmem:[%s1 + $0xc4] sm:$0xf]
      %v2572 = vld [vmem:[%s1 + $0xc8] sm:$0xf]
      %v2573 = vld [vmem:[%s1 + $0xcc] sm:$0xf]
      %v2574 = vld [vmem:[%s1 + $0xd0] sm:$0xf]
      %v2575 = vld [vmem:[%s1 + $0xd4] sm:$0xf]
      %v2576 = vld [vmem:[%s1 + $0xd8] sm:$0xf]
      %v2577 = vld [vmem:[%s1 + $0xdc] sm:$0xf]
      %v2578 = vld [vmem:[%s1 + $0xe0] sm:$0xf]
      %v2579 = vld [vmem:[%s1 + $0xe4] sm:$0xf]
      %v2580 = vld [vmem:[%s1 + $0xe8] sm:$0xf]
      %v2581 = vld [vmem:[%s1 + $0xec] sm:$0xf]
      %v2582 = vld [vmem:[%s1 + $0xf0] sm:$0xf]
      %v2583 = vld [vmem:[%s1 + $0xf4] sm:$0xf]
      %v2584 = vld [vmem:[%s1 + $0xf8] sm:$0xf]
      %v2585 = vld [vmem:[%s1 + $0xfc] sm:$0xf]
      %v2586 = vld [vmem:[%s1 + $0x100] sm:$0xf]
      %v2587 = vld [vmem:[%s1 + $0x104] sm:$0xf]
      %v2588 = vld [vmem:[%s1 + $0x108] sm:$0xf]
      %v2589 = vld [vmem:[%s1 + $0x10c] sm:$0xf]
      %v2590 = vld [vmem:[%s1 + $0x110] sm:$0xf]
      %v2591 = vld [vmem:[%s1 + $0x114] sm:$0xf]
      %v2592 = vld [vmem:[%s1 + $0x118] sm:$0xf]
      %v2593 = vld [vmem:[%s1 + $0x11c] sm:$0xf]
      %v2594 = vld [vmem:[%s1 + $0x120] sm:$0xf]
      %v2595 = vld [vmem:[%s1 + $0x124] sm:$0xf]
      %v2596 = vld [vmem:[%s1 + $0x128] sm:$0xf]
      %v2597 = vld [vmem:[%s1 + $0x12c] sm:$0xf]
      %v2598 = vld [vmem:[%s1 + $0x130] sm:$0xf]
      %v2599 = vld [vmem:[%s1 + $0x134] sm:$0xf]
      %v2600 = vld [vmem:[%s1 + $0x138] sm:$0xf]
      %v2601 = vld [vmem:[%s1 + $0x13c] sm:$0xf]
      %v2602 = vld [vmem:[%s1 + $0x140] sm:$0xf]
      %v2603 = vld [vmem:[%s1 + $0x144] sm:$0xf]
      %v2604 = vld [vmem:[%s1 + $0x148] sm:$0xf]
      %v2605 = vld [vmem:[%s1 + $0x14c] sm:$0xf]
      %v2606 = vld [vmem:[%s1 + $0x150] sm:$0xf]
      %v2607 = vld [vmem:[%s1 + $0x154] sm:$0xf]
      %v2608 = vld [vmem:[%s1 + $0x158] sm:$0xf]
      %v2609 = vld [vmem:[%s1 + $0x15c] sm:$0xf]
      %v2610 = vld [vmem:[%s1 + $0x160] sm:$0xf]
      %v2611 = vld [vmem:[%s1 + $0x164] sm:$0xf]
      %v2612 = vld [vmem:[%s1 + $0x168] sm:$0xf]
      %v2613 = vld [vmem:[%s1 + $0x16c] sm:$0xf]
      %v2614 = vld [vmem:[%s1 + $0x170] sm:$0xf]
      %v2615 = vld [vmem:[%s1 + $0x174] sm:$0xf]
      %v2616 = vld [vmem:[%s1 + $0x178] sm:$0xf]
      %v2617 = vld [vmem:[%s1 + $0x17c] sm:$0xf]
      %v2618 = vld [vmem:[%s1 + $0x180] sm:$0xf]
      %v2619 = vld [vmem:[%s1 + $0x184] sm:$0xf]
      %v2620 = vld [vmem:[%s1 + $0x188] sm:$0xf]
      %v2621 = vld [vmem:[%s1 + $0x18c] sm:$0xf]
      %v2622 = vld [vmem:[%s1 + $0x190] sm:$0xf]
      %v2623 = vld [vmem:[%s1 + $0x194] sm:$0xf]
      %v2624 = vld [vmem:[%s1 + $0x198] sm:$0xf]
      %v2625 = vld [vmem:[%s1 + $0x19c] sm:$0xf]
      %v2626 = vld [vmem:[%s1 + $0x1a0] sm:$0xf]
      %v2627 = vld [vmem:[%s1 + $0x1a4] sm:$0xf]
      %v2628 = vld [vmem:[%s1 + $0x1a8] sm:$0xf]
      %v2629 = vld [vmem:[%s1 + $0x1ac] sm:$0xf]
      %v2630 = vld [vmem:[%s1 + $0x1b0] sm:$0xf]
      %v2631 = vld [vmem:[%s1 + $0x1b4] sm:$0xf]
      %v2632 = vld [vmem:[%s1 + $0x1b8] sm:$0xf]
      %v2633 = vld [vmem:[%s1 + $0x1bc] sm:$0xf]
      %v2634 = vld [vmem:[%s1 + $0x1c0] sm:$0xf]
      %v2635 = vld [vmem:[%s1 + $0x1c4] sm:$0xf]
      %v2636 = vld [vmem:[%s1 + $0x1c8] sm:$0xf]
      %v2637 = vld [vmem:[%s1 + $0x1cc] sm:$0xf]
      %v2638 = vld [vmem:[%s1 + $0x1d0] sm:$0xf]
      %v2639 = vld [vmem:[%s1 + $0x1d4] sm:$0xf]
      %v2640 = vld [vmem:[%s1 + $0x1d8] sm:$0xf]
      %v2641 = vld [vmem:[%s1 + $0x1dc] sm:$0xf]
      %v2642 = vld [vmem:[%s1 + $0x1e0] sm:$0xf]
      %v2643 = vld [vmem:[%s1 + $0x1e4] sm:$0xf]
      %v2644 = vld [vmem:[%s1 + $0x1e8] sm:$0xf]
      %v2645 = vld [vmem:[%s1 + $0x1ec] sm:$0xf]
      %v2646 = vld [vmem:[%s1 + $0x1f0] sm:$0xf]
      %v2647 = vld [vmem:[%s1 + $0x1f4] sm:$0xf]
      %v2648 = vld [vmem:[%s1 + $0x1f8] sm:$0xf]
      %v2649 = vld [vmem:[%s1 + $0x1fc] sm:$0xf]
      %v2650 = vld [vmem:[%s1 + $0x200] sm:$0xf]
      %v2651 = vld [vmem:[%s1 + $0x204] sm:$0xf]
      %v2652 = vld [vmem:[%s1 + $0x208] sm:$0xf]
      %v2653 = vld [vmem:[%s1 + $0x20c] sm:$0xf]
      %v2654 = vld [vmem:[%s1 + $0x210] sm:$0xf]
      %v2655 = vld [vmem:[%s1 + $0x214] sm:$0xf]
      %v2656 = vld [vmem:[%s1 + $0x218] sm:$0xf]
      %v2657 = vld [vmem:[%s1 + $0x21c] sm:$0xf]
      %v2658 = vld [vmem:[%s1 + $0x220] sm:$0xf]
      %v2659 = vld [vmem:[%s1 + $0x224] sm:$0xf]
      %v2660 = vld [vmem:[%s1 + $0x228] sm:$0xf]
      %v2661 = vld [vmem:[%s1 + $0x22c] sm:$0xf]
      %v2662 = vld [vmem:[%s1 + $0x230] sm:$0xf]
      %v2663 = vld [vmem:[%s1 + $0x234] sm:$0xf]
      %v2664 = vld [vmem:[%s1 + $0x238] sm:$0xf]
      %v2665 = vld [vmem:[%s1 + $0x23c] sm:$0xf]
      %v2666 = vld [vmem:[%s2] sm:$0x1]
      %v2668 = vlaneseq
      %v2669 = vshrl.u32 %v2668, 7
      %v2670 = vsub.s32 0, %v2669
      %v2671 = vrot.slane %v2666, %v2670
      %v2817 = vunpack.c.l.b16 %v2522
      %v2818 = vunpack.c.l.b16 %v2523
      %v2819 = vunpack.c.l.b16 %v2524
      %v2820 = vunpack.c.l.b16 %v2525
      %v2821 = vunpack.c.l.b16 %v2526
      %v2822 = vunpack.c.l.b16 %v2527
      %v2823 = vunpack.c.l.b16 %v2528
      %v2824 = vunpack.c.l.b16 %v2529
      %v2825 = vunpack.c.l.b16 %v2530
      %v2826 = vunpack.c.l.b16 %v2531
      %v2827 = vunpack.c.l.b16 %v2532
      %v2828 = vunpack.c.l.b16 %v2533
      %v2829 = vunpack.c.l.b16 %v2534
      %v2830 = vunpack.c.l.b16 %v2535
      %v2831 = vunpack.c.l.b16 %v2536
      %v2832 = vunpack.c.l.b16 %v2537
      %v2833 = vunpack.c.l.b16 %v2538
      %v2834 = vunpack.c.l.b16 %v2539
      %v2835 = vunpack.c.l.b16 %v2540
      %v2836 = vunpack.c.l.b16 %v2541
      %v2837 = vunpack.c.l.b16 %v2542
      %v2838 = vunpack.c.l.b16 %v2543
      %v2839 = vunpack.c.l.b16 %v2544
      %v2840 = vunpack.c.l.b16 %v2545
      %v2841 = vunpack.c.l.b16 %v2546
      %v2842 = vunpack.c.l.b16 %v2547
      %v2843 = vunpack.c.l.b16 %v2548
      %v2844 = vunpack.c.l.b16 %v2549
      %v2845 = vunpack.c.l.b16 %v2550
      %v2846 = vunpack.c.l.b16 %v2551
      %v2847 = vunpack.c.l.b16 %v2552
      %v2848 = vunpack.c.l.b16 %v2553
      %v2849 = vunpack.c.l.b16 %v2554
      %v2850 = vunpack.c.l.b16 %v2555
      %v2851 = vunpack.c.l.b16 %v2556
      %v2852 = vunpack.c.l.b16 %v2557
      %v2853 = vunpack.c.l.b16 %v2558
      %v2854 = vunpack.c.l.b16 %v2559
      %v2855 = vunpack.c.l.b16 %v2560
      %v2856 = vunpack.c.l.b16 %v2561
      %v2857 = vunpack.c.l.b16 %v2562
      %v2858 = vunpack.c.l.b16 %v2563
      %v2859 = vunpack.c.l.b16 %v2564
      %v2860 = vunpack.c.l.b16 %v2565
      %v2861 = vunpack.c.l.b16 %v2566
      %v2862 = vunpack.c.l.b16 %v2567
      %v2863 = vunpack.c.l.b16 %v2568
      %v2864 = vunpack.c.l.b16 %v2569
      %v2865 = vunpack.c.l.b16 %v2570
      %v2866 = vunpack.c.l.b16 %v2571
      %v2867 = vunpack.c.l.b16 %v2572
      %v2868 = vunpack.c.l.b16 %v2573
      %v2869 = vunpack.c.l.b16 %v2574
      %v2870 = vunpack.c.l.b16 %v2575
      %v2871 = vunpack.c.l.b16 %v2576
      %v2872 = vunpack.c.l.b16 %v2577
      %v2873 = vunpack.c.l.b16 %v2578
      %v2874 = vunpack.c.l.b16 %v2579
      %v2875 = vunpack.c.l.b16 %v2580
      %v2876 = vunpack.c.l.b16 %v2581
      %v2877 = vunpack.c.l.b16 %v2582
      %v2878 = vunpack.c.l.b16 %v2583
      %v2879 = vunpack.c.l.b16 %v2584
      %v2880 = vunpack.c.l.b16 %v2585
      %v2881 = vunpack.c.l.b16 %v2586
      %v2882 = vunpack.c.l.b16 %v2587
      %v2883 = vunpack.c.l.b16 %v2588
      %v2884 = vunpack.c.l.b16 %v2589
      %v2885 = vunpack.c.l.b16 %v2590
      %v2886 = vunpack.c.l.b16 %v2591
      %v2887 = vunpack.c.l.b16 %v2592
      %v2888 = vunpack.c.l.b16 %v2593
      %v2889 = vunpack.c.l.b16 %v2594
      %v2890 = vunpack.c.l.b16 %v2595
      %v2891 = vunpack.c.l.b16 %v2596
      %v2892 = vunpack.c.l.b16 %v2597
      %v2893 = vunpack.c.l.b16 %v2598
      %v2894 = vunpack.c.l.b16 %v2599
      %v2895 = vunpack.c.l.b16 %v2600
      %v2896 = vunpack.c.l.b16 %v2601
      %v2897 = vunpack.c.l.b16 %v2602
      %v2898 = vunpack.c.l.b16 %v2603
      %v2899 = vunpack.c.l.b16 %v2604
      %v2900 = vunpack.c.l.b16 %v2605
      %v2901 = vunpack.c.l.b16 %v2606
      %v2902 = vunpack.c.l.b16 %v2607
      %v2903 = vunpack.c.l.b16 %v2608
      %v2904 = vunpack.c.l.b16 %v2609
      %v2905 = vunpack.c.l.b16 %v2610
      %v2906 = vunpack.c.l.b16 %v2611
      %v2907 = vunpack.c.l.b16 %v2612
      %v2908 = vunpack.c.l.b16 %v2613
      %v2909 = vunpack.c.l.b16 %v2614
      %v2910 = vunpack.c.l.b16 %v2615
      %v2911 = vunpack.c.l.b16 %v2616
      %v2912 = vunpack.c.l.b16 %v2617
      %v2913 = vunpack.c.l.b16 %v2618
      %v2914 = vunpack.c.l.b16 %v2619
      %v2915 = vunpack.c.l.b16 %v2620
      %v2916 = vunpack.c.l.b16 %v2621
      %v2917 = vunpack.c.l.b16 %v2622
      %v2918 = vunpack.c.l.b16 %v2623
      %v2919 = vunpack.c.l.b16 %v2624
      %v2920 = vunpack.c.l.b16 %v2625
      %v2921 = vunpack.c.l.b16 %v2626
      %v2922 = vunpack.c.l.b16 %v2627
      %v2923 = vunpack.c.l.b16 %v2628
      %v2924 = vunpack.c.l.b16 %v2629
      %v2925 = vunpack.c.l.b16 %v2630
      %v2926 = vunpack.c.l.b16 %v2631
      %v2927 = vunpack.c.l.b16 %v2632
      %v2928 = vunpack.c.l.b16 %v2633
      %v2929 = vunpack.c.l.b16 %v2634
      %v2930 = vunpack.c.l.b16 %v2635
      %v2931 = vunpack.c.l.b16 %v2636
      %v2932 = vunpack.c.l.b16 %v2637
      %v2933 = vunpack.c.l.b16 %v2638
      %v2934 = vunpack.c.l.b16 %v2639
      %v2935 = vunpack.c.l.b16 %v2640
      %v2936 = vunpack.c.l.b16 %v2641
      %v2937 = vunpack.c.l.b16 %v2642
      %v2938 = vunpack.c.l.b16 %v2643
      %v2939 = vunpack.c.l.b16 %v2644
      %v2940 = vunpack.c.l.b16 %v2645
      %v2941 = vunpack.c.l.b16 %v2646
      %v2942 = vunpack.c.l.b16 %v2647
      %v2943 = vunpack.c.l.b16 %v2648
      %v2944 = vunpack.c.l.b16 %v2649
      %v2945 = vunpack.c.l.b16 %v2650
      %v2946 = vunpack.c.l.b16 %v2651
      %v2947 = vunpack.c.l.b16 %v2652
      %v2948 = vunpack.c.l.b16 %v2653
      %v2949 = vunpack.c.l.b16 %v2654
      %v2950 = vunpack.c.l.b16 %v2655
      %v2951 = vunpack.c.l.b16 %v2656
      %v2952 = vunpack.c.l.b16 %v2657
      %v2953 = vunpack.c.l.b16 %v2658
      %v2954 = vunpack.c.l.b16 %v2659
      %v2955 = vunpack.c.l.b16 %v2660
      %v2956 = vunpack.c.l.b16 %v2661
      %v2957 = vunpack.c.l.b16 %v2662
      %v2958 = vunpack.c.l.b16 %v2663
      %v2959 = vunpack.c.l.b16 %v2664
      %v2960 = vunpack.c.l.b16 %v2665
      %v2961 = vpack.c.b16 %v2818, %v2817
      %v2962 = vpack.c.b16 %v2820, %v2819
      %v2963 = vpack.c.b16 %v2822, %v2821
      %v2964 = vpack.c.b16 %v2824, %v2823
      %v2965 = vpack.c.b16 %v2826, %v2825
      %v2966 = vpack.c.b16 %v2828, %v2827
      %v2967 = vpack.c.b16 %v2830, %v2829
      %v2968 = vpack.c.b16 %v2832, %v2831
      %v2969 = vpack.c.b16 %v2834, %v2833
      %v2970 = vpack.c.b16 %v2836, %v2835
      %v2971 = vpack.c.b16 %v2838, %v2837
      %v2972 = vpack.c.b16 %v2840, %v2839
      %v2973 = vpack.c.b16 %v2842, %v2841
      %v2974 = vpack.c.b16 %v2844, %v2843
      %v2975 = vpack.c.b16 %v2846, %v2845
      %v2976 = vpack.c.b16 %v2848, %v2847
      %v2977 = vpack.c.b16 %v2850, %v2849
      %v2978 = vpack.c.b16 %v2852, %v2851
      %v2979 = vpack.c.b16 %v2854, %v2853
      %v2980 = vpack.c.b16 %v2856, %v2855
      %v2981 = vpack.c.b16 %v2858, %v2857
      %v2982 = vpack.c.b16 %v2860, %v2859
      %v2983 = vpack.c.b16 %v2862, %v2861
      %v2984 = vpack.c.b16 %v2864, %v2863
      %v2985 = vpack.c.b16 %v2866, %v2865
      %v2986 = vpack.c.b16 %v2868, %v2867
      %v2987 = vpack.c.b16 %v2870, %v2869
      %v2988 = vpack.c.b16 %v2872, %v2871
      %v2989 = vpack.c.b16 %v2874, %v2873
      %v2990 = vpack.c.b16 %v2876, %v2875
      %v2991 = vpack.c.b16 %v2878, %v2877
      %v2992 = vpack.c.b16 %v2880, %v2879
      %v2993 = vpack.c.b16 %v2882, %v2881
      %v2994 = vpack.c.b16 %v2884, %v2883
      %v2995 = vpack.c.b16 %v2886, %v2885
      %v2996 = vpack.c.b16 %v2888, %v2887
      %v2997 = vpack.c.b16 %v2890, %v2889
      %v2998 = vpack.c.b16 %v2892, %v2891
      %v2999 = vpack.c.b16 %v2894, %v2893
      %v3000 = vpack.c.b16 %v2896, %v2895
      %v3001 = vpack.c.b16 %v2898, %v2897
      %v3002 = vpack.c.b16 %v2900, %v2899
      %v3003 = vpack.c.b16 %v2902, %v2901
      %v3004 = vpack.c.b16 %v2904, %v2903
      %v3005 = vpack.c.b16 %v2906, %v2905
      %v3006 = vpack.c.b16 %v2908, %v2907
      %v3007 = vpack.c.b16 %v2910, %v2909
      %v3008 = vpack.c.b16 %v2912, %v2911
      %v3009 = vpack.c.b16 %v2914, %v2913
      %v3010 = vpack.c.b16 %v2916, %v2915
      %v3011 = vpack.c.b16 %v2918, %v2917
      %v3012 = vpack.c.b16 %v2920, %v2919
      %v3013 = vpack.c.b16 %v2922, %v2921
      %v3014 = vpack.c.b16 %v2924, %v2923
      %v3015 = vpack.c.b16 %v2926, %v2925
      %v3016 = vpack.c.b16 %v2928, %v2927
      %v3017 = vpack.c.b16 %v2930, %v2929
      %v3018 = vpack.c.b16 %v2932, %v2931
      %v3019 = vpack.c.b16 %v2934, %v2933
      %v3020 = vpack.c.b16 %v2936, %v2935
      %v3021 = vpack.c.b16 %v2938, %v2937
      %v3022 = vpack.c.b16 %v2940, %v2939
      %v3023 = vpack.c.b16 %v2942, %v2941
      %v3024 = vpack.c.b16 %v2944, %v2943
      %v3025 = vpack.c.b16 %v2946, %v2945
      %v3026 = vpack.c.b16 %v2948, %v2947
      %v3027 = vpack.c.b16 %v2950, %v2949
      %v3028 = vpack.c.b16 %v2952, %v2951
      %v3029 = vpack.c.b16 %v2954, %v2953
      %v3030 = vpack.c.b16 %v2956, %v2955
      %v3031 = vpack.c.b16 %v2958, %v2957
      %v3032 = vpack.c.b16 %v2960, %v2959
      %3105 = vmatprep.subr.bf16.mxu0 0
      %3106 = vmatpush1.bf16.msra.mxu0 %v2968
      %3107 = vmatprep.subr.bf16.mxu0 0
      %3108 = vmatpush1.bf16.msra.mxu0 %v2967
      %3109 = vmatprep.subr.bf16.mxu0 0
      %3110 = vmatpush1.bf16.msra.mxu0 %v2966
      %3111 = vmatprep.subr.bf16.mxu0 0
      %3112 = vmatpush1.bf16.msra.mxu0 %v2965
      %3113 = vmatprep.subr.bf16.mxu0 0
      %3114 = vmatpush1.bf16.msra.mxu0 %v2964
      %3115 = vmatprep.subr.bf16.mxu0 0
      %3116 = vmatpush1.bf16.msra.mxu0 %v2963
      %3117 = vmatprep.subr.bf16.mxu0 0
      %3118 = vmatpush1.bf16.msra.mxu0 %v2962
      %3119 = vmatprep.subr.bf16.mxu0 0
      %3120 = vmatpush1.bf16.msra.mxu0 %v2961
      %3121 = vmatprep.subr.bf16.mxu0 0
      %3122 = vmatpush2.bf16.msra.mxu0 %v2976
      %3123 = vmatprep.subr.bf16.mxu0 0
      %3124 = vmatpush2.bf16.msra.mxu0 %v2975
      %3125 = vmatprep.subr.bf16.mxu0 0
      %3126 = vmatpush2.bf16.msra.mxu0 %v2974
      %3127 = vmatprep.subr.bf16.mxu0 0
      %3128 = vmatpush2.bf16.msra.mxu0 %v2973
      %3129 = vmatprep.subr.bf16.mxu0 0
      %3130 = vmatpush2.bf16.msra.mxu0 %v2972
      %3131 = vmatprep.subr.bf16.mxu0 0
      %3132 = vmatpush2.bf16.msra.mxu0 %v2971
      %3133 = vmatprep.subr.bf16.mxu0 0
      %3134 = vmatpush2.bf16.msra.mxu0 %v2970
      %3135 = vmatprep.subr.bf16.mxu0 0
      %3136 = vmatpush2.bf16.msra.mxu0 %v2969
      %3137 = vmatprep.mubr.bf16.mxu0 %v1284
      %3138 = vmatmul.mubr.bf16.gmra.mxu0 %v1192
      %v3139 = vpop.f32.mrf.mxu0
      %v3140 = vadd.f32 %v2671, %v3139
      %v3141 = vpop.f32.mrf.mxu0
      %v3142 = vpop.f32.mrf.mxu0
      %v3143 = vadd.f32 %v2671, %v3142
      %v3144 = vpop.f32.mrf.mxu0
      %3145 = vmatprep.mubr.bf16.mxu0 %v1296
      %3146 = vmatmul.mubr.bf16.gmra.mxu0 %v1193
      %v3147 = vpop.f32.mrf.mxu0
      %v3148 = vadd.f32 %v2671, %v3147
      %v3149 = vpop.f32.mrf.mxu0
      %v3150 = vpop.f32.mrf.mxu0
      %v3151 = vadd.f32 %v2671, %v3150
      %v3152 = vpop.f32.mrf.mxu0
      %3153 = vmatprep.mubr.bf16.mxu0 %v1308
      %3154 = vmatmul.mubr.bf16.gmra.mxu0 %v1194
      %v3155 = vpop.f32.mrf.mxu0
      %v3156 = vadd.f32 %v2671, %v3155
      %v3157 = vpop.f32.mrf.mxu0
      %v3158 = vpop.f32.mrf.mxu0
      %v3159 = vadd.f32 %v2671, %v3158
      %v3160 = vpop.f32.mrf.mxu0
      %3161 = vmatprep.mubr.bf16.mxu0 %v1320
      %3162 = vmatmul.mubr.bf16.gmra.mxu0 %v1195
      %v3163 = vpop.f32.mrf.mxu0
      %v3164 = vadd.f32 %v2671, %v3163
      %v3165 = vpop.f32.mrf.mxu0
      %v3166 = vpop.f32.mrf.mxu0
      %v3167 = vadd.f32 %v2671, %v3166
      %v3168 = vpop.f32.mrf.mxu0
      %3169 = vmatprep.mubr.bf16.mxu0 %v1332
      %3170 = vmatmul.mubr.bf16.gmra.mxu0 %v1196
      %v3171 = vpop.f32.mrf.mxu0
      %v3172 = vadd.f32 %v2671, %v3171
      %v3173 = vpop.f32.mrf.mxu0
      %v3174 = vpop.f32.mrf.mxu0
      %v3175 = vadd.f32 %v2671, %v3174
      %v3176 = vpop.f32.mrf.mxu0
      %3177 = vmatprep.mubr.bf16.mxu0 %v1344
      %3178 = vmatmul.mubr.bf16.gmra.mxu0 %v1197
      %v3179 = vpop.f32.mrf.mxu0
      %v3180 = vadd.f32 %v2671, %v3179
      %v3181 = vpop.f32.mrf.mxu0
      %v3182 = vpop.f32.mrf.mxu0
      %v3183 = vadd.f32 %v2671, %v3182
      %v3184 = vpop.f32.mrf.mxu0
      %3185 = vmatprep.mubr.bf16.mxu0 %v1356
      %3186 = vmatmul.mubr.bf16.gmra.mxu0 %v1198
      %v3187 = vpop.f32.mrf.mxu0
      %v3188 = vadd.f32 %v2671, %v3187
      %v3189 = vpop.f32.mrf.mxu0
      %v3190 = vpop.f32.mrf.mxu0
      %v3191 = vadd.f32 %v2671, %v3190
      %v3192 = vpop.f32.mrf.mxu0
      %3193 = vmatprep.mubr.bf16.mxu0 %v1368
      %3194 = vmatmul.mubr.bf16.gmra.mxu0 %v1199
      %v3195 = vpop.f32.mrf.mxu0
      %v3196 = vadd.f32 %v2671, %v3195
      %v3197 = vpop.f32.mrf.mxu0
      %v3198 = vpop.f32.mrf.mxu0
      %v3199 = vadd.f32 %v2671, %v3198
      %v3200 = vpop.f32.mrf.mxu0
      %3201 = vmatprep.mubr.bf16.mxu0 %v1380
      %3202 = vmatmul.mubr.bf16.gmra.mxu0 %v1200
      %v3203 = vpop.f32.mrf.mxu0
      %v3204 = vadd.f32 %v2671, %v3203
      %v3205 = vpop.f32.mrf.mxu0
      %v3206 = vpop.f32.mrf.mxu0
      %v3207 = vadd.f32 %v2671, %v3206
      %v3208 = vpop.f32.mrf.mxu0
      %3209 = vmatprep.mubr.bf16.mxu0 %v1392
      %3210 = vmatmul.mubr.bf16.gmra.mxu0 %v1201
      %v3211 = vpop.f32.mrf.mxu0
      %v3212 = vadd.f32 %v2671, %v3211
      %v3213 = vpop.f32.mrf.mxu0
      %v3214 = vpop.f32.mrf.mxu0
      %v3215 = vadd.f32 %v2671, %v3214
      %v3216 = vpop.f32.mrf.mxu0
      %3217 = vmatprep.mubr.bf16.mxu0 %v1404
      %3218 = vmatmul.mubr.bf16.gmra.mxu0 %v1202
      %v3219 = vpop.f32.mrf.mxu0
      %v3220 = vadd.f32 %v2671, %v3219
      %v3221 = vpop.f32.mrf.mxu0
      %v3222 = vpop.f32.mrf.mxu0
      %v3223 = vadd.f32 %v2671, %v3222
      %v3224 = vpop.f32.mrf.mxu0
      %3225 = vmatprep.mubr.bf16.mxu0 %v1416
      %3226 = vmatmul.mubr.bf16.gmra.mxu0 %v1203
      %v3227 = vpop.f32.mrf.mxu0
      %v3228 = vadd.f32 %v2671, %v3227
      %v3229 = vpop.f32.mrf.mxu0
      %v3230 = vpop.f32.mrf.mxu0
      %v3231 = vadd.f32 %v2671, %v3230
      %v3232 = vpop.f32.mrf.mxu0
      %3233 = vmatprep.mubr.bf16.mxu0 %v1428
      %3234 = vmatmul.mubr.bf16.gmra.mxu0 %v1204
      %v3235 = vpop.f32.mrf.mxu0
      %v3236 = vadd.f32 %v2671, %v3235
      %v3237 = vpop.f32.mrf.mxu0
      %v3238 = vpop.f32.mrf.mxu0
      %v3239 = vadd.f32 %v2671, %v3238
      %v3240 = vpop.f32.mrf.mxu0
      %3241 = vmatprep.mubr.bf16.mxu0 %v1440
      %3242 = vmatmul.mubr.bf16.gmra.mxu0 %v1205
      %v3243 = vpop.f32.mrf.mxu0
      %v3244 = vadd.f32 %v2671, %v3243
      %v3245 = vpop.f32.mrf.mxu0
      %v3246 = vpop.f32.mrf.mxu0
      %v3247 = vadd.f32 %v2671, %v3246
      %v3248 = vpop.f32.mrf.mxu0
      %3249 = vmatprep.mubr.bf16.mxu0 %v1452
      %3250 = vmatmul.mubr.bf16.gmra.mxu0 %v1206
      %v3251 = vpop.f32.mrf.mxu0
      %v3252 = vadd.f32 %v2671, %v3251
      %v3253 = vpop.f32.mrf.mxu0
      %v3254 = vpop.f32.mrf.mxu0
      %v3255 = vadd.f32 %v2671, %v3254
      %v3256 = vpop.f32.mrf.mxu0
      %3257 = vmatprep.mubr.bf16.mxu0 %v1464
      %3258 = vmatmul.mubr.bf16.gmra.mxu0 %v1207
      %v3259 = vpop.f32.mrf.mxu0
      %v3260 = vadd.f32 %v2671, %v3259
      %v3261 = vpop.f32.mrf.mxu0
      %v3262 = vpop.f32.mrf.mxu0
      %v3263 = vadd.f32 %v2671, %v3262
      %v3264 = vpop.f32.mrf.mxu0
      %3265 = vdwg.mxu0
      %3266 = vmatprep.subr.bf16.mxu0 0
      %3267 = vmatpush1.bf16.msra.mxu0 %v2984
      %3268 = vmatprep.subr.bf16.mxu0 0
      %3269 = vmatpush1.bf16.msra.mxu0 %v2983
      %3270 = vmatprep.subr.bf16.mxu0 0
      %3271 = vmatpush1.bf16.msra.mxu0 %v2982
      %3272 = vmatprep.subr.bf16.mxu0 0
      %3273 = vmatpush1.bf16.msra.mxu0 %v2981
      %3274 = vmatprep.subr.bf16.mxu0 0
      %3275 = vmatpush1.bf16.msra.mxu0 %v2980
      %3276 = vmatprep.subr.bf16.mxu0 0
      %3277 = vmatpush1.bf16.msra.mxu0 %v2979
      %3278 = vmatprep.subr.bf16.mxu0 0
      %3279 = vmatpush1.bf16.msra.mxu0 %v2978
      %3280 = vmatprep.subr.bf16.mxu0 0
      %3281 = vmatpush1.bf16.msra.mxu0 %v2977
      %3282 = vmatprep.subr.bf16.mxu0 0
      %3283 = vmatpush2.bf16.msra.mxu0 %v2992
      %3284 = vmatprep.subr.bf16.mxu0 0
      %3285 = vmatpush2.bf16.msra.mxu0 %v2991
      %3286 = vmatprep.subr.bf16.mxu0 0
      %3287 = vmatpush2.bf16.msra.mxu0 %v2990
      %3288 = vmatprep.subr.bf16.mxu0 0
      %3289 = vmatpush2.bf16.msra.mxu0 %v2989
      %3290 = vmatprep.subr.bf16.mxu0 0
      %3291 = vmatpush2.bf16.msra.mxu0 %v2988
      %3292 = vmatprep.subr.bf16.mxu0 0
      %3293 = vmatpush2.bf16.msra.mxu0 %v2987
      %3294 = vmatprep.subr.bf16.mxu0 0
      %3295 = vmatpush2.bf16.msra.mxu0 %v2986
      %3296 = vmatprep.subr.bf16.mxu0 0
      %3297 = vmatpush2.bf16.msra.mxu0 %v2985
      %3298 = vmatprep.mubr.bf16.mxu0 %v1658
      %3299 = vmatmul.mubr.bf16.gmra.mxu0 %v1532
      %v3300 = vpop.f32.mrf.mxu0
      %v3301 = vadd.f32 %v3140, %v3300
      %v3302 = vpop.f32.mrf.mxu0
      %v3303 = vpop.f32.mrf.mxu0
      %v3304 = vadd.f32 %v3143, %v3303
      %v3305 = vpop.f32.mrf.mxu0
      %3306 = vmatprep.mubr.bf16.mxu0 %v1659
      %3307 = vmatmul.mubr.bf16.gmra.mxu0 %v1535
      %v3308 = vpop.f32.mrf.mxu0
      %v3309 = vadd.f32 %v3148, %v3308
      %v3310 = vpop.f32.mrf.mxu0
      %v3311 = vpop.f32.mrf.mxu0
      %v3312 = vadd.f32 %v3151, %v3311
      %v3313 = vpop.f32.mrf.mxu0
      %3314 = vmatprep.mubr.bf16.mxu0 %v1660
      %3315 = vmatmul.mubr.bf16.gmra.mxu0 %v1538
      %v3316 = vpop.f32.mrf.mxu0
      %v3317 = vadd.f32 %v3156, %v3316
      %v3318 = vpop.f32.mrf.mxu0
      %v3319 = vpop.f32.mrf.mxu0
      %v3320 = vadd.f32 %v3159, %v3319
      %v3321 = vpop.f32.mrf.mxu0
      %3322 = vmatprep.mubr.bf16.mxu0 %v1661
      %3323 = vmatmul.mubr.bf16.gmra.mxu0 %v1541
      %v3324 = vpop.f32.mrf.mxu0
      %v3325 = vadd.f32 %v3164, %v3324
      %v3326 = vpop.f32.mrf.mxu0
      %v3327 = vpop.f32.mrf.mxu0
      %v3328 = vadd.f32 %v3167, %v3327
      %v3329 = vpop.f32.mrf.mxu0
      %3330 = vmatprep.mubr.bf16.mxu0 %v1662
      %3331 = vmatmul.mubr.bf16.gmra.mxu0 %v1544
      %v3332 = vpop.f32.mrf.mxu0
      %v3333 = vadd.f32 %v3172, %v3332
      %v3334 = vpop.f32.mrf.mxu0
      %v3335 = vpop.f32.mrf.mxu0
      %v3336 = vadd.f32 %v3175, %v3335
      %v3337 = vpop.f32.mrf.mxu0
      %3338 = vmatprep.mubr.bf16.mxu0 %v1663
      %3339 = vmatmul.mubr.bf16.gmra.mxu0 %v1547
      %v3340 = vpop.f32.mrf.mxu0
      %v3341 = vadd.f32 %v3180, %v3340
      %v3342 = vpop.f32.mrf.mxu0
      %v3343 = vpop.f32.mrf.mxu0
      %v3344 = vadd.f32 %v3183, %v3343
      %v3345 = vpop.f32.mrf.mxu0
      %3346 = vmatprep.mubr.bf16.mxu0 %v1664
      %3347 = vmatmul.mubr.bf16.gmra.mxu0 %v1550
      %v3348 = vpop.f32.mrf.mxu0
      %v3349 = vadd.f32 %v3188, %v3348
      %v3350 = vpop.f32.mrf.mxu0
      %v3351 = vpop.f32.mrf.mxu0
      %v3352 = vadd.f32 %v3191, %v3351
      %v3353 = vpop.f32.mrf.mxu0
      %3354 = vmatprep.mubr.bf16.mxu0 %v1665
      %3355 = vmatmul.mubr.bf16.gmra.mxu0 %v1553
      %v3356 = vpop.f32.mrf.mxu0
      %v3357 = vadd.f32 %v3196, %v3356
      %v3358 = vpop.f32.mrf.mxu0
      %v3359 = vpop.f32.mrf.mxu0
      %v3360 = vadd.f32 %v3199, %v3359
      %v3361 = vpop.f32.mrf.mxu0
      %3362 = vmatprep.mubr.bf16.mxu0 %v1666
      %3363 = vmatmul.mubr.bf16.gmra.mxu0 %v1556
      %v3364 = vpop.f32.mrf.mxu0
      %v3365 = vadd.f32 %v3204, %v3364
      %v3366 = vpop.f32.mrf.mxu0
      %v3367 = vpop.f32.mrf.mxu0
      %v3368 = vadd.f32 %v3207, %v3367
      %v3369 = vpop.f32.mrf.mxu0
      %3370 = vmatprep.mubr.bf16.mxu0 %v1667
      %3371 = vmatmul.mubr.bf16.gmra.mxu0 %v1559
      %v3372 = vpop.f32.mrf.mxu0
      %v3373 = vadd.f32 %v3212, %v3372
      %v3374 = vpop.f32.mrf.mxu0
      %v3375 = vpop.f32.mrf.mxu0
      %v3376 = vadd.f32 %v3215, %v3375
      %v3377 = vpop.f32.mrf.mxu0
      %3378 = vmatprep.mubr.bf16.mxu0 %v1668
      %3379 = vmatmul.mubr.bf16.gmra.mxu0 %v1562
      %v3380 = vpop.f32.mrf.mxu0
      %v3381 = vadd.f32 %v3220, %v3380
      %v3382 = vpop.f32.mrf.mxu0
      %v3383 = vpop.f32.mrf.mxu0
      %v3384 = vadd.f32 %v3223, %v3383
      %v3385 = vpop.f32.mrf.mxu0
      %3386 = vmatprep.mubr.bf16.mxu0 %v1669
      %3387 = vmatmul.mubr.bf16.gmra.mxu0 %v1565
      %v3388 = vpop.f32.mrf.mxu0
      %v3389 = vadd.f32 %v3228, %v3388
      %v3390 = vpop.f32.mrf.mxu0
      %v3391 = vpop.f32.mrf.mxu0
      %v3392 = vadd.f32 %v3231, %v3391
      %v3393 = vpop.f32.mrf.mxu0
      %3394 = vmatprep.mubr.bf16.mxu0 %v1670
      %3395 = vmatmul.mubr.bf16.gmra.mxu0 %v1568
      %v3396 = vpop.f32.mrf.mxu0
      %v3397 = vadd.f32 %v3236, %v3396
      %v3398 = vpop.f32.mrf.mxu0
      %v3399 = vpop.f32.mrf.mxu0
      %v3400 = vadd.f32 %v3239, %v3399
      %v3401 = vpop.f32.mrf.mxu0
      %3402 = vmatprep.mubr.bf16.mxu0 %v1671
      %3403 = vmatmul.mubr.bf16.gmra.mxu0 %v1571
      %v3404 = vpop.f32.mrf.mxu0
      %v3405 = vadd.f32 %v3244, %v3404
      %v3406 = vpop.f32.mrf.mxu0
      %v3407 = vpop.f32.mrf.mxu0
      %v3408 = vadd.f32 %v3247, %v3407
      %v3409 = vpop.f32.mrf.mxu0
      %3410 = vmatprep.mubr.bf16.mxu0 %v1672
      %3411 = vmatmul.mubr.bf16.gmra.mxu0 %v1574
      %v3412 = vpop.f32.mrf.mxu0
      %v3413 = vadd.f32 %v3252, %v3412
      %v3414 = vpop.f32.mrf.mxu0
      %v3415 = vpop.f32.mrf.mxu0
      %v3416 = vadd.f32 %v3255, %v3415
      %v3417 = vpop.f32.mrf.mxu0
      %3418 = vmatprep.mubr.bf16.mxu0 %v1673
      %3419 = vmatmul.mubr.bf16.gmra.mxu0 %v1577
      %v3420 = vpop.f32.mrf.mxu0
      %v3421 = vadd.f32 %v3260, %v3420
      %v3422 = vpop.f32.mrf.mxu0
      %v3423 = vpop.f32.mrf.mxu0
      %v3424 = vadd.f32 %v3263, %v3423
      %v3425 = vpop.f32.mrf.mxu0
      %3426 = vdwg.mxu0
      %3427 = vmatprep.subr.bf16.mxu0 0
      %3428 = vmatpush1.bf16.msra.mxu0 %v3000
      %3429 = vmatprep.subr.bf16.mxu0 0
      %3430 = vmatpush1.bf16.msra.mxu0 %v2999
      %3431 = vmatprep.subr.bf16.mxu0 0
      %3432 = vmatpush1.bf16.msra.mxu0 %v2998
      %3433 = vmatprep.subr.bf16.mxu0 0
      %3434 = vmatpush1.bf16.msra.mxu0 %v2997
      %3435 = vmatprep.subr.bf16.mxu0 0
      %3436 = vmatpush1.bf16.msra.mxu0 %v2996
      %3437 = vmatprep.subr.bf16.mxu0 0
      %3438 = vmatpush1.bf16.msra.mxu0 %v2995
      %3439 = vmatprep.subr.bf16.mxu0 0
      %3440 = vmatpush1.bf16.msra.mxu0 %v2994
      %3441 = vmatprep.subr.bf16.mxu0 0
      %3442 = vmatpush1.bf16.msra.mxu0 %v2993
      %3443 = vmatprep.subr.bf16.mxu0 0
      %3444 = vmatpush2.bf16.msra.mxu0 %v3008
      %3445 = vmatprep.subr.bf16.mxu0 0
      %3446 = vmatpush2.bf16.msra.mxu0 %v3007
      %3447 = vmatprep.subr.bf16.mxu0 0
      %3448 = vmatpush2.bf16.msra.mxu0 %v3006
      %3449 = vmatprep.subr.bf16.mxu0 0
      %3450 = vmatpush2.bf16.msra.mxu0 %v3005
      %3451 = vmatprep.subr.bf16.mxu0 0
      %3452 = vmatpush2.bf16.msra.mxu0 %v3004
      %3453 = vmatprep.subr.bf16.mxu0 0
      %3454 = vmatpush2.bf16.msra.mxu0 %v3003
      %3455 = vmatprep.subr.bf16.mxu0 0
      %3456 = vmatpush2.bf16.msra.mxu0 %v3002
      %3457 = vmatprep.subr.bf16.mxu0 0
      %3458 = vmatpush2.bf16.msra.mxu0 %v3001
      %3459 = vmatprep.mubr.bf16.mxu0 %v1996
      %3460 = vmatmul.mubr.bf16.gmra.mxu0 %v1749
      %v3461 = vpop.f32.mrf.mxu0
      %v3462 = vadd.f32 %v3301, %v3461
      %v3463 = vpop.f32.mrf.mxu0
      %v3464 = vpop.f32.mrf.mxu0
      %v3465 = vadd.f32 %v3304, %v3464
      %v3466 = vpop.f32.mrf.mxu0
      %3467 = vmatprep.mubr.bf16.mxu0 %v1999
      %3468 = vmatmul.mubr.bf16.gmra.mxu0 %v1761
      %v3469 = vpop.f32.mrf.mxu0
      %v3470 = vadd.f32 %v3309, %v3469
      %v3471 = vpop.f32.mrf.mxu0
      %v3472 = vpop.f32.mrf.mxu0
      %v3473 = vadd.f32 %v3312, %v3472
      %v3474 = vpop.f32.mrf.mxu0
      %3475 = vmatprep.mubr.bf16.mxu0 %v2002
      %3476 = vmatmul.mubr.bf16.gmra.mxu0 %v1773
      %v3477 = vpop.f32.mrf.mxu0
      %v3478 = vadd.f32 %v3317, %v3477
      %v3479 = vpop.f32.mrf.mxu0
      %v3480 = vpop.f32.mrf.mxu0
      %v3481 = vadd.f32 %v3320, %v3480
      %v3482 = vpop.f32.mrf.mxu0
      %3483 = vmatprep.mubr.bf16.mxu0 %v2005
      %3484 = vmatmul.mubr.bf16.gmra.mxu0 %v1785
      %v3485 = vpop.f32.mrf.mxu0
      %v3486 = vadd.f32 %v3325, %v3485
      %v3487 = vpop.f32.mrf.mxu0
      %v3488 = vpop.f32.mrf.mxu0
      %v3489 = vadd.f32 %v3328, %v3488
      %v3490 = vpop.f32.mrf.mxu0
      %3491 = vmatprep.mubr.bf16.mxu0 %v2008
      %3492 = vmatmul.mubr.bf16.gmra.mxu0 %v1797
      %v3493 = vpop.f32.mrf.mxu0
      %v3494 = vadd.f32 %v3333, %v3493
      %v3495 = vpop.f32.mrf.mxu0
      %v3496 = vpop.f32.mrf.mxu0
      %v3497 = vadd.f32 %v3336, %v3496
      %v3498 = vpop.f32.mrf.mxu0
      %3499 = vmatprep.mubr.bf16.mxu0 %v2011
      %3500 = vmatmul.mubr.bf16.gmra.mxu0 %v1809
      %v3501 = vpop.f32.mrf.mxu0
      %v3502 = vadd.f32 %v3341, %v3501
      %v3503 = vpop.f32.mrf.mxu0
      %v3504 = vpop.f32.mrf.mxu0
      %v3505 = vadd.f32 %v3344, %v3504
      %v3506 = vpop.f32.mrf.mxu0
      %3507 = vmatprep.mubr.bf16.mxu0 %v2014
      %3508 = vmatmul.mubr.bf16.gmra.mxu0 %v1821
      %v3509 = vpop.f32.mrf.mxu0
      %v3510 = vadd.f32 %v3349, %v3509
      %v3511 = vpop.f32.mrf.mxu0
      %v3512 = vpop.f32.mrf.mxu0
      %v3513 = vadd.f32 %v3352, %v3512
      %v3514 = vpop.f32.mrf.mxu0
      %3515 = vmatprep.mubr.bf16.mxu0 %v2017
      %3516 = vmatmul.mubr.bf16.gmra.mxu0 %v1833
      %v3517 = vpop.f32.mrf.mxu0
      %v3518 = vadd.f32 %v3357, %v3517
      %v3519 = vpop.f32.mrf.mxu0
      %v3520 = vpop.f32.mrf.mxu0
      %v3521 = vadd.f32 %v3360, %v3520
      %v3522 = vpop.f32.mrf.mxu0
      %3523 = vmatprep.mubr.bf16.mxu0 %v2020
      %3524 = vmatmul.mubr.bf16.gmra.mxu0 %v1845
      %v3525 = vpop.f32.mrf.mxu0
      %v3526 = vadd.f32 %v3365, %v3525
      %v3527 = vpop.f32.mrf.mxu0
      %v3528 = vpop.f32.mrf.mxu0
      %v3529 = vadd.f32 %v3368, %v3528
      %v3530 = vpop.f32.mrf.mxu0
      %3531 = vmatprep.mubr.bf16.mxu0 %v2023
      %3532 = vmatmul.mubr.bf16.gmra.mxu0 %v1857
      %v3533 = vpop.f32.mrf.mxu0
      %v3534 = vadd.f32 %v3373, %v3533
      %v3535 = vpop.f32.mrf.mxu0
      %v3536 = vpop.f32.mrf.mxu0
      %v3537 = vadd.f32 %v3376, %v3536
      %v3538 = vpop.f32.mrf.mxu0
      %3539 = vmatprep.mubr.bf16.mxu0 %v2026
      %3540 = vmatmul.mubr.bf16.gmra.mxu0 %v1869
      %v3541 = vpop.f32.mrf.mxu0
      %v3542 = vadd.f32 %v3381, %v3541
      %v3543 = vpop.f32.mrf.mxu0
      %v3544 = vpop.f32.mrf.mxu0
      %v3545 = vadd.f32 %v3384, %v3544
      %v3546 = vpop.f32.mrf.mxu0
      %3547 = vmatprep.mubr.bf16.mxu0 %v2029
      %3548 = vmatmul.mubr.bf16.gmra.mxu0 %v1881
      %v3549 = vpop.f32.mrf.mxu0
      %v3550 = vadd.f32 %v3389, %v3549
      %v3551 = vpop.f32.mrf.mxu0
      %v3552 = vpop.f32.mrf.mxu0
      %v3553 = vadd.f32 %v3392, %v3552
      %v3554 = vpop.f32.mrf.mxu0
      %3555 = vmatprep.mubr.bf16.mxu0 %v2032
      %3556 = vmatmul.mubr.bf16.gmra.mxu0 %v1893
      %v3557 = vpop.f32.mrf.mxu0
      %v3558 = vadd.f32 %v3397, %v3557
      %v3559 = vpop.f32.mrf.mxu0
      %v3560 = vpop.f32.mrf.mxu0
      %v3561 = vadd.f32 %v3400, %v3560
      %v3562 = vpop.f32.mrf.mxu0
      %3563 = vmatprep.mubr.bf16.mxu0 %v2035
      %3564 = vmatmul.mubr.bf16.gmra.mxu0 %v1905
      %v3565 = vpop.f32.mrf.mxu0
      %v3566 = vadd.f32 %v3405, %v3565
      %v3567 = vpop.f32.mrf.mxu0
      %v3568 = vpop.f32.mrf.mxu0
      %v3569 = vadd.f32 %v3408, %v3568
      %v3570 = vpop.f32.mrf.mxu0
      %3571 = vmatprep.mubr.bf16.mxu0 %v2038
      %3572 = vmatmul.mubr.bf16.gmra.mxu0 %v1917
      %v3573 = vpop.f32.mrf.mxu0
      %v3574 = vadd.f32 %v3413, %v3573
      %v3575 = vpop.f32.mrf.mxu0
      %v3576 = vpop.f32.mrf.mxu0
      %v3577 = vadd.f32 %v3416, %v3576
      %v3578 = vpop.f32.mrf.mxu0
      %3579 = vmatprep.mubr.bf16.mxu0 %v2041
      %3580 = vmatmul.mubr.bf16.gmra.mxu0 %v1929
      %v3581 = vpop.f32.mrf.mxu0
      %v3582 = vadd.f32 %v3421, %v3581
      %v3583 = vpop.f32.mrf.mxu0
      %v3584 = vpop.f32.mrf.mxu0
      %v3585 = vadd.f32 %v3424, %v3584
      %v3586 = vpop.f32.mrf.mxu0
      %3587 = vdwg.mxu0
      %3588 = vmatprep.subr.bf16.mxu0 0
      %3589 = vmatpush1.bf16.msra.mxu0 %v3016
      %3590 = vmatprep.subr.bf16.mxu0 0
      %3591 = vmatpush1.bf16.msra.mxu0 %v3015
      %3592 = vmatprep.subr.bf16.mxu0 0
      %3593 = vmatpush1.bf16.msra.mxu0 %v3014
      %3594 = vmatprep.subr.bf16.mxu0 0
      %3595 = vmatpush1.bf16.msra.mxu0 %v3013
      %3596 = vmatprep.subr.bf16.mxu0 0
      %3597 = vmatpush1.bf16.msra.mxu0 %v3012
      %3598 = vmatprep.subr.bf16.mxu0 0
      %3599 = vmatpush1.bf16.msra.mxu0 %v3011
      %3600 = vmatprep.subr.bf16.mxu0 0
      %3601 = vmatpush1.bf16.msra.mxu0 %v3010
      %3602 = vmatprep.subr.bf16.mxu0 0
      %3603 = vmatpush1.bf16.msra.mxu0 %v3009
      %3604 = vmatprep.subr.bf16.mxu0 0
      %3605 = vmatpush2.bf16.msra.mxu0 %v3024
      %3606 = vmatprep.subr.bf16.mxu0 0
      %3607 = vmatpush2.bf16.msra.mxu0 %v3023
      %3608 = vmatprep.subr.bf16.mxu0 0
      %3609 = vmatpush2.bf16.msra.mxu0 %v3022
      %3610 = vmatprep.subr.bf16.mxu0 0
      %3611 = vmatpush2.bf16.msra.mxu0 %v3021
      %3612 = vmatprep.subr.bf16.mxu0 0
      %3613 = vmatpush2.bf16.msra.mxu0 %v3020
      %3614 = vmatprep.subr.bf16.mxu0 0
      %3615 = vmatpush2.bf16.msra.mxu0 %v3019
      %3616 = vmatprep.subr.bf16.mxu0 0
      %3617 = vmatpush2.bf16.msra.mxu0 %v3018
      %3618 = vmatprep.subr.bf16.mxu0 0
      %3619 = vmatpush2.bf16.msra.mxu0 %v3017
      %3620 = vmatprep.mubr.bf16.mxu0 %v2213
      %3621 = vmatmul.mubr.bf16.gmra.mxu0 %v2122
      %v3622 = vpop.f32.mrf.mxu0
      %v3623 = vadd.f32 %v3462, %v3622
      %v3624 = vpop.f32.mrf.mxu0
      %v3625 = vpop.f32.mrf.mxu0
      %v3626 = vadd.f32 %v3465, %v3625
      %v3627 = vpop.f32.mrf.mxu0
      %3628 = vmatprep.mubr.bf16.mxu0 %v2225
      %3629 = vmatmul.mubr.bf16.gmra.mxu0 %v2123
      %v3630 = vpop.f32.mrf.mxu0
      %v3631 = vadd.f32 %v3470, %v3630
      %v3632 = vpop.f32.mrf.mxu0
      %v3633 = vpop.f32.mrf.mxu0
      %v3634 = vadd.f32 %v3473, %v3633
      %v3635 = vpop.f32.mrf.mxu0
      %3636 = vmatprep.mubr.bf16.mxu0 %v2237
      %3637 = vmatmul.mubr.bf16.gmra.mxu0 %v2124
      %v3638 = vpop.f32.mrf.mxu0
      %v3639 = vadd.f32 %v3478, %v3638
      %v3640 = vpop.f32.mrf.mxu0
      %v3641 = vpop.f32.mrf.mxu0
      %v3642 = vadd.f32 %v3481, %v3641
      %v3643 = vpop.f32.mrf.mxu0
      %3644 = vmatprep.mubr.bf16.mxu0 %v2249
      %3645 = vmatmul.mubr.bf16.gmra.mxu0 %v2125
      %v3646 = vpop.f32.mrf.mxu0
      %v3647 = vadd.f32 %v3486, %v3646
      %v3648 = vpop.f32.mrf.mxu0
      %v3649 = vpop.f32.mrf.mxu0
      %v3650 = vadd.f32 %v3489, %v3649
      %v3651 = vpop.f32.mrf.mxu0
      %3652 = vmatprep.mubr.bf16.mxu0 %v2261
      %3653 = vmatmul.mubr.bf16.gmra.mxu0 %v2126
      %v3654 = vpop.f32.mrf.mxu0
      %v3655 = vadd.f32 %v3494, %v3654
      %v3656 = vpop.f32.mrf.mxu0
      %v3657 = vpop.f32.mrf.mxu0
      %v3658 = vadd.f32 %v3497, %v3657
      %v3659 = vpop.f32.mrf.mxu0
      %3660 = vmatprep.mubr.bf16.mxu0 %v2273
      %3661 = vmatmul.mubr.bf16.gmra.mxu0 %v2127
      %v3662 = vpop.f32.mrf.mxu0
      %v3663 = vadd.f32 %v3502, %v3662
      %v3664 = vpop.f32.mrf.mxu0
      %v3665 = vpop.f32.mrf.mxu0
      %v3666 = vadd.f32 %v3505, %v3665
      %v3667 = vpop.f32.mrf.mxu0
      %3668 = vmatprep.mubr.bf16.mxu0 %v2285
      %3669 = vmatmul.mubr.bf16.gmra.mxu0 %v2128
      %v3670 = vpop.f32.mrf.mxu0
      %v3671 = vadd.f32 %v3510, %v3670
      %v3672 = vpop.f32.mrf.mxu0
      %v3673 = vpop.f32.mrf.mxu0
      %v3674 = vadd.f32 %v3513, %v3673
      %v3675 = vpop.f32.mrf.mxu0
      %3676 = vmatprep.mubr.bf16.mxu0 %v2297
      %3677 = vmatmul.mubr.bf16.gmra.mxu0 %v2129
      %v3678 = vpop.f32.mrf.mxu0
      %v3679 = vadd.f32 %v3518, %v3678
      %v3680 = vpop.f32.mrf.mxu0
      %v3681 = vpop.f32.mrf.mxu0
      %v3682 = vadd.f32 %v3521, %v3681
      %v3683 = vpop.f32.mrf.mxu0
      %3684 = vmatprep.mubr.bf16.mxu0 %v2309
      %3685 = vmatmul.mubr.bf16.gmra.mxu0 %v2130
      %v3686 = vpop.f32.mrf.mxu0
      %v3687 = vadd.f32 %v3526, %v3686
      %v3688 = vpop.f32.mrf.mxu0
      %v3689 = vpop.f32.mrf.mxu0
      %v3690 = vadd.f32 %v3529, %v3689
      %v3691 = vpop.f32.mrf.mxu0
      %3692 = vmatprep.mubr.bf16.mxu0 %v2321
      %3693 = vmatmul.mubr.bf16.gmra.mxu0 %v2131
      %v3694 = vpop.f32.mrf.mxu0
      %v3695 = vadd.f32 %v3534, %v3694
      %v3696 = vpop.f32.mrf.mxu0
      %v3697 = vpop.f32.mrf.mxu0
      %v3698 = vadd.f32 %v3537, %v3697
      %v3699 = vpop.f32.mrf.mxu0
      %3700 = vmatprep.mubr.bf16.mxu0 %v2333
      %3701 = vmatmul.mubr.bf16.gmra.mxu0 %v2132
      %v3702 = vpop.f32.mrf.mxu0
      %v3703 = vadd.f32 %v3542, %v3702
      %v3704 = vpop.f32.mrf.mxu0
      %v3705 = vpop.f32.mrf.mxu0
      %v3706 = vadd.f32 %v3545, %v3705
      %v3707 = vpop.f32.mrf.mxu0
      %3708 = vmatprep.mubr.bf16.mxu0 %v2345
      %3709 = vmatmul.mubr.bf16.gmra.mxu0 %v2133
      %v3710 = vpop.f32.mrf.mxu0
      %v3711 = vadd.f32 %v3550, %v3710
      %v3712 = vpop.f32.mrf.mxu0
      %v3713 = vpop.f32.mrf.mxu0
      %v3714 = vadd.f32 %v3553, %v3713
      %v3715 = vpop.f32.mrf.mxu0
      %3716 = vmatprep.mubr.bf16.mxu0 %v2357
      %3717 = vmatmul.mubr.bf16.gmra.mxu0 %v2134
      %v3718 = vpop.f32.mrf.mxu0
      %v3719 = vadd.f32 %v3558, %v3718
      %v3720 = vpop.f32.mrf.mxu0
      %v3721 = vpop.f32.mrf.mxu0
      %v3722 = vadd.f32 %v3561, %v3721
      %v3723 = vpop.f32.mrf.mxu0
      %3724 = vmatprep.mubr.bf16.mxu0 %v2369
      %3725 = vmatmul.mubr.bf16.gmra.mxu0 %v2135
      %v3726 = vpop.f32.mrf.mxu0
      %v3727 = vadd.f32 %v3566, %v3726
      %v3728 = vpop.f32.mrf.mxu0
      %v3729 = vpop.f32.mrf.mxu0
      %v3730 = vadd.f32 %v3569, %v3729
      %v3731 = vpop.f32.mrf.mxu0
      %3732 = vmatprep.mubr.bf16.mxu0 %v2381
      %3733 = vmatmul.mubr.bf16.gmra.mxu0 %v2136
      %v3734 = vpop.f32.mrf.mxu0
      %v3735 = vadd.f32 %v3574, %v3734
      %v3736 = vpop.f32.mrf.mxu0
      %v3737 = vpop.f32.mrf.mxu0
      %v3738 = vadd.f32 %v3577, %v3737
      %v3739 = vpop.f32.mrf.mxu0
      %3740 = vmatprep.mubr.bf16.mxu0 %v2393
      %3741 = vmatmul.mubr.bf16.gmra.mxu0 %v2137
      %v3742 = vpop.f32.mrf.mxu0
      %v3743 = vadd.f32 %v3582, %v3742
      %v3744 = vpop.f32.mrf.mxu0
      %v3745 = vpop.f32.mrf.mxu0
      %v3746 = vadd.f32 %v3585, %v3745
      %v3747 = vpop.f32.mrf.mxu0
      %3748 = vdwg.mxu0
      %3749 = vmatprep.subr.bf16.mxu0 0
      %3750 = vmatpush1.bf16.msra.mxu0 %v3032
      %3751 = vmatprep.subr.bf16.mxu0 0
      %3752 = vmatpush1.bf16.msra.mxu0 %v3031
      %3753 = vmatprep.subr.bf16.mxu0 0
      %3754 = vmatpush1.bf16.msra.mxu0 %v3030
      %3755 = vmatprep.subr.bf16.mxu0 0
      %3756 = vmatpush1.bf16.msra.mxu0 %v3029
      %3757 = vmatprep.subr.bf16.mxu0 0
      %3758 = vmatpush1.bf16.msra.mxu0 %v3028
      %3759 = vmatprep.subr.bf16.mxu0 0
      %3760 = vmatpush1.bf16.msra.mxu0 %v3027
      %3761 = vmatprep.subr.bf16.mxu0 0
      %3762 = vmatpush1.bf16.msra.mxu0 %v3026
      %3763 = vmatprep.subr.bf16.mxu0 0
      %3764 = vmatpush1.bf16.msra.mxu0 %v3025
      %3765 = vmatprep.subr.bf16.mxu0 0
      %3766 = vmatpush2.bf16.msra.mxu0 0
      %3767 = vmatprep.subr.bf16.mxu0 0
      %3768 = vmatpush2.bf16.msra.mxu0 0
      %3769 = vmatprep.subr.bf16.mxu0 0
      %3770 = vmatpush2.bf16.msra.mxu0 0
      %3771 = vmatprep.subr.bf16.mxu0 0
      %3772 = vmatpush2.bf16.msra.mxu0 0
      %3773 = vmatprep.subr.bf16.mxu0 0
      %3774 = vmatpush2.bf16.msra.mxu0 0
      %3775 = vmatprep.subr.bf16.mxu0 0
      %3776 = vmatpush2.bf16.msra.mxu0 0
      %3777 = vmatprep.subr.bf16.mxu0 0
      %3778 = vmatpush2.bf16.msra.mxu0 0
      %3779 = vmatprep.subr.bf16.mxu0 0
      %3780 = vmatpush2.bf16.msra.mxu0 0
      %3781 = vmatprep.mubr.bf16.mxu0 0
      %3782 = vmatmul.mubr.bf16.gmra.mxu0 %v2460
      %v3783 = vpop.f32.mrf.mxu0
      %v3784 = vadd.f32 %v3623, %v3783
      %v3785 = vpop.f32.mrf.mxu0
      %v3786 = vpop.f32.mrf.mxu0
      %v3787 = vadd.f32 %v3626, %v3786
      %v3788 = vpop.f32.mrf.mxu0
      %3789 = vmatprep.mubr.bf16.mxu0 0
      %3790 = vmatmul.mubr.bf16.gmra.mxu0 %v2463
      %v3791 = vpop.f32.mrf.mxu0
      %v3792 = vadd.f32 %v3631, %v3791
      %v3793 = vpop.f32.mrf.mxu0
      %v3794 = vpop.f32.mrf.mxu0
      %v3795 = vadd.f32 %v3634, %v3794
      %v3796 = vpop.f32.mrf.mxu0
      %3797 = vmatprep.mubr.bf16.mxu0 0
      %3798 = vmatmul.mubr.bf16.gmra.mxu0 %v2466
      %v3799 = vpop.f32.mrf.mxu0
      %v3800 = vadd.f32 %v3639, %v3799
      %v3801 = vpop.f32.mrf.mxu0
      %v3802 = vpop.f32.mrf.mxu0
      %v3803 = vadd.f32 %v3642, %v3802
      %v3804 = vpop.f32.mrf.mxu0
      %3805 = vmatprep.mubr.bf16.mxu0 0
      %3806 = vmatmul.mubr.bf16.gmra.mxu0 %v2469
      %v3807 = vpop.f32.mrf.mxu0
      %v3808 = vadd.f32 %v3647, %v3807
      %v3809 = vpop.f32.mrf.mxu0
      %v3810 = vpop.f32.mrf.mxu0
      %v3811 = vadd.f32 %v3650, %v3810
      %v3812 = vpop.f32.mrf.mxu0
      %3813 = vmatprep.mubr.bf16.mxu0 0
      %3814 = vmatmul.mubr.bf16.gmra.mxu0 %v2472
      %v3815 = vpop.f32.mrf.mxu0
      %v3816 = vadd.f32 %v3655, %v3815
      %v3817 = vpop.f32.mrf.mxu0
      %v3818 = vpop.f32.mrf.mxu0
      %v3819 = vadd.f32 %v3658, %v3818
      %v3820 = vpop.f32.mrf.mxu0
      %3821 = vmatprep.mubr.bf16.mxu0 0
      %3822 = vmatmul.mubr.bf16.gmra.mxu0 %v2475
      %v3823 = vpop.f32.mrf.mxu0
      %v3824 = vadd.f32 %v3663, %v3823
      %v3825 = vpop.f32.mrf.mxu0
      %v3826 = vpop.f32.mrf.mxu0
      %v3827 = vadd.f32 %v3666, %v3826
      %v3828 = vpop.f32.mrf.mxu0
      %3829 = vmatprep.mubr.bf16.mxu0 0
      %3830 = vmatmul.mubr.bf16.gmra.mxu0 %v2478
      %v3831 = vpop.f32.mrf.mxu0
      %v3832 = vadd.f32 %v3671, %v3831
      %v3833 = vpop.f32.mrf.mxu0
      %v3834 = vpop.f32.mrf.mxu0
      %v3835 = vadd.f32 %v3674, %v3834
      %v3836 = vpop.f32.mrf.mxu0
      %3837 = vmatprep.mubr.bf16.mxu0 0
      %3838 = vmatmul.mubr.bf16.gmra.mxu0 %v2481
      %v3839 = vpop.f32.mrf.mxu0
      %v3840 = vadd.f32 %v3679, %v3839
      %v3841 = vpop.f32.mrf.mxu0
      %v3842 = vpop.f32.mrf.mxu0
      %v3843 = vadd.f32 %v3682, %v3842
      %v3844 = vpop.f32.mrf.mxu0
      %3845 = vmatprep.mubr.bf16.mxu0 0
      %3846 = vmatmul.mubr.bf16.gmra.mxu0 %v2484
      %v3847 = vpop.f32.mrf.mxu0
      %v3848 = vadd.f32 %v3687, %v3847
      %v3849 = vpop.f32.mrf.mxu0
      %v3850 = vpop.f32.mrf.mxu0
      %v3851 = vadd.f32 %v3690, %v3850
      %v3852 = vpop.f32.mrf.mxu0
      %3853 = vmatprep.mubr.bf16.mxu0 0
      %3854 = vmatmul.mubr.bf16.gmra.mxu0 %v2487
      %v3855 = vpop.f32.mrf.mxu0
      %v3856 = vadd.f32 %v3695, %v3855
      %v3857 = vpop.f32.mrf.mxu0
      %v3858 = vpop.f32.mrf.mxu0
      %v3859 = vadd.f32 %v3698, %v3858
      %v3860 = vpop.f32.mrf.mxu0
      %3861 = vmatprep.mubr.bf16.mxu0 0
      %3862 = vmatmul.mubr.bf16.gmra.mxu0 %v2490
      %v3863 = vpop.f32.mrf.mxu0
      %v3864 = vadd.f32 %v3703, %v3863
      %v3865 = vpop.f32.mrf.mxu0
      %v3866 = vpop.f32.mrf.mxu0
      %v3867 = vadd.f32 %v3706, %v3866
      %v3868 = vpop.f32.mrf.mxu0
      %3869 = vmatprep.mubr.bf16.mxu0 0
      %3870 = vmatmul.mubr.bf16.gmra.mxu0 %v2493
      %v3871 = vpop.f32.mrf.mxu0
      %v3872 = vadd.f32 %v3711, %v3871
      %v3873 = vpop.f32.mrf.mxu0
      %v3874 = vpop.f32.mrf.mxu0
      %v3875 = vadd.f32 %v3714, %v3874
      %v3876 = vpop.f32.mrf.mxu0
      %3877 = vmatprep.mubr.bf16.mxu0 0
      %3878 = vmatmul.mubr.bf16.gmra.mxu0 %v2496
      %v3879 = vpop.f32.mrf.mxu0
      %v3880 = vadd.f32 %v3719, %v3879
      %v3881 = vpop.f32.mrf.mxu0
      %v3882 = vpop.f32.mrf.mxu0
      %v3883 = vadd.f32 %v3722, %v3882
      %v3884 = vpop.f32.mrf.mxu0
      %3885 = vmatprep.mubr.bf16.mxu0 0
      %3886 = vmatmul.mubr.bf16.gmra.mxu0 %v2499
      %v3887 = vpop.f32.mrf.mxu0
      %v3888 = vadd.f32 %v3727, %v3887
      %v3889 = vpop.f32.mrf.mxu0
      %v3890 = vpop.f32.mrf.mxu0
      %v3891 = vadd.f32 %v3730, %v3890
      %v3892 = vpop.f32.mrf.mxu0
      %3893 = vmatprep.mubr.bf16.mxu0 0
      %3894 = vmatmul.mubr.bf16.gmra.mxu0 %v2502
      %v3895 = vpop.f32.mrf.mxu0
      %v3896 = vadd.f32 %v3735, %v3895
      %v3897 = vpop.f32.mrf.mxu0
      %v3898 = vpop.f32.mrf.mxu0
      %v3899 = vadd.f32 %v3738, %v3898
      %v3900 = vpop.f32.mrf.mxu0
      %3901 = vmatprep.mubr.bf16.mxu0 0
      %3902 = vmatmul.mubr.bf16.gmra.mxu0 %v2505
      %v3903 = vpop.f32.mrf.mxu0
      %v3904 = vadd.f32 %v3743, %v3903
      %v3905 = vpop.f32.mrf.mxu0
      %v3906 = vpop.f32.mrf.mxu0
      %v3907 = vadd.f32 %v3746, %v3906
      %v3908 = vpop.f32.mrf.mxu0
      %3909 = vdwg.mxu0
      %v3910 = vmax.f32 %v3784, 0.0
      %v3911 = vmax.f32 %v3787, 0.0
      %v3912 = vmax.f32 %v3792, 0.0
      %v3913 = vmax.f32 %v3795, 0.0
      %v3914 = vmax.f32 %v3800, 0.0
      %v3915 = vmax.f32 %v3803, 0.0
      %v3916 = vmax.f32 %v3808, 0.0
      %v3917 = vmax.f32 %v3811, 0.0
      %v3918 = vmax.f32 %v3816, 0.0
      %v3919 = vmax.f32 %v3819, 0.0
      %v3920 = vmax.f32 %v3824, 0.0
      %v3921 = vmax.f32 %v3827, 0.0
      %v3922 = vmax.f32 %v3832, 0.0
      %v3923 = vmax.f32 %v3835, 0.0
      %v3924 = vmax.f32 %v3840, 0.0
      %v3925 = vmax.f32 %v3843, 0.0
      %v3926 = vmax.f32 %v3848, 0.0
      %v3927 = vmax.f32 %v3851, 0.0
      %v3928 = vmax.f32 %v3856, 0.0
      %v3929 = vmax.f32 %v3859, 0.0
      %v3930 = vmax.f32 %v3864, 0.0
      %v3931 = vmax.f32 %v3867, 0.0
      %v3932 = vmax.f32 %v3872, 0.0
      %v3933 = vmax.f32 %v3875, 0.0
      %v3934 = vmax.f32 %v3880, 0.0
      %v3935 = vmax.f32 %v3883, 0.0
      %v3936 = vmax.f32 %v3888, 0.0
      %v3937 = vmax.f32 %v3891, 0.0
      %v3938 = vmax.f32 %v3896, 0.0
      %v3939 = vmax.f32 %v3899, 0.0
      %v3940 = vmax.f32 %v3904, 0.0
      %v3941 = vmax.f32 %v3907, 0.0
      %3942 = vst [vmem:[#allocation3] sm:$0xf] 0
      %3943 = vst [vmem:[#allocation3 + $0x4] sm:$0xf] 0
      %3944 = vst [vmem:[#allocation3 + $0x8] sm:$0x1] 0
      %s3945 = scalar_lea.vmem [#allocation3], 204
      %3946 = vst [vmem:[%s3945] sm:$0xf] 0
      %3947 = vst [vmem:[%s3945 + $0x4] sm:$0xf] 0
      %3948 = vst [vmem:[%s3945 + $0x8] sm:$0x1] 0
      %v3949 = vld [vmem:[#allocation3] sm:$0x1]
      %v3950 = vsel %vm235, 0, %v3949
      %3951 = vst [vmem:[#allocation3] sm:$0x1] %v3950
      %v3952 = vld [vmem:[#allocation3 + $0xc] sm:$0x1]
      %v3953 = vsel %vm235, 0, %v3952
      %3954 = vst [vmem:[#allocation3 + $0xc] sm:$0x1] %v3953
      %v3955 = vld [vmem:[#allocation3 + $0x18] sm:$0x1]
      %v3956 = vsel %vm235, 0, %v3955
      %3957 = vst [vmem:[#allocation3 + $0x18] sm:$0x1] %v3956
      %v3958 = vld [vmem:[#allocation3 + $0x24] sm:$0x1]
      %v3959 = vsel %vm235, 0, %v3958
      %3960 = vst [vmem:[#allocation3 + $0x24] sm:$0x1] %v3959
      %v3961 = vld [vmem:[#allocation3 + $0x30] sm:$0x1]
      %v3962 = vsel %vm235, 0, %v3961
      %3963 = vst [vmem:[#allocation3 + $0x30] sm:$0x1] %v3962
      %v3964 = vld [vmem:[#allocation3 + $0x3c] sm:$0x1]
      %v3965 = vsel %vm235, 0, %v3964
      %3966 = vst [vmem:[#allocation3 + $0x3c] sm:$0x1] %v3965
      %v3967 = vld [vmem:[#allocation3 + $0x48] sm:$0x1]
      %v3968 = vsel %vm235, 0, %v3967
      %3969 = vst [vmem:[#allocation3 + $0x48] sm:$0x1] %v3968
      %v3970 = vld [vmem:[#allocation3 + $0x54] sm:$0x1]
      %v3971 = vsel %vm235, 0, %v3970
      %3972 = vst [vmem:[#allocation3 + $0x54] sm:$0x1] %v3971
      %v3973 = vld [vmem:[#allocation3 + $0x60] sm:$0x1]
      %v3974 = vsel %vm235, 0, %v3973
      %3975 = vst [vmem:[#allocation3 + $0x60] sm:$0x1] %v3974
      %v3976 = vld [vmem:[#allocation3 + $0x6c] sm:$0x1]
      %v3977 = vsel %vm235, 0, %v3976
      %3978 = vst [vmem:[#allocation3 + $0x6c] sm:$0x1] %v3977
      %v3979 = vld [vmem:[#allocation3 + $0x78] sm:$0x1]
      %v3980 = vsel %vm235, 0, %v3979
      %3981 = vst [vmem:[#allocation3 + $0x78] sm:$0x1] %v3980
      %v3982 = vld [vmem:[#allocation3 + $0x84] sm:$0x1]
      %v3983 = vsel %vm235, 0, %v3982
      %3984 = vst [vmem:[#allocation3 + $0x84] sm:$0x1] %v3983
      %v3985 = vld [vmem:[#allocation3 + $0x90] sm:$0x1]
      %v3986 = vsel %vm235, 0, %v3985
      %3987 = vst [vmem:[#allocation3 + $0x90] sm:$0x1] %v3986
      %v3988 = vld [vmem:[#allocation3 + $0x9c] sm:$0x1]
      %v3989 = vsel %vm235, 0, %v3988
      %3990 = vst [vmem:[#allocation3 + $0x9c] sm:$0x1] %v3989
      %v3991 = vld [vmem:[#allocation3 + $0xa8] sm:$0x1]
      %v3992 = vsel %vm235, 0, %v3991
      %3993 = vst [vmem:[#allocation3 + $0xa8] sm:$0x1] %v3992
      %v3994 = vld [vmem:[#allocation3 + $0xb4] sm:$0x1]
      %v3995 = vsel %vm235, 0, %v3994
      %3996 = vst [vmem:[#allocation3 + $0xb4] sm:$0x1] %v3995
      %v3997 = vld [vmem:[#allocation3 + $0xc0] sm:$0x1]
      %v3998 = vsel %vm235, 0, %v3997
      %3999 = vst [vmem:[#allocation3 + $0xc0] sm:$0x1] %v3998
      %v4000 = vld [vmem:[#allocation3 + $0xcc] sm:$0x1]
      %v4001 = vsel %vm235, 0, %v4000
      %4002 = vst [vmem:[#allocation3 + $0xcc] sm:$0x1] %v4001
      %v4003 = vld [vmem:[#allocation3 + $0x8] sm:$0x1]
      %v4004 = vsel %vm291, 0, %v4003
      %4005 = vst [vmem:[#allocation3 + $0x8] sm:$0x1] %v4004
      %v4006 = vld [vmem:[#allocation3 + $0x14] sm:$0x1]
      %v4007 = vsel %vm291, 0, %v4006
      %4008 = vst [vmem:[#allocation3 + $0x14] sm:$0x1] %v4007
      %v4009 = vld [vmem:[#allocation3 + $0x20] sm:$0x1]
      %v4010 = vsel %vm291, 0, %v4009
      %4011 = vst [vmem:[#allocation3 + $0x20] sm:$0x1] %v4010
      %v4012 = vld [vmem:[#allocation3 + $0x2c] sm:$0x1]
      %v4013 = vsel %vm291, 0, %v4012
      %4014 = vst [vmem:[#allocation3 + $0x2c] sm:$0x1] %v4013
      %v4015 = vld [vmem:[#allocation3 + $0x38] sm:$0x1]
      %v4016 = vsel %vm291, 0, %v4015
      %4017 = vst [vmem:[#allocation3 + $0x38] sm:$0x1] %v4016
      %v4018 = vld [vmem:[#allocation3 + $0x44] sm:$0x1]
      %v4019 = vsel %vm291, 0, %v4018
      %4020 = vst [vmem:[#allocation3 + $0x44] sm:$0x1] %v4019
      %v4021 = vld [vmem:[#allocation3 + $0x50] sm:$0x1]
      %v4022 = vsel %vm291, 0, %v4021
      %4023 = vst [vmem:[#allocation3 + $0x50] sm:$0x1] %v4022
      %v4024 = vld [vmem:[#allocation3 + $0x5c] sm:$0x1]
      %v4025 = vsel %vm291, 0, %v4024
      %4026 = vst [vmem:[#allocation3 + $0x5c] sm:$0x1] %v4025
      %v4027 = vld [vmem:[#allocation3 + $0x68] sm:$0x1]
      %v4028 = vsel %vm291, 0, %v4027
      %4029 = vst [vmem:[#allocation3 + $0x68] sm:$0x1] %v4028
      %v4030 = vld [vmem:[#allocation3 + $0x74] sm:$0x1]
      %v4031 = vsel %vm291, 0, %v4030
      %4032 = vst [vmem:[#allocation3 + $0x74] sm:$0x1] %v4031
      %v4033 = vld [vmem:[#allocation3 + $0x80] sm:$0x1]
      %v4034 = vsel %vm291, 0, %v4033
      %4035 = vst [vmem:[#allocation3 + $0x80] sm:$0x1] %v4034
      %v4036 = vld [vmem:[#allocation3 + $0x8c] sm:$0x1]
      %v4037 = vsel %vm291, 0, %v4036
      %4038 = vst [vmem:[#allocation3 + $0x8c] sm:$0x1] %v4037
      %v4039 = vld [vmem:[#allocation3 + $0x98] sm:$0x1]
      %v4040 = vsel %vm291, 0, %v4039
      %4041 = vst [vmem:[#allocation3 + $0x98] sm:$0x1] %v4040
      %v4042 = vld [vmem:[#allocation3 + $0xa4] sm:$0x1]
      %v4043 = vsel %vm291, 0, %v4042
      %4044 = vst [vmem:[#allocation3 + $0xa4] sm:$0x1] %v4043
      %v4045 = vld [vmem:[#allocation3 + $0xb0] sm:$0x1]
      %v4046 = vsel %vm291, 0, %v4045
      %4047 = vst [vmem:[#allocation3 + $0xb0] sm:$0x1] %v4046
      %v4048 = vld [vmem:[#allocation3 + $0xbc] sm:$0x1]
      %v4049 = vsel %vm291, 0, %v4048
      %4050 = vst [vmem:[#allocation3 + $0xbc] sm:$0x1] %v4049
      %v4051 = vld [vmem:[#allocation3 + $0xc8] sm:$0x1]
      %v4052 = vsel %vm291, 0, %v4051
      %4053 = vst [vmem:[#allocation3 + $0xc8] sm:$0x1] %v4052
      %v4054 = vld [vmem:[#allocation3 + $0xd4] sm:$0x1]
      %v4055 = vsel %vm291, 0, %v4054
      %4056 = vst [vmem:[#allocation3 + $0xd4] sm:$0x1] %v4055
      %s4057 = scalar_lea.vmem [#allocation3], 12
      %v4058 = vld [vmem:[%s4057] sm:$0xf]
      %v4059 = vsel %vm348, 0, %v4058
      %4060 = vst [vmem:[%s4057] sm:$0xf] %v4059
      %4061 = vst.msk [vmem:[%s4057 + $0x4] sm:$0xf] %vm352, 0
      %v4062 = vld [vmem:[%s4057 + $0x8] sm:$0x1]
      %v4063 = vsel %vm355, 0, %v4062
      %4064 = vst [vmem:[%s4057 + $0x8] sm:$0x1] %v4063
      %v4065 = vld [vmem:[%s4057 + $0xc] sm:$0xf]
      %v4066 = vsel %vm348, 0, %v4065
      %4067 = vst [vmem:[%s4057 + $0xc] sm:$0xf] %v4066
      %4068 = vst.msk [vmem:[%s4057 + $0x10] sm:$0xf] %vm352, 0
      %v4069 = vld [vmem:[%s4057 + $0x14] sm:$0x1]
      %v4070 = vsel %vm355, 0, %v4069
      %4071 = vst [vmem:[%s4057 + $0x14] sm:$0x1] %v4070
      %v4072 = vld [vmem:[%s4057 + $0x18] sm:$0xf]
      %v4073 = vsel %vm348, 0, %v4072
      %4074 = vst [vmem:[%s4057 + $0x18] sm:$0xf] %v4073
      %4075 = vst.msk [vmem:[%s4057 + $0x1c] sm:$0xf] %vm352, 0
      %v4076 = vld [vmem:[%s4057 + $0x20] sm:$0x1]
      %v4077 = vsel %vm355, 0, %v4076
      %4078 = vst [vmem:[%s4057 + $0x20] sm:$0x1] %v4077
      %v4079 = vld [vmem:[%s4057 + $0x24] sm:$0xf]
      %v4080 = vsel %vm348, 0, %v4079
      %4081 = vst [vmem:[%s4057 + $0x24] sm:$0xf] %v4080
      %4082 = vst.msk [vmem:[%s4057 + $0x28] sm:$0xf] %vm352, 0
      %v4083 = vld [vmem:[%s4057 + $0x2c] sm:$0x1]
      %v4084 = vsel %vm355, 0, %v4083
      %4085 = vst [vmem:[%s4057 + $0x2c] sm:$0x1] %v4084
      %v4086 = vld [vmem:[%s4057 + $0x30] sm:$0xf]
      %v4087 = vsel %vm348, 0, %v4086
      %4088 = vst [vmem:[%s4057 + $0x30] sm:$0xf] %v4087
      %4089 = vst.msk [vmem:[%s4057 + $0x34] sm:$0xf] %vm352, 0
      %v4090 = vld [vmem:[%s4057 + $0x38] sm:$0x1]
      %v4091 = vsel %vm355, 0, %v4090
      %4092 = vst [vmem:[%s4057 + $0x38] sm:$0x1] %v4091
      %v4093 = vld [vmem:[%s4057 + $0x3c] sm:$0xf]
      %v4094 = vsel %vm348, 0, %v4093
      %4095 = vst [vmem:[%s4057 + $0x3c] sm:$0xf] %v4094
      %4096 = vst.msk [vmem:[%s4057 + $0x40] sm:$0xf] %vm352, 0
      %v4097 = vld [vmem:[%s4057 + $0x44] sm:$0x1]
      %v4098 = vsel %vm355, 0, %v4097
      %4099 = vst [vmem:[%s4057 + $0x44] sm:$0x1] %v4098
      %v4100 = vld [vmem:[%s4057 + $0x48] sm:$0xf]
      %v4101 = vsel %vm348, 0, %v4100
      %4102 = vst [vmem:[%s4057 + $0x48] sm:$0xf] %v4101
      %4103 = vst.msk [vmem:[%s4057 + $0x4c] sm:$0xf] %vm352, 0
      %v4104 = vld [vmem:[%s4057 + $0x50] sm:$0x1]
      %v4105 = vsel %vm355, 0, %v4104
      %4106 = vst [vmem:[%s4057 + $0x50] sm:$0x1] %v4105
      %v4107 = vld [vmem:[%s4057 + $0x54] sm:$0xf]
      %v4108 = vsel %vm348, 0, %v4107
      %4109 = vst [vmem:[%s4057 + $0x54] sm:$0xf] %v4108
      %4110 = vst.msk [vmem:[%s4057 + $0x58] sm:$0xf] %vm352, 0
      %v4111 = vld [vmem:[%s4057 + $0x5c] sm:$0x1]
      %v4112 = vsel %vm355, 0, %v4111
      %4113 = vst [vmem:[%s4057 + $0x5c] sm:$0x1] %v4112
      %v4114 = vld [vmem:[%s4057 + $0x60] sm:$0xf]
      %v4115 = vsel %vm348, 0, %v4114
      %4116 = vst [vmem:[%s4057 + $0x60] sm:$0xf] %v4115
      %4117 = vst.msk [vmem:[%s4057 + $0x64] sm:$0xf] %vm352, 0
      %v4118 = vld [vmem:[%s4057 + $0x68] sm:$0x1]
      %v4119 = vsel %vm355, 0, %v4118
      %4120 = vst [vmem:[%s4057 + $0x68] sm:$0x1] %v4119
      %v4121 = vld [vmem:[%s4057 + $0x6c] sm:$0xf]
      %v4122 = vsel %vm348, 0, %v4121
      %4123 = vst [vmem:[%s4057 + $0x6c] sm:$0xf] %v4122
      %4124 = vst.msk [vmem:[%s4057 + $0x70] sm:$0xf] %vm352, 0
      %v4125 = vld [vmem:[%s4057 + $0x74] sm:$0x1]
      %v4126 = vsel %vm355, 0, %v4125
      %4127 = vst [vmem:[%s4057 + $0x74] sm:$0x1] %v4126
      %v4128 = vld [vmem:[%s4057 + $0x78] sm:$0xf]
      %v4129 = vsel %vm348, 0, %v4128
      %4130 = vst [vmem:[%s4057 + $0x78] sm:$0xf] %v4129
      %4131 = vst.msk [vmem:[%s4057 + $0x7c] sm:$0xf] %vm352, 0
      %v4132 = vld [vmem:[%s4057 + $0x80] sm:$0x1]
      %v4133 = vsel %vm355, 0, %v4132
      %4134 = vst [vmem:[%s4057 + $0x80] sm:$0x1] %v4133
      %v4135 = vld [vmem:[%s4057 + $0x84] sm:$0xf]
      %v4136 = vsel %vm348, 0, %v4135
      %4137 = vst [vmem:[%s4057 + $0x84] sm:$0xf] %v4136
      %4138 = vst.msk [vmem:[%s4057 + $0x88] sm:$0xf] %vm352, 0
      %v4139 = vld [vmem:[%s4057 + $0x8c] sm:$0x1]
      %v4140 = vsel %vm355, 0, %v4139
      %4141 = vst [vmem:[%s4057 + $0x8c] sm:$0x1] %v4140
      %v4142 = vld [vmem:[%s4057 + $0x90] sm:$0xf]
      %v4143 = vsel %vm348, 0, %v4142
      %4144 = vst [vmem:[%s4057 + $0x90] sm:$0xf] %v4143
      %4145 = vst.msk [vmem:[%s4057 + $0x94] sm:$0xf] %vm352, 0
      %v4146 = vld [vmem:[%s4057 + $0x98] sm:$0x1]
      %v4147 = vsel %vm355, 0, %v4146
      %4148 = vst [vmem:[%s4057 + $0x98] sm:$0x1] %v4147
      %v4149 = vld [vmem:[%s4057 + $0x9c] sm:$0xf]
      %v4150 = vsel %vm348, 0, %v4149
      %4151 = vst [vmem:[%s4057 + $0x9c] sm:$0xf] %v4150
      %4152 = vst.msk [vmem:[%s4057 + $0xa0] sm:$0xf] %vm352, 0
      %v4153 = vld [vmem:[%s4057 + $0xa4] sm:$0x1]
      %v4154 = vsel %vm355, 0, %v4153
      %4155 = vst [vmem:[%s4057 + $0xa4] sm:$0x1] %v4154
      %v4156 = vld [vmem:[%s4057 + $0xa8] sm:$0xf]
      %v4157 = vsel %vm348, 0, %v4156
      %4158 = vst [vmem:[%s4057 + $0xa8] sm:$0xf] %v4157
      %4159 = vst.msk [vmem:[%s4057 + $0xac] sm:$0xf] %vm352, 0
      %v4160 = vld [vmem:[%s4057 + $0xb0] sm:$0x1]
      %v4161 = vsel %vm355, 0, %v4160
      %4162 = vst [vmem:[%s4057 + $0xb0] sm:$0x1] %v4161
      %v4163 = vld [vmem:[%s4057 + $0xb4] sm:$0xf]
      %v4164 = vsel %vm348, 0, %v4163
      %4165 = vst [vmem:[%s4057 + $0xb4] sm:$0xf] %v4164
      %4166 = vst.msk [vmem:[%s4057 + $0xb8] sm:$0xf] %vm352, 0
      %v4167 = vld [vmem:[%s4057 + $0xbc] sm:$0x1]
      %v4168 = vsel %vm355, 0, %v4167
      %4169 = vst [vmem:[%s4057 + $0xbc] sm:$0x1] %v4168
      %v4170 = vpack.c.bf16 %v3911, %v3910
      %v4171 = vpack.c.bf16 %v3913, %v3912
      %v4172 = vpack.c.bf16 %v3915, %v3914
      %v4173 = vpack.c.bf16 %v3917, %v3916
      %v4174 = vpack.c.bf16 %v3919, %v3918
      %v4175 = vpack.c.bf16 %v3921, %v3920
      %v4176 = vpack.c.bf16 %v3923, %v3922
      %v4177 = vpack.c.bf16 %v3925, %v3924
      %v4178 = vpack.c.bf16 %v3927, %v3926
      %v4179 = vpack.c.bf16 %v3929, %v3928
      %v4180 = vpack.c.bf16 %v3931, %v3930
      %v4181 = vpack.c.bf16 %v3933, %v3932
      %v4182 = vpack.c.bf16 %v3935, %v3934
      %v4183 = vpack.c.bf16 %v3937, %v3936
      %v4184 = vpack.c.bf16 %v3939, %v3938
      %v4185 = vpack.c.bf16 %v3941, %v3940
      %v4202 = vunpack.c.l.b16 %v4170
      %v4203 = vunpack.c.h.b16 %v4170
      %v4204 = vunpack.c.l.b16 %v4171
      %v4205 = vunpack.c.h.b16 %v4171
      %v4206 = vunpack.c.l.b16 %v4172
      %v4207 = vunpack.c.h.b16 %v4172
      %v4208 = vunpack.c.l.b16 %v4173
      %v4209 = vunpack.c.h.b16 %v4173
      %v4210 = vunpack.c.l.b16 %v4174
      %v4211 = vunpack.c.h.b16 %v4174
      %v4212 = vunpack.c.l.b16 %v4175
      %v4213 = vunpack.c.h.b16 %v4175
      %v4214 = vunpack.c.l.b16 %v4176
      %v4215 = vunpack.c.h.b16 %v4176
      %v4216 = vunpack.c.l.b16 %v4177
      %v4217 = vunpack.c.h.b16 %v4177
      %v4218 = vunpack.c.l.b16 %v4178
      %v4219 = vunpack.c.h.b16 %v4178
      %v4220 = vunpack.c.l.b16 %v4179
      %v4221 = vunpack.c.h.b16 %v4179
      %v4222 = vunpack.c.l.b16 %v4180
      %v4223 = vunpack.c.h.b16 %v4180
      %v4224 = vunpack.c.l.b16 %v4181
      %v4225 = vunpack.c.h.b16 %v4181
      %v4226 = vunpack.c.l.b16 %v4182
      %v4227 = vunpack.c.h.b16 %v4182
      %v4228 = vunpack.c.l.b16 %v4183
      %v4229 = vunpack.c.h.b16 %v4183
      %v4230 = vunpack.c.l.b16 %v4184
      %v4231 = vunpack.c.h.b16 %v4184
      %v4232 = vunpack.c.l.b16 %v4185
      %v4233 = vunpack.c.h.b16 %v4185
      %v4234 = vpack.c.b16 %v4202, %v4202
      %v4235 = vpack.c.b16 %v4203, %v4203
      %v4236 = vpack.c.b16 %v4204, %v4204
      %v4237 = vpack.c.b16 %v4205, %v4205
      %v4238 = vpack.c.b16 %v4206, %v4206
      %v4239 = vpack.c.b16 %v4207, %v4207
      %v4240 = vpack.c.b16 %v4208, %v4208
      %v4241 = vpack.c.b16 %v4209, %v4209
      %v4242 = vpack.c.b16 %v4210, %v4210
      %v4243 = vpack.c.b16 %v4211, %v4211
      %v4244 = vpack.c.b16 %v4212, %v4212
      %v4245 = vpack.c.b16 %v4213, %v4213
      %v4246 = vpack.c.b16 %v4214, %v4214
      %v4247 = vpack.c.b16 %v4215, %v4215
      %v4248 = vpack.c.b16 %v4216, %v4216
      %v4249 = vpack.c.b16 %v4217, %v4217
      %v4250 = vpack.c.b16 %v4218, %v4218
      %v4251 = vpack.c.b16 %v4219, %v4219
      %v4252 = vpack.c.b16 %v4220, %v4220
      %v4253 = vpack.c.b16 %v4221, %v4221
      %v4254 = vpack.c.b16 %v4222, %v4222
      %v4255 = vpack.c.b16 %v4223, %v4223
      %v4256 = vpack.c.b16 %v4224, %v4224
      %v4257 = vpack.c.b16 %v4225, %v4225
      %v4258 = vpack.c.b16 %v4226, %v4226
      %v4259 = vpack.c.b16 %v4227, %v4227
      %v4260 = vpack.c.b16 %v4228, %v4228
      %v4261 = vpack.c.b16 %v4229, %v4229
      %v4262 = vpack.c.b16 %v4230, %v4230
      %v4263 = vpack.c.b16 %v4231, %v4231
      %v4264 = vpack.c.b16 %v4232, %v4232
      %v4265 = vpack.c.b16 %v4233, %v4233
      %v4267 = vshrl.u32 %v4234, 16
      %v4269 = vrot.slane %v4267, 7
      %v4270 = vshll.u32 %v4234, 16
      %v4272 = vor.u32 %v4269, %v4270
      %v4273 = vrot.slane %v4269, 4
      %v4275 = vshrl.u32 %v4235, 16
      %v4277 = vrot.slane %v4275, 7
      %v4278 = vshll.u32 %v4235, 16
      %v4280 = vor.u32 %v4277, %v4278
      %v4281 = vsel %vm497, %v4273, %v4280
      %v4282 = vrot.slane %v4277, 4
      %v4284 = vshrl.u32 %v4236, 16
      %v4286 = vrot.slane %v4284, 7
      %v4287 = vshll.u32 %v4236, 16
      %v4289 = vor.u32 %v4286, %v4287
      %v4290 = vrot.slane %v4286, 4
      %v4292 = vshrl.u32 %v4237, 16
      %v4294 = vrot.slane %v4292, 7
      %v4295 = vshll.u32 %v4237, 16
      %v4297 = vor.u32 %v4294, %v4295
      %v4298 = vsel %vm497, %v4290, %v4297
      %v4299 = vrot.slane %v4294, 4
      %v4301 = vshrl.u32 %v4238, 16
      %v4303 = vrot.slane %v4301, 7
      %v4304 = vshll.u32 %v4238, 16
      %v4306 = vor.u32 %v4303, %v4304
      %v4307 = vrot.slane %v4303, 4
      %v4309 = vshrl.u32 %v4239, 16
      %v4311 = vrot.slane %v4309, 7
      %v4312 = vshll.u32 %v4239, 16
      %v4314 = vor.u32 %v4311, %v4312
      %v4315 = vsel %vm497, %v4307, %v4314
      %v4316 = vrot.slane %v4311, 4
      %v4318 = vshrl.u32 %v4240, 16
      %v4320 = vrot.slane %v4318, 7
      %v4321 = vshll.u32 %v4240, 16
      %v4323 = vor.u32 %v4320, %v4321
      %v4324 = vrot.slane %v4320, 4
      %v4326 = vshrl.u32 %v4241, 16
      %v4328 = vrot.slane %v4326, 7
      %v4329 = vshll.u32 %v4241, 16
      %v4331 = vor.u32 %v4328, %v4329
      %v4332 = vsel %vm497, %v4324, %v4331
      %v4333 = vrot.slane %v4328, 4
      %v4335 = vshrl.u32 %v4242, 16
      %v4337 = vrot.slane %v4335, 7
      %v4338 = vshll.u32 %v4242, 16
      %v4340 = vor.u32 %v4337, %v4338
      %v4341 = vrot.slane %v4337, 4
      %v4343 = vshrl.u32 %v4243, 16
      %v4345 = vrot.slane %v4343, 7
      %v4346 = vshll.u32 %v4243, 16
      %v4348 = vor.u32 %v4345, %v4346
      %v4349 = vsel %vm497, %v4341, %v4348
      %v4350 = vrot.slane %v4345, 4
      %v4352 = vshrl.u32 %v4244, 16
      %v4354 = vrot.slane %v4352, 7
      %v4355 = vshll.u32 %v4244, 16
      %v4357 = vor.u32 %v4354, %v4355
      %v4358 = vrot.slane %v4354, 4
      %v4360 = vshrl.u32 %v4245, 16
      %v4362 = vrot.slane %v4360, 7
      %v4363 = vshll.u32 %v4245, 16
      %v4365 = vor.u32 %v4362, %v4363
      %v4366 = vsel %vm497, %v4358, %v4365
      %v4367 = vrot.slane %v4362, 4
      %v4369 = vshrl.u32 %v4246, 16
      %v4371 = vrot.slane %v4369, 7
      %v4372 = vshll.u32 %v4246, 16
      %v4374 = vor.u32 %v4371, %v4372
      %v4375 = vrot.slane %v4371, 4
      %v4377 = vshrl.u32 %v4247, 16
      %v4379 = vrot.slane %v4377, 7
      %v4380 = vshll.u32 %v4247, 16
      %v4382 = vor.u32 %v4379, %v4380
      %v4383 = vsel %vm497, %v4375, %v4382
      %v4384 = vrot.slane %v4379, 4
      %v4386 = vshrl.u32 %v4248, 16
      %v4388 = vrot.slane %v4386, 7
      %v4389 = vshll.u32 %v4248, 16
      %v4391 = vor.u32 %v4388, %v4389
      %v4392 = vrot.slane %v4388, 4
      %v4394 = vshrl.u32 %v4249, 16
      %v4396 = vrot.slane %v4394, 7
      %v4397 = vshll.u32 %v4249, 16
      %v4399 = vor.u32 %v4396, %v4397
      %v4400 = vsel %vm497, %v4392, %v4399
      %v4401 = vrot.slane %v4396, 4
      %v4403 = vshrl.u32 %v4250, 16
      %v4405 = vrot.slane %v4403, 7
      %v4406 = vshll.u32 %v4250, 16
      %v4408 = vor.u32 %v4405, %v4406
      %v4409 = vrot.slane %v4405, 4
      %v4411 = vshrl.u32 %v4251, 16
      %v4413 = vrot.slane %v4411, 7
      %v4414 = vshll.u32 %v4251, 16
      %v4416 = vor.u32 %v4413, %v4414
      %v4417 = vsel %vm497, %v4409, %v4416
      %v4418 = vrot.slane %v4413, 4
      %v4420 = vshrl.u32 %v4252, 16
      %v4422 = vrot.slane %v4420, 7
      %v4423 = vshll.u32 %v4252, 16
      %v4425 = vor.u32 %v4422, %v4423
      %v4426 = vrot.slane %v4422, 4
      %v4428 = vshrl.u32 %v4253, 16
      %v4430 = vrot.slane %v4428, 7
      %v4431 = vshll.u32 %v4253, 16
      %v4433 = vor.u32 %v4430, %v4431
      %v4434 = vsel %vm497, %v4426, %v4433
      %v4435 = vrot.slane %v4430, 4
      %v4437 = vshrl.u32 %v4254, 16
      %v4439 = vrot.slane %v4437, 7
      %v4440 = vshll.u32 %v4254, 16
      %v4442 = vor.u32 %v4439, %v4440
      %v4443 = vrot.slane %v4439, 4
      %v4445 = vshrl.u32 %v4255, 16
      %v4447 = vrot.slane %v4445, 7
      %v4448 = vshll.u32 %v4255, 16
      %v4450 = vor.u32 %v4447, %v4448
      %v4451 = vsel %vm497, %v4443, %v4450
      %v4452 = vrot.slane %v4447, 4
      %v4454 = vshrl.u32 %v4256, 16
      %v4456 = vrot.slane %v4454, 7
      %v4457 = vshll.u32 %v4256, 16
      %v4459 = vor.u32 %v4456, %v4457
      %v4460 = vrot.slane %v4456, 4
      %v4462 = vshrl.u32 %v4257, 16
      %v4464 = vrot.slane %v4462, 7
      %v4465 = vshll.u32 %v4257, 16
      %v4467 = vor.u32 %v4464, %v4465
      %v4468 = vsel %vm497, %v4460, %v4467
      %v4469 = vrot.slane %v4464, 4
      %v4471 = vshrl.u32 %v4258, 16
      %v4473 = vrot.slane %v4471, 7
      %v4474 = vshll.u32 %v4258, 16
      %v4476 = vor.u32 %v4473, %v4474
      %v4477 = vrot.slane %v4473, 4
      %v4479 = vshrl.u32 %v4259, 16
      %v4481 = vrot.slane %v4479, 7
      %v4482 = vshll.u32 %v4259, 16
      %v4484 = vor.u32 %v4481, %v4482
      %v4485 = vsel %vm497, %v4477, %v4484
      %v4486 = vrot.slane %v4481, 4
      %v4488 = vshrl.u32 %v4260, 16
      %v4490 = vrot.slane %v4488, 7
      %v4491 = vshll.u32 %v4260, 16
      %v4493 = vor.u32 %v4490, %v4491
      %v4494 = vrot.slane %v4490, 4
      %v4496 = vshrl.u32 %v4261, 16
      %v4498 = vrot.slane %v4496, 7
      %v4499 = vshll.u32 %v4261, 16
      %v4501 = vor.u32 %v4498, %v4499
      %v4502 = vsel %vm497, %v4494, %v4501
      %v4503 = vrot.slane %v4498, 4
      %v4505 = vshrl.u32 %v4262, 16
      %v4507 = vrot.slane %v4505, 7
      %v4508 = vshll.u32 %v4262, 16
      %v4510 = vor.u32 %v4507, %v4508
      %v4511 = vrot.slane %v4507, 4
      %v4513 = vshrl.u32 %v4263, 16
      %v4515 = vrot.slane %v4513, 7
      %v4516 = vshll.u32 %v4263, 16
      %v4518 = vor.u32 %v4515, %v4516
      %v4519 = vsel %vm497, %v4511, %v4518
      %v4520 = vrot.slane %v4515, 4
      %v4522 = vshrl.u32 %v4264, 16
      %v4524 = vrot.slane %v4522, 7
      %v4525 = vshll.u32 %v4264, 16
      %v4527 = vor.u32 %v4524, %v4525
      %v4528 = vrot.slane %v4524, 4
      %v4530 = vshrl.u32 %v4265, 16
      %v4532 = vrot.slane %v4530, 7
      %v4533 = vshll.u32 %v4265, 16
      %v4535 = vor.u32 %v4532, %v4533
      %v4536 = vsel %vm497, %v4528, %v4535
      %v4537 = vrot.slane %v4532, 4
      %v4586 = vld [vmem:[%s4057] sm:$0xf]
      %v4587 = vsel %vm819, %v4272, %v4586
      %4588 = vst [vmem:[%s4057] sm:$0xf] %v4587
      %4589 = vst.msk [vmem:[%s4057 + $0x4] sm:$0xf] %vm823, %v4281
      %v4590 = vld [vmem:[%s4057 + $0x8] sm:$0x1]
      %v4591 = vsel %vm826, %v4282, %v4590
      %4592 = vst [vmem:[%s4057 + $0x8] sm:$0x1] %v4591
      %v4593 = vld [vmem:[%s4057 + $0xc] sm:$0xf]
      %v4594 = vsel %vm819, %v4289, %v4593
      %4595 = vst [vmem:[%s4057 + $0xc] sm:$0xf] %v4594
      %4596 = vst.msk [vmem:[%s4057 + $0x10] sm:$0xf] %vm823, %v4298
      %v4597 = vld [vmem:[%s4057 + $0x14] sm:$0x1]
      %v4598 = vsel %vm826, %v4299, %v4597
      %4599 = vst [vmem:[%s4057 + $0x14] sm:$0x1] %v4598
      %v4600 = vld [vmem:[%s4057 + $0x18] sm:$0xf]
      %v4601 = vsel %vm819, %v4306, %v4600
      %4602 = vst [vmem:[%s4057 + $0x18] sm:$0xf] %v4601
      %4603 = vst.msk [vmem:[%s4057 + $0x1c] sm:$0xf] %vm823, %v4315
      %v4604 = vld [vmem:[%s4057 + $0x20] sm:$0x1]
      %v4605 = vsel %vm826, %v4316, %v4604
      %4606 = vst [vmem:[%s4057 + $0x20] sm:$0x1] %v4605
      %v4607 = vld [vmem:[%s4057 + $0x24] sm:$0xf]
      %v4608 = vsel %vm819, %v4323, %v4607
      %4609 = vst [vmem:[%s4057 + $0x24] sm:$0xf] %v4608
      %4610 = vst.msk [vmem:[%s4057 + $0x28] sm:$0xf] %vm823, %v4332
      %v4611 = vld [vmem:[%s4057 + $0x2c] sm:$0x1]
      %v4612 = vsel %vm826, %v4333, %v4611
      %4613 = vst [vmem:[%s4057 + $0x2c] sm:$0x1] %v4612
      %v4614 = vld [vmem:[%s4057 + $0x30] sm:$0xf]
      %v4615 = vsel %vm819, %v4340, %v4614
      %4616 = vst [vmem:[%s4057 + $0x30] sm:$0xf] %v4615
      %4617 = vst.msk [vmem:[%s4057 + $0x34] sm:$0xf] %vm823, %v4349
      %v4618 = vld [vmem:[%s4057 + $0x38] sm:$0x1]
      %v4619 = vsel %vm826, %v4350, %v4618
      %4620 = vst [vmem:[%s4057 + $0x38] sm:$0x1] %v4619
      %v4621 = vld [vmem:[%s4057 + $0x3c] sm:$0xf]
      %v4622 = vsel %vm819, %v4357, %v4621
      %4623 = vst [vmem:[%s4057 + $0x3c] sm:$0xf] %v4622
      %4624 = vst.msk [vmem:[%s4057 + $0x40] sm:$0xf] %vm823, %v4366
      %v4625 = vld [vmem:[%s4057 + $0x44] sm:$0x1]
      %v4626 = vsel %vm826, %v4367, %v4625
      %4627 = vst [vmem:[%s4057 + $0x44] sm:$0x1] %v4626
      %v4628 = vld [vmem:[%s4057 + $0x48] sm:$0xf]
      %v4629 = vsel %vm819, %v4374, %v4628
      %4630 = vst [vmem:[%s4057 + $0x48] sm:$0xf] %v4629
      %4631 = vst.msk [vmem:[%s4057 + $0x4c] sm:$0xf] %vm823, %v4383
      %v4632 = vld [vmem:[%s4057 + $0x50] sm:$0x1]
      %v4633 = vsel %vm826, %v4384, %v4632
      %4634 = vst [vmem:[%s4057 + $0x50] sm:$0x1] %v4633
      %v4635 = vld [vmem:[%s4057 + $0x54] sm:$0xf]
      %v4636 = vsel %vm819, %v4391, %v4635
      %4637 = vst [vmem:[%s4057 + $0x54] sm:$0xf] %v4636
      %4638 = vst.msk [vmem:[%s4057 + $0x58] sm:$0xf] %vm823, %v4400
      %v4639 = vld [vmem:[%s4057 + $0x5c] sm:$0x1]
      %v4640 = vsel %vm826, %v4401, %v4639
      %4641 = vst [vmem:[%s4057 + $0x5c] sm:$0x1] %v4640
      %v4642 = vld [vmem:[%s4057 + $0x60] sm:$0xf]
      %v4643 = vsel %vm819, %v4408, %v4642
      %4644 = vst [vmem:[%s4057 + $0x60] sm:$0xf] %v4643
      %4645 = vst.msk [vmem:[%s4057 + $0x64] sm:$0xf] %vm823, %v4417
      %v4646 = vld [vmem:[%s4057 + $0x68] sm:$0x1]
      %v4647 = vsel %vm826, %v4418, %v4646
      %4648 = vst [vmem:[%s4057 + $0x68] sm:$0x1] %v4647
      %v4649 = vld [vmem:[%s4057 + $0x6c] sm:$0xf]
      %v4650 = vsel %vm819, %v4425, %v4649
      %4651 = vst [vmem:[%s4057 + $0x6c] sm:$0xf] %v4650
      %4652 = vst.msk [vmem:[%s4057 + $0x70] sm:$0xf] %vm823, %v4434
      %v4653 = vld [vmem:[%s4057 + $0x74] sm:$0x1]
      %v4654 = vsel %vm826, %v4435, %v4653
      %4655 = vst [vmem:[%s4057 + $0x74] sm:$0x1] %v4654
      %v4656 = vld [vmem:[%s4057 + $0x78] sm:$0xf]
      %v4657 = vsel %vm819, %v4442, %v4656
      %4658 = vst [vmem:[%s4057 + $0x78] sm:$0xf] %v4657
      %4659 = vst.msk [vmem:[%s4057 + $0x7c] sm:$0xf] %vm823, %v4451
      %v4660 = vld [vmem:[%s4057 + $0x80] sm:$0x1]
      %v4661 = vsel %vm826, %v4452, %v4660
      %4662 = vst [vmem:[%s4057 + $0x80] sm:$0x1] %v4661
      %v4663 = vld [vmem:[%s4057 + $0x84] sm:$0xf]
      %v4664 = vsel %vm819, %v4459, %v4663
      %4665 = vst [vmem:[%s4057 + $0x84] sm:$0xf] %v4664
      %4666 = vst.msk [vmem:[%s4057 + $0x88] sm:$0xf] %vm823, %v4468
      %v4667 = vld [vmem:[%s4057 + $0x8c] sm:$0x1]
      %v4668 = vsel %vm826, %v4469, %v4667
      %4669 = vst [vmem:[%s4057 + $0x8c] sm:$0x1] %v4668
      %v4670 = vld [vmem:[%s4057 + $0x90] sm:$0xf]
      %v4671 = vsel %vm819, %v4476, %v4670
      %4672 = vst [vmem:[%s4057 + $0x90] sm:$0xf] %v4671
      %4673 = vst.msk [vmem:[%s4057 + $0x94] sm:$0xf] %vm823, %v4485
      %v4674 = vld [vmem:[%s4057 + $0x98] sm:$0x1]
      %v4675 = vsel %vm826, %v4486, %v4674
      %4676 = vst [vmem:[%s4057 + $0x98] sm:$0x1] %v4675
      %v4677 = vld [vmem:[%s4057 + $0x9c] sm:$0xf]
      %v4678 = vsel %vm819, %v4493, %v4677
      %4679 = vst [vmem:[%s4057 + $0x9c] sm:$0xf] %v4678
      %4680 = vst.msk [vmem:[%s4057 + $0xa0] sm:$0xf] %vm823, %v4502
      %v4681 = vld [vmem:[%s4057 + $0xa4] sm:$0x1]
      %v4682 = vsel %vm826, %v4503, %v4681
      %4683 = vst [vmem:[%s4057 + $0xa4] sm:$0x1] %v4682
      %v4684 = vld [vmem:[%s4057 + $0xa8] sm:$0xf]
      %v4685 = vsel %vm819, %v4510, %v4684
      %4686 = vst [vmem:[%s4057 + $0xa8] sm:$0xf] %v4685
      %4687 = vst.msk [vmem:[%s4057 + $0xac] sm:$0xf] %vm823, %v4519
      %v4688 = vld [vmem:[%s4057 + $0xb0] sm:$0x1]
      %v4689 = vsel %vm826, %v4520, %v4688
      %4690 = vst [vmem:[%s4057 + $0xb0] sm:$0x1] %v4689
      %v4691 = vld [vmem:[%s4057 + $0xb4] sm:$0xf]
      %v4692 = vsel %vm819, %v4527, %v4691
      %4693 = vst [vmem:[%s4057 + $0xb4] sm:$0xf] %v4692
      %4694 = vst.msk [vmem:[%s4057 + $0xb8] sm:$0xf] %vm823, %v4536
      %v4695 = vld [vmem:[%s4057 + $0xbc] sm:$0x1]
      %v4696 = vsel %vm826, %v4537, %v4695
      %4697 = vst [vmem:[%s4057 + $0xbc] sm:$0x1] %v4696
      %v4698 = vld [vmem:[%s4] sm:$0x1]
      %v4699 = vld [vmem:[%s4057] sm:$0xf]
      %v4700 = vld [vmem:[%s4057 + $0x4] sm:$0xf]
      %v4701 = vld [vmem:[%s4057 + $0xc] sm:$0xf]
      %v4702 = vld [vmem:[%s4057 + $0x10] sm:$0xf]
      %v4703 = vld [vmem:[%s4057 + $0x18] sm:$0xf]
      %v4704 = vld [vmem:[%s4057 + $0x1c] sm:$0xf]
      %v4705 = vld [vmem:[%s4057 + $0x24] sm:$0xf]
      %v4706 = vld [vmem:[%s4057 + $0x28] sm:$0xf]
      %v4707 = vld [vmem:[%s4057 + $0x30] sm:$0xf]
      %v4708 = vld [vmem:[%s4057 + $0x34] sm:$0xf]
      %v4709 = vld [vmem:[%s4057 + $0x3c] sm:$0xf]
      %v4710 = vld [vmem:[%s4057 + $0x40] sm:$0xf]
      %v4711 = vld [vmem:[%s4057 + $0x48] sm:$0xf]
      %v4712 = vld [vmem:[%s4057 + $0x4c] sm:$0xf]
      %v4713 = vld [vmem:[%s4057 + $0x54] sm:$0xf]
      %v4714 = vld [vmem:[%s4057 + $0x58] sm:$0xf]
      %v4715 = vld [vmem:[%s4057 + $0x60] sm:$0xf]
      %v4716 = vld [vmem:[%s4057 + $0x64] sm:$0xf]
      %v4717 = vld [vmem:[%s4057 + $0x6c] sm:$0xf]
      %v4718 = vld [vmem:[%s4057 + $0x70] sm:$0xf]
      %v4719 = vld [vmem:[%s4057 + $0x78] sm:$0xf]
      %v4720 = vld [vmem:[%s4057 + $0x7c] sm:$0xf]
      %v4721 = vld [vmem:[%s4057 + $0x84] sm:$0xf]
      %v4722 = vld [vmem:[%s4057 + $0x88] sm:$0xf]
      %v4723 = vld [vmem:[%s4057 + $0x90] sm:$0xf]
      %v4724 = vld [vmem:[%s4057 + $0x94] sm:$0xf]
      %v4725 = vld [vmem:[%s4057 + $0x9c] sm:$0xf]
      %v4726 = vld [vmem:[%s4057 + $0xa0] sm:$0xf]
      %v4727 = vld [vmem:[%s4057 + $0xa8] sm:$0xf]
      %v4728 = vld [vmem:[%s4057 + $0xac] sm:$0xf]
      %v4729 = vld [vmem:[%s4057 + $0xb4] sm:$0xf]
      %v4730 = vld [vmem:[%s4057 + $0xb8] sm:$0xf]
      %v4731 = vld [vmem:[%s4057 + $0x8] sm:$0x1]
      %v4732 = vld [vmem:[%s4057 + $0x14] sm:$0x1]
      %v4733 = vld [vmem:[%s4057 + $0x20] sm:$0x1]
      %v4734 = vld [vmem:[%s4057 + $0x2c] sm:$0x1]
      %v4735 = vld [vmem:[%s4057 + $0x38] sm:$0x1]
      %v4736 = vld [vmem:[%s4057 + $0x44] sm:$0x1]
      %v4737 = vld [vmem:[%s4057 + $0x50] sm:$0x1]
      %v4738 = vld [vmem:[%s4057 + $0x5c] sm:$0x1]
      %v4739 = vld [vmem:[%s4057 + $0x68] sm:$0x1]
      %v4740 = vld [vmem:[%s4057 + $0x74] sm:$0x1]
      %v4741 = vld [vmem:[%s4057 + $0x80] sm:$0x1]
      %v4742 = vld [vmem:[%s4057 + $0x8c] sm:$0x1]
      %v4743 = vld [vmem:[%s4057 + $0x98] sm:$0x1]
      %v4744 = vld [vmem:[%s4057 + $0xa4] sm:$0x1]
      %v4745 = vld [vmem:[%s4057 + $0xb0] sm:$0x1]
      %v4746 = vld [vmem:[%s4057 + $0xbc] sm:$0x1]
      %v4747 = vld [vmem:[%s4057] sm:$0xe]
      %v4748 = vld [vmem:[%s4057 + $0xc] sm:$0xe]
      %v4749 = vld [vmem:[%s4057 + $0x18] sm:$0xe]
      %v4750 = vld [vmem:[%s4057 + $0x24] sm:$0xe]
      %v4751 = vld [vmem:[%s4057 + $0x30] sm:$0xe]
      %v4752 = vld [vmem:[%s4057 + $0x3c] sm:$0xe]
      %v4753 = vld [vmem:[%s4057 + $0x48] sm:$0xe]
      %v4754 = vld [vmem:[%s4057 + $0x54] sm:$0xe]
      %v4755 = vld [vmem:[%s4057 + $0x60] sm:$0xe]
      %v4756 = vld [vmem:[%s4057 + $0x6c] sm:$0xe]
      %v4757 = vld [vmem:[%s4057 + $0x78] sm:$0xe]
      %v4758 = vld [vmem:[%s4057 + $0x84] sm:$0xe]
      %v4759 = vld [vmem:[%s4057 + $0x90] sm:$0xe]
      %v4760 = vld [vmem:[%s4057 + $0x9c] sm:$0xe]
      %v4761 = vld [vmem:[%s4057 + $0xa8] sm:$0xe]
      %v4762 = vld [vmem:[%s4057 + $0xb4] sm:$0xe]
      %v4763 = vld [vmem:[#allocation3] sm:$0xf]
      %v4764 = vld [vmem:[#allocation3 + $0x4] sm:$0xf]
      %v4765 = vld [vmem:[#allocation3 + $0xc] sm:$0xf]
      %v4766 = vld [vmem:[#allocation3 + $0x10] sm:$0xf]
      %v4767 = vld [vmem:[#allocation3 + $0x18] sm:$0xf]
      %v4768 = vld [vmem:[#allocation3 + $0x1c] sm:$0xf]
      %v4769 = vld [vmem:[#allocation3 + $0x24] sm:$0xf]
      %v4770 = vld [vmem:[#allocation3 + $0x28] sm:$0xf]
      %v4771 = vld [vmem:[#allocation3 + $0x30] sm:$0xf]
      %v4772 = vld [vmem:[#allocation3 + $0x34] sm:$0xf]
      %v4773 = vld [vmem:[#allocation3 + $0x3c] sm:$0xf]
      %v4774 = vld [vmem:[#allocation3 + $0x40] sm:$0xf]
      %v4775 = vld [vmem:[#allocation3 + $0x48] sm:$0xf]
      %v4776 = vld [vmem:[#allocation3 + $0x4c] sm:$0xf]
      %v4777 = vld [vmem:[#allocation3 + $0x54] sm:$0xf]
      %v4778 = vld [vmem:[#allocation3 + $0x58] sm:$0xf]
      %v4779 = vld [vmem:[#allocation3 + $0x60] sm:$0xf]
      %v4780 = vld [vmem:[#allocation3 + $0x64] sm:$0xf]
      %v4781 = vld [vmem:[#allocation3 + $0x6c] sm:$0xf]
      %v4782 = vld [vmem:[#allocation3 + $0x70] sm:$0xf]
      %v4783 = vld [vmem:[#allocation3 + $0x78] sm:$0xf]
      %v4784 = vld [vmem:[#allocation3 + $0x7c] sm:$0xf]
      %v4785 = vld [vmem:[#allocation3 + $0x84] sm:$0xf]
      %v4786 = vld [vmem:[#allocation3 + $0x88] sm:$0xf]
      %v4787 = vld [vmem:[#allocation3 + $0x90] sm:$0xf]
      %v4788 = vld [vmem:[#allocation3 + $0x94] sm:$0xf]
      %v4789 = vld [vmem:[#allocation3 + $0x9c] sm:$0xf]
      %v4790 = vld [vmem:[#allocation3 + $0xa0] sm:$0xf]
      %v4791 = vld [vmem:[#allocation3 + $0xa8] sm:$0xf]
      %v4792 = vld [vmem:[#allocation3 + $0xac] sm:$0xf]
      %v4793 = vld [vmem:[#allocation3 + $0xb4] sm:$0xf]
      %v4794 = vld [vmem:[#allocation3 + $0xb8] sm:$0xf]
      %v4795 = vld [vmem:[#allocation3 + $0x8] sm:$0x1]
      %v4796 = vld [vmem:[#allocation3 + $0x14] sm:$0x1]
      %v4797 = vld [vmem:[#allocation3 + $0x20] sm:$0x1]
      %v4798 = vld [vmem:[#allocation3 + $0x2c] sm:$0x1]
      %v4799 = vld [vmem:[#allocation3 + $0x38] sm:$0x1]
      %v4800 = vld [vmem:[#allocation3 + $0x44] sm:$0x1]
      %v4801 = vld [vmem:[#allocation3 + $0x50] sm:$0x1]
      %v4802 = vld [vmem:[#allocation3 + $0x5c] sm:$0x1]
      %v4803 = vld [vmem:[#allocation3 + $0x68] sm:$0x1]
      %v4804 = vld [vmem:[#allocation3 + $0x74] sm:$0x1]
      %v4805 = vld [vmem:[#allocation3 + $0x80] sm:$0x1]
      %v4806 = vld [vmem:[#allocation3 + $0x8c] sm:$0x1]
      %v4807 = vld [vmem:[#allocation3 + $0x98] sm:$0x1]
      %v4808 = vld [vmem:[#allocation3 + $0xa4] sm:$0x1]
      %v4809 = vld [vmem:[#allocation3 + $0xb0] sm:$0x1]
      %v4810 = vld [vmem:[#allocation3 + $0xbc] sm:$0x1]
      %v4811 = vld [vmem:[#allocation3] sm:$0xe]
      %v4812 = vld [vmem:[#allocation3 + $0xc] sm:$0xe]
      %v4813 = vld [vmem:[#allocation3 + $0x18] sm:$0xe]
      %v4814 = vld [vmem:[#allocation3 + $0x24] sm:$0xe]
      %v4815 = vld [vmem:[#allocation3 + $0x30] sm:$0xe]
      %v4816 = vld [vmem:[#allocation3 + $0x3c] sm:$0xe]
      %v4817 = vld [vmem:[#allocation3 + $0x48] sm:$0xe]
      %v4818 = vld [vmem:[#allocation3 + $0x54] sm:$0xe]
      %v4819 = vld [vmem:[#allocation3 + $0x60] sm:$0xe]
      %v4820 = vld [vmem:[#allocation3 + $0x6c] sm:$0xe]
      %v4821 = vld [vmem:[#allocation3 + $0x78] sm:$0xe]
      %v4822 = vld [vmem:[#allocation3 + $0x84] sm:$0xe]
      %v4823 = vld [vmem:[#allocation3 + $0x90] sm:$0xe]
      %v4824 = vld [vmem:[#allocation3 + $0x9c] sm:$0xe]
      %v4825 = vld [vmem:[#allocation3 + $0xa8] sm:$0xe]
      %v4826 = vld [vmem:[#allocation3 + $0xb4] sm:$0xe]
      %v4859 = vunpack.c.l.b16 %v4699
      %v4860 = vunpack.c.l.b16 %v4700
      %v4861 = vunpack.c.l.b16 %v4701
      %v4862 = vunpack.c.l.b16 %v4702
      %v4863 = vunpack.c.l.b16 %v4703
      %v4864 = vunpack.c.l.b16 %v4704
      %v4865 = vunpack.c.l.b16 %v4705
      %v4866 = vunpack.c.l.b16 %v4706
      %v4867 = vunpack.c.l.b16 %v4707
      %v4868 = vunpack.c.l.b16 %v4708
      %v4869 = vunpack.c.l.b16 %v4709
      %v4870 = vunpack.c.l.b16 %v4710
      %v4871 = vunpack.c.l.b16 %v4711
      %v4872 = vunpack.c.l.b16 %v4712
      %v4873 = vunpack.c.l.b16 %v4713
      %v4874 = vunpack.c.l.b16 %v4714
      %v4875 = vunpack.c.l.b16 %v4715
      %v4876 = vunpack.c.l.b16 %v4716
      %v4877 = vunpack.c.l.b16 %v4717
      %v4878 = vunpack.c.l.b16 %v4718
      %v4879 = vunpack.c.l.b16 %v4719
      %v4880 = vunpack.c.l.b16 %v4720
      %v4881 = vunpack.c.l.b16 %v4721
      %v4882 = vunpack.c.l.b16 %v4722
      %v4883 = vunpack.c.l.b16 %v4723
      %v4884 = vunpack.c.l.b16 %v4724
      %v4885 = vunpack.c.l.b16 %v4725
      %v4886 = vunpack.c.l.b16 %v4726
      %v4887 = vunpack.c.l.b16 %v4727
      %v4888 = vunpack.c.l.b16 %v4728
      %v4889 = vunpack.c.l.b16 %v4729
      %v4890 = vunpack.c.l.b16 %v4730
      %v4891 = vpack.c.b16 %v4860, %v4859
      %v4892 = vpack.c.b16 %v4862, %v4861
      %v4893 = vpack.c.b16 %v4864, %v4863
      %v4894 = vpack.c.b16 %v4866, %v4865
      %v4895 = vpack.c.b16 %v4868, %v4867
      %v4896 = vpack.c.b16 %v4870, %v4869
      %v4897 = vpack.c.b16 %v4872, %v4871
      %v4898 = vpack.c.b16 %v4874, %v4873
      %v4899 = vpack.c.b16 %v4876, %v4875
      %v4900 = vpack.c.b16 %v4878, %v4877
      %v4901 = vpack.c.b16 %v4880, %v4879
      %v4902 = vpack.c.b16 %v4882, %v4881
      %v4903 = vpack.c.b16 %v4884, %v4883
      %v4904 = vpack.c.b16 %v4886, %v4885
      %v4905 = vpack.c.b16 %v4888, %v4887
      %v4906 = vpack.c.b16 %v4890, %v4889
      %v4939 = vunpack.c.l.b16 %v4731
      %v4940 = vunpack.c.l.b16 %v4732
      %v4941 = vunpack.c.l.b16 %v4733
      %v4942 = vunpack.c.l.b16 %v4734
      %v4943 = vunpack.c.l.b16 %v4735
      %v4944 = vunpack.c.l.b16 %v4736
      %v4945 = vunpack.c.l.b16 %v4737
      %v4946 = vunpack.c.l.b16 %v4738
      %v4947 = vunpack.c.l.b16 %v4739
      %v4948 = vunpack.c.l.b16 %v4740
      %v4949 = vunpack.c.l.b16 %v4741
      %v4950 = vunpack.c.l.b16 %v4742
      %v4951 = vunpack.c.l.b16 %v4743
      %v4952 = vunpack.c.l.b16 %v4744
      %v4953 = vunpack.c.l.b16 %v4745
      %v4954 = vunpack.c.l.b16 %v4746
      %v4955 = vpack.c.b16 %v4939, %v4939
      %v4956 = vpack.c.b16 %v4940, %v4940
      %v4957 = vpack.c.b16 %v4941, %v4941
      %v4958 = vpack.c.b16 %v4942, %v4942
      %v4959 = vpack.c.b16 %v4943, %v4943
      %v4960 = vpack.c.b16 %v4944, %v4944
      %v4961 = vpack.c.b16 %v4945, %v4945
      %v4962 = vpack.c.b16 %v4946, %v4946
      %v4963 = vpack.c.b16 %v4947, %v4947
      %v4964 = vpack.c.b16 %v4948, %v4948
      %v4965 = vpack.c.b16 %v4949, %v4949
      %v4966 = vpack.c.b16 %v4950, %v4950
      %v4967 = vpack.c.b16 %v4951, %v4951
      %v4968 = vpack.c.b16 %v4952, %v4952
      %v4969 = vpack.c.b16 %v4953, %v4953
      %v4970 = vpack.c.b16 %v4954, %v4954
      %v4972 = vshrl.u32 %v4891, 16
      %v4974 = vshll.u32 %v4891, 16
      %v4976 = vrot.slane %v4974, 1
      %v4977 = vor.u32 %v4972, %v4976
      %v4979 = vshll.u32 %v4955, 16
      %v4981 = vrot.slane %v4979, 1
      %v4982 = vsel %vm1272, %v4977, %v4981
      %v4984 = vshrl.u32 %v4892, 16
      %v4986 = vshll.u32 %v4892, 16
      %v4988 = vrot.slane %v4986, 1
      %v4989 = vor.u32 %v4984, %v4988
      %v4991 = vshll.u32 %v4956, 16
      %v4993 = vrot.slane %v4991, 1
      %v4994 = vsel %vm1272, %v4989, %v4993
      %v4996 = vshrl.u32 %v4893, 16
      %v4998 = vshll.u32 %v4893, 16
      %v5000 = vrot.slane %v4998, 1
      %v5001 = vor.u32 %v4996, %v5000
      %v5003 = vshll.u32 %v4957, 16
      %v5005 = vrot.slane %v5003, 1
      %v5006 = vsel %vm1272, %v5001, %v5005
      %v5008 = vshrl.u32 %v4894, 16
      %v5010 = vshll.u32 %v4894, 16
      %v5012 = vrot.slane %v5010, 1
      %v5013 = vor.u32 %v5008, %v5012
      %v5015 = vshll.u32 %v4958, 16
      %v5017 = vrot.slane %v5015, 1
      %v5018 = vsel %vm1272, %v5013, %v5017
      %v5020 = vshrl.u32 %v4895, 16
      %v5022 = vshll.u32 %v4895, 16
      %v5024 = vrot.slane %v5022, 1
      %v5025 = vor.u32 %v5020, %v5024
      %v5027 = vshll.u32 %v4959, 16
      %v5029 = vrot.slane %v5027, 1
      %v5030 = vsel %vm1272, %v5025, %v5029
      %v5032 = vshrl.u32 %v4896, 16
      %v5034 = vshll.u32 %v4896, 16
      %v5036 = vrot.slane %v5034, 1
      %v5037 = vor.u32 %v5032, %v5036
      %v5039 = vshll.u32 %v4960, 16
      %v5041 = vrot.slane %v5039, 1
      %v5042 = vsel %vm1272, %v5037, %v5041
      %v5044 = vshrl.u32 %v4897, 16
      %v5046 = vshll.u32 %v4897, 16
      %v5048 = vrot.slane %v5046, 1
      %v5049 = vor.u32 %v5044, %v5048
      %v5051 = vshll.u32 %v4961, 16
      %v5053 = vrot.slane %v5051, 1
      %v5054 = vsel %vm1272, %v5049, %v5053
      %v5056 = vshrl.u32 %v4898, 16
      %v5058 = vshll.u32 %v4898, 16
      %v5060 = vrot.slane %v5058, 1
      %v5061 = vor.u32 %v5056, %v5060
      %v5063 = vshll.u32 %v4962, 16
      %v5065 = vrot.slane %v5063, 1
      %v5066 = vsel %vm1272, %v5061, %v5065
      %v5068 = vshrl.u32 %v4899, 16
      %v5070 = vshll.u32 %v4899, 16
      %v5072 = vrot.slane %v5070, 1
      %v5073 = vor.u32 %v5068, %v5072
      %v5075 = vshll.u32 %v4963, 16
      %v5077 = vrot.slane %v5075, 1
      %v5078 = vsel %vm1272, %v5073, %v5077
      %v5080 = vshrl.u32 %v4900, 16
      %v5082 = vshll.u32 %v4900, 16
      %v5084 = vrot.slane %v5082, 1
      %v5085 = vor.u32 %v5080, %v5084
      %v5087 = vshll.u32 %v4964, 16
      %v5089 = vrot.slane %v5087, 1
      %v5090 = vsel %vm1272, %v5085, %v5089
      %v5092 = vshrl.u32 %v4901, 16
      %v5094 = vshll.u32 %v4901, 16
      %v5096 = vrot.slane %v5094, 1
      %v5097 = vor.u32 %v5092, %v5096
      %v5099 = vshll.u32 %v4965, 16
      %v5101 = vrot.slane %v5099, 1
      %v5102 = vsel %vm1272, %v5097, %v5101
      %v5104 = vshrl.u32 %v4902, 16
      %v5106 = vshll.u32 %v4902, 16
      %v5108 = vrot.slane %v5106, 1
      %v5109 = vor.u32 %v5104, %v5108
      %v5111 = vshll.u32 %v4966, 16
      %v5113 = vrot.slane %v5111, 1
      %v5114 = vsel %vm1272, %v5109, %v5113
      %v5116 = vshrl.u32 %v4903, 16
      %v5118 = vshll.u32 %v4903, 16
      %v5120 = vrot.slane %v5118, 1
      %v5121 = vor.u32 %v5116, %v5120
      %v5123 = vshll.u32 %v4967, 16
      %v5125 = vrot.slane %v5123, 1
      %v5126 = vsel %vm1272, %v5121, %v5125
      %v5128 = vshrl.u32 %v4904, 16
      %v5130 = vshll.u32 %v4904, 16
      %v5132 = vrot.slane %v5130, 1
      %v5133 = vor.u32 %v5128, %v5132
      %v5135 = vshll.u32 %v4968, 16
      %v5137 = vrot.slane %v5135, 1
      %v5138 = vsel %vm1272, %v5133, %v5137
      %v5140 = vshrl.u32 %v4905, 16
      %v5142 = vshll.u32 %v4905, 16
      %v5144 = vrot.slane %v5142, 1
      %v5145 = vor.u32 %v5140, %v5144
      %v5147 = vshll.u32 %v4969, 16
      %v5149 = vrot.slane %v5147, 1
      %v5150 = vsel %vm1272, %v5145, %v5149
      %v5152 = vshrl.u32 %v4906, 16
      %v5154 = vshll.u32 %v4906, 16
      %v5156 = vrot.slane %v5154, 1
      %v5157 = vor.u32 %v5152, %v5156
      %v5159 = vshll.u32 %v4970, 16
      %v5161 = vrot.slane %v5159, 1
      %v5162 = vsel %vm1272, %v5157, %v5161
      %v5195 = vunpack.c.l.b16 %v4747
      %v5196 = vunpack.c.l.b16 %v4748
      %v5197 = vunpack.c.l.b16 %v4749
      %v5198 = vunpack.c.l.b16 %v4750
      %v5199 = vunpack.c.l.b16 %v4751
      %v5200 = vunpack.c.l.b16 %v4752
      %v5201 = vunpack.c.l.b16 %v4753
      %v5202 = vunpack.c.l.b16 %v4754
      %v5203 = vunpack.c.l.b16 %v4755
      %v5204 = vunpack.c.l.b16 %v4756
      %v5205 = vunpack.c.l.b16 %v4757
      %v5206 = vunpack.c.l.b16 %v4758
      %v5207 = vunpack.c.l.b16 %v4759
      %v5208 = vunpack.c.l.b16 %v4760
      %v5209 = vunpack.c.l.b16 %v4761
      %v5210 = vunpack.c.l.b16 %v4762
      %v5211 = vpack.c.b16 %v4860, %v5195
      %v5212 = vpack.c.b16 %v4862, %v5196
      %v5213 = vpack.c.b16 %v4864, %v5197
      %v5214 = vpack.c.b16 %v4866, %v5198
      %v5215 = vpack.c.b16 %v4868, %v5199
      %v5216 = vpack.c.b16 %v4870, %v5200
      %v5217 = vpack.c.b16 %v4872, %v5201
      %v5218 = vpack.c.b16 %v4874, %v5202
      %v5219 = vpack.c.b16 %v4876, %v5203
      %v5220 = vpack.c.b16 %v4878, %v5204
      %v5221 = vpack.c.b16 %v4880, %v5205
      %v5222 = vpack.c.b16 %v4882, %v5206
      %v5223 = vpack.c.b16 %v4884, %v5207
      %v5224 = vpack.c.b16 %v4886, %v5208
      %v5225 = vpack.c.b16 %v4888, %v5209
      %v5226 = vpack.c.b16 %v4890, %v5210
      %v5227 = vrot.slane %v5211, 1
      %v5228 = vrot.slane %v4955, 1
      %v5229 = vsel %vm1529, %v5227, %v5228
      %v5230 = vrot.slane %v5212, 1
      %v5231 = vrot.slane %v4956, 1
      %v5232 = vsel %vm1529, %v5230, %v5231
      %v5233 = vrot.slane %v5213, 1
      %v5234 = vrot.slane %v4957, 1
      %v5235 = vsel %vm1529, %v5233, %v5234
      %v5236 = vrot.slane %v5214, 1
      %v5237 = vrot.slane %v4958, 1
      %v5238 = vsel %vm1529, %v5236, %v5237
      %v5239 = vrot.slane %v5215, 1
      %v5240 = vrot.slane %v4959, 1
      %v5241 = vsel %vm1529, %v5239, %v5240
      %v5242 = vrot.slane %v5216, 1
      %v5243 = vrot.slane %v4960, 1
      %v5244 = vsel %vm1529, %v5242, %v5243
      %v5245 = vrot.slane %v5217, 1
      %v5246 = vrot.slane %v4961, 1
      %v5247 = vsel %vm1529, %v5245, %v5246
      %v5248 = vrot.slane %v5218, 1
      %v5249 = vrot.slane %v4962, 1
      %v5250 = vsel %vm1529, %v5248, %v5249
      %v5251 = vrot.slane %v5219, 1
      %v5252 = vrot.slane %v4963, 1
      %v5253 = vsel %vm1529, %v5251, %v5252
      %v5254 = vrot.slane %v5220, 1
      %v5255 = vrot.slane %v4964, 1
      %v5256 = vsel %vm1529, %v5254, %v5255
      %v5257 = vrot.slane %v5221, 1
      %v5258 = vrot.slane %v4965, 1
      %v5259 = vsel %vm1529, %v5257, %v5258
      %v5260 = vrot.slane %v5222, 1
      %v5261 = vrot.slane %v4966, 1
      %v5262 = vsel %vm1529, %v5260, %v5261
      %v5263 = vrot.slane %v5223, 1
      %v5264 = vrot.slane %v4967, 1
      %v5265 = vsel %vm1529, %v5263, %v5264
      %v5266 = vrot.slane %v5224, 1
      %v5267 = vrot.slane %v4968, 1
      %v5268 = vsel %vm1529, %v5266, %v5267
      %v5269 = vrot.slane %v5225, 1
      %v5270 = vrot.slane %v4969, 1
      %v5271 = vsel %vm1529, %v5269, %v5270
      %v5272 = vrot.slane %v5226, 1
      %v5273 = vrot.slane %v4970, 1
      %v5274 = vsel %vm1529, %v5272, %v5273
      %v5323 = vunpack.c.l.b16 %v4763
      %v5324 = vunpack.c.l.b16 %v4764
      %v5325 = vunpack.c.l.b16 %v4765
      %v5326 = vunpack.c.l.b16 %v4766
      %v5327 = vunpack.c.l.b16 %v4767
      %v5328 = vunpack.c.l.b16 %v4768
      %v5329 = vunpack.c.l.b16 %v4769
      %v5330 = vunpack.c.l.b16 %v4770
      %v5331 = vunpack.c.l.b16 %v4771
      %v5332 = vunpack.c.l.b16 %v4772
      %v5333 = vunpack.c.l.b16 %v4773
      %v5334 = vunpack.c.l.b16 %v4774
      %v5335 = vunpack.c.l.b16 %v4775
      %v5336 = vunpack.c.l.b16 %v4776
      %v5337 = vunpack.c.l.b16 %v4777
      %v5338 = vunpack.c.l.b16 %v4778
      %v5339 = vunpack.c.l.b16 %v4779
      %v5340 = vunpack.c.l.b16 %v4780
      %v5341 = vunpack.c.l.b16 %v4781
      %v5342 = vunpack.c.l.b16 %v4782
      %v5343 = vunpack.c.l.b16 %v4783
      %v5344 = vunpack.c.l.b16 %v4784
      %v5345 = vunpack.c.l.b16 %v4785
      %v5346 = vunpack.c.l.b16 %v4786
      %v5347 = vunpack.c.l.b16 %v4787
      %v5348 = vunpack.c.l.b16 %v4788
      %v5349 = vunpack.c.l.b16 %v4789
      %v5350 = vunpack.c.l.b16 %v4790
      %v5351 = vunpack.c.l.b16 %v4791
      %v5352 = vunpack.c.l.b16 %v4792
      %v5353 = vunpack.c.l.b16 %v4793
      %v5354 = vunpack.c.l.b16 %v4794
      %v5355 = vpack.c.b16 %v5324, %v5323
      %v5356 = vpack.c.b16 %v5326, %v5325
      %v5357 = vpack.c.b16 %v5328, %v5327
      %v5358 = vpack.c.b16 %v5330, %v5329
      %v5359 = vpack.c.b16 %v5332, %v5331
      %v5360 = vpack.c.b16 %v5334, %v5333
      %v5361 = vpack.c.b16 %v5336, %v5335
      %v5362 = vpack.c.b16 %v5338, %v5337
      %v5363 = vpack.c.b16 %v5340, %v5339
      %v5364 = vpack.c.b16 %v5342, %v5341
      %v5365 = vpack.c.b16 %v5344, %v5343
      %v5366 = vpack.c.b16 %v5346, %v5345
      %v5367 = vpack.c.b16 %v5348, %v5347
      %v5368 = vpack.c.b16 %v5350, %v5349
      %v5369 = vpack.c.b16 %v5352, %v5351
      %v5370 = vpack.c.b16 %v5354, %v5353
      %v5403 = vunpack.c.l.b16 %v4795
      %v5404 = vunpack.c.l.b16 %v4796
      %v5405 = vunpack.c.l.b16 %v4797
      %v5406 = vunpack.c.l.b16 %v4798
      %v5407 = vunpack.c.l.b16 %v4799
      %v5408 = vunpack.c.l.b16 %v4800
      %v5409 = vunpack.c.l.b16 %v4801
      %v5410 = vunpack.c.l.b16 %v4802
      %v5411 = vunpack.c.l.b16 %v4803
      %v5412 = vunpack.c.l.b16 %v4804
      %v5413 = vunpack.c.l.b16 %v4805
      %v5414 = vunpack.c.l.b16 %v4806
      %v5415 = vunpack.c.l.b16 %v4807
      %v5416 = vunpack.c.l.b16 %v4808
      %v5417 = vunpack.c.l.b16 %v4809
      %v5418 = vunpack.c.l.b16 %v4810
      %v5419 = vpack.c.b16 %v5403, %v5403
      %v5420 = vpack.c.b16 %v5404, %v5404
      %v5421 = vpack.c.b16 %v5405, %v5405
      %v5422 = vpack.c.b16 %v5406, %v5406
      %v5423 = vpack.c.b16 %v5407, %v5407
      %v5424 = vpack.c.b16 %v5408, %v5408
      %v5425 = vpack.c.b16 %v5409, %v5409
      %v5426 = vpack.c.b16 %v5410, %v5410
      %v5427 = vpack.c.b16 %v5411, %v5411
      %v5428 = vpack.c.b16 %v5412, %v5412
      %v5429 = vpack.c.b16 %v5413, %v5413
      %v5430 = vpack.c.b16 %v5414, %v5414
      %v5431 = vpack.c.b16 %v5415, %v5415
      %v5432 = vpack.c.b16 %v5416, %v5416
      %v5433 = vpack.c.b16 %v5417, %v5417
      %v5434 = vpack.c.b16 %v5418, %v5418
      %v5436 = vshrl.u32 %v5355, 16
      %v5438 = vshll.u32 %v5355, 16
      %v5440 = vrot.slane %v5438, 1
      %v5441 = vor.u32 %v5436, %v5440
      %v5443 = vshll.u32 %v5419, 16
      %v5445 = vrot.slane %v5443, 1
      %v5446 = vsel %vm1272, %v5441, %v5445
      %v5448 = vshrl.u32 %v5356, 16
      %v5450 = vshll.u32 %v5356, 16
      %v5452 = vrot.slane %v5450, 1
      %v5453 = vor.u32 %v5448, %v5452
      %v5455 = vshll.u32 %v5420, 16
      %v5457 = vrot.slane %v5455, 1
      %v5458 = vsel %vm1272, %v5453, %v5457
      %v5460 = vshrl.u32 %v5357, 16
      %v5462 = vshll.u32 %v5357, 16
      %v5464 = vrot.slane %v5462, 1
      %v5465 = vor.u32 %v5460, %v5464
      %v5467 = vshll.u32 %v5421, 16
      %v5469 = vrot.slane %v5467, 1
      %v5470 = vsel %vm1272, %v5465, %v5469
      %v5472 = vshrl.u32 %v5358, 16
      %v5474 = vshll.u32 %v5358, 16
      %v5476 = vrot.slane %v5474, 1
      %v5477 = vor.u32 %v5472, %v5476
      %v5479 = vshll.u32 %v5422, 16
      %v5481 = vrot.slane %v5479, 1
      %v5482 = vsel %vm1272, %v5477, %v5481
      %v5484 = vshrl.u32 %v5359, 16
      %v5486 = vshll.u32 %v5359, 16
      %v5488 = vrot.slane %v5486, 1
      %v5489 = vor.u32 %v5484, %v5488
      %v5491 = vshll.u32 %v5423, 16
      %v5493 = vrot.slane %v5491, 1
      %v5494 = vsel %vm1272, %v5489, %v5493
      %v5496 = vshrl.u32 %v5360, 16
      %v5498 = vshll.u32 %v5360, 16
      %v5500 = vrot.slane %v5498, 1
      %v5501 = vor.u32 %v5496, %v5500
      %v5503 = vshll.u32 %v5424, 16
      %v5505 = vrot.slane %v5503, 1
      %v5506 = vsel %vm1272, %v5501, %v5505
      %v5508 = vshrl.u32 %v5361, 16
      %v5510 = vshll.u32 %v5361, 16
      %v5512 = vrot.slane %v5510, 1
      %v5513 = vor.u32 %v5508, %v5512
      %v5515 = vshll.u32 %v5425, 16
      %v5517 = vrot.slane %v5515, 1
      %v5518 = vsel %vm1272, %v5513, %v5517
      %v5520 = vshrl.u32 %v5362, 16
      %v5522 = vshll.u32 %v5362, 16
      %v5524 = vrot.slane %v5522, 1
      %v5525 = vor.u32 %v5520, %v5524
      %v5527 = vshll.u32 %v5426, 16
      %v5529 = vrot.slane %v5527, 1
      %v5530 = vsel %vm1272, %v5525, %v5529
      %v5532 = vshrl.u32 %v5363, 16
      %v5534 = vshll.u32 %v5363, 16
      %v5536 = vrot.slane %v5534, 1
      %v5537 = vor.u32 %v5532, %v5536
      %v5539 = vshll.u32 %v5427, 16
      %v5541 = vrot.slane %v5539, 1
      %v5542 = vsel %vm1272, %v5537, %v5541
      %v5544 = vshrl.u32 %v5364, 16
      %v5546 = vshll.u32 %v5364, 16
      %v5548 = vrot.slane %v5546, 1
      %v5549 = vor.u32 %v5544, %v5548
      %v5551 = vshll.u32 %v5428, 16
      %v5553 = vrot.slane %v5551, 1
      %v5554 = vsel %vm1272, %v5549, %v5553
      %v5556 = vshrl.u32 %v5365, 16
      %v5558 = vshll.u32 %v5365, 16
      %v5560 = vrot.slane %v5558, 1
      %v5561 = vor.u32 %v5556, %v5560
      %v5563 = vshll.u32 %v5429, 16
      %v5565 = vrot.slane %v5563, 1
      %v5566 = vsel %vm1272, %v5561, %v5565
      %v5568 = vshrl.u32 %v5366, 16
      %v5570 = vshll.u32 %v5366, 16
      %v5572 = vrot.slane %v5570, 1
      %v5573 = vor.u32 %v5568, %v5572
      %v5575 = vshll.u32 %v5430, 16
      %v5577 = vrot.slane %v5575, 1
      %v5578 = vsel %vm1272, %v5573, %v5577
      %v5580 = vshrl.u32 %v5367, 16
      %v5582 = vshll.u32 %v5367, 16
      %v5584 = vrot.slane %v5582, 1
      %v5585 = vor.u32 %v5580, %v5584
      %v5587 = vshll.u32 %v5431, 16
      %v5589 = vrot.slane %v5587, 1
      %v5590 = vsel %vm1272, %v5585, %v5589
      %v5592 = vshrl.u32 %v5368, 16
      %v5594 = vshll.u32 %v5368, 16
      %v5596 = vrot.slane %v5594, 1
      %v5597 = vor.u32 %v5592, %v5596
      %v5599 = vshll.u32 %v5432, 16
      %v5601 = vrot.slane %v5599, 1
      %v5602 = vsel %vm1272, %v5597, %v5601
      %v5604 = vshrl.u32 %v5369, 16
      %v5606 = vshll.u32 %v5369, 16
      %v5608 = vrot.slane %v5606, 1
      %v5609 = vor.u32 %v5604, %v5608
      %v5611 = vshll.u32 %v5433, 16
      %v5613 = vrot.slane %v5611, 1
      %v5614 = vsel %vm1272, %v5609, %v5613
      %v5616 = vshrl.u32 %v5370, 16
      %v5618 = vshll.u32 %v5370, 16
      %v5620 = vrot.slane %v5618, 1
      %v5621 = vor.u32 %v5616, %v5620
      %v5623 = vshll.u32 %v5434, 16
      %v5625 = vrot.slane %v5623, 1
      %v5626 = vsel %vm1272, %v5621, %v5625
      %v5659 = vunpack.c.l.b16 %v4811
      %v5660 = vunpack.c.l.b16 %v4812
      %v5661 = vunpack.c.l.b16 %v4813
      %v5662 = vunpack.c.l.b16 %v4814
      %v5663 = vunpack.c.l.b16 %v4815
      %v5664 = vunpack.c.l.b16 %v4816
      %v5665 = vunpack.c.l.b16 %v4817
      %v5666 = vunpack.c.l.b16 %v4818
      %v5667 = vunpack.c.l.b16 %v4819
      %v5668 = vunpack.c.l.b16 %v4820
      %v5669 = vunpack.c.l.b16 %v4821
      %v5670 = vunpack.c.l.b16 %v4822
      %v5671 = vunpack.c.l.b16 %v4823
      %v5672 = vunpack.c.l.b16 %v4824
      %v5673 = vunpack.c.l.b16 %v4825
      %v5674 = vunpack.c.l.b16 %v4826
      %v5675 = vpack.c.b16 %v5324, %v5659
      %v5676 = vpack.c.b16 %v5326, %v5660
      %v5677 = vpack.c.b16 %v5328, %v5661
      %v5678 = vpack.c.b16 %v5330, %v5662
      %v5679 = vpack.c.b16 %v5332, %v5663
      %v5680 = vpack.c.b16 %v5334, %v5664
      %v5681 = vpack.c.b16 %v5336, %v5665
      %v5682 = vpack.c.b16 %v5338, %v5666
      %v5683 = vpack.c.b16 %v5340, %v5667
      %v5684 = vpack.c.b16 %v5342, %v5668
      %v5685 = vpack.c.b16 %v5344, %v5669
      %v5686 = vpack.c.b16 %v5346, %v5670
      %v5687 = vpack.c.b16 %v5348, %v5671
      %v5688 = vpack.c.b16 %v5350, %v5672
      %v5689 = vpack.c.b16 %v5352, %v5673
      %v5690 = vpack.c.b16 %v5354, %v5674
      %v5691 = vrot.slane %v5675, 1
      %v5692 = vrot.slane %v5419, 1
      %v5693 = vsel %vm1529, %v5691, %v5692
      %v5694 = vrot.slane %v5676, 1
      %v5695 = vrot.slane %v5420, 1
      %v5696 = vsel %vm1529, %v5694, %v5695
      %v5697 = vrot.slane %v5677, 1
      %v5698 = vrot.slane %v5421, 1
      %v5699 = vsel %vm1529, %v5697, %v5698
      %v5700 = vrot.slane %v5678, 1
      %v5701 = vrot.slane %v5422, 1
      %v5702 = vsel %vm1529, %v5700, %v5701
      %v5703 = vrot.slane %v5679, 1
      %v5704 = vrot.slane %v5423, 1
      %v5705 = vsel %vm1529, %v5703, %v5704
      %v5706 = vrot.slane %v5680, 1
      %v5707 = vrot.slane %v5424, 1
      %v5708 = vsel %vm1529, %v5706, %v5707
      %v5709 = vrot.slane %v5681, 1
      %v5710 = vrot.slane %v5425, 1
      %v5711 = vsel %vm1529, %v5709, %v5710
      %v5712 = vrot.slane %v5682, 1
      %v5713 = vrot.slane %v5426, 1
      %v5714 = vsel %vm1529, %v5712, %v5713
      %v5715 = vrot.slane %v5683, 1
      %v5716 = vrot.slane %v5427, 1
      %v5717 = vsel %vm1529, %v5715, %v5716
      %v5718 = vrot.slane %v5684, 1
      %v5719 = vrot.slane %v5428, 1
      %v5720 = vsel %vm1529, %v5718, %v5719
      %v5721 = vrot.slane %v5685, 1
      %v5722 = vrot.slane %v5429, 1
      %v5723 = vsel %vm1529, %v5721, %v5722
      %v5724 = vrot.slane %v5686, 1
      %v5725 = vrot.slane %v5430, 1
      %v5726 = vsel %vm1529, %v5724, %v5725
      %v5727 = vrot.slane %v5687, 1
      %v5728 = vrot.slane %v5431, 1
      %v5729 = vsel %vm1529, %v5727, %v5728
      %v5730 = vrot.slane %v5688, 1
      %v5731 = vrot.slane %v5432, 1
      %v5732 = vsel %vm1529, %v5730, %v5731
      %v5733 = vrot.slane %v5689, 1
      %v5734 = vrot.slane %v5433, 1
      %v5735 = vsel %vm1529, %v5733, %v5734
      %v5736 = vrot.slane %v5690, 1
      %v5737 = vrot.slane %v5434, 1
      %v5738 = vsel %vm1529, %v5736, %v5737
      %v5755 = vld [vmem:[%s3] sm:$0xf]
      %v5756 = vld [vmem:[%s3 + $0x4] sm:$0xf]
      %v5757 = vld [vmem:[%s3 + $0x8] sm:$0xf]
      %v5758 = vld [vmem:[%s3 + $0xc] sm:$0xf]
      %v5759 = vld [vmem:[%s3 + $0x10] sm:$0xf]
      %v5760 = vld [vmem:[%s3 + $0x14] sm:$0xf]
      %v5761 = vld [vmem:[%s3 + $0x18] sm:$0xf]
      %v5762 = vld [vmem:[%s3 + $0x1c] sm:$0xf]
      %v5763 = vld [vmem:[%s3 + $0x20] sm:$0xf]
      %v5764 = vld [vmem:[%s3 + $0x24] sm:$0xf]
      %v5765 = vld [vmem:[%s3 + $0x28] sm:$0xf]
      %v5766 = vld [vmem:[%s3 + $0x2c] sm:$0xf]
      %v5767 = vld [vmem:[%s3 + $0x30] sm:$0xf]
      %v5768 = vld [vmem:[%s3 + $0x34] sm:$0xf]
      %v5769 = vld [vmem:[%s3 + $0x38] sm:$0xf]
      %v5770 = vld [vmem:[%s3 + $0x3c] sm:$0xf]
      %v5771 = vld [vmem:[%s3 + $0x40] sm:$0xf]
      %v5772 = vld [vmem:[%s3 + $0x44] sm:$0xf]
      %v5773 = vld [vmem:[%s3 + $0x48] sm:$0xf]
      %v5774 = vld [vmem:[%s3 + $0x4c] sm:$0xf]
      %v5775 = vld [vmem:[%s3 + $0x50] sm:$0xf]
      %v5776 = vld [vmem:[%s3 + $0x54] sm:$0xf]
      %v5777 = vld [vmem:[%s3 + $0x58] sm:$0xf]
      %v5778 = vld [vmem:[%s3 + $0x5c] sm:$0xf]
      %v5779 = vld [vmem:[%s3 + $0x60] sm:$0xf]
      %v5780 = vld [vmem:[%s3 + $0x64] sm:$0xf]
      %v5781 = vld [vmem:[%s3 + $0x68] sm:$0xf]
      %v5782 = vld [vmem:[%s3 + $0x6c] sm:$0xf]
      %v5783 = vld [vmem:[%s3 + $0x70] sm:$0xf]
      %v5784 = vld [vmem:[%s3 + $0x74] sm:$0xf]
      %v5785 = vld [vmem:[%s3 + $0x78] sm:$0xf]
      %v5786 = vld [vmem:[%s3 + $0x7c] sm:$0xf]
      %v5787 = vld [vmem:[%s3 + $0x80] sm:$0xf]
      %v5788 = vld [vmem:[%s3 + $0x84] sm:$0xf]
      %v5789 = vld [vmem:[%s3 + $0x88] sm:$0xf]
      %v5790 = vld [vmem:[%s3 + $0x8c] sm:$0xf]
      %v5791 = vld [vmem:[%s3 + $0x90] sm:$0xf]
      %v5792 = vld [vmem:[%s3 + $0x94] sm:$0xf]
      %v5793 = vld [vmem:[%s3 + $0x98] sm:$0xf]
      %v5794 = vld [vmem:[%s3 + $0x9c] sm:$0xf]
      %v5795 = vld [vmem:[%s3 + $0xa0] sm:$0xf]
      %v5796 = vld [vmem:[%s3 + $0xa4] sm:$0xf]
      %v5797 = vld [vmem:[%s3 + $0xa8] sm:$0xf]
      %v5798 = vld [vmem:[%s3 + $0xac] sm:$0xf]
      %v5799 = vld [vmem:[%s3 + $0xb0] sm:$0xf]
      %v5800 = vld [vmem:[%s3 + $0xb4] sm:$0xf]
      %v5801 = vld [vmem:[%s3 + $0xb8] sm:$0xf]
      %v5802 = vld [vmem:[%s3 + $0xbc] sm:$0xf]
      %v5803 = vld [vmem:[%s3 + $0xc0] sm:$0xf]
      %v5804 = vld [vmem:[%s3 + $0xc4] sm:$0xf]
      %v5805 = vld [vmem:[%s3 + $0xc8] sm:$0xf]
      %v5806 = vld [vmem:[%s3 + $0xcc] sm:$0xf]
      %v5807 = vld [vmem:[%s3 + $0xd0] sm:$0xf]
      %v5808 = vld [vmem:[%s3 + $0xd4] sm:$0xf]
      %v5809 = vld [vmem:[%s3 + $0xd8] sm:$0xf]
      %v5810 = vld [vmem:[%s3 + $0xdc] sm:$0xf]
      %v5811 = vld [vmem:[%s3 + $0xe0] sm:$0xf]
      %v5812 = vld [vmem:[%s3 + $0xe4] sm:$0xf]
      %v5813 = vld [vmem:[%s3 + $0xe8] sm:$0xf]
      %v5814 = vld [vmem:[%s3 + $0xec] sm:$0xf]
      %v5815 = vld [vmem:[%s3 + $0xf0] sm:$0xf]
      %v5816 = vld [vmem:[%s3 + $0xf4] sm:$0xf]
      %v5817 = vld [vmem:[%s3 + $0xf8] sm:$0xf]
      %v5818 = vld [vmem:[%s3 + $0xfc] sm:$0xf]
      %v5819 = vld [vmem:[%s3 + $0x100] sm:$0xf]
      %v5820 = vld [vmem:[%s3 + $0x104] sm:$0xf]
      %v5821 = vld [vmem:[%s3 + $0x108] sm:$0xf]
      %v5822 = vld [vmem:[%s3 + $0x10c] sm:$0xf]
      %v5823 = vld [vmem:[%s3 + $0x110] sm:$0xf]
      %v5824 = vld [vmem:[%s3 + $0x114] sm:$0xf]
      %v5825 = vld [vmem:[%s3 + $0x118] sm:$0xf]
      %v5826 = vld [vmem:[%s3 + $0x11c] sm:$0xf]
      %v5827 = vld [vmem:[%s3 + $0x120] sm:$0xf]
      %v5828 = vld [vmem:[%s3 + $0x124] sm:$0xf]
      %v5829 = vld [vmem:[%s3 + $0x128] sm:$0xf]
      %v5830 = vld [vmem:[%s3 + $0x12c] sm:$0xf]
      %v5831 = vld [vmem:[%s3 + $0x130] sm:$0xf]
      %v5832 = vld [vmem:[%s3 + $0x134] sm:$0xf]
      %v5833 = vld [vmem:[%s3 + $0x138] sm:$0xf]
      %v5834 = vld [vmem:[%s3 + $0x13c] sm:$0xf]
      %v5835 = vld [vmem:[%s3 + $0x140] sm:$0xf]
      %v5836 = vld [vmem:[%s3 + $0x144] sm:$0xf]
      %v5837 = vld [vmem:[%s3 + $0x148] sm:$0xf]
      %v5838 = vld [vmem:[%s3 + $0x14c] sm:$0xf]
      %v5839 = vld [vmem:[%s3 + $0x150] sm:$0xf]
      %v5840 = vld [vmem:[%s3 + $0x154] sm:$0xf]
      %v5841 = vld [vmem:[%s3 + $0x158] sm:$0xf]
      %v5842 = vld [vmem:[%s3 + $0x15c] sm:$0xf]
      %v5843 = vld [vmem:[%s3 + $0x160] sm:$0xf]
      %v5844 = vld [vmem:[%s3 + $0x164] sm:$0xf]
      %v5845 = vld [vmem:[%s3 + $0x168] sm:$0xf]
      %v5846 = vld [vmem:[%s3 + $0x16c] sm:$0xf]
      %v5847 = vld [vmem:[%s3 + $0x170] sm:$0xf]
      %v5848 = vld [vmem:[%s3 + $0x174] sm:$0xf]
      %v5849 = vld [vmem:[%s3 + $0x178] sm:$0xf]
      %v5850 = vld [vmem:[%s3 + $0x17c] sm:$0xf]
      %v5852 = vlaneseq
      %v5853 = vshrl.u32 %v5852, 7
      %v5854 = vsub.s32 0, %v5853
      %v5855 = vrot.slane %v4698, %v5854
      %v5953 = vunpack.c.l.b16 %v5755
      %v5954 = vunpack.c.l.b16 %v5756
      %v5955 = vunpack.c.l.b16 %v5757
      %v5956 = vunpack.c.l.b16 %v5758
      %v5957 = vunpack.c.l.b16 %v5759
      %v5958 = vunpack.c.l.b16 %v5760
      %v5959 = vunpack.c.l.b16 %v5761
      %v5960 = vunpack.c.l.b16 %v5762
      %v5961 = vunpack.c.l.b16 %v5763
      %v5962 = vunpack.c.l.b16 %v5764
      %v5963 = vunpack.c.l.b16 %v5765
      %v5964 = vunpack.c.l.b16 %v5766
      %v5965 = vunpack.c.l.b16 %v5767
      %v5966 = vunpack.c.l.b16 %v5768
      %v5967 = vunpack.c.l.b16 %v5769
      %v5968 = vunpack.c.l.b16 %v5770
      %v5969 = vunpack.c.l.b16 %v5771
      %v5970 = vunpack.c.l.b16 %v5772
      %v5971 = vunpack.c.l.b16 %v5773
      %v5972 = vunpack.c.l.b16 %v5774
      %v5973 = vunpack.c.l.b16 %v5775
      %v5974 = vunpack.c.l.b16 %v5776
      %v5975 = vunpack.c.l.b16 %v5777
      %v5976 = vunpack.c.l.b16 %v5778
      %v5977 = vunpack.c.l.b16 %v5779
      %v5978 = vunpack.c.l.b16 %v5780
      %v5979 = vunpack.c.l.b16 %v5781
      %v5980 = vunpack.c.l.b16 %v5782
      %v5981 = vunpack.c.l.b16 %v5783
      %v5982 = vunpack.c.l.b16 %v5784
      %v5983 = vunpack.c.l.b16 %v5785
      %v5984 = vunpack.c.l.b16 %v5786
      %v5985 = vunpack.c.l.b16 %v5787
      %v5986 = vunpack.c.l.b16 %v5788
      %v5987 = vunpack.c.l.b16 %v5789
      %v5988 = vunpack.c.l.b16 %v5790
      %v5989 = vunpack.c.l.b16 %v5791
      %v5990 = vunpack.c.l.b16 %v5792
      %v5991 = vunpack.c.l.b16 %v5793
      %v5992 = vunpack.c.l.b16 %v5794
      %v5993 = vunpack.c.l.b16 %v5795
      %v5994 = vunpack.c.l.b16 %v5796
      %v5995 = vunpack.c.l.b16 %v5797
      %v5996 = vunpack.c.l.b16 %v5798
      %v5997 = vunpack.c.l.b16 %v5799
      %v5998 = vunpack.c.l.b16 %v5800
      %v5999 = vunpack.c.l.b16 %v5801
      %v6000 = vunpack.c.l.b16 %v5802
      %v6001 = vunpack.c.l.b16 %v5803
      %v6002 = vunpack.c.l.b16 %v5804
      %v6003 = vunpack.c.l.b16 %v5805
      %v6004 = vunpack.c.l.b16 %v5806
      %v6005 = vunpack.c.l.b16 %v5807
      %v6006 = vunpack.c.l.b16 %v5808
      %v6007 = vunpack.c.l.b16 %v5809
      %v6008 = vunpack.c.l.b16 %v5810
      %v6009 = vunpack.c.l.b16 %v5811
      %v6010 = vunpack.c.l.b16 %v5812
      %v6011 = vunpack.c.l.b16 %v5813
      %v6012 = vunpack.c.l.b16 %v5814
      %v6013 = vunpack.c.l.b16 %v5815
      %v6014 = vunpack.c.l.b16 %v5816
      %v6015 = vunpack.c.l.b16 %v5817
      %v6016 = vunpack.c.l.b16 %v5818
      %v6017 = vunpack.c.l.b16 %v5819
      %v6018 = vunpack.c.l.b16 %v5820
      %v6019 = vunpack.c.l.b16 %v5821
      %v6020 = vunpack.c.l.b16 %v5822
      %v6021 = vunpack.c.l.b16 %v5823
      %v6022 = vunpack.c.l.b16 %v5824
      %v6023 = vunpack.c.l.b16 %v5825
      %v6024 = vunpack.c.l.b16 %v5826
      %v6025 = vunpack.c.l.b16 %v5827
      %v6026 = vunpack.c.l.b16 %v5828
      %v6027 = vunpack.c.l.b16 %v5829
      %v6028 = vunpack.c.l.b16 %v5830
      %v6029 = vunpack.c.l.b16 %v5831
      %v6030 = vunpack.c.l.b16 %v5832
      %v6031 = vunpack.c.l.b16 %v5833
      %v6032 = vunpack.c.l.b16 %v5834
      %v6033 = vunpack.c.l.b16 %v5835
      %v6034 = vunpack.c.l.b16 %v5836
      %v6035 = vunpack.c.l.b16 %v5837
      %v6036 = vunpack.c.l.b16 %v5838
      %v6037 = vunpack.c.l.b16 %v5839
      %v6038 = vunpack.c.l.b16 %v5840
      %v6039 = vunpack.c.l.b16 %v5841
      %v6040 = vunpack.c.l.b16 %v5842
      %v6041 = vunpack.c.l.b16 %v5843
      %v6042 = vunpack.c.l.b16 %v5844
      %v6043 = vunpack.c.l.b16 %v5845
      %v6044 = vunpack.c.l.b16 %v5846
      %v6045 = vunpack.c.l.b16 %v5847
      %v6046 = vunpack.c.l.b16 %v5848
      %v6047 = vunpack.c.l.b16 %v5849
      %v6048 = vunpack.c.l.b16 %v5850
      %v6049 = vpack.c.b16 %v5954, %v5953
      %v6050 = vpack.c.b16 %v5956, %v5955
      %v6051 = vpack.c.b16 %v5958, %v5957
      %v6052 = vpack.c.b16 %v5960, %v5959
      %v6053 = vpack.c.b16 %v5962, %v5961
      %v6054 = vpack.c.b16 %v5964, %v5963
      %v6055 = vpack.c.b16 %v5966, %v5965
      %v6056 = vpack.c.b16 %v5968, %v5967
      %v6057 = vpack.c.b16 %v5970, %v5969
      %v6058 = vpack.c.b16 %v5972, %v5971
      %v6059 = vpack.c.b16 %v5974, %v5973
      %v6060 = vpack.c.b16 %v5976, %v5975
      %v6061 = vpack.c.b16 %v5978, %v5977
      %v6062 = vpack.c.b16 %v5980, %v5979
      %v6063 = vpack.c.b16 %v5982, %v5981
      %v6064 = vpack.c.b16 %v5984, %v5983
      %v6065 = vpack.c.b16 %v5986, %v5985
      %v6066 = vpack.c.b16 %v5988, %v5987
      %v6067 = vpack.c.b16 %v5990, %v5989
      %v6068 = vpack.c.b16 %v5992, %v5991
      %v6069 = vpack.c.b16 %v5994, %v5993
      %v6070 = vpack.c.b16 %v5996, %v5995
      %v6071 = vpack.c.b16 %v5998, %v5997
      %v6072 = vpack.c.b16 %v6000, %v5999
      %v6073 = vpack.c.b16 %v6002, %v6001
      %v6074 = vpack.c.b16 %v6004, %v6003
      %v6075 = vpack.c.b16 %v6006, %v6005
      %v6076 = vpack.c.b16 %v6008, %v6007
      %v6077 = vpack.c.b16 %v6010, %v6009
      %v6078 = vpack.c.b16 %v6012, %v6011
      %v6079 = vpack.c.b16 %v6014, %v6013
      %v6080 = vpack.c.b16 %v6016, %v6015
      %v6081 = vpack.c.b16 %v6018, %v6017
      %v6082 = vpack.c.b16 %v6020, %v6019
      %v6083 = vpack.c.b16 %v6022, %v6021
      %v6084 = vpack.c.b16 %v6024, %v6023
      %v6085 = vpack.c.b16 %v6026, %v6025
      %v6086 = vpack.c.b16 %v6028, %v6027
      %v6087 = vpack.c.b16 %v6030, %v6029
      %v6088 = vpack.c.b16 %v6032, %v6031
      %v6089 = vpack.c.b16 %v6034, %v6033
      %v6090 = vpack.c.b16 %v6036, %v6035
      %v6091 = vpack.c.b16 %v6038, %v6037
      %v6092 = vpack.c.b16 %v6040, %v6039
      %v6093 = vpack.c.b16 %v6042, %v6041
      %v6094 = vpack.c.b16 %v6044, %v6043
      %v6095 = vpack.c.b16 %v6046, %v6045
      %v6096 = vpack.c.b16 %v6048, %v6047
      %6145 = vmatprep.subr.bf16.mxu0 0
      %6146 = vmatpush1.bf16.msra.mxu0 %v6056
      %6147 = vmatprep.subr.bf16.mxu0 0
      %6148 = vmatpush1.bf16.msra.mxu0 %v6055
      %6149 = vmatprep.subr.bf16.mxu0 0
      %6150 = vmatpush1.bf16.msra.mxu0 %v6054
      %6151 = vmatprep.subr.bf16.mxu0 0
      %6152 = vmatpush1.bf16.msra.mxu0 %v6053
      %6153 = vmatprep.subr.bf16.mxu0 0
      %6154 = vmatpush1.bf16.msra.mxu0 %v6052
      %6155 = vmatprep.subr.bf16.mxu0 0
      %6156 = vmatpush1.bf16.msra.mxu0 %v6051
      %6157 = vmatprep.subr.bf16.mxu0 0
      %6158 = vmatpush1.bf16.msra.mxu0 %v6050
      %6159 = vmatprep.subr.bf16.mxu0 0
      %6160 = vmatpush1.bf16.msra.mxu0 %v6049
      %6161 = vmatprep.subr.bf16.mxu0 0
      %6162 = vmatpush2.bf16.msra.mxu0 %v6064
      %6163 = vmatprep.subr.bf16.mxu0 0
      %6164 = vmatpush2.bf16.msra.mxu0 %v6063
      %6165 = vmatprep.subr.bf16.mxu0 0
      %6166 = vmatpush2.bf16.msra.mxu0 %v6062
      %6167 = vmatprep.subr.bf16.mxu0 0
      %6168 = vmatpush2.bf16.msra.mxu0 %v6061
      %6169 = vmatprep.subr.bf16.mxu0 0
      %6170 = vmatpush2.bf16.msra.mxu0 %v6060
      %6171 = vmatprep.subr.bf16.mxu0 0
      %6172 = vmatpush2.bf16.msra.mxu0 %v6059
      %6173 = vmatprep.subr.bf16.mxu0 0
      %6174 = vmatpush2.bf16.msra.mxu0 %v6058
      %6175 = vmatprep.subr.bf16.mxu0 0
      %6176 = vmatpush2.bf16.msra.mxu0 %v6057
      %6177 = vmatprep.mubr.bf16.mxu0 %v4982
      %6178 = vmatmul.mubr.bf16.gmra.mxu0 %v4891
      %v6179 = vpop.f32.mrf.mxu0
      %v6180 = vadd.f32 %v5855, %v6179
      %v6181 = vpop.f32.mrf.mxu0
      %v6182 = vpop.f32.mrf.mxu0
      %v6183 = vadd.f32 %v5855, %v6182
      %v6184 = vpop.f32.mrf.mxu0
      %6185 = vmatprep.mubr.bf16.mxu0 %v4994
      %6186 = vmatmul.mubr.bf16.gmra.mxu0 %v4892
      %v6187 = vpop.f32.mrf.mxu0
      %v6188 = vadd.f32 %v5855, %v6187
      %v6189 = vpop.f32.mrf.mxu0
      %v6190 = vpop.f32.mrf.mxu0
      %v6191 = vadd.f32 %v5855, %v6190
      %v6192 = vpop.f32.mrf.mxu0
      %6193 = vmatprep.mubr.bf16.mxu0 %v5006
      %6194 = vmatmul.mubr.bf16.gmra.mxu0 %v4893
      %v6195 = vpop.f32.mrf.mxu0
      %v6196 = vadd.f32 %v5855, %v6195
      %v6197 = vpop.f32.mrf.mxu0
      %v6198 = vpop.f32.mrf.mxu0
      %v6199 = vadd.f32 %v5855, %v6198
      %v6200 = vpop.f32.mrf.mxu0
      %6201 = vmatprep.mubr.bf16.mxu0 %v5018
      %6202 = vmatmul.mubr.bf16.gmra.mxu0 %v4894
      %v6203 = vpop.f32.mrf.mxu0
      %v6204 = vadd.f32 %v5855, %v6203
      %v6205 = vpop.f32.mrf.mxu0
      %v6206 = vpop.f32.mrf.mxu0
      %v6207 = vadd.f32 %v5855, %v6206
      %v6208 = vpop.f32.mrf.mxu0
      %6209 = vmatprep.mubr.bf16.mxu0 %v5030
      %6210 = vmatmul.mubr.bf16.gmra.mxu0 %v4895
      %v6211 = vpop.f32.mrf.mxu0
      %v6212 = vadd.f32 %v5855, %v6211
      %v6213 = vpop.f32.mrf.mxu0
      %v6214 = vpop.f32.mrf.mxu0
      %v6215 = vadd.f32 %v5855, %v6214
      %v6216 = vpop.f32.mrf.mxu0
      %6217 = vmatprep.mubr.bf16.mxu0 %v5042
      %6218 = vmatmul.mubr.bf16.gmra.mxu0 %v4896
      %v6219 = vpop.f32.mrf.mxu0
      %v6220 = vadd.f32 %v5855, %v6219
      %v6221 = vpop.f32.mrf.mxu0
      %v6222 = vpop.f32.mrf.mxu0
      %v6223 = vadd.f32 %v5855, %v6222
      %v6224 = vpop.f32.mrf.mxu0
      %6225 = vmatprep.mubr.bf16.mxu0 %v5054
      %6226 = vmatmul.mubr.bf16.gmra.mxu0 %v4897
      %v6227 = vpop.f32.mrf.mxu0
      %v6228 = vadd.f32 %v5855, %v6227
      %v6229 = vpop.f32.mrf.mxu0
      %v6230 = vpop.f32.mrf.mxu0
      %v6231 = vadd.f32 %v5855, %v6230
      %v6232 = vpop.f32.mrf.mxu0
      %6233 = vmatprep.mubr.bf16.mxu0 %v5066
      %6234 = vmatmul.mubr.bf16.gmra.mxu0 %v4898
      %v6235 = vpop.f32.mrf.mxu0
      %v6236 = vadd.f32 %v5855, %v6235
      %v6237 = vpop.f32.mrf.mxu0
      %v6238 = vpop.f32.mrf.mxu0
      %v6239 = vadd.f32 %v5855, %v6238
      %v6240 = vpop.f32.mrf.mxu0
      %6241 = vmatprep.mubr.bf16.mxu0 %v5078
      %6242 = vmatmul.mubr.bf16.gmra.mxu0 %v4899
      %v6243 = vpop.f32.mrf.mxu0
      %v6244 = vadd.f32 %v5855, %v6243
      %v6245 = vpop.f32.mrf.mxu0
      %v6246 = vpop.f32.mrf.mxu0
      %v6247 = vadd.f32 %v5855, %v6246
      %v6248 = vpop.f32.mrf.mxu0
      %6249 = vmatprep.mubr.bf16.mxu0 %v5090
      %6250 = vmatmul.mubr.bf16.gmra.mxu0 %v4900
      %v6251 = vpop.f32.mrf.mxu0
      %v6252 = vadd.f32 %v5855, %v6251
      %v6253 = vpop.f32.mrf.mxu0
      %v6254 = vpop.f32.mrf.mxu0
      %v6255 = vadd.f32 %v5855, %v6254
      %v6256 = vpop.f32.mrf.mxu0
      %6257 = vmatprep.mubr.bf16.mxu0 %v5102
      %6258 = vmatmul.mubr.bf16.gmra.mxu0 %v4901
      %v6259 = vpop.f32.mrf.mxu0
      %v6260 = vadd.f32 %v5855, %v6259
      %v6261 = vpop.f32.mrf.mxu0
      %v6262 = vpop.f32.mrf.mxu0
      %v6263 = vadd.f32 %v5855, %v6262
      %v6264 = vpop.f32.mrf.mxu0
      %6265 = vmatprep.mubr.bf16.mxu0 %v5114
      %6266 = vmatmul.mubr.bf16.gmra.mxu0 %v4902
      %v6267 = vpop.f32.mrf.mxu0
      %v6268 = vadd.f32 %v5855, %v6267
      %v6269 = vpop.f32.mrf.mxu0
      %v6270 = vpop.f32.mrf.mxu0
      %v6271 = vadd.f32 %v5855, %v6270
      %v6272 = vpop.f32.mrf.mxu0
      %6273 = vmatprep.mubr.bf16.mxu0 %v5126
      %6274 = vmatmul.mubr.bf16.gmra.mxu0 %v4903
      %v6275 = vpop.f32.mrf.mxu0
      %v6276 = vadd.f32 %v5855, %v6275
      %v6277 = vpop.f32.mrf.mxu0
      %v6278 = vpop.f32.mrf.mxu0
      %v6279 = vadd.f32 %v5855, %v6278
      %v6280 = vpop.f32.mrf.mxu0
      %6281 = vmatprep.mubr.bf16.mxu0 %v5138
      %6282 = vmatmul.mubr.bf16.gmra.mxu0 %v4904
      %v6283 = vpop.f32.mrf.mxu0
      %v6284 = vadd.f32 %v5855, %v6283
      %v6285 = vpop.f32.mrf.mxu0
      %v6286 = vpop.f32.mrf.mxu0
      %v6287 = vadd.f32 %v5855, %v6286
      %v6288 = vpop.f32.mrf.mxu0
      %6289 = vmatprep.mubr.bf16.mxu0 %v5150
      %6290 = vmatmul.mubr.bf16.gmra.mxu0 %v4905
      %v6291 = vpop.f32.mrf.mxu0
      %v6292 = vadd.f32 %v5855, %v6291
      %v6293 = vpop.f32.mrf.mxu0
      %v6294 = vpop.f32.mrf.mxu0
      %v6295 = vadd.f32 %v5855, %v6294
      %v6296 = vpop.f32.mrf.mxu0
      %6297 = vmatprep.mubr.bf16.mxu0 %v5162
      %6298 = vmatmul.mubr.bf16.gmra.mxu0 %v4906
      %v6299 = vpop.f32.mrf.mxu0
      %v6300 = vadd.f32 %v5855, %v6299
      %v6301 = vpop.f32.mrf.mxu0
      %v6302 = vpop.f32.mrf.mxu0
      %v6303 = vadd.f32 %v5855, %v6302
      %v6304 = vpop.f32.mrf.mxu0
      %6305 = vdwg.mxu0
      %6306 = vmatprep.subr.bf16.mxu0 0
      %6307 = vmatpush1.bf16.msra.mxu0 %v6072
      %6308 = vmatprep.subr.bf16.mxu0 0
      %6309 = vmatpush1.bf16.msra.mxu0 %v6071
      %6310 = vmatprep.subr.bf16.mxu0 0
      %6311 = vmatpush1.bf16.msra.mxu0 %v6070
      %6312 = vmatprep.subr.bf16.mxu0 0
      %6313 = vmatpush1.bf16.msra.mxu0 %v6069
      %6314 = vmatprep.subr.bf16.mxu0 0
      %6315 = vmatpush1.bf16.msra.mxu0 %v6068
      %6316 = vmatprep.subr.bf16.mxu0 0
      %6317 = vmatpush1.bf16.msra.mxu0 %v6067
      %6318 = vmatprep.subr.bf16.mxu0 0
      %6319 = vmatpush1.bf16.msra.mxu0 %v6066
      %6320 = vmatprep.subr.bf16.mxu0 0
      %6321 = vmatpush1.bf16.msra.mxu0 %v6065
      %6322 = vmatprep.subr.bf16.mxu0 0
      %6323 = vmatpush2.bf16.msra.mxu0 %v6080
      %6324 = vmatprep.subr.bf16.mxu0 0
      %6325 = vmatpush2.bf16.msra.mxu0 %v6079
      %6326 = vmatprep.subr.bf16.mxu0 0
      %6327 = vmatpush2.bf16.msra.mxu0 %v6078
      %6328 = vmatprep.subr.bf16.mxu0 0
      %6329 = vmatpush2.bf16.msra.mxu0 %v6077
      %6330 = vmatprep.subr.bf16.mxu0 0
      %6331 = vmatpush2.bf16.msra.mxu0 %v6076
      %6332 = vmatprep.subr.bf16.mxu0 0
      %6333 = vmatpush2.bf16.msra.mxu0 %v6075
      %6334 = vmatprep.subr.bf16.mxu0 0
      %6335 = vmatpush2.bf16.msra.mxu0 %v6074
      %6336 = vmatprep.subr.bf16.mxu0 0
      %6337 = vmatpush2.bf16.msra.mxu0 %v6073
      %6338 = vmatprep.mubr.bf16.mxu0 %v5355
      %6339 = vmatmul.mubr.bf16.gmra.mxu0 %v5229
      %v6340 = vpop.f32.mrf.mxu0
      %v6341 = vadd.f32 %v6180, %v6340
      %v6342 = vpop.f32.mrf.mxu0
      %v6343 = vpop.f32.mrf.mxu0
      %v6344 = vadd.f32 %v6183, %v6343
      %v6345 = vpop.f32.mrf.mxu0
      %6346 = vmatprep.mubr.bf16.mxu0 %v5356
      %6347 = vmatmul.mubr.bf16.gmra.mxu0 %v5232
      %v6348 = vpop.f32.mrf.mxu0
      %v6349 = vadd.f32 %v6188, %v6348
      %v6350 = vpop.f32.mrf.mxu0
      %v6351 = vpop.f32.mrf.mxu0
      %v6352 = vadd.f32 %v6191, %v6351
      %v6353 = vpop.f32.mrf.mxu0
      %6354 = vmatprep.mubr.bf16.mxu0 %v5357
      %6355 = vmatmul.mubr.bf16.gmra.mxu0 %v5235
      %v6356 = vpop.f32.mrf.mxu0
      %v6357 = vadd.f32 %v6196, %v6356
      %v6358 = vpop.f32.mrf.mxu0
      %v6359 = vpop.f32.mrf.mxu0
      %v6360 = vadd.f32 %v6199, %v6359
      %v6361 = vpop.f32.mrf.mxu0
      %6362 = vmatprep.mubr.bf16.mxu0 %v5358
      %6363 = vmatmul.mubr.bf16.gmra.mxu0 %v5238
      %v6364 = vpop.f32.mrf.mxu0
      %v6365 = vadd.f32 %v6204, %v6364
      %v6366 = vpop.f32.mrf.mxu0
      %v6367 = vpop.f32.mrf.mxu0
      %v6368 = vadd.f32 %v6207, %v6367
      %v6369 = vpop.f32.mrf.mxu0
      %6370 = vmatprep.mubr.bf16.mxu0 %v5359
      %6371 = vmatmul.mubr.bf16.gmra.mxu0 %v5241
      %v6372 = vpop.f32.mrf.mxu0
      %v6373 = vadd.f32 %v6212, %v6372
      %v6374 = vpop.f32.mrf.mxu0
      %v6375 = vpop.f32.mrf.mxu0
      %v6376 = vadd.f32 %v6215, %v6375
      %v6377 = vpop.f32.mrf.mxu0
      %6378 = vmatprep.mubr.bf16.mxu0 %v5360
      %6379 = vmatmul.mubr.bf16.gmra.mxu0 %v5244
      %v6380 = vpop.f32.mrf.mxu0
      %v6381 = vadd.f32 %v6220, %v6380
      %v6382 = vpop.f32.mrf.mxu0
      %v6383 = vpop.f32.mrf.mxu0
      %v6384 = vadd.f32 %v6223, %v6383
      %v6385 = vpop.f32.mrf.mxu0
      %6386 = vmatprep.mubr.bf16.mxu0 %v5361
      %6387 = vmatmul.mubr.bf16.gmra.mxu0 %v5247
      %v6388 = vpop.f32.mrf.mxu0
      %v6389 = vadd.f32 %v6228, %v6388
      %v6390 = vpop.f32.mrf.mxu0
      %v6391 = vpop.f32.mrf.mxu0
      %v6392 = vadd.f32 %v6231, %v6391
      %v6393 = vpop.f32.mrf.mxu0
      %6394 = vmatprep.mubr.bf16.mxu0 %v5362
      %6395 = vmatmul.mubr.bf16.gmra.mxu0 %v5250
      %v6396 = vpop.f32.mrf.mxu0
      %v6397 = vadd.f32 %v6236, %v6396
      %v6398 = vpop.f32.mrf.mxu0
      %v6399 = vpop.f32.mrf.mxu0
      %v6400 = vadd.f32 %v6239, %v6399
      %v6401 = vpop.f32.mrf.mxu0
      %6402 = vmatprep.mubr.bf16.mxu0 %v5363
      %6403 = vmatmul.mubr.bf16.gmra.mxu0 %v5253
      %v6404 = vpop.f32.mrf.mxu0
      %v6405 = vadd.f32 %v6244, %v6404
      %v6406 = vpop.f32.mrf.mxu0
      %v6407 = vpop.f32.mrf.mxu0
      %v6408 = vadd.f32 %v6247, %v6407
      %v6409 = vpop.f32.mrf.mxu0
      %6410 = vmatprep.mubr.bf16.mxu0 %v5364
      %6411 = vmatmul.mubr.bf16.gmra.mxu0 %v5256
      %v6412 = vpop.f32.mrf.mxu0
      %v6413 = vadd.f32 %v6252, %v6412
      %v6414 = vpop.f32.mrf.mxu0
      %v6415 = vpop.f32.mrf.mxu0
      %v6416 = vadd.f32 %v6255, %v6415
      %v6417 = vpop.f32.mrf.mxu0
      %6418 = vmatprep.mubr.bf16.mxu0 %v5365
      %6419 = vmatmul.mubr.bf16.gmra.mxu0 %v5259
      %v6420 = vpop.f32.mrf.mxu0
      %v6421 = vadd.f32 %v6260, %v6420
      %v6422 = vpop.f32.mrf.mxu0
      %v6423 = vpop.f32.mrf.mxu0
      %v6424 = vadd.f32 %v6263, %v6423
      %v6425 = vpop.f32.mrf.mxu0
      %6426 = vmatprep.mubr.bf16.mxu0 %v5366
      %6427 = vmatmul.mubr.bf16.gmra.mxu0 %v5262
      %v6428 = vpop.f32.mrf.mxu0
      %v6429 = vadd.f32 %v6268, %v6428
      %v6430 = vpop.f32.mrf.mxu0
      %v6431 = vpop.f32.mrf.mxu0
      %v6432 = vadd.f32 %v6271, %v6431
      %v6433 = vpop.f32.mrf.mxu0
      %6434 = vmatprep.mubr.bf16.mxu0 %v5367
      %6435 = vmatmul.mubr.bf16.gmra.mxu0 %v5265
      %v6436 = vpop.f32.mrf.mxu0
      %v6437 = vadd.f32 %v6276, %v6436
      %v6438 = vpop.f32.mrf.mxu0
      %v6439 = vpop.f32.mrf.mxu0
      %v6440 = vadd.f32 %v6279, %v6439
      %v6441 = vpop.f32.mrf.mxu0
      %6442 = vmatprep.mubr.bf16.mxu0 %v5368
      %6443 = vmatmul.mubr.bf16.gmra.mxu0 %v5268
      %v6444 = vpop.f32.mrf.mxu0
      %v6445 = vadd.f32 %v6284, %v6444
      %v6446 = vpop.f32.mrf.mxu0
      %v6447 = vpop.f32.mrf.mxu0
      %v6448 = vadd.f32 %v6287, %v6447
      %v6449 = vpop.f32.mrf.mxu0
      %6450 = vmatprep.mubr.bf16.mxu0 %v5369
      %6451 = vmatmul.mubr.bf16.gmra.mxu0 %v5271
      %v6452 = vpop.f32.mrf.mxu0
      %v6453 = vadd.f32 %v6292, %v6452
      %v6454 = vpop.f32.mrf.mxu0
      %v6455 = vpop.f32.mrf.mxu0
      %v6456 = vadd.f32 %v6295, %v6455
      %v6457 = vpop.f32.mrf.mxu0
      %6458 = vmatprep.mubr.bf16.mxu0 %v5370
      %6459 = vmatmul.mubr.bf16.gmra.mxu0 %v5274
      %v6460 = vpop.f32.mrf.mxu0
      %v6461 = vadd.f32 %v6300, %v6460
      %v6462 = vpop.f32.mrf.mxu0
      %v6463 = vpop.f32.mrf.mxu0
      %v6464 = vadd.f32 %v6303, %v6463
      %v6465 = vpop.f32.mrf.mxu0
      %6466 = vdwg.mxu0
      %6467 = vmatprep.subr.bf16.mxu0 0
      %6468 = vmatpush1.bf16.msra.mxu0 %v6088
      %6469 = vmatprep.subr.bf16.mxu0 0
      %6470 = vmatpush1.bf16.msra.mxu0 %v6087
      %6471 = vmatprep.subr.bf16.mxu0 0
      %6472 = vmatpush1.bf16.msra.mxu0 %v6086
      %6473 = vmatprep.subr.bf16.mxu0 0
      %6474 = vmatpush1.bf16.msra.mxu0 %v6085
      %6475 = vmatprep.subr.bf16.mxu0 0
      %6476 = vmatpush1.bf16.msra.mxu0 %v6084
      %6477 = vmatprep.subr.bf16.mxu0 0
      %6478 = vmatpush1.bf16.msra.mxu0 %v6083
      %6479 = vmatprep.subr.bf16.mxu0 0
      %6480 = vmatpush1.bf16.msra.mxu0 %v6082
      %6481 = vmatprep.subr.bf16.mxu0 0
      %6482 = vmatpush1.bf16.msra.mxu0 %v6081
      %6483 = vmatprep.subr.bf16.mxu0 0
      %6484 = vmatpush2.bf16.msra.mxu0 %v6096
      %6485 = vmatprep.subr.bf16.mxu0 0
      %6486 = vmatpush2.bf16.msra.mxu0 %v6095
      %6487 = vmatprep.subr.bf16.mxu0 0
      %6488 = vmatpush2.bf16.msra.mxu0 %v6094
      %6489 = vmatprep.subr.bf16.mxu0 0
      %6490 = vmatpush2.bf16.msra.mxu0 %v6093
      %6491 = vmatprep.subr.bf16.mxu0 0
      %6492 = vmatpush2.bf16.msra.mxu0 %v6092
      %6493 = vmatprep.subr.bf16.mxu0 0
      %6494 = vmatpush2.bf16.msra.mxu0 %v6091
      %6495 = vmatprep.subr.bf16.mxu0 0
      %6496 = vmatpush2.bf16.msra.mxu0 %v6090
      %6497 = vmatprep.subr.bf16.mxu0 0
      %6498 = vmatpush2.bf16.msra.mxu0 %v6089
      %6499 = vmatprep.mubr.bf16.mxu0 %v5693
      %6500 = vmatmul.mubr.bf16.gmra.mxu0 %v5446
      %v6501 = vpop.f32.mrf.mxu0
      %v6502 = vadd.f32 %v6341, %v6501
      %v6503 = vpop.f32.mrf.mxu0
      %v6504 = vpop.f32.mrf.mxu0
      %v6505 = vadd.f32 %v6344, %v6504
      %v6506 = vpop.f32.mrf.mxu0
      %6507 = vmatprep.mubr.bf16.mxu0 %v5696
      %6508 = vmatmul.mubr.bf16.gmra.mxu0 %v5458
      %v6509 = vpop.f32.mrf.mxu0
      %v6510 = vadd.f32 %v6349, %v6509
      %v6511 = vpop.f32.mrf.mxu0
      %v6512 = vpop.f32.mrf.mxu0
      %v6513 = vadd.f32 %v6352, %v6512
      %v6514 = vpop.f32.mrf.mxu0
      %6515 = vmatprep.mubr.bf16.mxu0 %v5699
      %6516 = vmatmul.mubr.bf16.gmra.mxu0 %v5470
      %v6517 = vpop.f32.mrf.mxu0
      %v6518 = vadd.f32 %v6357, %v6517
      %v6519 = vpop.f32.mrf.mxu0
      %v6520 = vpop.f32.mrf.mxu0
      %v6521 = vadd.f32 %v6360, %v6520
      %v6522 = vpop.f32.mrf.mxu0
      %6523 = vmatprep.mubr.bf16.mxu0 %v5702
      %6524 = vmatmul.mubr.bf16.gmra.mxu0 %v5482
      %v6525 = vpop.f32.mrf.mxu0
      %v6526 = vadd.f32 %v6365, %v6525
      %v6527 = vpop.f32.mrf.mxu0
      %v6528 = vpop.f32.mrf.mxu0
      %v6529 = vadd.f32 %v6368, %v6528
      %v6530 = vpop.f32.mrf.mxu0
      %6531 = vmatprep.mubr.bf16.mxu0 %v5705
      %6532 = vmatmul.mubr.bf16.gmra.mxu0 %v5494
      %v6533 = vpop.f32.mrf.mxu0
      %v6534 = vadd.f32 %v6373, %v6533
      %v6535 = vpop.f32.mrf.mxu0
      %v6536 = vpop.f32.mrf.mxu0
      %v6537 = vadd.f32 %v6376, %v6536
      %v6538 = vpop.f32.mrf.mxu0
      %6539 = vmatprep.mubr.bf16.mxu0 %v5708
      %6540 = vmatmul.mubr.bf16.gmra.mxu0 %v5506
      %v6541 = vpop.f32.mrf.mxu0
      %v6542 = vadd.f32 %v6381, %v6541
      %v6543 = vpop.f32.mrf.mxu0
      %v6544 = vpop.f32.mrf.mxu0
      %v6545 = vadd.f32 %v6384, %v6544
      %v6546 = vpop.f32.mrf.mxu0
      %6547 = vmatprep.mubr.bf16.mxu0 %v5711
      %6548 = vmatmul.mubr.bf16.gmra.mxu0 %v5518
      %v6549 = vpop.f32.mrf.mxu0
      %v6550 = vadd.f32 %v6389, %v6549
      %v6551 = vpop.f32.mrf.mxu0
      %v6552 = vpop.f32.mrf.mxu0
      %v6553 = vadd.f32 %v6392, %v6552
      %v6554 = vpop.f32.mrf.mxu0
      %6555 = vmatprep.mubr.bf16.mxu0 %v5714
      %6556 = vmatmul.mubr.bf16.gmra.mxu0 %v5530
      %v6557 = vpop.f32.mrf.mxu0
      %v6558 = vadd.f32 %v6397, %v6557
      %v6559 = vpop.f32.mrf.mxu0
      %v6560 = vpop.f32.mrf.mxu0
      %v6561 = vadd.f32 %v6400, %v6560
      %v6562 = vpop.f32.mrf.mxu0
      %6563 = vmatprep.mubr.bf16.mxu0 %v5717
      %6564 = vmatmul.mubr.bf16.gmra.mxu0 %v5542
      %v6565 = vpop.f32.mrf.mxu0
      %v6566 = vadd.f32 %v6405, %v6565
      %v6567 = vpop.f32.mrf.mxu0
      %v6568 = vpop.f32.mrf.mxu0
      %v6569 = vadd.f32 %v6408, %v6568
      %v6570 = vpop.f32.mrf.mxu0
      %6571 = vmatprep.mubr.bf16.mxu0 %v5720
      %6572 = vmatmul.mubr.bf16.gmra.mxu0 %v5554
      %v6573 = vpop.f32.mrf.mxu0
      %v6574 = vadd.f32 %v6413, %v6573
      %v6575 = vpop.f32.mrf.mxu0
      %v6576 = vpop.f32.mrf.mxu0
      %v6577 = vadd.f32 %v6416, %v6576
      %v6578 = vpop.f32.mrf.mxu0
      %6579 = vmatprep.mubr.bf16.mxu0 %v5723
      %6580 = vmatmul.mubr.bf16.gmra.mxu0 %v5566
      %v6581 = vpop.f32.mrf.mxu0
      %v6582 = vadd.f32 %v6421, %v6581
      %v6583 = vpop.f32.mrf.mxu0
      %v6584 = vpop.f32.mrf.mxu0
      %v6585 = vadd.f32 %v6424, %v6584
      %v6586 = vpop.f32.mrf.mxu0
      %6587 = vmatprep.mubr.bf16.mxu0 %v5726
      %6588 = vmatmul.mubr.bf16.gmra.mxu0 %v5578
      %v6589 = vpop.f32.mrf.mxu0
      %v6590 = vadd.f32 %v6429, %v6589
      %v6591 = vpop.f32.mrf.mxu0
      %v6592 = vpop.f32.mrf.mxu0
      %v6593 = vadd.f32 %v6432, %v6592
      %v6594 = vpop.f32.mrf.mxu0
      %6595 = vmatprep.mubr.bf16.mxu0 %v5729
      %6596 = vmatmul.mubr.bf16.gmra.mxu0 %v5590
      %v6597 = vpop.f32.mrf.mxu0
      %v6598 = vadd.f32 %v6437, %v6597
      %v6599 = vpop.f32.mrf.mxu0
      %v6600 = vpop.f32.mrf.mxu0
      %v6601 = vadd.f32 %v6440, %v6600
      %v6602 = vpop.f32.mrf.mxu0
      %6603 = vmatprep.mubr.bf16.mxu0 %v5732
      %6604 = vmatmul.mubr.bf16.gmra.mxu0 %v5602
      %v6605 = vpop.f32.mrf.mxu0
      %v6606 = vadd.f32 %v6445, %v6605
      %v6607 = vpop.f32.mrf.mxu0
      %v6608 = vpop.f32.mrf.mxu0
      %v6609 = vadd.f32 %v6448, %v6608
      %v6610 = vpop.f32.mrf.mxu0
      %6611 = vmatprep.mubr.bf16.mxu0 %v5735
      %6612 = vmatmul.mubr.bf16.gmra.mxu0 %v5614
      %v6613 = vpop.f32.mrf.mxu0
      %v6614 = vadd.f32 %v6453, %v6613
      %v6615 = vpop.f32.mrf.mxu0
      %v6616 = vpop.f32.mrf.mxu0
      %v6617 = vadd.f32 %v6456, %v6616
      %v6618 = vpop.f32.mrf.mxu0
      %6619 = vmatprep.mubr.bf16.mxu0 %v5738
      %6620 = vmatmul.mubr.bf16.gmra.mxu0 %v5626
      %v6621 = vpop.f32.mrf.mxu0
      %v6622 = vadd.f32 %v6461, %v6621
      %v6623 = vpop.f32.mrf.mxu0
      %v6624 = vpop.f32.mrf.mxu0
      %v6625 = vadd.f32 %v6464, %v6624
      %v6626 = vpop.f32.mrf.mxu0
      %6627 = vdwg.mxu0
      %v6628 = vmax.f32 %v6502, 0.0
      %v6629 = vmax.f32 %v6505, 0.0
      %v6630 = vmax.f32 %v6510, 0.0
      %v6631 = vmax.f32 %v6513, 0.0
      %v6632 = vmax.f32 %v6518, 0.0
      %v6633 = vmax.f32 %v6521, 0.0
      %v6634 = vmax.f32 %v6526, 0.0
      %v6635 = vmax.f32 %v6529, 0.0
      %v6636 = vmax.f32 %v6534, 0.0
      %v6637 = vmax.f32 %v6537, 0.0
      %v6638 = vmax.f32 %v6542, 0.0
      %v6639 = vmax.f32 %v6545, 0.0
      %v6640 = vmax.f32 %v6550, 0.0
      %v6641 = vmax.f32 %v6553, 0.0
      %v6642 = vmax.f32 %v6558, 0.0
      %v6643 = vmax.f32 %v6561, 0.0
      %v6644 = vmax.f32 %v6566, 0.0
      %v6645 = vmax.f32 %v6569, 0.0
      %v6646 = vmax.f32 %v6574, 0.0
      %v6647 = vmax.f32 %v6577, 0.0
      %v6648 = vmax.f32 %v6582, 0.0
      %v6649 = vmax.f32 %v6585, 0.0
      %v6650 = vmax.f32 %v6590, 0.0
      %v6651 = vmax.f32 %v6593, 0.0
      %v6652 = vmax.f32 %v6598, 0.0
      %v6653 = vmax.f32 %v6601, 0.0
      %v6654 = vmax.f32 %v6606, 0.0
      %v6655 = vmax.f32 %v6609, 0.0
      %v6656 = vmax.f32 %v6614, 0.0
      %v6657 = vmax.f32 %v6617, 0.0
      %v6658 = vmax.f32 %v6622, 0.0
      %v6659 = vmax.f32 %v6625, 0.0
      %v6660 = vpack.c.bf16 %v6629, %v6628
      %v6661 = vpack.c.bf16 %v6631, %v6630
      %v6662 = vpack.c.bf16 %v6633, %v6632
      %v6663 = vpack.c.bf16 %v6635, %v6634
      %v6664 = vpack.c.bf16 %v6637, %v6636
      %v6665 = vpack.c.bf16 %v6639, %v6638
      %v6666 = vpack.c.bf16 %v6641, %v6640
      %v6667 = vpack.c.bf16 %v6643, %v6642
      %v6668 = vpack.c.bf16 %v6645, %v6644
      %v6669 = vpack.c.bf16 %v6647, %v6646
      %v6670 = vpack.c.bf16 %v6649, %v6648
      %v6671 = vpack.c.bf16 %v6651, %v6650
      %v6672 = vpack.c.bf16 %v6653, %v6652
      %v6673 = vpack.c.bf16 %v6655, %v6654
      %v6674 = vpack.c.bf16 %v6657, %v6656
      %v6675 = vpack.c.bf16 %v6659, %v6658
      %v6692 = vunpack.c.l.b16 %v6660
      %v6693 = vunpack.c.h.b16 %v6660
      %v6694 = vunpack.c.l.b16 %v6661
      %v6695 = vunpack.c.h.b16 %v6661
      %v6696 = vunpack.c.l.b16 %v6662
      %v6697 = vunpack.c.h.b16 %v6662
      %v6698 = vunpack.c.l.b16 %v6663
      %v6699 = vunpack.c.h.b16 %v6663
      %v6700 = vunpack.c.l.b16 %v6664
      %v6701 = vunpack.c.h.b16 %v6664
      %v6702 = vunpack.c.l.b16 %v6665
      %v6703 = vunpack.c.h.b16 %v6665
      %v6704 = vunpack.c.l.b16 %v6666
      %v6705 = vunpack.c.h.b16 %v6666
      %v6706 = vunpack.c.l.b16 %v6667
      %v6707 = vunpack.c.h.b16 %v6667
      %v6708 = vunpack.c.l.b16 %v6668
      %v6709 = vunpack.c.h.b16 %v6668
      %v6710 = vunpack.c.l.b16 %v6669
      %v6711 = vunpack.c.h.b16 %v6669
      %v6712 = vunpack.c.l.b16 %v6670
      %v6713 = vunpack.c.h.b16 %v6670
      %v6714 = vunpack.c.l.b16 %v6671
      %v6715 = vunpack.c.h.b16 %v6671
      %v6716 = vunpack.c.l.b16 %v6672
      %v6717 = vunpack.c.h.b16 %v6672
      %v6718 = vunpack.c.l.b16 %v6673
      %v6719 = vunpack.c.h.b16 %v6673
      %v6720 = vunpack.c.l.b16 %v6674
      %v6721 = vunpack.c.h.b16 %v6674
      %v6722 = vunpack.c.l.b16 %v6675
      %v6723 = vunpack.c.h.b16 %v6675
      %v6724 = vpack.c.b16 %v6692, %v6692
      %v6725 = vpack.c.b16 %v6693, %v6693
      %v6726 = vpack.c.b16 %v6694, %v6694
      %v6727 = vpack.c.b16 %v6695, %v6695
      %v6728 = vpack.c.b16 %v6696, %v6696
      %v6729 = vpack.c.b16 %v6697, %v6697
      %v6730 = vpack.c.b16 %v6698, %v6698
      %v6731 = vpack.c.b16 %v6699, %v6699
      %v6732 = vpack.c.b16 %v6700, %v6700
      %v6733 = vpack.c.b16 %v6701, %v6701
      %v6734 = vpack.c.b16 %v6702, %v6702
      %v6735 = vpack.c.b16 %v6703, %v6703
      %v6736 = vpack.c.b16 %v6704, %v6704
      %v6737 = vpack.c.b16 %v6705, %v6705
      %v6738 = vpack.c.b16 %v6706, %v6706
      %v6739 = vpack.c.b16 %v6707, %v6707
      %v6740 = vpack.c.b16 %v6708, %v6708
      %v6741 = vpack.c.b16 %v6709, %v6709
      %v6742 = vpack.c.b16 %v6710, %v6710
      %v6743 = vpack.c.b16 %v6711, %v6711
      %v6744 = vpack.c.b16 %v6712, %v6712
      %v6745 = vpack.c.b16 %v6713, %v6713
      %v6746 = vpack.c.b16 %v6714, %v6714
      %v6747 = vpack.c.b16 %v6715, %v6715
      %v6748 = vpack.c.b16 %v6716, %v6716
      %v6749 = vpack.c.b16 %v6717, %v6717
      %v6750 = vpack.c.b16 %v6718, %v6718
      %v6751 = vpack.c.b16 %v6719, %v6719
      %v6752 = vpack.c.b16 %v6720, %v6720
      %v6753 = vpack.c.b16 %v6721, %v6721
      %v6754 = vpack.c.b16 %v6722, %v6722
      %v6755 = vpack.c.b16 %v6723, %v6723
      %vm6788 = vcmask 125952
      %6789 = vst.msk [vmem:[%s224] sm:$0xf] %vm6788, %v6724
      %6790 = vst.msk [vmem:[%s224 + $0x4] sm:$0xf] %vm6788, %v6725
      %6791 = vst.msk [vmem:[%s224 + $0x10] sm:$0xf] %vm6788, %v6726
      %6792 = vst.msk [vmem:[%s224 + $0x14] sm:$0xf] %vm6788, %v6727
      %6793 = vst.msk [vmem:[%s224 + $0x20] sm:$0xf] %vm6788, %v6728
      %6794 = vst.msk [vmem:[%s224 + $0x24] sm:$0xf] %vm6788, %v6729
      %6795 = vst.msk [vmem:[%s224 + $0x30] sm:$0xf] %vm6788, %v6730
      %6796 = vst.msk [vmem:[%s224 + $0x34] sm:$0xf] %vm6788, %v6731
      %6797 = vst.msk [vmem:[%s224 + $0x40] sm:$0xf] %vm6788, %v6732
      %6798 = vst.msk [vmem:[%s224 + $0x44] sm:$0xf] %vm6788, %v6733
      %6799 = vst.msk [vmem:[%s224 + $0x50] sm:$0xf] %vm6788, %v6734
      %6800 = vst.msk [vmem:[%s224 + $0x54] sm:$0xf] %vm6788, %v6735
      %6801 = vst.msk [vmem:[%s224 + $0x60] sm:$0xf] %vm6788, %v6736
      %6802 = vst.msk [vmem:[%s224 + $0x64] sm:$0xf] %vm6788, %v6737
      %6803 = vst.msk [vmem:[%s224 + $0x70] sm:$0xf] %vm6788, %v6738
      %6804 = vst.msk [vmem:[%s224 + $0x74] sm:$0xf] %vm6788, %v6739
      %6805 = vst.msk [vmem:[%s224 + $0x80] sm:$0xf] %vm6788, %v6740
      %6806 = vst.msk [vmem:[%s224 + $0x84] sm:$0xf] %vm6788, %v6741
      %6807 = vst.msk [vmem:[%s224 + $0x90] sm:$0xf] %vm6788, %v6742
      %6808 = vst.msk [vmem:[%s224 + $0x94] sm:$0xf] %vm6788, %v6743
      %6809 = vst.msk [vmem:[%s224 + $0xa0] sm:$0xf] %vm6788, %v6744
      %6810 = vst.msk [vmem:[%s224 + $0xa4] sm:$0xf] %vm6788, %v6745
      %6811 = vst.msk [vmem:[%s224 + $0xb0] sm:$0xf] %vm6788, %v6746
      %6812 = vst.msk [vmem:[%s224 + $0xb4] sm:$0xf] %vm6788, %v6747
      %6813 = vst.msk [vmem:[%s224 + $0xc0] sm:$0xf] %vm6788, %v6748
      %6814 = vst.msk [vmem:[%s224 + $0xc4] sm:$0xf] %vm6788, %v6749
      %6815 = vst.msk [vmem:[%s224 + $0xd0] sm:$0xf] %vm6788, %v6750
      %6816 = vst.msk [vmem:[%s224 + $0xd4] sm:$0xf] %vm6788, %v6751
      %6817 = vst.msk [vmem:[%s224 + $0xe0] sm:$0xf] %vm6788, %v6752
      %6818 = vst.msk [vmem:[%s224 + $0xe4] sm:$0xf] %vm6788, %v6753
      %6819 = vst.msk [vmem:[%s224 + $0xf0] sm:$0xf] %vm6788, %v6754
      %6820 = vst.msk [vmem:[%s224 + $0xf4] sm:$0xf] %vm6788, %v6755
      %s6821 = scalar_lea.vmem [#allocation3], 24
      %v6822 = vld [vmem:[%s6821] sm:$0xf]
      %v6823 = vld [vmem:[%s6821 + $0x4] sm:$0xf]
      %v6824 = vld [vmem:[%s6821 + $0xc] sm:$0xf]
      %v6825 = vld [vmem:[%s6821 + $0x10] sm:$0xf]
      %v6826 = vld [vmem:[%s6821 + $0x18] sm:$0xf]
      %v6827 = vld [vmem:[%s6821 + $0x1c] sm:$0xf]
      %v6828 = vld [vmem:[%s6821 + $0x24] sm:$0xf]
      %v6829 = vld [vmem:[%s6821 + $0x28] sm:$0xf]
      %v6830 = vld [vmem:[%s6821 + $0x30] sm:$0xf]
      %v6831 = vld [vmem:[%s6821 + $0x34] sm:$0xf]
      %v6832 = vld [vmem:[%s6821 + $0x3c] sm:$0xf]
      %v6833 = vld [vmem:[%s6821 + $0x40] sm:$0xf]
      %v6834 = vld [vmem:[%s6821 + $0x48] sm:$0xf]
      %v6835 = vld [vmem:[%s6821 + $0x4c] sm:$0xf]
      %v6836 = vld [vmem:[%s6821 + $0x54] sm:$0xf]
      %v6837 = vld [vmem:[%s6821 + $0x58] sm:$0xf]
      %v6838 = vld [vmem:[%s6821 + $0x60] sm:$0xf]
      %v6839 = vld [vmem:[%s6821 + $0x64] sm:$0xf]
      %v6840 = vld [vmem:[%s6821 + $0x6c] sm:$0xf]
      %v6841 = vld [vmem:[%s6821 + $0x70] sm:$0xf]
      %v6842 = vld [vmem:[%s6821 + $0x78] sm:$0xf]
      %v6843 = vld [vmem:[%s6821 + $0x7c] sm:$0xf]
      %v6844 = vld [vmem:[%s6821 + $0x84] sm:$0xf]
      %v6845 = vld [vmem:[%s6821 + $0x88] sm:$0xf]
      %v6846 = vld [vmem:[%s6821 + $0x90] sm:$0xf]
      %v6847 = vld [vmem:[%s6821 + $0x94] sm:$0xf]
      %v6848 = vld [vmem:[%s6821 + $0x9c] sm:$0xf]
      %v6849 = vld [vmem:[%s6821 + $0xa0] sm:$0xf]
      %v6850 = vld [vmem:[%s6821 + $0xa8] sm:$0xf]
      %v6851 = vld [vmem:[%s6821 + $0xac] sm:$0xf]
      %v6852 = vld [vmem:[%s6821 + $0xb4] sm:$0xf]
      %v6853 = vld [vmem:[%s6821 + $0xb8] sm:$0xf]
      %v6854 = vld [vmem:[%s6821 + $0x8] sm:$0x1]
      %v6855 = vld [vmem:[%s6821 + $0x14] sm:$0x1]
      %v6856 = vld [vmem:[%s6821 + $0x20] sm:$0x1]
      %v6857 = vld [vmem:[%s6821 + $0x2c] sm:$0x1]
      %v6858 = vld [vmem:[%s6821 + $0x38] sm:$0x1]
      %v6859 = vld [vmem:[%s6821 + $0x44] sm:$0x1]
      %v6860 = vld [vmem:[%s6821 + $0x50] sm:$0x1]
      %v6861 = vld [vmem:[%s6821 + $0x5c] sm:$0x1]
      %v6862 = vld [vmem:[%s6821 + $0x68] sm:$0x1]
      %v6863 = vld [vmem:[%s6821 + $0x74] sm:$0x1]
      %v6864 = vld [vmem:[%s6821 + $0x80] sm:$0x1]
      %v6865 = vld [vmem:[%s6821 + $0x8c] sm:$0x1]
      %v6866 = vld [vmem:[%s6821 + $0x98] sm:$0x1]
      %v6867 = vld [vmem:[%s6821 + $0xa4] sm:$0x1]
      %v6868 = vld [vmem:[%s6821 + $0xb0] sm:$0x1]
      %v6869 = vld [vmem:[%s6821 + $0xbc] sm:$0x1]
      %v6870 = vld [vmem:[%s6821] sm:$0xe]
      %v6871 = vld [vmem:[%s6821 + $0xc] sm:$0xe]
      %v6872 = vld [vmem:[%s6821 + $0x18] sm:$0xe]
      %v6873 = vld [vmem:[%s6821 + $0x24] sm:$0xe]
      %v6874 = vld [vmem:[%s6821 + $0x30] sm:$0xe]
      %v6875 = vld [vmem:[%s6821 + $0x3c] sm:$0xe]
      %v6876 = vld [vmem:[%s6821 + $0x48] sm:$0xe]
      %v6877 = vld [vmem:[%s6821 + $0x54] sm:$0xe]
      %v6878 = vld [vmem:[%s6821 + $0x60] sm:$0xe]
      %v6879 = vld [vmem:[%s6821 + $0x6c] sm:$0xe]
      %v6880 = vld [vmem:[%s6821 + $0x78] sm:$0xe]
      %v6881 = vld [vmem:[%s6821 + $0x84] sm:$0xe]
      %v6882 = vld [vmem:[%s6821 + $0x90] sm:$0xe]
      %v6883 = vld [vmem:[%s6821 + $0x9c] sm:$0xe]
      %v6884 = vld [vmem:[%s6821 + $0xa8] sm:$0xe]
      %v6885 = vld [vmem:[%s6821 + $0xb4] sm:$0xe]
      %v6886 = vld [vmem:[%s4057] sm:$0xf]
      %v6887 = vld [vmem:[%s4057 + $0x4] sm:$0xf]
      %v6888 = vld [vmem:[%s4057 + $0xc] sm:$0xf]
      %v6889 = vld [vmem:[%s4057 + $0x10] sm:$0xf]
      %v6890 = vld [vmem:[%s4057 + $0x18] sm:$0xf]
      %v6891 = vld [vmem:[%s4057 + $0x1c] sm:$0xf]
      %v6892 = vld [vmem:[%s4057 + $0x24] sm:$0xf]
      %v6893 = vld [vmem:[%s4057 + $0x28] sm:$0xf]
      %v6894 = vld [vmem:[%s4057 + $0x30] sm:$0xf]
      %v6895 = vld [vmem:[%s4057 + $0x34] sm:$0xf]
      %v6896 = vld [vmem:[%s4057 + $0x3c] sm:$0xf]
      %v6897 = vld [vmem:[%s4057 + $0x40] sm:$0xf]
      %v6898 = vld [vmem:[%s4057 + $0x48] sm:$0xf]
      %v6899 = vld [vmem:[%s4057 + $0x4c] sm:$0xf]
      %v6900 = vld [vmem:[%s4057 + $0x54] sm:$0xf]
      %v6901 = vld [vmem:[%s4057 + $0x58] sm:$0xf]
      %v6902 = vld [vmem:[%s4057 + $0x60] sm:$0xf]
      %v6903 = vld [vmem:[%s4057 + $0x64] sm:$0xf]
      %v6904 = vld [vmem:[%s4057 + $0x6c] sm:$0xf]
      %v6905 = vld [vmem:[%s4057 + $0x70] sm:$0xf]
      %v6906 = vld [vmem:[%s4057 + $0x78] sm:$0xf]
      %v6907 = vld [vmem:[%s4057 + $0x7c] sm:$0xf]
      %v6908 = vld [vmem:[%s4057 + $0x84] sm:$0xf]
      %v6909 = vld [vmem:[%s4057 + $0x88] sm:$0xf]
      %v6910 = vld [vmem:[%s4057 + $0x90] sm:$0xf]
      %v6911 = vld [vmem:[%s4057 + $0x94] sm:$0xf]
      %v6912 = vld [vmem:[%s4057 + $0x9c] sm:$0xf]
      %v6913 = vld [vmem:[%s4057 + $0xa0] sm:$0xf]
      %v6914 = vld [vmem:[%s4057 + $0xa8] sm:$0xf]
      %v6915 = vld [vmem:[%s4057 + $0xac] sm:$0xf]
      %v6916 = vld [vmem:[%s4057 + $0xb4] sm:$0xf]
      %v6917 = vld [vmem:[%s4057 + $0xb8] sm:$0xf]
      %v6918 = vld [vmem:[%s4057 + $0x8] sm:$0x1]
      %v6919 = vld [vmem:[%s4057 + $0x14] sm:$0x1]
      %v6920 = vld [vmem:[%s4057 + $0x20] sm:$0x1]
      %v6921 = vld [vmem:[%s4057 + $0x2c] sm:$0x1]
      %v6922 = vld [vmem:[%s4057 + $0x38] sm:$0x1]
      %v6923 = vld [vmem:[%s4057 + $0x44] sm:$0x1]
      %v6924 = vld [vmem:[%s4057 + $0x50] sm:$0x1]
      %v6925 = vld [vmem:[%s4057 + $0x5c] sm:$0x1]
      %v6926 = vld [vmem:[%s4057 + $0x68] sm:$0x1]
      %v6927 = vld [vmem:[%s4057 + $0x74] sm:$0x1]
      %v6928 = vld [vmem:[%s4057 + $0x80] sm:$0x1]
      %v6929 = vld [vmem:[%s4057 + $0x8c] sm:$0x1]
      %v6930 = vld [vmem:[%s4057 + $0x98] sm:$0x1]
      %v6931 = vld [vmem:[%s4057 + $0xa4] sm:$0x1]
      %v6932 = vld [vmem:[%s4057 + $0xb0] sm:$0x1]
      %v6933 = vld [vmem:[%s4057 + $0xbc] sm:$0x1]
      %v6934 = vld [vmem:[%s4057] sm:$0xe]
      %v6935 = vld [vmem:[%s4057 + $0xc] sm:$0xe]
      %v6936 = vld [vmem:[%s4057 + $0x18] sm:$0xe]
      %v6937 = vld [vmem:[%s4057 + $0x24] sm:$0xe]
      %v6938 = vld [vmem:[%s4057 + $0x30] sm:$0xe]
      %v6939 = vld [vmem:[%s4057 + $0x3c] sm:$0xe]
      %v6940 = vld [vmem:[%s4057 + $0x48] sm:$0xe]
      %v6941 = vld [vmem:[%s4057 + $0x54] sm:$0xe]
      %v6942 = vld [vmem:[%s4057 + $0x60] sm:$0xe]
      %v6943 = vld [vmem:[%s4057 + $0x6c] sm:$0xe]
      %v6944 = vld [vmem:[%s4057 + $0x78] sm:$0xe]
      %v6945 = vld [vmem:[%s4057 + $0x84] sm:$0xe]
      %v6946 = vld [vmem:[%s4057 + $0x90] sm:$0xe]
      %v6947 = vld [vmem:[%s4057 + $0x9c] sm:$0xe]
      %v6948 = vld [vmem:[%s4057 + $0xa8] sm:$0xe]
      %v6949 = vld [vmem:[%s4057 + $0xb4] sm:$0xe]
      %v6982 = vunpack.c.l.b16 %v6822
      %v6983 = vunpack.c.l.b16 %v6823
      %v6984 = vunpack.c.l.b16 %v6824
      %v6985 = vunpack.c.l.b16 %v6825
      %v6986 = vunpack.c.l.b16 %v6826
      %v6987 = vunpack.c.l.b16 %v6827
      %v6988 = vunpack.c.l.b16 %v6828
      %v6989 = vunpack.c.l.b16 %v6829
      %v6990 = vunpack.c.l.b16 %v6830
      %v6991 = vunpack.c.l.b16 %v6831
      %v6992 = vunpack.c.l.b16 %v6832
      %v6993 = vunpack.c.l.b16 %v6833
      %v6994 = vunpack.c.l.b16 %v6834
      %v6995 = vunpack.c.l.b16 %v6835
      %v6996 = vunpack.c.l.b16 %v6836
      %v6997 = vunpack.c.l.b16 %v6837
      %v6998 = vunpack.c.l.b16 %v6838
      %v6999 = vunpack.c.l.b16 %v6839
      %v7000 = vunpack.c.l.b16 %v6840
      %v7001 = vunpack.c.l.b16 %v6841
      %v7002 = vunpack.c.l.b16 %v6842
      %v7003 = vunpack.c.l.b16 %v6843
      %v7004 = vunpack.c.l.b16 %v6844
      %v7005 = vunpack.c.l.b16 %v6845
      %v7006 = vunpack.c.l.b16 %v6846
      %v7007 = vunpack.c.l.b16 %v6847
      %v7008 = vunpack.c.l.b16 %v6848
      %v7009 = vunpack.c.l.b16 %v6849
      %v7010 = vunpack.c.l.b16 %v6850
      %v7011 = vunpack.c.l.b16 %v6851
      %v7012 = vunpack.c.l.b16 %v6852
      %v7013 = vunpack.c.l.b16 %v6853
      %v7014 = vpack.c.b16 %v6983, %v6982
      %v7015 = vpack.c.b16 %v6985, %v6984
      %v7016 = vpack.c.b16 %v6987, %v6986
      %v7017 = vpack.c.b16 %v6989, %v6988
      %v7018 = vpack.c.b16 %v6991, %v6990
      %v7019 = vpack.c.b16 %v6993, %v6992
      %v7020 = vpack.c.b16 %v6995, %v6994
      %v7021 = vpack.c.b16 %v6997, %v6996
      %v7022 = vpack.c.b16 %v6999, %v6998
      %v7023 = vpack.c.b16 %v7001, %v7000
      %v7024 = vpack.c.b16 %v7003, %v7002
      %v7025 = vpack.c.b16 %v7005, %v7004
      %v7026 = vpack.c.b16 %v7007, %v7006
      %v7027 = vpack.c.b16 %v7009, %v7008
      %v7028 = vpack.c.b16 %v7011, %v7010
      %v7029 = vpack.c.b16 %v7013, %v7012
      %v7062 = vunpack.c.l.b16 %v6854
      %v7063 = vunpack.c.l.b16 %v6855
      %v7064 = vunpack.c.l.b16 %v6856
      %v7065 = vunpack.c.l.b16 %v6857
      %v7066 = vunpack.c.l.b16 %v6858
      %v7067 = vunpack.c.l.b16 %v6859
      %v7068 = vunpack.c.l.b16 %v6860
      %v7069 = vunpack.c.l.b16 %v6861
      %v7070 = vunpack.c.l.b16 %v6862
      %v7071 = vunpack.c.l.b16 %v6863
      %v7072 = vunpack.c.l.b16 %v6864
      %v7073 = vunpack.c.l.b16 %v6865
      %v7074 = vunpack.c.l.b16 %v6866
      %v7075 = vunpack.c.l.b16 %v6867
      %v7076 = vunpack.c.l.b16 %v6868
      %v7077 = vunpack.c.l.b16 %v6869
      %v7078 = vpack.c.b16 %v7062, %v7062
      %v7079 = vpack.c.b16 %v7063, %v7063
      %v7080 = vpack.c.b16 %v7064, %v7064
      %v7081 = vpack.c.b16 %v7065, %v7065
      %v7082 = vpack.c.b16 %v7066, %v7066
      %v7083 = vpack.c.b16 %v7067, %v7067
      %v7084 = vpack.c.b16 %v7068, %v7068
      %v7085 = vpack.c.b16 %v7069, %v7069
      %v7086 = vpack.c.b16 %v7070, %v7070
      %v7087 = vpack.c.b16 %v7071, %v7071
      %v7088 = vpack.c.b16 %v7072, %v7072
      %v7089 = vpack.c.b16 %v7073, %v7073
      %v7090 = vpack.c.b16 %v7074, %v7074
      %v7091 = vpack.c.b16 %v7075, %v7075
      %v7092 = vpack.c.b16 %v7076, %v7076
      %v7093 = vpack.c.b16 %v7077, %v7077
      %v7095 = vshrl.u32 %v7014, 16
      %v7097 = vshll.u32 %v7014, 16
      %v7099 = vrot.slane %v7097, 1
      %v7100 = vor.u32 %v7095, %v7099
      %v7102 = vshll.u32 %v7078, 16
      %v7104 = vrot.slane %v7102, 1
      %v7105 = vsel %vm1272, %v7100, %v7104
      %v7107 = vshrl.u32 %v7015, 16
      %v7109 = vshll.u32 %v7015, 16
      %v7111 = vrot.slane %v7109, 1
      %v7112 = vor.u32 %v7107, %v7111
      %v7114 = vshll.u32 %v7079, 16
      %v7116 = vrot.slane %v7114, 1
      %v7117 = vsel %vm1272, %v7112, %v7116
      %v7119 = vshrl.u32 %v7016, 16
      %v7121 = vshll.u32 %v7016, 16
      %v7123 = vrot.slane %v7121, 1
      %v7124 = vor.u32 %v7119, %v7123
      %v7126 = vshll.u32 %v7080, 16
      %v7128 = vrot.slane %v7126, 1
      %v7129 = vsel %vm1272, %v7124, %v7128
      %v7131 = vshrl.u32 %v7017, 16
      %v7133 = vshll.u32 %v7017, 16
      %v7135 = vrot.slane %v7133, 1
      %v7136 = vor.u32 %v7131, %v7135
      %v7138 = vshll.u32 %v7081, 16
      %v7140 = vrot.slane %v7138, 1
      %v7141 = vsel %vm1272, %v7136, %v7140
      %v7143 = vshrl.u32 %v7018, 16
      %v7145 = vshll.u32 %v7018, 16
      %v7147 = vrot.slane %v7145, 1
      %v7148 = vor.u32 %v7143, %v7147
      %v7150 = vshll.u32 %v7082, 16
      %v7152 = vrot.slane %v7150, 1
      %v7153 = vsel %vm1272, %v7148, %v7152
      %v7155 = vshrl.u32 %v7019, 16
      %v7157 = vshll.u32 %v7019, 16
      %v7159 = vrot.slane %v7157, 1
      %v7160 = vor.u32 %v7155, %v7159
      %v7162 = vshll.u32 %v7083, 16
      %v7164 = vrot.slane %v7162, 1
      %v7165 = vsel %vm1272, %v7160, %v7164
      %v7167 = vshrl.u32 %v7020, 16
      %v7169 = vshll.u32 %v7020, 16
      %v7171 = vrot.slane %v7169, 1
      %v7172 = vor.u32 %v7167, %v7171
      %v7174 = vshll.u32 %v7084, 16
      %v7176 = vrot.slane %v7174, 1
      %v7177 = vsel %vm1272, %v7172, %v7176
      %v7179 = vshrl.u32 %v7021, 16
      %v7181 = vshll.u32 %v7021, 16
      %v7183 = vrot.slane %v7181, 1
      %v7184 = vor.u32 %v7179, %v7183
      %v7186 = vshll.u32 %v7085, 16
      %v7188 = vrot.slane %v7186, 1
      %v7189 = vsel %vm1272, %v7184, %v7188
      %v7191 = vshrl.u32 %v7022, 16
      %v7193 = vshll.u32 %v7022, 16
      %v7195 = vrot.slane %v7193, 1
      %v7196 = vor.u32 %v7191, %v7195
      %v7198 = vshll.u32 %v7086, 16
      %v7200 = vrot.slane %v7198, 1
      %v7201 = vsel %vm1272, %v7196, %v7200
      %v7203 = vshrl.u32 %v7023, 16
      %v7205 = vshll.u32 %v7023, 16
      %v7207 = vrot.slane %v7205, 1
      %v7208 = vor.u32 %v7203, %v7207
      %v7210 = vshll.u32 %v7087, 16
      %v7212 = vrot.slane %v7210, 1
      %v7213 = vsel %vm1272, %v7208, %v7212
      %v7215 = vshrl.u32 %v7024, 16
      %v7217 = vshll.u32 %v7024, 16
      %v7219 = vrot.slane %v7217, 1
      %v7220 = vor.u32 %v7215, %v7219
      %v7222 = vshll.u32 %v7088, 16
      %v7224 = vrot.slane %v7222, 1
      %v7225 = vsel %vm1272, %v7220, %v7224
      %v7227 = vshrl.u32 %v7025, 16
      %v7229 = vshll.u32 %v7025, 16
      %v7231 = vrot.slane %v7229, 1
      %v7232 = vor.u32 %v7227, %v7231
      %v7234 = vshll.u32 %v7089, 16
      %v7236 = vrot.slane %v7234, 1
      %v7237 = vsel %vm1272, %v7232, %v7236
      %v7239 = vshrl.u32 %v7026, 16
      %v7241 = vshll.u32 %v7026, 16
      %v7243 = vrot.slane %v7241, 1
      %v7244 = vor.u32 %v7239, %v7243
      %v7246 = vshll.u32 %v7090, 16
      %v7248 = vrot.slane %v7246, 1
      %v7249 = vsel %vm1272, %v7244, %v7248
      %v7251 = vshrl.u32 %v7027, 16
      %v7253 = vshll.u32 %v7027, 16
      %v7255 = vrot.slane %v7253, 1
      %v7256 = vor.u32 %v7251, %v7255
      %v7258 = vshll.u32 %v7091, 16
      %v7260 = vrot.slane %v7258, 1
      %v7261 = vsel %vm1272, %v7256, %v7260
      %v7263 = vshrl.u32 %v7028, 16
      %v7265 = vshll.u32 %v7028, 16
      %v7267 = vrot.slane %v7265, 1
      %v7268 = vor.u32 %v7263, %v7267
      %v7270 = vshll.u32 %v7092, 16
      %v7272 = vrot.slane %v7270, 1
      %v7273 = vsel %vm1272, %v7268, %v7272
      %v7275 = vshrl.u32 %v7029, 16
      %v7277 = vshll.u32 %v7029, 16
      %v7279 = vrot.slane %v7277, 1
      %v7280 = vor.u32 %v7275, %v7279
      %v7282 = vshll.u32 %v7093, 16
      %v7284 = vrot.slane %v7282, 1
      %v7285 = vsel %vm1272, %v7280, %v7284
      %v7318 = vunpack.c.l.b16 %v6870
      %v7319 = vunpack.c.l.b16 %v6871
      %v7320 = vunpack.c.l.b16 %v6872
      %v7321 = vunpack.c.l.b16 %v6873
      %v7322 = vunpack.c.l.b16 %v6874
      %v7323 = vunpack.c.l.b16 %v6875
      %v7324 = vunpack.c.l.b16 %v6876
      %v7325 = vunpack.c.l.b16 %v6877
      %v7326 = vunpack.c.l.b16 %v6878
      %v7327 = vunpack.c.l.b16 %v6879
      %v7328 = vunpack.c.l.b16 %v6880
      %v7329 = vunpack.c.l.b16 %v6881
      %v7330 = vunpack.c.l.b16 %v6882
      %v7331 = vunpack.c.l.b16 %v6883
      %v7332 = vunpack.c.l.b16 %v6884
      %v7333 = vunpack.c.l.b16 %v6885
      %v7334 = vpack.c.b16 %v6983, %v7318
      %v7335 = vpack.c.b16 %v6985, %v7319
      %v7336 = vpack.c.b16 %v6987, %v7320
      %v7337 = vpack.c.b16 %v6989, %v7321
      %v7338 = vpack.c.b16 %v6991, %v7322
      %v7339 = vpack.c.b16 %v6993, %v7323
      %v7340 = vpack.c.b16 %v6995, %v7324
      %v7341 = vpack.c.b16 %v6997, %v7325
      %v7342 = vpack.c.b16 %v6999, %v7326
      %v7343 = vpack.c.b16 %v7001, %v7327
      %v7344 = vpack.c.b16 %v7003, %v7328
      %v7345 = vpack.c.b16 %v7005, %v7329
      %v7346 = vpack.c.b16 %v7007, %v7330
      %v7347 = vpack.c.b16 %v7009, %v7331
      %v7348 = vpack.c.b16 %v7011, %v7332
      %v7349 = vpack.c.b16 %v7013, %v7333
      %v7350 = vrot.slane %v7334, 1
      %v7351 = vrot.slane %v7078, 1
      %v7352 = vsel %vm1529, %v7350, %v7351
      %v7353 = vrot.slane %v7335, 1
      %v7354 = vrot.slane %v7079, 1
      %v7355 = vsel %vm1529, %v7353, %v7354
      %v7356 = vrot.slane %v7336, 1
      %v7357 = vrot.slane %v7080, 1
      %v7358 = vsel %vm1529, %v7356, %v7357
      %v7359 = vrot.slane %v7337, 1
      %v7360 = vrot.slane %v7081, 1
      %v7361 = vsel %vm1529, %v7359, %v7360
      %v7362 = vrot.slane %v7338, 1
      %v7363 = vrot.slane %v7082, 1
      %v7364 = vsel %vm1529, %v7362, %v7363
      %v7365 = vrot.slane %v7339, 1
      %v7366 = vrot.slane %v7083, 1
      %v7367 = vsel %vm1529, %v7365, %v7366
      %v7368 = vrot.slane %v7340, 1
      %v7369 = vrot.slane %v7084, 1
      %v7370 = vsel %vm1529, %v7368, %v7369
      %v7371 = vrot.slane %v7341, 1
      %v7372 = vrot.slane %v7085, 1
      %v7373 = vsel %vm1529, %v7371, %v7372
      %v7374 = vrot.slane %v7342, 1
      %v7375 = vrot.slane %v7086, 1
      %v7376 = vsel %vm1529, %v7374, %v7375
      %v7377 = vrot.slane %v7343, 1
      %v7378 = vrot.slane %v7087, 1
      %v7379 = vsel %vm1529, %v7377, %v7378
      %v7380 = vrot.slane %v7344, 1
      %v7381 = vrot.slane %v7088, 1
      %v7382 = vsel %vm1529, %v7380, %v7381
      %v7383 = vrot.slane %v7345, 1
      %v7384 = vrot.slane %v7089, 1
      %v7385 = vsel %vm1529, %v7383, %v7384
      %v7386 = vrot.slane %v7346, 1
      %v7387 = vrot.slane %v7090, 1
      %v7388 = vsel %vm1529, %v7386, %v7387
      %v7389 = vrot.slane %v7347, 1
      %v7390 = vrot.slane %v7091, 1
      %v7391 = vsel %vm1529, %v7389, %v7390
      %v7392 = vrot.slane %v7348, 1
      %v7393 = vrot.slane %v7092, 1
      %v7394 = vsel %vm1529, %v7392, %v7393
      %v7395 = vrot.slane %v7349, 1
      %v7396 = vrot.slane %v7093, 1
      %v7397 = vsel %vm1529, %v7395, %v7396
      %v7446 = vunpack.c.l.b16 %v6886
      %v7447 = vunpack.c.l.b16 %v6887
      %v7448 = vunpack.c.l.b16 %v6888
      %v7449 = vunpack.c.l.b16 %v6889
      %v7450 = vunpack.c.l.b16 %v6890
      %v7451 = vunpack.c.l.b16 %v6891
      %v7452 = vunpack.c.l.b16 %v6892
      %v7453 = vunpack.c.l.b16 %v6893
      %v7454 = vunpack.c.l.b16 %v6894
      %v7455 = vunpack.c.l.b16 %v6895
      %v7456 = vunpack.c.l.b16 %v6896
      %v7457 = vunpack.c.l.b16 %v6897
      %v7458 = vunpack.c.l.b16 %v6898
      %v7459 = vunpack.c.l.b16 %v6899
      %v7460 = vunpack.c.l.b16 %v6900
      %v7461 = vunpack.c.l.b16 %v6901
      %v7462 = vunpack.c.l.b16 %v6902
      %v7463 = vunpack.c.l.b16 %v6903
      %v7464 = vunpack.c.l.b16 %v6904
      %v7465 = vunpack.c.l.b16 %v6905
      %v7466 = vunpack.c.l.b16 %v6906
      %v7467 = vunpack.c.l.b16 %v6907
      %v7468 = vunpack.c.l.b16 %v6908
      %v7469 = vunpack.c.l.b16 %v6909
      %v7470 = vunpack.c.l.b16 %v6910
      %v7471 = vunpack.c.l.b16 %v6911
      %v7472 = vunpack.c.l.b16 %v6912
      %v7473 = vunpack.c.l.b16 %v6913
      %v7474 = vunpack.c.l.b16 %v6914
      %v7475 = vunpack.c.l.b16 %v6915
      %v7476 = vunpack.c.l.b16 %v6916
      %v7477 = vunpack.c.l.b16 %v6917
      %v7478 = vpack.c.b16 %v7447, %v7446
      %v7479 = vpack.c.b16 %v7449, %v7448
      %v7480 = vpack.c.b16 %v7451, %v7450
      %v7481 = vpack.c.b16 %v7453, %v7452
      %v7482 = vpack.c.b16 %v7455, %v7454
      %v7483 = vpack.c.b16 %v7457, %v7456
      %v7484 = vpack.c.b16 %v7459, %v7458
      %v7485 = vpack.c.b16 %v7461, %v7460
      %v7486 = vpack.c.b16 %v7463, %v7462
      %v7487 = vpack.c.b16 %v7465, %v7464
      %v7488 = vpack.c.b16 %v7467, %v7466
      %v7489 = vpack.c.b16 %v7469, %v7468
      %v7490 = vpack.c.b16 %v7471, %v7470
      %v7491 = vpack.c.b16 %v7473, %v7472
      %v7492 = vpack.c.b16 %v7475, %v7474
      %v7493 = vpack.c.b16 %v7477, %v7476
      %v7526 = vunpack.c.l.b16 %v6918
      %v7527 = vunpack.c.l.b16 %v6919
      %v7528 = vunpack.c.l.b16 %v6920
      %v7529 = vunpack.c.l.b16 %v6921
      %v7530 = vunpack.c.l.b16 %v6922
      %v7531 = vunpack.c.l.b16 %v6923
      %v7532 = vunpack.c.l.b16 %v6924
      %v7533 = vunpack.c.l.b16 %v6925
      %v7534 = vunpack.c.l.b16 %v6926
      %v7535 = vunpack.c.l.b16 %v6927
      %v7536 = vunpack.c.l.b16 %v6928
      %v7537 = vunpack.c.l.b16 %v6929
      %v7538 = vunpack.c.l.b16 %v6930
      %v7539 = vunpack.c.l.b16 %v6931
      %v7540 = vunpack.c.l.b16 %v6932
      %v7541 = vunpack.c.l.b16 %v6933
      %v7542 = vpack.c.b16 %v7526, %v7526
      %v7543 = vpack.c.b16 %v7527, %v7527
      %v7544 = vpack.c.b16 %v7528, %v7528
      %v7545 = vpack.c.b16 %v7529, %v7529
      %v7546 = vpack.c.b16 %v7530, %v7530
      %v7547 = vpack.c.b16 %v7531, %v7531
      %v7548 = vpack.c.b16 %v7532, %v7532
      %v7549 = vpack.c.b16 %v7533, %v7533
      %v7550 = vpack.c.b16 %v7534, %v7534
      %v7551 = vpack.c.b16 %v7535, %v7535
      %v7552 = vpack.c.b16 %v7536, %v7536
      %v7553 = vpack.c.b16 %v7537, %v7537
      %v7554 = vpack.c.b16 %v7538, %v7538
      %v7555 = vpack.c.b16 %v7539, %v7539
      %v7556 = vpack.c.b16 %v7540, %v7540
      %v7557 = vpack.c.b16 %v7541, %v7541
      %v7559 = vshrl.u32 %v7478, 16
      %v7561 = vshll.u32 %v7478, 16
      %v7563 = vrot.slane %v7561, 1
      %v7564 = vor.u32 %v7559, %v7563
      %v7566 = vshll.u32 %v7542, 16
      %v7568 = vrot.slane %v7566, 1
      %v7569 = vsel %vm1272, %v7564, %v7568
      %v7571 = vshrl.u32 %v7479, 16
      %v7573 = vshll.u32 %v7479, 16
      %v7575 = vrot.slane %v7573, 1
      %v7576 = vor.u32 %v7571, %v7575
      %v7578 = vshll.u32 %v7543, 16
      %v7580 = vrot.slane %v7578, 1
      %v7581 = vsel %vm1272, %v7576, %v7580
      %v7583 = vshrl.u32 %v7480, 16
      %v7585 = vshll.u32 %v7480, 16
      %v7587 = vrot.slane %v7585, 1
      %v7588 = vor.u32 %v7583, %v7587
      %v7590 = vshll.u32 %v7544, 16
      %v7592 = vrot.slane %v7590, 1
      %v7593 = vsel %vm1272, %v7588, %v7592
      %v7595 = vshrl.u32 %v7481, 16
      %v7597 = vshll.u32 %v7481, 16
      %v7599 = vrot.slane %v7597, 1
      %v7600 = vor.u32 %v7595, %v7599
      %v7602 = vshll.u32 %v7545, 16
      %v7604 = vrot.slane %v7602, 1
      %v7605 = vsel %vm1272, %v7600, %v7604
      %v7607 = vshrl.u32 %v7482, 16
      %v7609 = vshll.u32 %v7482, 16
      %v7611 = vrot.slane %v7609, 1
      %v7612 = vor.u32 %v7607, %v7611
      %v7614 = vshll.u32 %v7546, 16
      %v7616 = vrot.slane %v7614, 1
      %v7617 = vsel %vm1272, %v7612, %v7616
      %v7619 = vshrl.u32 %v7483, 16
      %v7621 = vshll.u32 %v7483, 16
      %v7623 = vrot.slane %v7621, 1
      %v7624 = vor.u32 %v7619, %v7623
      %v7626 = vshll.u32 %v7547, 16
      %v7628 = vrot.slane %v7626, 1
      %v7629 = vsel %vm1272, %v7624, %v7628
      %v7631 = vshrl.u32 %v7484, 16
      %v7633 = vshll.u32 %v7484, 16
      %v7635 = vrot.slane %v7633, 1
      %v7636 = vor.u32 %v7631, %v7635
      %v7638 = vshll.u32 %v7548, 16
      %v7640 = vrot.slane %v7638, 1
      %v7641 = vsel %vm1272, %v7636, %v7640
      %v7643 = vshrl.u32 %v7485, 16
      %v7645 = vshll.u32 %v7485, 16
      %v7647 = vrot.slane %v7645, 1
      %v7648 = vor.u32 %v7643, %v7647
      %v7650 = vshll.u32 %v7549, 16
      %v7652 = vrot.slane %v7650, 1
      %v7653 = vsel %vm1272, %v7648, %v7652
      %v7655 = vshrl.u32 %v7486, 16
      %v7657 = vshll.u32 %v7486, 16
      %v7659 = vrot.slane %v7657, 1
      %v7660 = vor.u32 %v7655, %v7659
      %v7662 = vshll.u32 %v7550, 16
      %v7664 = vrot.slane %v7662, 1
      %v7665 = vsel %vm1272, %v7660, %v7664
      %v7667 = vshrl.u32 %v7487, 16
      %v7669 = vshll.u32 %v7487, 16
      %v7671 = vrot.slane %v7669, 1
      %v7672 = vor.u32 %v7667, %v7671
      %v7674 = vshll.u32 %v7551, 16
      %v7676 = vrot.slane %v7674, 1
      %v7677 = vsel %vm1272, %v7672, %v7676
      %v7679 = vshrl.u32 %v7488, 16
      %v7681 = vshll.u32 %v7488, 16
      %v7683 = vrot.slane %v7681, 1
      %v7684 = vor.u32 %v7679, %v7683
      %v7686 = vshll.u32 %v7552, 16
      %v7688 = vrot.slane %v7686, 1
      %v7689 = vsel %vm1272, %v7684, %v7688
      %v7691 = vshrl.u32 %v7489, 16
      %v7693 = vshll.u32 %v7489, 16
      %v7695 = vrot.slane %v7693, 1
      %v7696 = vor.u32 %v7691, %v7695
      %v7698 = vshll.u32 %v7553, 16
      %v7700 = vrot.slane %v7698, 1
      %v7701 = vsel %vm1272, %v7696, %v7700
      %v7703 = vshrl.u32 %v7490, 16
      %v7705 = vshll.u32 %v7490, 16
      %v7707 = vrot.slane %v7705, 1
      %v7708 = vor.u32 %v7703, %v7707
      %v7710 = vshll.u32 %v7554, 16
      %v7712 = vrot.slane %v7710, 1
      %v7713 = vsel %vm1272, %v7708, %v7712
      %v7715 = vshrl.u32 %v7491, 16
      %v7717 = vshll.u32 %v7491, 16
      %v7719 = vrot.slane %v7717, 1
      %v7720 = vor.u32 %v7715, %v7719
      %v7722 = vshll.u32 %v7555, 16
      %v7724 = vrot.slane %v7722, 1
      %v7725 = vsel %vm1272, %v7720, %v7724
      %v7727 = vshrl.u32 %v7492, 16
      %v7729 = vshll.u32 %v7492, 16
      %v7731 = vrot.slane %v7729, 1
      %v7732 = vor.u32 %v7727, %v7731
      %v7734 = vshll.u32 %v7556, 16
      %v7736 = vrot.slane %v7734, 1
      %v7737 = vsel %vm1272, %v7732, %v7736
      %v7739 = vshrl.u32 %v7493, 16
      %v7741 = vshll.u32 %v7493, 16
      %v7743 = vrot.slane %v7741, 1
      %v7744 = vor.u32 %v7739, %v7743
      %v7746 = vshll.u32 %v7557, 16
      %v7748 = vrot.slane %v7746, 1
      %v7749 = vsel %vm1272, %v7744, %v7748
      %v7782 = vunpack.c.l.b16 %v6934
      %v7783 = vunpack.c.l.b16 %v6935
      %v7784 = vunpack.c.l.b16 %v6936
      %v7785 = vunpack.c.l.b16 %v6937
      %v7786 = vunpack.c.l.b16 %v6938
      %v7787 = vunpack.c.l.b16 %v6939
      %v7788 = vunpack.c.l.b16 %v6940
      %v7789 = vunpack.c.l.b16 %v6941
      %v7790 = vunpack.c.l.b16 %v6942
      %v7791 = vunpack.c.l.b16 %v6943
      %v7792 = vunpack.c.l.b16 %v6944
      %v7793 = vunpack.c.l.b16 %v6945
      %v7794 = vunpack.c.l.b16 %v6946
      %v7795 = vunpack.c.l.b16 %v6947
      %v7796 = vunpack.c.l.b16 %v6948
      %v7797 = vunpack.c.l.b16 %v6949
      %v7798 = vpack.c.b16 %v7447, %v7782
      %v7799 = vpack.c.b16 %v7449, %v7783
      %v7800 = vpack.c.b16 %v7451, %v7784
      %v7801 = vpack.c.b16 %v7453, %v7785
      %v7802 = vpack.c.b16 %v7455, %v7786
      %v7803 = vpack.c.b16 %v7457, %v7787
      %v7804 = vpack.c.b16 %v7459, %v7788
      %v7805 = vpack.c.b16 %v7461, %v7789
      %v7806 = vpack.c.b16 %v7463, %v7790
      %v7807 = vpack.c.b16 %v7465, %v7791
      %v7808 = vpack.c.b16 %v7467, %v7792
      %v7809 = vpack.c.b16 %v7469, %v7793
      %v7810 = vpack.c.b16 %v7471, %v7794
      %v7811 = vpack.c.b16 %v7473, %v7795
      %v7812 = vpack.c.b16 %v7475, %v7796
      %v7813 = vpack.c.b16 %v7477, %v7797
      %v7814 = vrot.slane %v7798, 1
      %v7815 = vrot.slane %v7542, 1
      %v7816 = vsel %vm1529, %v7814, %v7815
      %v7817 = vrot.slane %v7799, 1
      %v7818 = vrot.slane %v7543, 1
      %v7819 = vsel %vm1529, %v7817, %v7818
      %v7820 = vrot.slane %v7800, 1
      %v7821 = vrot.slane %v7544, 1
      %v7822 = vsel %vm1529, %v7820, %v7821
      %v7823 = vrot.slane %v7801, 1
      %v7824 = vrot.slane %v7545, 1
      %v7825 = vsel %vm1529, %v7823, %v7824
      %v7826 = vrot.slane %v7802, 1
      %v7827 = vrot.slane %v7546, 1
      %v7828 = vsel %vm1529, %v7826, %v7827
      %v7829 = vrot.slane %v7803, 1
      %v7830 = vrot.slane %v7547, 1
      %v7831 = vsel %vm1529, %v7829, %v7830
      %v7832 = vrot.slane %v7804, 1
      %v7833 = vrot.slane %v7548, 1
      %v7834 = vsel %vm1529, %v7832, %v7833
      %v7835 = vrot.slane %v7805, 1
      %v7836 = vrot.slane %v7549, 1
      %v7837 = vsel %vm1529, %v7835, %v7836
      %v7838 = vrot.slane %v7806, 1
      %v7839 = vrot.slane %v7550, 1
      %v7840 = vsel %vm1529, %v7838, %v7839
      %v7841 = vrot.slane %v7807, 1
      %v7842 = vrot.slane %v7551, 1
      %v7843 = vsel %vm1529, %v7841, %v7842
      %v7844 = vrot.slane %v7808, 1
      %v7845 = vrot.slane %v7552, 1
      %v7846 = vsel %vm1529, %v7844, %v7845
      %v7847 = vrot.slane %v7809, 1
      %v7848 = vrot.slane %v7553, 1
      %v7849 = vsel %vm1529, %v7847, %v7848
      %v7850 = vrot.slane %v7810, 1
      %v7851 = vrot.slane %v7554, 1
      %v7852 = vsel %vm1529, %v7850, %v7851
      %v7853 = vrot.slane %v7811, 1
      %v7854 = vrot.slane %v7555, 1
      %v7855 = vsel %vm1529, %v7853, %v7854
      %v7856 = vrot.slane %v7812, 1
      %v7857 = vrot.slane %v7556, 1
      %v7858 = vsel %vm1529, %v7856, %v7857
      %v7859 = vrot.slane %v7813, 1
      %v7860 = vrot.slane %v7557, 1
      %v7861 = vsel %vm1529, %v7859, %v7860
      %s7878 = scalar_lea.vmem %s3, 384
      %v7879 = vld [vmem:[%s7878] sm:$0xf]
      %v7880 = vld [vmem:[%s7878 + $0x4] sm:$0xf]
      %v7881 = vld [vmem:[%s7878 + $0x8] sm:$0xf]
      %v7882 = vld [vmem:[%s7878 + $0xc] sm:$0xf]
      %v7883 = vld [vmem:[%s7878 + $0x10] sm:$0xf]
      %v7884 = vld [vmem:[%s7878 + $0x14] sm:$0xf]
      %v7885 = vld [vmem:[%s7878 + $0x18] sm:$0xf]
      %v7886 = vld [vmem:[%s7878 + $0x1c] sm:$0xf]
      %v7887 = vld [vmem:[%s7878 + $0x20] sm:$0xf]
      %v7888 = vld [vmem:[%s7878 + $0x24] sm:$0xf]
      %v7889 = vld [vmem:[%s7878 + $0x28] sm:$0xf]
      %v7890 = vld [vmem:[%s7878 + $0x2c] sm:$0xf]
      %v7891 = vld [vmem:[%s7878 + $0x30] sm:$0xf]
      %v7892 = vld [vmem:[%s7878 + $0x34] sm:$0xf]
      %v7893 = vld [vmem:[%s7878 + $0x38] sm:$0xf]
      %v7894 = vld [vmem:[%s7878 + $0x3c] sm:$0xf]
      %v7895 = vld [vmem:[%s7878 + $0x40] sm:$0xf]
      %v7896 = vld [vmem:[%s7878 + $0x44] sm:$0xf]
      %v7897 = vld [vmem:[%s7878 + $0x48] sm:$0xf]
      %v7898 = vld [vmem:[%s7878 + $0x4c] sm:$0xf]
      %v7899 = vld [vmem:[%s7878 + $0x50] sm:$0xf]
      %v7900 = vld [vmem:[%s7878 + $0x54] sm:$0xf]
      %v7901 = vld [vmem:[%s7878 + $0x58] sm:$0xf]
      %v7902 = vld [vmem:[%s7878 + $0x5c] sm:$0xf]
      %v7903 = vld [vmem:[%s7878 + $0x60] sm:$0xf]
      %v7904 = vld [vmem:[%s7878 + $0x64] sm:$0xf]
      %v7905 = vld [vmem:[%s7878 + $0x68] sm:$0xf]
      %v7906 = vld [vmem:[%s7878 + $0x6c] sm:$0xf]
      %v7907 = vld [vmem:[%s7878 + $0x70] sm:$0xf]
      %v7908 = vld [vmem:[%s7878 + $0x74] sm:$0xf]
      %v7909 = vld [vmem:[%s7878 + $0x78] sm:$0xf]
      %v7910 = vld [vmem:[%s7878 + $0x7c] sm:$0xf]
      %v7911 = vld [vmem:[%s7878 + $0x80] sm:$0xf]
      %v7912 = vld [vmem:[%s7878 + $0x84] sm:$0xf]
      %v7913 = vld [vmem:[%s7878 + $0x88] sm:$0xf]
      %v7914 = vld [vmem:[%s7878 + $0x8c] sm:$0xf]
      %v7915 = vld [vmem:[%s7878 + $0x90] sm:$0xf]
      %v7916 = vld [vmem:[%s7878 + $0x94] sm:$0xf]
      %v7917 = vld [vmem:[%s7878 + $0x98] sm:$0xf]
      %v7918 = vld [vmem:[%s7878 + $0x9c] sm:$0xf]
      %v7919 = vld [vmem:[%s7878 + $0xa0] sm:$0xf]
      %v7920 = vld [vmem:[%s7878 + $0xa4] sm:$0xf]
      %v7921 = vld [vmem:[%s7878 + $0xa8] sm:$0xf]
      %v7922 = vld [vmem:[%s7878 + $0xac] sm:$0xf]
      %v7923 = vld [vmem:[%s7878 + $0xb0] sm:$0xf]
      %v7924 = vld [vmem:[%s7878 + $0xb4] sm:$0xf]
      %v7925 = vld [vmem:[%s7878 + $0xb8] sm:$0xf]
      %v7926 = vld [vmem:[%s7878 + $0xbc] sm:$0xf]
      %v7927 = vld [vmem:[%s7878 + $0xc0] sm:$0xf]
      %v7928 = vld [vmem:[%s7878 + $0xc4] sm:$0xf]
      %v7929 = vld [vmem:[%s7878 + $0xc8] sm:$0xf]
      %v7930 = vld [vmem:[%s7878 + $0xcc] sm:$0xf]
      %v7931 = vld [vmem:[%s7878 + $0xd0] sm:$0xf]
      %v7932 = vld [vmem:[%s7878 + $0xd4] sm:$0xf]
      %v7933 = vld [vmem:[%s7878 + $0xd8] sm:$0xf]
      %v7934 = vld [vmem:[%s7878 + $0xdc] sm:$0xf]
      %v7935 = vld [vmem:[%s7878 + $0xe0] sm:$0xf]
      %v7936 = vld [vmem:[%s7878 + $0xe4] sm:$0xf]
      %v7937 = vld [vmem:[%s7878 + $0xe8] sm:$0xf]
      %v7938 = vld [vmem:[%s7878 + $0xec] sm:$0xf]
      %v7939 = vld [vmem:[%s7878 + $0xf0] sm:$0xf]
      %v7940 = vld [vmem:[%s7878 + $0xf4] sm:$0xf]
      %v7941 = vld [vmem:[%s7878 + $0xf8] sm:$0xf]
      %v7942 = vld [vmem:[%s7878 + $0xfc] sm:$0xf]
      %v7943 = vld [vmem:[%s7878 + $0x100] sm:$0xf]
      %v7944 = vld [vmem:[%s7878 + $0x104] sm:$0xf]
      %v7945 = vld [vmem:[%s7878 + $0x108] sm:$0xf]
      %v7946 = vld [vmem:[%s7878 + $0x10c] sm:$0xf]
      %v7947 = vld [vmem:[%s7878 + $0x110] sm:$0xf]
      %v7948 = vld [vmem:[%s7878 + $0x114] sm:$0xf]
      %v7949 = vld [vmem:[%s7878 + $0x118] sm:$0xf]
      %v7950 = vld [vmem:[%s7878 + $0x11c] sm:$0xf]
      %v7951 = vld [vmem:[%s7878 + $0x120] sm:$0xf]
      %v7952 = vld [vmem:[%s7878 + $0x124] sm:$0xf]
      %v7953 = vld [vmem:[%s7878 + $0x128] sm:$0xf]
      %v7954 = vld [vmem:[%s7878 + $0x12c] sm:$0xf]
      %v7955 = vld [vmem:[%s7878 + $0x130] sm:$0xf]
      %v7956 = vld [vmem:[%s7878 + $0x134] sm:$0xf]
      %v7957 = vld [vmem:[%s7878 + $0x138] sm:$0xf]
      %v7958 = vld [vmem:[%s7878 + $0x13c] sm:$0xf]
      %v7959 = vld [vmem:[%s7878 + $0x140] sm:$0xf]
      %v7960 = vld [vmem:[%s7878 + $0x144] sm:$0xf]
      %v7961 = vld [vmem:[%s7878 + $0x148] sm:$0xf]
      %v7962 = vld [vmem:[%s7878 + $0x14c] sm:$0xf]
      %v7963 = vld [vmem:[%s7878 + $0x150] sm:$0xf]
      %v7964 = vld [vmem:[%s7878 + $0x154] sm:$0xf]
      %v7965 = vld [vmem:[%s7878 + $0x158] sm:$0xf]
      %v7966 = vld [vmem:[%s7878 + $0x15c] sm:$0xf]
      %v7967 = vld [vmem:[%s7878 + $0x160] sm:$0xf]
      %v7968 = vld [vmem:[%s7878 + $0x164] sm:$0xf]
      %v7969 = vld [vmem:[%s7878 + $0x168] sm:$0xf]
      %v7970 = vld [vmem:[%s7878 + $0x16c] sm:$0xf]
      %v7971 = vld [vmem:[%s7878 + $0x170] sm:$0xf]
      %v7972 = vld [vmem:[%s7878 + $0x174] sm:$0xf]
      %v7973 = vld [vmem:[%s7878 + $0x178] sm:$0xf]
      %v7974 = vld [vmem:[%s7878 + $0x17c] sm:$0xf]
      %v8071 = vunpack.c.l.b16 %v7879
      %v8072 = vunpack.c.l.b16 %v7880
      %v8073 = vunpack.c.l.b16 %v7881
      %v8074 = vunpack.c.l.b16 %v7882
      %v8075 = vunpack.c.l.b16 %v7883
      %v8076 = vunpack.c.l.b16 %v7884
      %v8077 = vunpack.c.l.b16 %v7885
      %v8078 = vunpack.c.l.b16 %v7886
      %v8079 = vunpack.c.l.b16 %v7887
      %v8080 = vunpack.c.l.b16 %v7888
      %v8081 = vunpack.c.l.b16 %v7889
      %v8082 = vunpack.c.l.b16 %v7890
      %v8083 = vunpack.c.l.b16 %v7891
      %v8084 = vunpack.c.l.b16 %v7892
      %v8085 = vunpack.c.l.b16 %v7893
      %v8086 = vunpack.c.l.b16 %v7894
      %v8087 = vunpack.c.l.b16 %v7895
      %v8088 = vunpack.c.l.b16 %v7896
      %v8089 = vunpack.c.l.b16 %v7897
      %v8090 = vunpack.c.l.b16 %v7898
      %v8091 = vunpack.c.l.b16 %v7899
      %v8092 = vunpack.c.l.b16 %v7900
      %v8093 = vunpack.c.l.b16 %v7901
      %v8094 = vunpack.c.l.b16 %v7902
      %v8095 = vunpack.c.l.b16 %v7903
      %v8096 = vunpack.c.l.b16 %v7904
      %v8097 = vunpack.c.l.b16 %v7905
      %v8098 = vunpack.c.l.b16 %v7906
      %v8099 = vunpack.c.l.b16 %v7907
      %v8100 = vunpack.c.l.b16 %v7908
      %v8101 = vunpack.c.l.b16 %v7909
      %v8102 = vunpack.c.l.b16 %v7910
      %v8103 = vunpack.c.l.b16 %v7911
      %v8104 = vunpack.c.l.b16 %v7912
      %v8105 = vunpack.c.l.b16 %v7913
      %v8106 = vunpack.c.l.b16 %v7914
      %v8107 = vunpack.c.l.b16 %v7915
      %v8108 = vunpack.c.l.b16 %v7916
      %v8109 = vunpack.c.l.b16 %v7917
      %v8110 = vunpack.c.l.b16 %v7918
      %v8111 = vunpack.c.l.b16 %v7919
      %v8112 = vunpack.c.l.b16 %v7920
      %v8113 = vunpack.c.l.b16 %v7921
      %v8114 = vunpack.c.l.b16 %v7922
      %v8115 = vunpack.c.l.b16 %v7923
      %v8116 = vunpack.c.l.b16 %v7924
      %v8117 = vunpack.c.l.b16 %v7925
      %v8118 = vunpack.c.l.b16 %v7926
      %v8119 = vunpack.c.l.b16 %v7927
      %v8120 = vunpack.c.l.b16 %v7928
      %v8121 = vunpack.c.l.b16 %v7929
      %v8122 = vunpack.c.l.b16 %v7930
      %v8123 = vunpack.c.l.b16 %v7931
      %v8124 = vunpack.c.l.b16 %v7932
      %v8125 = vunpack.c.l.b16 %v7933
      %v8126 = vunpack.c.l.b16 %v7934
      %v8127 = vunpack.c.l.b16 %v7935
      %v8128 = vunpack.c.l.b16 %v7936
      %v8129 = vunpack.c.l.b16 %v7937
      %v8130 = vunpack.c.l.b16 %v7938
      %v8131 = vunpack.c.l.b16 %v7939
      %v8132 = vunpack.c.l.b16 %v7940
      %v8133 = vunpack.c.l.b16 %v7941
      %v8134 = vunpack.c.l.b16 %v7942
      %v8135 = vunpack.c.l.b16 %v7943
      %v8136 = vunpack.c.l.b16 %v7944
      %v8137 = vunpack.c.l.b16 %v7945
      %v8138 = vunpack.c.l.b16 %v7946
      %v8139 = vunpack.c.l.b16 %v7947
      %v8140 = vunpack.c.l.b16 %v7948
      %v8141 = vunpack.c.l.b16 %v7949
      %v8142 = vunpack.c.l.b16 %v7950
      %v8143 = vunpack.c.l.b16 %v7951
      %v8144 = vunpack.c.l.b16 %v7952
      %v8145 = vunpack.c.l.b16 %v7953
      %v8146 = vunpack.c.l.b16 %v7954
      %v8147 = vunpack.c.l.b16 %v7955
      %v8148 = vunpack.c.l.b16 %v7956
      %v8149 = vunpack.c.l.b16 %v7957
      %v8150 = vunpack.c.l.b16 %v7958
      %v8151 = vunpack.c.l.b16 %v7959
      %v8152 = vunpack.c.l.b16 %v7960
      %v8153 = vunpack.c.l.b16 %v7961
      %v8154 = vunpack.c.l.b16 %v7962
      %v8155 = vunpack.c.l.b16 %v7963
      %v8156 = vunpack.c.l.b16 %v7964
      %v8157 = vunpack.c.l.b16 %v7965
      %v8158 = vunpack.c.l.b16 %v7966
      %v8159 = vunpack.c.l.b16 %v7967
      %v8160 = vunpack.c.l.b16 %v7968
      %v8161 = vunpack.c.l.b16 %v7969
      %v8162 = vunpack.c.l.b16 %v7970
      %v8163 = vunpack.c.l.b16 %v7971
      %v8164 = vunpack.c.l.b16 %v7972
      %v8165 = vunpack.c.l.b16 %v7973
      %v8166 = vunpack.c.l.b16 %v7974
      %v8167 = vpack.c.b16 %v8072, %v8071
      %v8168 = vpack.c.b16 %v8074, %v8073
      %v8169 = vpack.c.b16 %v8076, %v8075
      %v8170 = vpack.c.b16 %v8078, %v8077
      %v8171 = vpack.c.b16 %v8080, %v8079
      %v8172 = vpack.c.b16 %v8082, %v8081
      %v8173 = vpack.c.b16 %v8084, %v8083
      %v8174 = vpack.c.b16 %v8086, %v8085
      %v8175 = vpack.c.b16 %v8088, %v8087
      %v8176 = vpack.c.b16 %v8090, %v8089
      %v8177 = vpack.c.b16 %v8092, %v8091
      %v8178 = vpack.c.b16 %v8094, %v8093
      %v8179 = vpack.c.b16 %v8096, %v8095
      %v8180 = vpack.c.b16 %v8098, %v8097
      %v8181 = vpack.c.b16 %v8100, %v8099
      %v8182 = vpack.c.b16 %v8102, %v8101
      %v8183 = vpack.c.b16 %v8104, %v8103
      %v8184 = vpack.c.b16 %v8106, %v8105
      %v8185 = vpack.c.b16 %v8108, %v8107
      %v8186 = vpack.c.b16 %v8110, %v8109
      %v8187 = vpack.c.b16 %v8112, %v8111
      %v8188 = vpack.c.b16 %v8114, %v8113
      %v8189 = vpack.c.b16 %v8116, %v8115
      %v8190 = vpack.c.b16 %v8118, %v8117
      %v8191 = vpack.c.b16 %v8120, %v8119
      %v8192 = vpack.c.b16 %v8122, %v8121
      %v8193 = vpack.c.b16 %v8124, %v8123
      %v8194 = vpack.c.b16 %v8126, %v8125
      %v8195 = vpack.c.b16 %v8128, %v8127
      %v8196 = vpack.c.b16 %v8130, %v8129
      %v8197 = vpack.c.b16 %v8132, %v8131
      %v8198 = vpack.c.b16 %v8134, %v8133
      %v8199 = vpack.c.b16 %v8136, %v8135
      %v8200 = vpack.c.b16 %v8138, %v8137
      %v8201 = vpack.c.b16 %v8140, %v8139
      %v8202 = vpack.c.b16 %v8142, %v8141
      %v8203 = vpack.c.b16 %v8144, %v8143
      %v8204 = vpack.c.b16 %v8146, %v8145
      %v8205 = vpack.c.b16 %v8148, %v8147
      %v8206 = vpack.c.b16 %v8150, %v8149
      %v8207 = vpack.c.b16 %v8152, %v8151
      %v8208 = vpack.c.b16 %v8154, %v8153
      %v8209 = vpack.c.b16 %v8156, %v8155
      %v8210 = vpack.c.b16 %v8158, %v8157
      %v8211 = vpack.c.b16 %v8160, %v8159
      %v8212 = vpack.c.b16 %v8162, %v8161
      %v8213 = vpack.c.b16 %v8164, %v8163
      %v8214 = vpack.c.b16 %v8166, %v8165
      %8263 = vmatprep.subr.bf16.mxu0 0
      %8264 = vmatpush1.bf16.msra.mxu0 %v8174
      %8265 = vmatprep.subr.bf16.mxu0 0
      %8266 = vmatpush1.bf16.msra.mxu0 %v8173
      %8267 = vmatprep.subr.bf16.mxu0 0
      %8268 = vmatpush1.bf16.msra.mxu0 %v8172
      %8269 = vmatprep.subr.bf16.mxu0 0
      %8270 = vmatpush1.bf16.msra.mxu0 %v8171
      %8271 = vmatprep.subr.bf16.mxu0 0
      %8272 = vmatpush1.bf16.msra.mxu0 %v8170
      %8273 = vmatprep.subr.bf16.mxu0 0
      %8274 = vmatpush1.bf16.msra.mxu0 %v8169
      %8275 = vmatprep.subr.bf16.mxu0 0
      %8276 = vmatpush1.bf16.msra.mxu0 %v8168
      %8277 = vmatprep.subr.bf16.mxu0 0
      %8278 = vmatpush1.bf16.msra.mxu0 %v8167
      %8279 = vmatprep.subr.bf16.mxu0 0
      %8280 = vmatpush2.bf16.msra.mxu0 %v8182
      %8281 = vmatprep.subr.bf16.mxu0 0
      %8282 = vmatpush2.bf16.msra.mxu0 %v8181
      %8283 = vmatprep.subr.bf16.mxu0 0
      %8284 = vmatpush2.bf16.msra.mxu0 %v8180
      %8285 = vmatprep.subr.bf16.mxu0 0
      %8286 = vmatpush2.bf16.msra.mxu0 %v8179
      %8287 = vmatprep.subr.bf16.mxu0 0
      %8288 = vmatpush2.bf16.msra.mxu0 %v8178
      %8289 = vmatprep.subr.bf16.mxu0 0
      %8290 = vmatpush2.bf16.msra.mxu0 %v8177
      %8291 = vmatprep.subr.bf16.mxu0 0
      %8292 = vmatpush2.bf16.msra.mxu0 %v8176
      %8293 = vmatprep.subr.bf16.mxu0 0
      %8294 = vmatpush2.bf16.msra.mxu0 %v8175
      %8295 = vmatprep.mubr.bf16.mxu0 %v7105
      %8296 = vmatmul.mubr.bf16.gmra.mxu0 %v7014
      %v8297 = vpop.f32.mrf.mxu0
      %v8298 = vadd.f32 %v5855, %v8297
      %v8299 = vpop.f32.mrf.mxu0
      %v8300 = vpop.f32.mrf.mxu0
      %v8301 = vadd.f32 %v5855, %v8300
      %v8302 = vpop.f32.mrf.mxu0
      %8303 = vmatprep.mubr.bf16.mxu0 %v7117
      %8304 = vmatmul.mubr.bf16.gmra.mxu0 %v7015
      %v8305 = vpop.f32.mrf.mxu0
      %v8306 = vadd.f32 %v5855, %v8305
      %v8307 = vpop.f32.mrf.mxu0
      %v8308 = vpop.f32.mrf.mxu0
      %v8309 = vadd.f32 %v5855, %v8308
      %v8310 = vpop.f32.mrf.mxu0
      %8311 = vmatprep.mubr.bf16.mxu0 %v7129
      %8312 = vmatmul.mubr.bf16.gmra.mxu0 %v7016
      %v8313 = vpop.f32.mrf.mxu0
      %v8314 = vadd.f32 %v5855, %v8313
      %v8315 = vpop.f32.mrf.mxu0
      %v8316 = vpop.f32.mrf.mxu0
      %v8317 = vadd.f32 %v5855, %v8316
      %v8318 = vpop.f32.mrf.mxu0
      %8319 = vmatprep.mubr.bf16.mxu0 %v7141
      %8320 = vmatmul.mubr.bf16.gmra.mxu0 %v7017
      %v8321 = vpop.f32.mrf.mxu0
      %v8322 = vadd.f32 %v5855, %v8321
      %v8323 = vpop.f32.mrf.mxu0
      %v8324 = vpop.f32.mrf.mxu0
      %v8325 = vadd.f32 %v5855, %v8324
      %v8326 = vpop.f32.mrf.mxu0
      %8327 = vmatprep.mubr.bf16.mxu0 %v7153
      %8328 = vmatmul.mubr.bf16.gmra.mxu0 %v7018
      %v8329 = vpop.f32.mrf.mxu0
      %v8330 = vadd.f32 %v5855, %v8329
      %v8331 = vpop.f32.mrf.mxu0
      %v8332 = vpop.f32.mrf.mxu0
      %v8333 = vadd.f32 %v5855, %v8332
      %v8334 = vpop.f32.mrf.mxu0
      %8335 = vmatprep.mubr.bf16.mxu0 %v7165
      %8336 = vmatmul.mubr.bf16.gmra.mxu0 %v7019
      %v8337 = vpop.f32.mrf.mxu0
      %v8338 = vadd.f32 %v5855, %v8337
      %v8339 = vpop.f32.mrf.mxu0
      %v8340 = vpop.f32.mrf.mxu0
      %v8341 = vadd.f32 %v5855, %v8340
      %v8342 = vpop.f32.mrf.mxu0
      %8343 = vmatprep.mubr.bf16.mxu0 %v7177
      %8344 = vmatmul.mubr.bf16.gmra.mxu0 %v7020
      %v8345 = vpop.f32.mrf.mxu0
      %v8346 = vadd.f32 %v5855, %v8345
      %v8347 = vpop.f32.mrf.mxu0
      %v8348 = vpop.f32.mrf.mxu0
      %v8349 = vadd.f32 %v5855, %v8348
      %v8350 = vpop.f32.mrf.mxu0
      %8351 = vmatprep.mubr.bf16.mxu0 %v7189
      %8352 = vmatmul.mubr.bf16.gmra.mxu0 %v7021
      %v8353 = vpop.f32.mrf.mxu0
      %v8354 = vadd.f32 %v5855, %v8353
      %v8355 = vpop.f32.mrf.mxu0
      %v8356 = vpop.f32.mrf.mxu0
      %v8357 = vadd.f32 %v5855, %v8356
      %v8358 = vpop.f32.mrf.mxu0
      %8359 = vmatprep.mubr.bf16.mxu0 %v7201
      %8360 = vmatmul.mubr.bf16.gmra.mxu0 %v7022
      %v8361 = vpop.f32.mrf.mxu0
      %v8362 = vadd.f32 %v5855, %v8361
      %v8363 = vpop.f32.mrf.mxu0
      %v8364 = vpop.f32.mrf.mxu0
      %v8365 = vadd.f32 %v5855, %v8364
      %v8366 = vpop.f32.mrf.mxu0
      %8367 = vmatprep.mubr.bf16.mxu0 %v7213
      %8368 = vmatmul.mubr.bf16.gmra.mxu0 %v7023
      %v8369 = vpop.f32.mrf.mxu0
      %v8370 = vadd.f32 %v5855, %v8369
      %v8371 = vpop.f32.mrf.mxu0
      %v8372 = vpop.f32.mrf.mxu0
      %v8373 = vadd.f32 %v5855, %v8372
      %v8374 = vpop.f32.mrf.mxu0
      %8375 = vmatprep.mubr.bf16.mxu0 %v7225
      %8376 = vmatmul.mubr.bf16.gmra.mxu0 %v7024
      %v8377 = vpop.f32.mrf.mxu0
      %v8378 = vadd.f32 %v5855, %v8377
      %v8379 = vpop.f32.mrf.mxu0
      %v8380 = vpop.f32.mrf.mxu0
      %v8381 = vadd.f32 %v5855, %v8380
      %v8382 = vpop.f32.mrf.mxu0
      %8383 = vmatprep.mubr.bf16.mxu0 %v7237
      %8384 = vmatmul.mubr.bf16.gmra.mxu0 %v7025
      %v8385 = vpop.f32.mrf.mxu0
      %v8386 = vadd.f32 %v5855, %v8385
      %v8387 = vpop.f32.mrf.mxu0
      %v8388 = vpop.f32.mrf.mxu0
      %v8389 = vadd.f32 %v5855, %v8388
      %v8390 = vpop.f32.mrf.mxu0
      %8391 = vmatprep.mubr.bf16.mxu0 %v7249
      %8392 = vmatmul.mubr.bf16.gmra.mxu0 %v7026
      %v8393 = vpop.f32.mrf.mxu0
      %v8394 = vadd.f32 %v5855, %v8393
      %v8395 = vpop.f32.mrf.mxu0
      %v8396 = vpop.f32.mrf.mxu0
      %v8397 = vadd.f32 %v5855, %v8396
      %v8398 = vpop.f32.mrf.mxu0
      %8399 = vmatprep.mubr.bf16.mxu0 %v7261
      %8400 = vmatmul.mubr.bf16.gmra.mxu0 %v7027
      %v8401 = vpop.f32.mrf.mxu0
      %v8402 = vadd.f32 %v5855, %v8401
      %v8403 = vpop.f32.mrf.mxu0
      %v8404 = vpop.f32.mrf.mxu0
      %v8405 = vadd.f32 %v5855, %v8404
      %v8406 = vpop.f32.mrf.mxu0
      %8407 = vmatprep.mubr.bf16.mxu0 %v7273
      %8408 = vmatmul.mubr.bf16.gmra.mxu0 %v7028
      %v8409 = vpop.f32.mrf.mxu0
      %v8410 = vadd.f32 %v5855, %v8409
      %v8411 = vpop.f32.mrf.mxu0
      %v8412 = vpop.f32.mrf.mxu0
      %v8413 = vadd.f32 %v5855, %v8412
      %v8414 = vpop.f32.mrf.mxu0
      %8415 = vmatprep.mubr.bf16.mxu0 %v7285
      %8416 = vmatmul.mubr.bf16.gmra.mxu0 %v7029
      %v8417 = vpop.f32.mrf.mxu0
      %v8418 = vadd.f32 %v5855, %v8417
      %v8419 = vpop.f32.mrf.mxu0
      %v8420 = vpop.f32.mrf.mxu0
      %v8421 = vadd.f32 %v5855, %v8420
      %v8422 = vpop.f32.mrf.mxu0
      %8423 = vdwg.mxu0
      %8424 = vmatprep.subr.bf16.mxu0 0
      %8425 = vmatpush1.bf16.msra.mxu0 %v8190
      %8426 = vmatprep.subr.bf16.mxu0 0
      %8427 = vmatpush1.bf16.msra.mxu0 %v8189
      %8428 = vmatprep.subr.bf16.mxu0 0
      %8429 = vmatpush1.bf16.msra.mxu0 %v8188
      %8430 = vmatprep.subr.bf16.mxu0 0
      %8431 = vmatpush1.bf16.msra.mxu0 %v8187
      %8432 = vmatprep.subr.bf16.mxu0 0
      %8433 = vmatpush1.bf16.msra.mxu0 %v8186
      %8434 = vmatprep.subr.bf16.mxu0 0
      %8435 = vmatpush1.bf16.msra.mxu0 %v8185
      %8436 = vmatprep.subr.bf16.mxu0 0
      %8437 = vmatpush1.bf16.msra.mxu0 %v8184
      %8438 = vmatprep.subr.bf16.mxu0 0
      %8439 = vmatpush1.bf16.msra.mxu0 %v8183
      %8440 = vmatprep.subr.bf16.mxu0 0
      %8441 = vmatpush2.bf16.msra.mxu0 %v8198
      %8442 = vmatprep.subr.bf16.mxu0 0
      %8443 = vmatpush2.bf16.msra.mxu0 %v8197
      %8444 = vmatprep.subr.bf16.mxu0 0
      %8445 = vmatpush2.bf16.msra.mxu0 %v8196
      %8446 = vmatprep.subr.bf16.mxu0 0
      %8447 = vmatpush2.bf16.msra.mxu0 %v8195
      %8448 = vmatprep.subr.bf16.mxu0 0
      %8449 = vmatpush2.bf16.msra.mxu0 %v8194
      %8450 = vmatprep.subr.bf16.mxu0 0
      %8451 = vmatpush2.bf16.msra.mxu0 %v8193
      %8452 = vmatprep.subr.bf16.mxu0 0
      %8453 = vmatpush2.bf16.msra.mxu0 %v8192
      %8454 = vmatprep.subr.bf16.mxu0 0
      %8455 = vmatpush2.bf16.msra.mxu0 %v8191
      %8456 = vmatprep.mubr.bf16.mxu0 %v7478
      %8457 = vmatmul.mubr.bf16.gmra.mxu0 %v7352
      %v8458 = vpop.f32.mrf.mxu0
      %v8459 = vadd.f32 %v8298, %v8458
      %v8460 = vpop.f32.mrf.mxu0
      %v8461 = vpop.f32.mrf.mxu0
      %v8462 = vadd.f32 %v8301, %v8461
      %v8463 = vpop.f32.mrf.mxu0
      %8464 = vmatprep.mubr.bf16.mxu0 %v7479
      %8465 = vmatmul.mubr.bf16.gmra.mxu0 %v7355
      %v8466 = vpop.f32.mrf.mxu0
      %v8467 = vadd.f32 %v8306, %v8466
      %v8468 = vpop.f32.mrf.mxu0
      %v8469 = vpop.f32.mrf.mxu0
      %v8470 = vadd.f32 %v8309, %v8469
      %v8471 = vpop.f32.mrf.mxu0
      %8472 = vmatprep.mubr.bf16.mxu0 %v7480
      %8473 = vmatmul.mubr.bf16.gmra.mxu0 %v7358
      %v8474 = vpop.f32.mrf.mxu0
      %v8475 = vadd.f32 %v8314, %v8474
      %v8476 = vpop.f32.mrf.mxu0
      %v8477 = vpop.f32.mrf.mxu0
      %v8478 = vadd.f32 %v8317, %v8477
      %v8479 = vpop.f32.mrf.mxu0
      %8480 = vmatprep.mubr.bf16.mxu0 %v7481
      %8481 = vmatmul.mubr.bf16.gmra.mxu0 %v7361
      %v8482 = vpop.f32.mrf.mxu0
      %v8483 = vadd.f32 %v8322, %v8482
      %v8484 = vpop.f32.mrf.mxu0
      %v8485 = vpop.f32.mrf.mxu0
      %v8486 = vadd.f32 %v8325, %v8485
      %v8487 = vpop.f32.mrf.mxu0
      %8488 = vmatprep.mubr.bf16.mxu0 %v7482
      %8489 = vmatmul.mubr.bf16.gmra.mxu0 %v7364
      %v8490 = vpop.f32.mrf.mxu0
      %v8491 = vadd.f32 %v8330, %v8490
      %v8492 = vpop.f32.mrf.mxu0
      %v8493 = vpop.f32.mrf.mxu0
      %v8494 = vadd.f32 %v8333, %v8493
      %v8495 = vpop.f32.mrf.mxu0
      %8496 = vmatprep.mubr.bf16.mxu0 %v7483
      %8497 = vmatmul.mubr.bf16.gmra.mxu0 %v7367
      %v8498 = vpop.f32.mrf.mxu0
      %v8499 = vadd.f32 %v8338, %v8498
      %v8500 = vpop.f32.mrf.mxu0
      %v8501 = vpop.f32.mrf.mxu0
      %v8502 = vadd.f32 %v8341, %v8501
      %v8503 = vpop.f32.mrf.mxu0
      %8504 = vmatprep.mubr.bf16.mxu0 %v7484
      %8505 = vmatmul.mubr.bf16.gmra.mxu0 %v7370
      %v8506 = vpop.f32.mrf.mxu0
      %v8507 = vadd.f32 %v8346, %v8506
      %v8508 = vpop.f32.mrf.mxu0
      %v8509 = vpop.f32.mrf.mxu0
      %v8510 = vadd.f32 %v8349, %v8509
      %v8511 = vpop.f32.mrf.mxu0
      %8512 = vmatprep.mubr.bf16.mxu0 %v7485
      %8513 = vmatmul.mubr.bf16.gmra.mxu0 %v7373
      %v8514 = vpop.f32.mrf.mxu0
      %v8515 = vadd.f32 %v8354, %v8514
      %v8516 = vpop.f32.mrf.mxu0
      %v8517 = vpop.f32.mrf.mxu0
      %v8518 = vadd.f32 %v8357, %v8517
      %v8519 = vpop.f32.mrf.mxu0
      %8520 = vmatprep.mubr.bf16.mxu0 %v7486
      %8521 = vmatmul.mubr.bf16.gmra.mxu0 %v7376
      %v8522 = vpop.f32.mrf.mxu0
      %v8523 = vadd.f32 %v8362, %v8522
      %v8524 = vpop.f32.mrf.mxu0
      %v8525 = vpop.f32.mrf.mxu0
      %v8526 = vadd.f32 %v8365, %v8525
      %v8527 = vpop.f32.mrf.mxu0
      %8528 = vmatprep.mubr.bf16.mxu0 %v7487
      %8529 = vmatmul.mubr.bf16.gmra.mxu0 %v7379
      %v8530 = vpop.f32.mrf.mxu0
      %v8531 = vadd.f32 %v8370, %v8530
      %v8532 = vpop.f32.mrf.mxu0
      %v8533 = vpop.f32.mrf.mxu0
      %v8534 = vadd.f32 %v8373, %v8533
      %v8535 = vpop.f32.mrf.mxu0
      %8536 = vmatprep.mubr.bf16.mxu0 %v7488
      %8537 = vmatmul.mubr.bf16.gmra.mxu0 %v7382
      %v8538 = vpop.f32.mrf.mxu0
      %v8539 = vadd.f32 %v8378, %v8538
      %v8540 = vpop.f32.mrf.mxu0
      %v8541 = vpop.f32.mrf.mxu0
      %v8542 = vadd.f32 %v8381, %v8541
      %v8543 = vpop.f32.mrf.mxu0
      %8544 = vmatprep.mubr.bf16.mxu0 %v7489
      %8545 = vmatmul.mubr.bf16.gmra.mxu0 %v7385
      %v8546 = vpop.f32.mrf.mxu0
      %v8547 = vadd.f32 %v8386, %v8546
      %v8548 = vpop.f32.mrf.mxu0
      %v8549 = vpop.f32.mrf.mxu0
      %v8550 = vadd.f32 %v8389, %v8549
      %v8551 = vpop.f32.mrf.mxu0
      %8552 = vmatprep.mubr.bf16.mxu0 %v7490
      %8553 = vmatmul.mubr.bf16.gmra.mxu0 %v7388
      %v8554 = vpop.f32.mrf.mxu0
      %v8555 = vadd.f32 %v8394, %v8554
      %v8556 = vpop.f32.mrf.mxu0
      %v8557 = vpop.f32.mrf.mxu0
      %v8558 = vadd.f32 %v8397, %v8557
      %v8559 = vpop.f32.mrf.mxu0
      %8560 = vmatprep.mubr.bf16.mxu0 %v7491
      %8561 = vmatmul.mubr.bf16.gmra.mxu0 %v7391
      %v8562 = vpop.f32.mrf.mxu0
      %v8563 = vadd.f32 %v8402, %v8562
      %v8564 = vpop.f32.mrf.mxu0
      %v8565 = vpop.f32.mrf.mxu0
      %v8566 = vadd.f32 %v8405, %v8565
      %v8567 = vpop.f32.mrf.mxu0
      %8568 = vmatprep.mubr.bf16.mxu0 %v7492
      %8569 = vmatmul.mubr.bf16.gmra.mxu0 %v7394
      %v8570 = vpop.f32.mrf.mxu0
      %v8571 = vadd.f32 %v8410, %v8570
      %v8572 = vpop.f32.mrf.mxu0
      %v8573 = vpop.f32.mrf.mxu0
      %v8574 = vadd.f32 %v8413, %v8573
      %v8575 = vpop.f32.mrf.mxu0
      %8576 = vmatprep.mubr.bf16.mxu0 %v7493
      %8577 = vmatmul.mubr.bf16.gmra.mxu0 %v7397
      %v8578 = vpop.f32.mrf.mxu0
      %v8579 = vadd.f32 %v8418, %v8578
      %v8580 = vpop.f32.mrf.mxu0
      %v8581 = vpop.f32.mrf.mxu0
      %v8582 = vadd.f32 %v8421, %v8581
      %v8583 = vpop.f32.mrf.mxu0
      %8584 = vdwg.mxu0
      %8585 = vmatprep.subr.bf16.mxu0 0
      %8586 = vmatpush1.bf16.msra.mxu0 %v8206
      %8587 = vmatprep.subr.bf16.mxu0 0
      %8588 = vmatpush1.bf16.msra.mxu0 %v8205
      %8589 = vmatprep.subr.bf16.mxu0 0
      %8590 = vmatpush1.bf16.msra.mxu0 %v8204
      %8591 = vmatprep.subr.bf16.mxu0 0
      %8592 = vmatpush1.bf16.msra.mxu0 %v8203
      %8593 = vmatprep.subr.bf16.mxu0 0
      %8594 = vmatpush1.bf16.msra.mxu0 %v8202
      %8595 = vmatprep.subr.bf16.mxu0 0
      %8596 = vmatpush1.bf16.msra.mxu0 %v8201
      %8597 = vmatprep.subr.bf16.mxu0 0
      %8598 = vmatpush1.bf16.msra.mxu0 %v8200
      %8599 = vmatprep.subr.bf16.mxu0 0
      %8600 = vmatpush1.bf16.msra.mxu0 %v8199
      %8601 = vmatprep.subr.bf16.mxu0 0
      %8602 = vmatpush2.bf16.msra.mxu0 %v8214
      %8603 = vmatprep.subr.bf16.mxu0 0
      %8604 = vmatpush2.bf16.msra.mxu0 %v8213
      %8605 = vmatprep.subr.bf16.mxu0 0
      %8606 = vmatpush2.bf16.msra.mxu0 %v8212
      %8607 = vmatprep.subr.bf16.mxu0 0
      %8608 = vmatpush2.bf16.msra.mxu0 %v8211
      %8609 = vmatprep.subr.bf16.mxu0 0
      %8610 = vmatpush2.bf16.msra.mxu0 %v8210
      %8611 = vmatprep.subr.bf16.mxu0 0
      %8612 = vmatpush2.bf16.msra.mxu0 %v8209
      %8613 = vmatprep.subr.bf16.mxu0 0
      %8614 = vmatpush2.bf16.msra.mxu0 %v8208
      %8615 = vmatprep.subr.bf16.mxu0 0
      %8616 = vmatpush2.bf16.msra.mxu0 %v8207
      %8617 = vmatprep.mubr.bf16.mxu0 %v7816
      %8618 = vmatmul.mubr.bf16.gmra.mxu0 %v7569
      %v8619 = vpop.f32.mrf.mxu0
      %v8620 = vadd.f32 %v8459, %v8619
      %v8621 = vpop.f32.mrf.mxu0
      %v8622 = vpop.f32.mrf.mxu0
      %v8623 = vadd.f32 %v8462, %v8622
      %v8624 = vpop.f32.mrf.mxu0
      %8625 = vmatprep.mubr.bf16.mxu0 %v7819
      %8626 = vmatmul.mubr.bf16.gmra.mxu0 %v7581
      %v8627 = vpop.f32.mrf.mxu0
      %v8628 = vadd.f32 %v8467, %v8627
      %v8629 = vpop.f32.mrf.mxu0
      %v8630 = vpop.f32.mrf.mxu0
      %v8631 = vadd.f32 %v8470, %v8630
      %v8632 = vpop.f32.mrf.mxu0
      %8633 = vmatprep.mubr.bf16.mxu0 %v7822
      %8634 = vmatmul.mubr.bf16.gmra.mxu0 %v7593
      %v8635 = vpop.f32.mrf.mxu0
      %v8636 = vadd.f32 %v8475, %v8635
      %v8637 = vpop.f32.mrf.mxu0
      %v8638 = vpop.f32.mrf.mxu0
      %v8639 = vadd.f32 %v8478, %v8638
      %v8640 = vpop.f32.mrf.mxu0
      %8641 = vmatprep.mubr.bf16.mxu0 %v7825
      %8642 = vmatmul.mubr.bf16.gmra.mxu0 %v7605
      %v8643 = vpop.f32.mrf.mxu0
      %v8644 = vadd.f32 %v8483, %v8643
      %v8645 = vpop.f32.mrf.mxu0
      %v8646 = vpop.f32.mrf.mxu0
      %v8647 = vadd.f32 %v8486, %v8646
      %v8648 = vpop.f32.mrf.mxu0
      %8649 = vmatprep.mubr.bf16.mxu0 %v7828
      %8650 = vmatmul.mubr.bf16.gmra.mxu0 %v7617
      %v8651 = vpop.f32.mrf.mxu0
      %v8652 = vadd.f32 %v8491, %v8651
      %v8653 = vpop.f32.mrf.mxu0
      %v8654 = vpop.f32.mrf.mxu0
      %v8655 = vadd.f32 %v8494, %v8654
      %v8656 = vpop.f32.mrf.mxu0
      %8657 = vmatprep.mubr.bf16.mxu0 %v7831
      %8658 = vmatmul.mubr.bf16.gmra.mxu0 %v7629
      %v8659 = vpop.f32.mrf.mxu0
      %v8660 = vadd.f32 %v8499, %v8659
      %v8661 = vpop.f32.mrf.mxu0
      %v8662 = vpop.f32.mrf.mxu0
      %v8663 = vadd.f32 %v8502, %v8662
      %v8664 = vpop.f32.mrf.mxu0
      %8665 = vmatprep.mubr.bf16.mxu0 %v7834
      %8666 = vmatmul.mubr.bf16.gmra.mxu0 %v7641
      %v8667 = vpop.f32.mrf.mxu0
      %v8668 = vadd.f32 %v8507, %v8667
      %v8669 = vpop.f32.mrf.mxu0
      %v8670 = vpop.f32.mrf.mxu0
      %v8671 = vadd.f32 %v8510, %v8670
      %v8672 = vpop.f32.mrf.mxu0
      %8673 = vmatprep.mubr.bf16.mxu0 %v7837
      %8674 = vmatmul.mubr.bf16.gmra.mxu0 %v7653
      %v8675 = vpop.f32.mrf.mxu0
      %v8676 = vadd.f32 %v8515, %v8675
      %v8677 = vpop.f32.mrf.mxu0
      %v8678 = vpop.f32.mrf.mxu0
      %v8679 = vadd.f32 %v8518, %v8678
      %v8680 = vpop.f32.mrf.mxu0
      %8681 = vmatprep.mubr.bf16.mxu0 %v7840
      %8682 = vmatmul.mubr.bf16.gmra.mxu0 %v7665
      %v8683 = vpop.f32.mrf.mxu0
      %v8684 = vadd.f32 %v8523, %v8683
      %v8685 = vpop.f32.mrf.mxu0
      %v8686 = vpop.f32.mrf.mxu0
      %v8687 = vadd.f32 %v8526, %v8686
      %v8688 = vpop.f32.mrf.mxu0
      %8689 = vmatprep.mubr.bf16.mxu0 %v7843
      %8690 = vmatmul.mubr.bf16.gmra.mxu0 %v7677
      %v8691 = vpop.f32.mrf.mxu0
      %v8692 = vadd.f32 %v8531, %v8691
      %v8693 = vpop.f32.mrf.mxu0
      %v8694 = vpop.f32.mrf.mxu0
      %v8695 = vadd.f32 %v8534, %v8694
      %v8696 = vpop.f32.mrf.mxu0
      %8697 = vmatprep.mubr.bf16.mxu0 %v7846
      %8698 = vmatmul.mubr.bf16.gmra.mxu0 %v7689
      %v8699 = vpop.f32.mrf.mxu0
      %v8700 = vadd.f32 %v8539, %v8699
      %v8701 = vpop.f32.mrf.mxu0
      %v8702 = vpop.f32.mrf.mxu0
      %v8703 = vadd.f32 %v8542, %v8702
      %v8704 = vpop.f32.mrf.mxu0
      %8705 = vmatprep.mubr.bf16.mxu0 %v7849
      %8706 = vmatmul.mubr.bf16.gmra.mxu0 %v7701
      %v8707 = vpop.f32.mrf.mxu0
      %v8708 = vadd.f32 %v8547, %v8707
      %v8709 = vpop.f32.mrf.mxu0
      %v8710 = vpop.f32.mrf.mxu0
      %v8711 = vadd.f32 %v8550, %v8710
      %v8712 = vpop.f32.mrf.mxu0
      %8713 = vmatprep.mubr.bf16.mxu0 %v7852
      %8714 = vmatmul.mubr.bf16.gmra.mxu0 %v7713
      %v8715 = vpop.f32.mrf.mxu0
      %v8716 = vadd.f32 %v8555, %v8715
      %v8717 = vpop.f32.mrf.mxu0
      %v8718 = vpop.f32.mrf.mxu0
      %v8719 = vadd.f32 %v8558, %v8718
      %v8720 = vpop.f32.mrf.mxu0
      %8721 = vmatprep.mubr.bf16.mxu0 %v7855
      %8722 = vmatmul.mubr.bf16.gmra.mxu0 %v7725
      %v8723 = vpop.f32.mrf.mxu0
      %v8724 = vadd.f32 %v8563, %v8723
      %v8725 = vpop.f32.mrf.mxu0
      %v8726 = vpop.f32.mrf.mxu0
      %v8727 = vadd.f32 %v8566, %v8726
      %v8728 = vpop.f32.mrf.mxu0
      %8729 = vmatprep.mubr.bf16.mxu0 %v7858
      %8730 = vmatmul.mubr.bf16.gmra.mxu0 %v7737
      %v8731 = vpop.f32.mrf.mxu0
      %v8732 = vadd.f32 %v8571, %v8731
      %v8733 = vpop.f32.mrf.mxu0
      %v8734 = vpop.f32.mrf.mxu0
      %v8735 = vadd.f32 %v8574, %v8734
      %v8736 = vpop.f32.mrf.mxu0
      %8737 = vmatprep.mubr.bf16.mxu0 %v7861
      %8738 = vmatmul.mubr.bf16.gmra.mxu0 %v7749
      %v8739 = vpop.f32.mrf.mxu0
      %v8740 = vadd.f32 %v8579, %v8739
      %v8741 = vpop.f32.mrf.mxu0
      %v8742 = vpop.f32.mrf.mxu0
      %v8743 = vadd.f32 %v8582, %v8742
      %v8744 = vpop.f32.mrf.mxu0
      %8745 = vdwg.mxu0
      %v8746 = vmax.f32 %v8620, 0.0
      %v8747 = vmax.f32 %v8623, 0.0
      %v8748 = vmax.f32 %v8628, 0.0
      %v8749 = vmax.f32 %v8631, 0.0
      %v8750 = vmax.f32 %v8636, 0.0
      %v8751 = vmax.f32 %v8639, 0.0
      %v8752 = vmax.f32 %v8644, 0.0
      %v8753 = vmax.f32 %v8647, 0.0
      %v8754 = vmax.f32 %v8652, 0.0
      %v8755 = vmax.f32 %v8655, 0.0
      %v8756 = vmax.f32 %v8660, 0.0
      %v8757 = vmax.f32 %v8663, 0.0
      %v8758 = vmax.f32 %v8668, 0.0
      %v8759 = vmax.f32 %v8671, 0.0
      %v8760 = vmax.f32 %v8676, 0.0
      %v8761 = vmax.f32 %v8679, 0.0
      %v8762 = vmax.f32 %v8684, 0.0
      %v8763 = vmax.f32 %v8687, 0.0
      %v8764 = vmax.f32 %v8692, 0.0
      %v8765 = vmax.f32 %v8695, 0.0
      %v8766 = vmax.f32 %v8700, 0.0
      %v8767 = vmax.f32 %v8703, 0.0
      %v8768 = vmax.f32 %v8708, 0.0
      %v8769 = vmax.f32 %v8711, 0.0
      %v8770 = vmax.f32 %v8716, 0.0
      %v8771 = vmax.f32 %v8719, 0.0
      %v8772 = vmax.f32 %v8724, 0.0
      %v8773 = vmax.f32 %v8727, 0.0
      %v8774 = vmax.f32 %v8732, 0.0
      %v8775 = vmax.f32 %v8735, 0.0
      %v8776 = vmax.f32 %v8740, 0.0
      %v8777 = vmax.f32 %v8743, 0.0
      %v8778 = vpack.c.bf16 %v8747, %v8746
      %v8779 = vpack.c.bf16 %v8749, %v8748
      %v8780 = vpack.c.bf16 %v8751, %v8750
      %v8781 = vpack.c.bf16 %v8753, %v8752
      %v8782 = vpack.c.bf16 %v8755, %v8754
      %v8783 = vpack.c.bf16 %v8757, %v8756
      %v8784 = vpack.c.bf16 %v8759, %v8758
      %v8785 = vpack.c.bf16 %v8761, %v8760
      %v8786 = vpack.c.bf16 %v8763, %v8762
      %v8787 = vpack.c.bf16 %v8765, %v8764
      %v8788 = vpack.c.bf16 %v8767, %v8766
      %v8789 = vpack.c.bf16 %v8769, %v8768
      %v8790 = vpack.c.bf16 %v8771, %v8770
      %v8791 = vpack.c.bf16 %v8773, %v8772
      %v8792 = vpack.c.bf16 %v8775, %v8774
      %v8793 = vpack.c.bf16 %v8777, %v8776
      %v8810 = vunpack.c.l.b16 %v8778
      %v8811 = vunpack.c.h.b16 %v8778
      %v8812 = vunpack.c.l.b16 %v8779
      %v8813 = vunpack.c.h.b16 %v8779
      %v8814 = vunpack.c.l.b16 %v8780
      %v8815 = vunpack.c.h.b16 %v8780
      %v8816 = vunpack.c.l.b16 %v8781
      %v8817 = vunpack.c.h.b16 %v8781
      %v8818 = vunpack.c.l.b16 %v8782
      %v8819 = vunpack.c.h.b16 %v8782
      %v8820 = vunpack.c.l.b16 %v8783
      %v8821 = vunpack.c.h.b16 %v8783
      %v8822 = vunpack.c.l.b16 %v8784
      %v8823 = vunpack.c.h.b16 %v8784
      %v8824 = vunpack.c.l.b16 %v8785
      %v8825 = vunpack.c.h.b16 %v8785
      %v8826 = vunpack.c.l.b16 %v8786
      %v8827 = vunpack.c.h.b16 %v8786
      %v8828 = vunpack.c.l.b16 %v8787
      %v8829 = vunpack.c.h.b16 %v8787
      %v8830 = vunpack.c.l.b16 %v8788
      %v8831 = vunpack.c.h.b16 %v8788
      %v8832 = vunpack.c.l.b16 %v8789
      %v8833 = vunpack.c.h.b16 %v8789
      %v8834 = vunpack.c.l.b16 %v8790
      %v8835 = vunpack.c.h.b16 %v8790
      %v8836 = vunpack.c.l.b16 %v8791
      %v8837 = vunpack.c.h.b16 %v8791
      %v8838 = vunpack.c.l.b16 %v8792
      %v8839 = vunpack.c.h.b16 %v8792
      %v8840 = vunpack.c.l.b16 %v8793
      %v8841 = vunpack.c.h.b16 %v8793
      %v8842 = vpack.c.b16 %v8810, %v8810
      %v8843 = vpack.c.b16 %v8811, %v8811
      %v8844 = vpack.c.b16 %v8812, %v8812
      %v8845 = vpack.c.b16 %v8813, %v8813
      %v8846 = vpack.c.b16 %v8814, %v8814
      %v8847 = vpack.c.b16 %v8815, %v8815
      %v8848 = vpack.c.b16 %v8816, %v8816
      %v8849 = vpack.c.b16 %v8817, %v8817
      %v8850 = vpack.c.b16 %v8818, %v8818
      %v8851 = vpack.c.b16 %v8819, %v8819
      %v8852 = vpack.c.b16 %v8820, %v8820
      %v8853 = vpack.c.b16 %v8821, %v8821
      %v8854 = vpack.c.b16 %v8822, %v8822
      %v8855 = vpack.c.b16 %v8823, %v8823
      %v8856 = vpack.c.b16 %v8824, %v8824
      %v8857 = vpack.c.b16 %v8825, %v8825
      %v8858 = vpack.c.b16 %v8826, %v8826
      %v8859 = vpack.c.b16 %v8827, %v8827
      %v8860 = vpack.c.b16 %v8828, %v8828
      %v8861 = vpack.c.b16 %v8829, %v8829
      %v8862 = vpack.c.b16 %v8830, %v8830
      %v8863 = vpack.c.b16 %v8831, %v8831
      %v8864 = vpack.c.b16 %v8832, %v8832
      %v8865 = vpack.c.b16 %v8833, %v8833
      %v8866 = vpack.c.b16 %v8834, %v8834
      %v8867 = vpack.c.b16 %v8835, %v8835
      %v8868 = vpack.c.b16 %v8836, %v8836
      %v8869 = vpack.c.b16 %v8837, %v8837
      %v8870 = vpack.c.b16 %v8838, %v8838
      %v8871 = vpack.c.b16 %v8839, %v8839
      %v8872 = vpack.c.b16 %v8840, %v8840
      %v8873 = vpack.c.b16 %v8841, %v8841
      %s8906 = scalar_lea.vmem %s224, 8
      %8907 = vst.msk [vmem:[%s8906] sm:$0xf] %vm6788, %v8842
      %8908 = vst.msk [vmem:[%s8906 + $0x4] sm:$0xf] %vm6788, %v8843
      %8909 = vst.msk [vmem:[%s8906 + $0x10] sm:$0xf] %vm6788, %v8844
      %8910 = vst.msk [vmem:[%s8906 + $0x14] sm:$0xf] %vm6788, %v8845
      %8911 = vst.msk [vmem:[%s8906 + $0x20] sm:$0xf] %vm6788, %v8846
      %8912 = vst.msk [vmem:[%s8906 + $0x24] sm:$0xf] %vm6788, %v8847
      %8913 = vst.msk [vmem:[%s8906 + $0x30] sm:$0xf] %vm6788, %v8848
      %8914 = vst.msk [vmem:[%s8906 + $0x34] sm:$0xf] %vm6788, %v8849
      %8915 = vst.msk [vmem:[%s8906 + $0x40] sm:$0xf] %vm6788, %v8850
      %8916 = vst.msk [vmem:[%s8906 + $0x44] sm:$0xf] %vm6788, %v8851
      %8917 = vst.msk [vmem:[%s8906 + $0x50] sm:$0xf] %vm6788, %v8852
      %8918 = vst.msk [vmem:[%s8906 + $0x54] sm:$0xf] %vm6788, %v8853
      %8919 = vst.msk [vmem:[%s8906 + $0x60] sm:$0xf] %vm6788, %v8854
      %8920 = vst.msk [vmem:[%s8906 + $0x64] sm:$0xf] %vm6788, %v8855
      %8921 = vst.msk [vmem:[%s8906 + $0x70] sm:$0xf] %vm6788, %v8856
      %8922 = vst.msk [vmem:[%s8906 + $0x74] sm:$0xf] %vm6788, %v8857
      %8923 = vst.msk [vmem:[%s8906 + $0x80] sm:$0xf] %vm6788, %v8858
      %8924 = vst.msk [vmem:[%s8906 + $0x84] sm:$0xf] %vm6788, %v8859
      %8925 = vst.msk [vmem:[%s8906 + $0x90] sm:$0xf] %vm6788, %v8860
      %8926 = vst.msk [vmem:[%s8906 + $0x94] sm:$0xf] %vm6788, %v8861
      %8927 = vst.msk [vmem:[%s8906 + $0xa0] sm:$0xf] %vm6788, %v8862
      %8928 = vst.msk [vmem:[%s8906 + $0xa4] sm:$0xf] %vm6788, %v8863
      %8929 = vst.msk [vmem:[%s8906 + $0xb0] sm:$0xf] %vm6788, %v8864
      %8930 = vst.msk [vmem:[%s8906 + $0xb4] sm:$0xf] %vm6788, %v8865
      %8931 = vst.msk [vmem:[%s8906 + $0xc0] sm:$0xf] %vm6788, %v8866
      %8932 = vst.msk [vmem:[%s8906 + $0xc4] sm:$0xf] %vm6788, %v8867
      %8933 = vst.msk [vmem:[%s8906 + $0xd0] sm:$0xf] %vm6788, %v8868
      %8934 = vst.msk [vmem:[%s8906 + $0xd4] sm:$0xf] %vm6788, %v8869
      %8935 = vst.msk [vmem:[%s8906 + $0xe0] sm:$0xf] %vm6788, %v8870
      %8936 = vst.msk [vmem:[%s8906 + $0xe4] sm:$0xf] %vm6788, %v8871
      %8937 = vst.msk [vmem:[%s8906 + $0xf0] sm:$0xf] %vm6788, %v8872
      %8938 = vst.msk [vmem:[%s8906 + $0xf4] sm:$0xf] %vm6788, %v8873
      %p8939 = scmp.lt.s32.totalorder %s16, 1
      %s8940 = scalar_select %p8939, %s16, 1
      %s8941 = smul.addr %s8940, 64
      %s8942 = smul.addr %s8941, 4
      %s8943 = scalar_lea.vmem %s5, %s8942
      // Predicated region
      $region41: #{_forward.3} parent=39 // pred_check
        %p8944 = pneg %p144
      $region42: #{_forward.3} parent=39 // pred_check_branch
        %8946 = sbr.rel (%p8944) target = $region44
      $region43: #{_forward.3} parent=39 // pred_region
        _
      $region44: #{_forward.3} parent=39 // pred_fallthru
        _
    $region40: #{_forward.3} parent=5 // pred_fallthru
      _
    %p8947 = scmp.le.s32.totalorder 2, %s11
    // Predicated region
    $region45: #{_forward.3} parent=5 // pred_check
      %p8948 = pneg %p8947
    $region46: #{_forward.3} parent=5 // pred_check_branch
      %8950 = sbr.rel (%p8948) target = $region48
    $region47: #{_forward.3} parent=5 // pred_region
      %s8951 = ssub.s32 %s11, 2
      // Predicated region
      $region49: #{_forward.3} parent=47 // pred_check
        %p8952 = pneg %p150
      $region50: #{_forward.3} parent=47 // pred_check_branch
        %8954 = sbr.rel (%p8952) target = $region52
      $region51: #{_forward.3} parent=47 // pred_region
        %p8955 = scmp.lt.s32.totalorder %s17, 1
        %s8956 = scalar_select %p8955, %s17, 1
        %s8957 = smul.addr %s8956, 64
        %s8958 = smul.addr %s8957, 4
        %s8959 = scalar_lea.vmem %s5, %s8958
      $region52: #{_forward.3} parent=47 // pred_fallthru
        _
    $region48: #{_forward.3} parent=5 // pred_fallthru
      _
  $region6: #{_forward.3} parent=0 // loop_footer
    %s15 = sadd.s32 1, %s11
  $region7: #{_forward.3} parent=0 // loop_footer_branch
    %10 = sbr.rel target = $region3
  $region8: #{_forward.3} parent=0 // loop_exit
    _

</llo_original>
